<compile_context>
chip_gen: v5e
topology: v5e:2x2
jax: 0.10.0
libtpu: 0.0.40
codegen_flags: <defaults>
</compile_context>

<pallas_src>
import functools

import jax
import jax.numpy as jnp
from jax import lax
from jax.experimental import pallas as pl
from jax.experimental.pallas import tpu as pltpu


# ------------------------------ generation-aware knobs ------------------------------

def _vmem_limit_bytes():
    """~70% of per-core physical VMEM (v7x: 64 MiB -> ~45 MiB; v5e/v6e: -> ~90 MiB)."""
    cap = 64 << 20  # conservative fallback (v7x-sized)
    try:
        cap = int(pltpu.get_tpu_info().vmem_capacity_bytes)
    except Exception:  # noqa: BLE001 - best-effort hardware query
        pass
    return int(min(cap * 0.7, 96 << 20))


def _target_batch_tile():
    """MXU-saturating batch tile: 128 rows on v5 (128x128 MXU), 256 on v6e/v7x."""
    kind = ""
    try:
        kind = jax.devices()[0].device_kind.lower()
    except Exception:  # noqa: BLE001
        pass
    return 128 if "v5" in kind else 256


def _round_up(x, m):
    return ((x + m - 1) // m) * m


def _choose_nb(n):
    """Batch-tile rows per grid step.

    Multiple of 16 (bf16 sublane packing); capped at the MXU-saturating target; shrunk
    for small N so the 'parallel' grid axis gives work to both v7x TensorCores.
    """
    target = _target_batch_tile()
    return min(target, max(16, _round_up(-(-n // 2), 16)))


# ----------------------------------- kernels ----------------------------------------

def _aux_kernel_p1(pooled_ref, w1_ref, b1_ref, w2_ref, b2_ref, wfc_ref, bfc_ref,
                   o_ref, y1_scr, *, nb, t, c1):
    """Fast path: conv_2 output is 1x1 (production InceptionV3 aux shape).

    pooled_ref: (T*NB, Cin) bf16, rows ordered (tap, image)
    w1_ref:     (Cin, 128)  bf16, BN scale folded in
    w2_ref:     (T*128, 768) bf16, BN scale / p2 folded in, rows ordered (tap, chan)
    wfc_ref:    (768, Cpad) bf16
    y1_scr:     (NB, T*128) bf16 VMEM scratch
    o_ref:      (NB, Cpad)  f32
    """
    b1 = b1_ref[...]
    # conv_1 (1x1) + shift + ReLU per tap; write each tap's (NB,128) block into its
    # 128-lane slot of the scratch (static, aligned stores; no cross-lane reshape).
    for tt in range(t):
        xt = pooled_ref[tt * nb:(tt + 1) * nb, :]
        y1t = jnp.dot(xt, w1_ref[...], preferred_element_type=jnp.float32)
        y1_scr[:, tt * c1:(tt + 1) * c1] = jnp.maximum(y1t + b1, 0.0).astype(jnp.bfloat16)

    # conv_2 (5x5 valid, single output pixel) + GAP as ONE K = T*128 MXU matmul.
    z = jnp.dot(y1_scr[...], w2_ref[...], preferred_element_type=jnp.float32)
    z = jnp.maximum(z + b2_ref[...], 0.0)                               # (NB, 768) f32

    # fc (lane-padded output).
    out = jnp.dot(z.astype(jnp.bfloat16), wfc_ref[...],
                  preferred_element_type=jnp.float32)
    o_ref[...] = out + bfc_ref[...]


def _aux_kernel_gen(pooled_ref, w1_ref, b1_ref, w2_ref, b2_ref, wfc_ref, bfc_ref,
                    o_ref, acc_scr, *, nb, ho, wo, k2, c1):
    """General path (conv_2 output larger than 1x1): per-tap accumulation into a VMEM
    f32 scratch (one (NB, 768) accumulator per output pixel)."""
    ho2 = ho - k2 + 1
    wo2 = wo - k2 + 1
    p2 = ho2 * wo2
    c2 = w2_ref.shape[-1]
    b1 = b1_ref[...]

    acc_scr[...] = jnp.zeros_like(acc_scr)                              # (p2, NB, c2)
    for hh in range(ho):
        for ww in range(wo):
            tt = hh * wo + ww
            xt = pooled_ref[tt * nb:(tt + 1) * nb, :]
            y1t = jnp.maximum(
                jnp.dot(xt, w1_ref[...], preferred_element_type=jnp.float32) + b1,
                0.0).astype(jnp.bfloat16)                               # (NB, 128)
            for kh in range(k2):
                oh = hh - kh
                if not 0 <= oh < ho2:
                    continue
                for kw in range(k2):
                    ow = ww - kw
                    if not 0 <= ow < wo2:
                        continue
                    idx = oh * wo2 + ow
                    acc_scr[idx] = acc_scr[idx] + jnp.dot(
                        y1t, w2_ref[kh * k2 + kw],
                        preferred_element_type=jnp.float32)

    # BN shift + ReLU + GAP (1/p2 already folded into weights/shift).
    b2 = b2_ref[...]
    gap = jnp.zeros((nb, c2), jnp.float32)
    for p in range(p2):
        gap = gap + jnp.maximum(acc_scr[p] + b2, 0.0)

    out = jnp.dot(gap.astype(jnp.bfloat16), wfc_ref[...],
                  preferred_element_type=jnp.float32)
    o_ref[...] = out + bfc_ref[...]


# ------------------------------------ forward ---------------------------------------

def inception_aux_forward(x_nchw, params):
    w1, s1, b1 = params["w1"], params["scale1"], params["shift1"]
    w2, s2, b2 = params["w2"], params["scale2"], params["shift2"]
    wfc, bfc = params["wfc"], params["bfc"]

    k2 = w2.shape[0]                    # 5
    c1 = w2.shape[2]                    # 128
    c2 = w2.shape[3]                    # 768
    num_classes = wfc.shape[1]

    N, Cin, H, W = x_nchw.shape

    # --- wrapper glue: NCHW -> NHWC (channels on lanes), F.avg_pool2d(kernel=5, stride=3) ---
    x = jnp.transpose(x_nchw, (0, 2, 3, 1)).astype(jnp.float32)
    pooled = lax.reduce_window(x, 0.0, lax.add,
                               (1, 5, 5, 1), (1, 3, 3, 1), "VALID") * (1.0 / 25.0)
    Ho, Wo = pooled.shape[1], pooled.shape[2]
    assert Ho >= k2 and Wo >= k2, "input spatial too small for the 5x5 conv"
    T = Ho * Wo
    ho2, wo2 = Ho - k2 + 1, Wo - k2 + 1
    p2 = ho2 * wo2

    # --- batch tiling (generation-aware); pooled activations go to the kernel in bf16 ---
    NB = _choose_nb(N)
    Npad = _round_up(N, NB)
    pooled = pooled.astype(jnp.bfloat16)                                # halve HBM stream
    if Npad != N:
        pooled = jnp.pad(pooled, ((0, Npad - N), (0, 0), (0, 0), (0, 0)))
    nblk = Npad // NB

    # Rows ordered (block, tap, image-in-block): each grid block sees its NB images for
    # all Ho*Wo taps, tap-major / image-minor (done in bf16 to halve any HBM copy).
    pooled_rows = (pooled.reshape(nblk, NB, T, Cin)
                   .transpose(0, 2, 1, 3)
                   .reshape(nblk * T * NB, Cin))

    # --- weights: BN scales folded into bf16 MXU operands; shifts / fc bias stay f32 ---
    w1b = (w1 * s1).astype(jnp.bfloat16)                                # (Cin, 128)
    b1f = b1.astype(jnp.float32)                                        # (1, 128)
    s2_fold = s2 / float(p2)                                            # fold GAP 1/p2
    b2f = (b2 / float(p2)).astype(jnp.float32)                          # (1, 768)
    Cpad = _round_up(num_classes, 128)                                  # lane-dense fc out
    wfcb = jnp.pad(wfc, ((0, 0), (0, Cpad - num_classes))).astype(jnp.bfloat16)
    bfcp = jnp.pad(bfc, ((0, 0), (0, Cpad - num_classes))).astype(jnp.float32)

    if p2 == 1:
        # Production shape: conv_2 + GAP as one K = T*128 matmul; w2 flattened tap-major
        # (tap index hh*Wo+ww == kernel index kh*k2+kw since Ho == Wo == k2).
        w2in = (w2 * s2_fold).reshape(k2 * k2 * c1, c2).astype(jnp.bfloat16)
        w2_spec = pl.BlockSpec(w2in.shape, lambda n: (0, 0))
        scratch = [pltpu.VMEM((NB, T * c1), jnp.bfloat16)]
        kern = functools.partial(_aux_kernel_p1, nb=NB, t=T, c1=c1)
    else:
        w2in = (w2 * s2_fold).reshape(k2 * k2, c1, c2).astype(jnp.bfloat16)
        w2_spec = pl.BlockSpec(w2in.shape, lambda n: (0, 0, 0))
        scratch = [pltpu.VMEM((p2, NB, c2), jnp.float32)]
        kern = functools.partial(_aux_kernel_gen, nb=NB, ho=Ho, wo=Wo, k2=k2, c1=c1)

    flops = 2 * Npad * (T * Cin * c1 + p2 * k2 * k2 * c1 * c2 + c2 * Cpad)
    bytes_accessed = (pooled_rows.size * 2 + w1b.size * 2 + w2in.size * 2
                      + wfcb.size * 2
                      + (b1f.size + b2f.size + bfcp.size + Npad * Cpad) * 4)
    cost = pl.CostEstimate(flops=int(flops), transcendentals=0,
                           bytes_accessed=int(bytes_accessed))

    out = pl.pallas_call(
        kern,
        out_shape=jax.ShapeDtypeStruct((Npad, Cpad), jnp.float32),
        grid=(nblk,),
        in_specs=[
            pl.BlockSpec((T * NB, Cin), lambda n: (n, 0)),              # pooled rows (tiled)
            pl.BlockSpec(w1b.shape, lambda n: (0, 0)),                  # resident weights
            pl.BlockSpec(b1f.shape, lambda n: (0, 0)),
            w2_spec,
            pl.BlockSpec(b2f.shape, lambda n: (0, 0)),
            pl.BlockSpec(wfcb.shape, lambda n: (0, 0)),
            pl.BlockSpec(bfcp.shape, lambda n: (0, 0)),
        ],
        out_specs=pl.BlockSpec((NB, Cpad), lambda n: (n, 0)),
        scratch_shapes=scratch,
        compiler_params=pltpu.CompilerParams(
            dimension_semantics=("parallel",),                          # 2 TCs on v7x
            vmem_limit_bytes=_vmem_limit_bytes()),
        cost_estimate=cost,
    )(pooled_rows, w1b, b1f, w2in, b2f, wfcb, bfcp)

    return out[:N, :num_classes]


# ------------------------------- params & reference ---------------------------------

def init_params(key, in_channels, num_classes):
    eps = 0.001  # BatchNorm eps from the module
    ks = jax.random.split(key, 12)

    def bn_fold(kg, kb, km, kv, c):
        gamma = jax.random.uniform(kg, (1, c), jnp.float32, 0.8, 1.2)
        beta = jax.random.normal(kb, (1, c), jnp.float32) * 0.1
        rmean = jax.random.normal(km, (1, c), jnp.float32) * 0.1
        rvar = jax.random.uniform(kv, (1, c), jnp.float32, 0.8, 1.2)
        scale = gamma / jnp.sqrt(rvar + eps)
        shift = beta - rmean * scale
        return scale, shift

    w1 = jax.random.normal(ks[0], (in_channels, 128), jnp.float32) * (2.0 / in_channels) ** 0.5
    scale1, shift1 = bn_fold(ks[1], ks[2], ks[3], ks[4], 128)
    w2 = jax.random.normal(ks[5], (5, 5, 128, 768), jnp.float32) * (2.0 / (5 * 5 * 128)) ** 0.5
    scale2, shift2 = bn_fold(ks[6], ks[7], ks[8], ks[9], 768)
    wfc = jax.random.normal(ks[10], (768, num_classes), jnp.float32) * (1.0 / 768) ** 0.5
    bfc = jax.random.normal(ks[11], (1, num_classes), jnp.float32) * 0.05
    return dict(w1=w1, scale1=scale1, shift1=shift1,
                w2=w2, scale2=scale2, shift2=shift2,
                wfc=wfc, bfc=bfc)


def reference_forward(x_nchw, params):
    """Plain-JAX (f32) reference of the same forward pass."""
    x = jnp.transpose(x_nchw, (0, 2, 3, 1)).astype(jnp.float32)
    Cin = x.shape[-1]
    xp = lax.reduce_window(x, 0.0, lax.add, (1, 5, 5, 1), (1, 3, 3, 1), "VALID") / 25.0
    dn = ("NHWC", "HWIO", "NHWC")
    y = lax.conv_general_dilated(xp, params["w1"].reshape(1, 1, Cin, 128), (1, 1), "VALID",
                                 dimension_numbers=dn)
    y = jnp.maximum(y * params["scale1"].reshape(1, 1, 1, 128)
                    + params["shift1"].reshape(1, 1, 1, 128), 0.0)
    y = lax.conv_general_dilated(y, params["w2"], (1, 1), "VALID", dimension_numbers=dn)
    y = jnp.maximum(y * params["scale2"].reshape(1, 1, 1, 768)
                    + params["shift2"].reshape(1, 1, 1, 768), 0.0)
    y = jnp.mean(y, axis=(1, 2))
    return y @ params["wfc"] + params["bfc"]


def _check(out, ref, n, num_classes):
    assert out.shape == (n, num_classes)
    assert bool(jnp.all(jnp.isfinite(out)))
    max_err = float(jnp.max(jnp.abs(out - ref)))
    tol = 3e-2 * float(jnp.max(jnp.abs(ref))) + 5e-3   # bf16-operand / f32-accum tolerance
    assert max_err < tol, f"mismatch: max_err={max_err} tol={tol}"


if __name__ == "__main__":
    key = jax.random.PRNGKey(0)
    kx, kx2, kx3, kp = jax.random.split(key, 4)

    Cin = 4
    num_classes = 8
    params = init_params(kp, Cin, num_classes)
    fwd = jax.jit(inception_aux_forward)

    # Canonical InceptionV3-aux shape: 17x17 -> 5x5 after avg_pool(5,3) -> 1x1 after the
    # 5x5 conv (fast fused conv2+GAP matmul path).
    N = 2
    x = jax.random.normal(kx, (N, Cin, 17, 17), jnp.float32)   # NCHW, as PyTorch supplies
    out = jax.block_until_ready(fwd(x, params))
    _check(out, reference_forward(x, params), N, num_classes)

    # Odd batch (exercises batch padding / tile rounding).
    N2 = 9
    x2 = jax.random.normal(kx2, (N2, Cin, 17, 17), jnp.float32)
    out2 = jax.block_until_ready(fwd(x2, params))
    _check(out2, reference_forward(x2, params), N2, num_classes)

    # Larger spatial input: 20x20 -> 6x6 pooled -> 2x2 conv_2 output (general path with
    # the VMEM per-pixel accumulator scratch).
    N3 = 2
    x3 = jax.random.normal(kx3, (N3, Cin, 20, 20), jnp.float32)
    out3 = jax.block_until_ready(fwd(x3, params))
    _check(out3, reference_forward(x3, params), N3, num_classes)

    print("KERNEL_OK")
</pallas_src>

<mosaic_0001>
module attributes {stable_mosaic.version = 11 : i64} {
  func.func @_aux_kernel_p1(%arg0: i32, %arg1: memref<400x4xbf16, #tpu.memory_space<vmem>>, %arg2: memref<4x128xbf16, #tpu.memory_space<vmem>>, %arg3: memref<1x128xf32, #tpu.memory_space<vmem>>, %arg4: memref<3200x768xbf16, #tpu.memory_space<vmem>>, %arg5: memref<1x768xf32, #tpu.memory_space<vmem>>, %arg6: memref<768x128xbf16, #tpu.memory_space<vmem>>, %arg7: memref<1x128xf32, #tpu.memory_space<vmem>>, %arg8: memref<16x128xf32, #tpu.memory_space<vmem>>, %arg9: memref<16x3200xbf16, #tpu.memory_space<vmem>>) attributes {dimension_semantics = [#tpu.dimension_semantics<parallel>], iteration_bounds = array<i64: 1>, scalar_prefetch = 0 : i64, scratch_operands = 1 : i64, tpu.core_type = #tpu.core_type<tc>, window_params = [{transform_indices = @transform_0, window_bounds = array<i64: 400, 4>}, {pipeline_mode = #tpu.pipeline_mode<synchronous>, transform_indices = @transform_1, window_bounds = array<i64: 4, 128>}, {pipeline_mode = #tpu.pipeline_mode<synchronous>, transform_indices = @transform_2, window_bounds = array<i64: 1, 128>}, {pipeline_mode = #tpu.pipeline_mode<synchronous>, transform_indices = @transform_3, window_bounds = array<i64: 3200, 768>}, {pipeline_mode = #tpu.pipeline_mode<synchronous>, transform_indices = @transform_4, window_bounds = array<i64: 1, 768>}, {pipeline_mode = #tpu.pipeline_mode<synchronous>, transform_indices = @transform_5, window_bounds = array<i64: 768, 128>}, {pipeline_mode = #tpu.pipeline_mode<synchronous>, transform_indices = @transform_6, window_bounds = array<i64: 1, 128>}, {transform_indices = @transform_7, window_bounds = array<i64: 16, 128>}]} {
    %c0 = arith.constant 0 : index
    %c0_0 = arith.constant 0 : index
    %0 = vector.load %arg3[%c0, %c0_0] : memref<1x128xf32, #tpu.memory_space<vmem>>, vector<1x128xf32>
    %c0_1 = arith.constant 0 : index
    %c0_2 = arith.constant 0 : index
    %1 = vector.load %arg1[%c0_1, %c0_2] : memref<400x4xbf16, #tpu.memory_space<vmem>>, vector<16x4xbf16>
    %c0_3 = arith.constant 0 : index
    %c0_4 = arith.constant 0 : index
    %2 = vector.load %arg2[%c0_3, %c0_4] : memref<4x128xbf16, #tpu.memory_space<vmem>>, vector<4x128xbf16>
    %cst = arith.constant dense<0.000000e+00> : vector<16x128xf32>
    %3 = tpu.matmul %1, %2, %cst {dimension_numbers = #tpu.dot_dimension_numbers<[1], [0], [0], [1], [0, 0, 1, 1], [], []>} : vector<16x4xbf16>, vector<4x128xbf16>, vector<16x128xf32> -> vector<16x128xf32>
    %4 = vector.broadcast %0 : vector<1x128xf32> to vector<16x128xf32>
    %5 = arith.addf %3, %4 : vector<16x128xf32>
    %cst_5 = arith.constant 0.000000e+00 : f32
    %6 = vector.broadcast %cst_5 : f32 to vector<16x128xf32>
    %7 = arith.maximumf %5, %6 : vector<16x128xf32>
    %8 = arith.truncf %7 : vector<16x128xf32> to vector<16x128xbf16>
    %c0_6 = arith.constant 0 : index
    %c0_7 = arith.constant 0 : index
    %9 = vector.load %arg9[%c0_6, %c0_7] : memref<16x3200xbf16, #tpu.memory_space<vmem>>, vector<16x128xbf16>
    tpu.vector_store %arg9[%c0_6, %c0_7], %8 {strides = array<i32>} : memref<16x3200xbf16, #tpu.memory_space<vmem>>, vector<16x128xbf16>,
    %c16 = arith.constant 16 : index
    %c0_8 = arith.constant 0 : index
    %10 = vector.load %arg1[%c16, %c0_8] : memref<400x4xbf16, #tpu.memory_space<vmem>>, vector<16x4xbf16>
    %c0_9 = arith.constant 0 : index
    %c0_10 = arith.constant 0 : index
    %11 = vector.load %arg2[%c0_9, %c0_10] : memref<4x128xbf16, #tpu.memory_space<vmem>>, vector<4x128xbf16>
    %cst_11 = arith.constant dense<0.000000e+00> : vector<16x128xf32>
    %12 = tpu.matmul %10, %11, %cst_11 {dimension_numbers = #tpu.dot_dimension_numbers<[1], [0], [0], [1], [0, 0, 1, 1], [], []>} : vector<16x4xbf16>, vector<4x128xbf16>, vector<16x128xf32> -> vector<16x128xf32>
    %13 = vector.broadcast %0 : vector<1x128xf32> to vector<16x128xf32>
    %14 = arith.addf %12, %13 : vector<16x128xf32>
    %cst_12 = arith.constant 0.000000e+00 : f32
    %15 = vector.broadcast %cst_12 : f32 to vector<16x128xf32>
    %16 = arith.maximumf %14, %15 : vector<16x128xf32>
    %17 = arith.truncf %16 : vector<16x128xf32> to vector<16x128xbf16>
    %c0_13 = arith.constant 0 : index
    %c128 = arith.constant 128 : index
    %18 = vector.load %arg9[%c0_13, %c128] : memref<16x3200xbf16, #tpu.memory_space<vmem>>, vector<16x128xbf16>
    tpu.vector_store %arg9[%c0_13, %c128], %17 {strides = array<i32>} : memref<16x3200xbf16, #tpu.memory_space<vmem>>, vector<16x128xbf16>,
    %c32 = arith.constant 32 : index
    %c0_14 = arith.constant 0 : index
    %19 = vector.load %arg1[%c32, %c0_14] : memref<400x4xbf16, #tpu.memory_space<vmem>>, vector<16x4xbf16>
    %c0_15 = arith.constant 0 : index
    %c0_16 = arith.constant 0 : index
    %20 = vector.load %arg2[%c0_15, %c0_16] : memref<4x128xbf16, #tpu.memory_space<vmem>>, vector<4x128xbf16>
    %cst_17 = arith.constant dense<0.000000e+00> : vector<16x128xf32>
    %21 = tpu.matmul %19, %20, %cst_17 {dimension_numbers = #tpu.dot_dimension_numbers<[1], [0], [0], [1], [0, 0, 1, 1], [], []>} : vector<16x4xbf16>, vector<4x128xbf16>, vector<16x128xf32> -> vector<16x128xf32>
    %22 = vector.broadcast %0 : vector<1x128xf32> to vector<16x128xf32>
    %23 = arith.addf %21, %22 : vector<16x128xf32>
    %cst_18 = arith.constant 0.000000e+00 : f32
    %24 = vector.broadcast %cst_18 : f32 to vector<16x128xf32>
    %25 = arith.maximumf %23, %24 : vector<16x128xf32>
    %26 = arith.truncf %25 : vector<16x128xf32> to vector<16x128xbf16>
    %c0_19 = arith.constant 0 : index
    %c256 = arith.constant 256 : index
    %27 = vector.load %arg9[%c0_19, %c256] : memref<16x3200xbf16, #tpu.memory_space<vmem>>, vector<16x128xbf16>
    tpu.vector_store %arg9[%c0_19, %c256], %26 {strides = array<i32>} : memref<16x3200xbf16, #tpu.memory_space<vmem>>, vector<16x128xbf16>,
    %c48 = arith.constant 48 : index
    %c0_20 = arith.constant 0 : index
    %28 = vector.load %arg1[%c48, %c0_20] : memref<400x4xbf16, #tpu.memory_space<vmem>>, vector<16x4xbf16>
    %c0_21 = arith.constant 0 : index
    %c0_22 = arith.constant 0 : index
    %29 = vector.load %arg2[%c0_21, %c0_22] : memref<4x128xbf16, #tpu.memory_space<vmem>>, vector<4x128xbf16>
    %cst_23 = arith.constant dense<0.000000e+00> : vector<16x128xf32>
    %30 = tpu.matmul %28, %29, %cst_23 {dimension_numbers = #tpu.dot_dimension_numbers<[1], [0], [0], [1], [0, 0, 1, 1], [], []>} : vector<16x4xbf16>, vector<4x128xbf16>, vector<16x128xf32> -> vector<16x128xf32>
    %31 = vector.broadcast %0 : vector<1x128xf32> to vector<16x128xf32>
    %32 = arith.addf %30, %31 : vector<16x128xf32>
    %cst_24 = arith.constant 0.000000e+00 : f32
    %33 = vector.broadcast %cst_24 : f32 to vector<16x128xf32>
    %34 = arith.maximumf %32, %33 : vector<16x128xf32>
    %35 = arith.truncf %34 : vector<16x128xf32> to vector<16x128xbf16>
    %c0_25 = arith.constant 0 : index
    %c384 = arith.constant 384 : index
    %36 = vector.load %arg9[%c0_25, %c384] : memref<16x3200xbf16, #tpu.memory_space<vmem>>, vector<16x128xbf16>
    tpu.vector_store %arg9[%c0_25, %c384], %35 {strides = array<i32>} : memref<16x3200xbf16, #tpu.memory_space<vmem>>, vector<16x128xbf16>,
    %c64 = arith.constant 64 : index
    %c0_26 = arith.constant 0 : index
    %37 = vector.load %arg1[%c64, %c0_26] : memref<400x4xbf16, #tpu.memory_space<vmem>>, vector<16x4xbf16>
    %c0_27 = arith.constant 0 : index
    %c0_28 = arith.constant 0 : index
    %38 = vector.load %arg2[%c0_27, %c0_28] : memref<4x128xbf16, #tpu.memory_space<vmem>>, vector<4x128xbf16>
    %cst_29 = arith.constant dense<0.000000e+00> : vector<16x128xf32>
    %39 = tpu.matmul %37, %38, %cst_29 {dimension_numbers = #tpu.dot_dimension_numbers<[1], [0], [0], [1], [0, 0, 1, 1], [], []>} : vector<16x4xbf16>, vector<4x128xbf16>, vector<16x128xf32> -> vector<16x128xf32>
    %40 = vector.broadcast %0 : vector<1x128xf32> to vector<16x128xf32>
    %41 = arith.addf %39, %40 : vector<16x128xf32>
    %cst_30 = arith.constant 0.000000e+00 : f32
    %42 = vector.broadcast %cst_30 : f32 to vector<16x128xf32>
    %43 = arith.maximumf %41, %42 : vector<16x128xf32>
    %44 = arith.truncf %43 : vector<16x128xf32> to vector<16x128xbf16>
    %c0_31 = arith.constant 0 : index
    %c512 = arith.constant 512 : index
    %45 = vector.load %arg9[%c0_31, %c512] : memref<16x3200xbf16, #tpu.memory_space<vmem>>, vector<16x128xbf16>
    tpu.vector_store %arg9[%c0_31, %c512], %44 {strides = array<i32>} : memref<16x3200xbf16, #tpu.memory_space<vmem>>, vector<16x128xbf16>,
    %c80 = arith.constant 80 : index
    %c0_32 = arith.constant 0 : index
    %46 = vector.load %arg1[%c80, %c0_32] : memref<400x4xbf16, #tpu.memory_space<vmem>>, vector<16x4xbf16>
    %c0_33 = arith.constant 0 : index
    %c0_34 = arith.constant 0 : index
    %47 = vector.load %arg2[%c0_33, %c0_34] : memref<4x128xbf16, #tpu.memory_space<vmem>>, vector<4x128xbf16>
    %cst_35 = arith.constant dense<0.000000e+00> : vector<16x128xf32>
    %48 = tpu.matmul %46, %47, %cst_35 {dimension_numbers = #tpu.dot_dimension_numbers<[1], [0], [0], [1], [0, 0, 1, 1], [], []>} : vector<16x4xbf16>, vector<4x128xbf16>, vector<16x128xf32> -> vector<16x128xf32>
    %49 = vector.broadcast %0 : vector<1x128xf32> to vector<16x128xf32>
    %50 = arith.addf %48, %49 : vector<16x128xf32>
    %cst_36 = arith.constant 0.000000e+00 : f32
    %51 = vector.broadcast %cst_36 : f32 to vector<16x128xf32>
    %52 = arith.maximumf %50, %51 : vector<16x128xf32>
    %53 = arith.truncf %52 : vector<16x128xf32> to vector<16x128xbf16>
    %c0_37 = arith.constant 0 : index
    %c640 = arith.constant 640 : index
    %54 = vector.load %arg9[%c0_37, %c640] : memref<16x3200xbf16, #tpu.memory_space<vmem>>, vector<16x128xbf16>
    tpu.vector_store %arg9[%c0_37, %c640], %53 {strides = array<i32>} : memref<16x3200xbf16, #tpu.memory_space<vmem>>, vector<16x128xbf16>,
    %c96 = arith.constant 96 : index
    %c0_38 = arith.constant 0 : index
    %55 = vector.load %arg1[%c96, %c0_38] : memref<400x4xbf16, #tpu.memory_space<vmem>>, vector<16x4xbf16>
    %c0_39 = arith.constant 0 : index
    %c0_40 = arith.constant 0 : index
    %56 = vector.load %arg2[%c0_39, %c0_40] : memref<4x128xbf16, #tpu.memory_space<vmem>>, vector<4x128xbf16>
    %cst_41 = arith.constant dense<0.000000e+00> : vector<16x128xf32>
    %57 = tpu.matmul %55, %56, %cst_41 {dimension_numbers = #tpu.dot_dimension_numbers<[1], [0], [0], [1], [0, 0, 1, 1], [], []>} : vector<16x4xbf16>, vector<4x128xbf16>, vector<16x128xf32> -> vector<16x128xf32>
    %58 = vector.broadcast %0 : vector<1x128xf32> to vector<16x128xf32>
    %59 = arith.addf %57, %58 : vector<16x128xf32>
    %cst_42 = arith.constant 0.000000e+00 : f32
    %60 = vector.broadcast %cst_42 : f32 to vector<16x128xf32>
    %61 = arith.maximumf %59, %60 : vector<16x128xf32>
    %62 = arith.truncf %61 : vector<16x128xf32> to vector<16x128xbf16>
    %c0_43 = arith.constant 0 : index
    %c768 = arith.constant 768 : index
    %63 = vector.load %arg9[%c0_43, %c768] : memref<16x3200xbf16, #tpu.memory_space<vmem>>, vector<16x128xbf16>
    tpu.vector_store %arg9[%c0_43, %c768], %62 {strides = array<i32>} : memref<16x3200xbf16, #tpu.memory_space<vmem>>, vector<16x128xbf16>,
    %c112 = arith.constant 112 : index
    %c0_44 = arith.constant 0 : index
    %64 = vector.load %arg1[%c112, %c0_44] : memref<400x4xbf16, #tpu.memory_space<vmem>>, vector<16x4xbf16>
    %c0_45 = arith.constant 0 : index
    %c0_46 = arith.constant 0 : index
    %65 = vector.load %arg2[%c0_45, %c0_46] : memref<4x128xbf16, #tpu.memory_space<vmem>>, vector<4x128xbf16>
    %cst_47 = arith.constant dense<0.000000e+00> : vector<16x128xf32>
    %66 = tpu.matmul %64, %65, %cst_47 {dimension_numbers = #tpu.dot_dimension_numbers<[1], [0], [0], [1], [0, 0, 1, 1], [], []>} : vector<16x4xbf16>, vector<4x128xbf16>, vector<16x128xf32> -> vector<16x128xf32>
    %67 = vector.broadcast %0 : vector<1x128xf32> to vector<16x128xf32>
    %68 = arith.addf %66, %67 : vector<16x128xf32>
    %cst_48 = arith.constant 0.000000e+00 : f32
    %69 = vector.broadcast %cst_48 : f32 to vector<16x128xf32>
    %70 = arith.maximumf %68, %69 : vector<16x128xf32>
    %71 = arith.truncf %70 : vector<16x128xf32> to vector<16x128xbf16>
    %c0_49 = arith.constant 0 : index
    %c896 = arith.constant 896 : index
    %72 = vector.load %arg9[%c0_49, %c896] : memref<16x3200xbf16, #tpu.memory_space<vmem>>, vector<16x128xbf16>
    tpu.vector_store %arg9[%c0_49, %c896], %71 {strides = array<i32>} : memref<16x3200xbf16, #tpu.memory_space<vmem>>, vector<16x128xbf16>,
    %c128_50 = arith.constant 128 : index
    %c0_51 = arith.constant 0 : index
    %73 = vector.load %arg1[%c128_50, %c0_51] : memref<400x4xbf16, #tpu.memory_space<vmem>>, vector<16x4xbf16>
    %c0_52 = arith.constant 0 : index
    %c0_53 = arith.constant 0 : index
    %74 = vector.load %arg2[%c0_52, %c0_53] : memref<4x128xbf16, #tpu.memory_space<vmem>>, vector<4x128xbf16>
    %cst_54 = arith.constant dense<0.000000e+00> : vector<16x128xf32>
    %75 = tpu.matmul %73, %74, %cst_54 {dimension_numbers = #tpu.dot_dimension_numbers<[1], [0], [0], [1], [0, 0, 1, 1], [], []>} : vector<16x4xbf16>, vector<4x128xbf16>, vector<16x128xf32> -> vector<16x128xf32>
    %76 = vector.broadcast %0 : vector<1x128xf32> to vector<16x128xf32>
    %77 = arith.addf %75, %76 : vector<16x128xf32>
    %cst_55 = arith.constant 0.000000e+00 : f32
    %78 = vector.broadcast %cst_55 : f32 to vector<16x128xf32>
    %79 = arith.maximumf %77, %78 : vector<16x128xf32>
    %80 = arith.truncf %79 : vector<16x128xf32> to vector<16x128xbf16>
    %c0_56 = arith.constant 0 : index
    %c1024 = arith.constant 1024 : index
    %81 = vector.load %arg9[%c0_56, %c1024] : memref<16x3200xbf16, #tpu.memory_space<vmem>>, vector<16x128xbf16>
    tpu.vector_store %arg9[%c0_56, %c1024], %80 {strides = array<i32>} : memref<16x3200xbf16, #tpu.memory_space<vmem>>, vector<16x128xbf16>,
    %c144 = arith.constant 144 : index
    %c0_57 = arith.constant 0 : index
    %82 = vector.load %arg1[%c144, %c0_57] : memref<400x4xbf16, #tpu.memory_space<vmem>>, vector<16x4xbf16>
    %c0_58 = arith.constant 0 : index
    %c0_59 = arith.constant 0 : index
    %83 = vector.load %arg2[%c0_58, %c0_59] : memref<4x128xbf16, #tpu.memory_space<vmem>>, vector<4x128xbf16>
    %cst_60 = arith.constant dense<0.000000e+00> : vector<16x128xf32>
    %84 = tpu.matmul %82, %83, %cst_60 {dimension_numbers = #tpu.dot_dimension_numbers<[1], [0], [0], [1], [0, 0, 1, 1], [], []>} : vector<16x4xbf16>, vector<4x128xbf16>, vector<16x128xf32> -> vector<16x128xf32>
    %85 = vector.broadcast %0 : vector<1x128xf32> to vector<16x128xf32>
    %86 = arith.addf %84, %85 : vector<16x128xf32>
    %cst_61 = arith.constant 0.000000e+00 : f32
    %87 = vector.broadcast %cst_61 : f32 to vector<16x128xf32>
    %88 = arith.maximumf %86, %87 : vector<16x128xf32>
    %89 = arith.truncf %88 : vector<16x128xf32> to vector<16x128xbf16>
    %c0_62 = arith.constant 0 : index
    %c1152 = arith.constant 1152 : index
    %90 = vector.load %arg9[%c0_62, %c1152] : memref<16x3200xbf16, #tpu.memory_space<vmem>>, vector<16x128xbf16>
    tpu.vector_store %arg9[%c0_62, %c1152], %89 {strides = array<i32>} : memref<16x3200xbf16, #tpu.memory_space<vmem>>, vector<16x128xbf16>,
    %c160 = arith.constant 160 : index
    %c0_63 = arith.constant 0 : index
    %91 = vector.load %arg1[%c160, %c0_63] : memref<400x4xbf16, #tpu.memory_space<vmem>>, vector<16x4xbf16>
    %c0_64 = arith.constant 0 : index
    %c0_65 = arith.constant 0 : index
    %92 = vector.load %arg2[%c0_64, %c0_65] : memref<4x128xbf16, #tpu.memory_space<vmem>>, vector<4x128xbf16>
    %cst_66 = arith.constant dense<0.000000e+00> : vector<16x128xf32>
    %93 = tpu.matmul %91, %92, %cst_66 {dimension_numbers = #tpu.dot_dimension_numbers<[1], [0], [0], [1], [0, 0, 1, 1], [], []>} : vector<16x4xbf16>, vector<4x128xbf16>, vector<16x128xf32> -> vector<16x128xf32>
    %94 = vector.broadcast %0 : vector<1x128xf32> to vector<16x128xf32>
    %95 = arith.addf %93, %94 : vector<16x128xf32>
    %cst_67 = arith.constant 0.000000e+00 : f32
    %96 = vector.broadcast %cst_67 : f32 to vector<16x128xf32>
    %97 = arith.maximumf %95, %96 : vector<16x128xf32>
    %98 = arith.truncf %97 : vector<16x128xf32> to vector<16x128xbf16>
    %c0_68 = arith.constant 0 : index
    %c1280 = arith.constant 1280 : index
    %99 = vector.load %arg9[%c0_68, %c1280] : memref<16x3200xbf16, #tpu.memory_space<vmem>>, vector<16x128xbf16>
    tpu.vector_store %arg9[%c0_68, %c1280], %98 {strides = array<i32>} : memref<16x3200xbf16, #tpu.memory_space<vmem>>, vector<16x128xbf16>,
    %c176 = arith.constant 176 : index
    %c0_69 = arith.constant 0 : index
    %100 = vector.load %arg1[%c176, %c0_69] : memref<400x4xbf16, #tpu.memory_space<vmem>>, vector<16x4xbf16>
    %c0_70 = arith.constant 0 : index
    %c0_71 = arith.constant 0 : index
    %101 = vector.load %arg2[%c0_70, %c0_71] : memref<4x128xbf16, #tpu.memory_space<vmem>>, vector<4x128xbf16>
    %cst_72 = arith.constant dense<0.000000e+00> : vector<16x128xf32>
    %102 = tpu.matmul %100, %101, %cst_72 {dimension_numbers = #tpu.dot_dimension_numbers<[1], [0], [0], [1], [0, 0, 1, 1], [], []>} : vector<16x4xbf16>, vector<4x128xbf16>, vector<16x128xf32> -> vector<16x128xf32>
    %103 = vector.broadcast %0 : vector<1x128xf32> to vector<16x128xf32>
    %104 = arith.addf %102, %103 : vector<16x128xf32>
    %cst_73 = arith.constant 0.000000e+00 : f32
    %105 = vector.broadcast %cst_73 : f32 to vector<16x128xf32>
    %106 = arith.maximumf %104, %105 : vector<16x128xf32>
    %107 = arith.truncf %106 : vector<16x128xf32> to vector<16x128xbf16>
    %c0_74 = arith.constant 0 : index
    %c1408 = arith.constant 1408 : index
    %108 = vector.load %arg9[%c0_74, %c1408] : memref<16x3200xbf16, #tpu.memory_space<vmem>>, vector<16x128xbf16>
    tpu.vector_store %arg9[%c0_74, %c1408], %107 {strides = array<i32>} : memref<16x3200xbf16, #tpu.memory_space<vmem>>, vector<16x128xbf16>,
    %c192 = arith.constant 192 : index
    %c0_75 = arith.constant 0 : index
    %109 = vector.load %arg1[%c192, %c0_75] : memref<400x4xbf16, #tpu.memory_space<vmem>>, vector<16x4xbf16>
    %c0_76 = arith.constant 0 : index
    %c0_77 = arith.constant 0 : index
    %110 = vector.load %arg2[%c0_76, %c0_77] : memref<4x128xbf16, #tpu.memory_space<vmem>>, vector<4x128xbf16>
    %cst_78 = arith.constant dense<0.000000e+00> : vector<16x128xf32>
    %111 = tpu.matmul %109, %110, %cst_78 {dimension_numbers = #tpu.dot_dimension_numbers<[1], [0], [0], [1], [0, 0, 1, 1], [], []>} : vector<16x4xbf16>, vector<4x128xbf16>, vector<16x128xf32> -> vector<16x128xf32>
    %112 = vector.broadcast %0 : vector<1x128xf32> to vector<16x128xf32>
    %113 = arith.addf %111, %112 : vector<16x128xf32>
    %cst_79 = arith.constant 0.000000e+00 : f32
    %114 = vector.broadcast %cst_79 : f32 to vector<16x128xf32>
    %115 = arith.maximumf %113, %114 : vector<16x128xf32>
    %116 = arith.truncf %115 : vector<16x128xf32> to vector<16x128xbf16>
    %c0_80 = arith.constant 0 : index
    %c1536 = arith.constant 1536 : index
    %117 = vector.load %arg9[%c0_80, %c1536] : memref<16x3200xbf16, #tpu.memory_space<vmem>>, vector<16x128xbf16>
    tpu.vector_store %arg9[%c0_80, %c1536], %116 {strides = array<i32>} : memref<16x3200xbf16, #tpu.memory_space<vmem>>, vector<16x128xbf16>,
    %c208 = arith.constant 208 : index
    %c0_81 = arith.constant 0 : index
    %118 = vector.load %arg1[%c208, %c0_81] : memref<400x4xbf16, #tpu.memory_space<vmem>>, vector<16x4xbf16>
    %c0_82 = arith.constant 0 : index
    %c0_83 = arith.constant 0 : index
    %119 = vector.load %arg2[%c0_82, %c0_83] : memref<4x128xbf16, #tpu.memory_space<vmem>>, vector<4x128xbf16>
    %cst_84 = arith.constant dense<0.000000e+00> : vector<16x128xf32>
    %120 = tpu.matmul %118, %119, %cst_84 {dimension_numbers = #tpu.dot_dimension_numbers<[1], [0], [0], [1], [0, 0, 1, 1], [], []>} : vector<16x4xbf16>, vector<4x128xbf16>, vector<16x128xf32> -> vector<16x128xf32>
    %121 = vector.broadcast %0 : vector<1x128xf32> to vector<16x128xf32>
    %122 = arith.addf %120, %121 : vector<16x128xf32>
    %cst_85 = arith.constant 0.000000e+00 : f32
    %123 = vector.broadcast %cst_85 : f32 to vector<16x128xf32>
    %124 = arith.maximumf %122, %123 : vector<16x128xf32>
    %125 = arith.truncf %124 : vector<16x128xf32> to vector<16x128xbf16>
    %c0_86 = arith.constant 0 : index
    %c1664 = arith.constant 1664 : index
    %126 = vector.load %arg9[%c0_86, %c1664] : memref<16x3200xbf16, #tpu.memory_space<vmem>>, vector<16x128xbf16>
    tpu.vector_store %arg9[%c0_86, %c1664], %125 {strides = array<i32>} : memref<16x3200xbf16, #tpu.memory_space<vmem>>, vector<16x128xbf16>,
    %c224 = arith.constant 224 : index
    %c0_87 = arith.constant 0 : index
    %127 = vector.load %arg1[%c224, %c0_87] : memref<400x4xbf16, #tpu.memory_space<vmem>>, vector<16x4xbf16>
    %c0_88 = arith.constant 0 : index
    %c0_89 = arith.constant 0 : index
    %128 = vector.load %arg2[%c0_88, %c0_89] : memref<4x128xbf16, #tpu.memory_space<vmem>>, vector<4x128xbf16>
    %cst_90 = arith.constant dense<0.000000e+00> : vector<16x128xf32>
    %129 = tpu.matmul %127, %128, %cst_90 {dimension_numbers = #tpu.dot_dimension_numbers<[1], [0], [0], [1], [0, 0, 1, 1], [], []>} : vector<16x4xbf16>, vector<4x128xbf16>, vector<16x128xf32> -> vector<16x128xf32>
    %130 = vector.broadcast %0 : vector<1x128xf32> to vector<16x128xf32>
    %131 = arith.addf %129, %130 : vector<16x128xf32>
    %cst_91 = arith.constant 0.000000e+00 : f32
    %132 = vector.broadcast %cst_91 : f32 to vector<16x128xf32>
    %133 = arith.maximumf %131, %132 : vector<16x128xf32>
    %134 = arith.truncf %133 : vector<16x128xf32> to vector<16x128xbf16>
    %c0_92 = arith.constant 0 : index
    %c1792 = arith.constant 1792 : index
    %135 = vector.load %arg9[%c0_92, %c1792] : memref<16x3200xbf16, #tpu.memory_space<vmem>>, vector<16x128xbf16>
    tpu.vector_store %arg9[%c0_92, %c1792], %134 {strides = array<i32>} : memref<16x3200xbf16, #tpu.memory_space<vmem>>, vector<16x128xbf16>,
    %c240 = arith.constant 240 : index
    %c0_93 = arith.constant 0 : index
    %136 = vector.load %arg1[%c240, %c0_93] : memref<400x4xbf16, #tpu.memory_space<vmem>>, vector<16x4xbf16>
    %c0_94 = arith.constant 0 : index
    %c0_95 = arith.constant 0 : index
    %137 = vector.load %arg2[%c0_94, %c0_95] : memref<4x128xbf16, #tpu.memory_space<vmem>>, vector<4x128xbf16>
    %cst_96 = arith.constant dense<0.000000e+00> : vector<16x128xf32>
    %138 = tpu.matmul %136, %137, %cst_96 {dimension_numbers = #tpu.dot_dimension_numbers<[1], [0], [0], [1], [0, 0, 1, 1], [], []>} : vector<16x4xbf16>, vector<4x128xbf16>, vector<16x128xf32> -> vector<16x128xf32>
    %139 = vector.broadcast %0 : vector<1x128xf32> to vector<16x128xf32>
    %140 = arith.addf %138, %139 : vector<16x128xf32>
    %cst_97 = arith.constant 0.000000e+00 : f32
    %141 = vector.broadcast %cst_97 : f32 to vector<16x128xf32>
    %142 = arith.maximumf %140, %141 : vector<16x128xf32>
    %143 = arith.truncf %142 : vector<16x128xf32> to vector<16x128xbf16>
    %c0_98 = arith.constant 0 : index
    %c1920 = arith.constant 1920 : index
    %144 = vector.load %arg9[%c0_98, %c1920] : memref<16x3200xbf16, #tpu.memory_space<vmem>>, vector<16x128xbf16>
    tpu.vector_store %arg9[%c0_98, %c1920], %143 {strides = array<i32>} : memref<16x3200xbf16, #tpu.memory_space<vmem>>, vector<16x128xbf16>,
    %c256_99 = arith.constant 256 : index
    %c0_100 = arith.constant 0 : index
    %145 = vector.load %arg1[%c256_99, %c0_100] : memref<400x4xbf16, #tpu.memory_space<vmem>>, vector<16x4xbf16>
    %c0_101 = arith.constant 0 : index
    %c0_102 = arith.constant 0 : index
    %146 = vector.load %arg2[%c0_101, %c0_102] : memref<4x128xbf16, #tpu.memory_space<vmem>>, vector<4x128xbf16>
    %cst_103 = arith.constant dense<0.000000e+00> : vector<16x128xf32>
    %147 = tpu.matmul %145, %146, %cst_103 {dimension_numbers = #tpu.dot_dimension_numbers<[1], [0], [0], [1], [0, 0, 1, 1], [], []>} : vector<16x4xbf16>, vector<4x128xbf16>, vector<16x128xf32> -> vector<16x128xf32>
    %148 = vector.broadcast %0 : vector<1x128xf32> to vector<16x128xf32>
    %149 = arith.addf %147, %148 : vector<16x128xf32>
    %cst_104 = arith.constant 0.000000e+00 : f32
    %150 = vector.broadcast %cst_104 : f32 to vector<16x128xf32>
    %151 = arith.maximumf %149, %150 : vector<16x128xf32>
    %152 = arith.truncf %151 : vector<16x128xf32> to vector<16x128xbf16>
    %c0_105 = arith.constant 0 : index
    %c2048 = arith.constant 2048 : index
    %153 = vector.load %arg9[%c0_105, %c2048] : memref<16x3200xbf16, #tpu.memory_space<vmem>>, vector<16x128xbf16>
    tpu.vector_store %arg9[%c0_105, %c2048], %152 {strides = array<i32>} : memref<16x3200xbf16, #tpu.memory_space<vmem>>, vector<16x128xbf16>,
    %c272 = arith.constant 272 : index
    %c0_106 = arith.constant 0 : index
    %154 = vector.load %arg1[%c272, %c0_106] : memref<400x4xbf16, #tpu.memory_space<vmem>>, vector<16x4xbf16>
    %c0_107 = arith.constant 0 : index
    %c0_108 = arith.constant 0 : index
    %155 = vector.load %arg2[%c0_107, %c0_108] : memref<4x128xbf16, #tpu.memory_space<vmem>>, vector<4x128xbf16>
    %cst_109 = arith.constant dense<0.000000e+00> : vector<16x128xf32>
    %156 = tpu.matmul %154, %155, %cst_109 {dimension_numbers = #tpu.dot_dimension_numbers<[1], [0], [0], [1], [0, 0, 1, 1], [], []>} : vector<16x4xbf16>, vector<4x128xbf16>, vector<16x128xf32> -> vector<16x128xf32>
    %157 = vector.broadcast %0 : vector<1x128xf32> to vector<16x128xf32>
    %158 = arith.addf %156, %157 : vector<16x128xf32>
    %cst_110 = arith.constant 0.000000e+00 : f32
    %159 = vector.broadcast %cst_110 : f32 to vector<16x128xf32>
    %160 = arith.maximumf %158, %159 : vector<16x128xf32>
    %161 = arith.truncf %160 : vector<16x128xf32> to vector<16x128xbf16>
    %c0_111 = arith.constant 0 : index
    %c2176 = arith.constant 2176 : index
    %162 = vector.load %arg9[%c0_111, %c2176] : memref<16x3200xbf16, #tpu.memory_space<vmem>>, vector<16x128xbf16>
    tpu.vector_store %arg9[%c0_111, %c2176], %161 {strides = array<i32>} : memref<16x3200xbf16, #tpu.memory_space<vmem>>, vector<16x128xbf16>,
    %c288 = arith.constant 288 : index
    %c0_112 = arith.constant 0 : index
    %163 = vector.load %arg1[%c288, %c0_112] : memref<400x4xbf16, #tpu.memory_space<vmem>>, vector<16x4xbf16>
    %c0_113 = arith.constant 0 : index
    %c0_114 = arith.constant 0 : index
    %164 = vector.load %arg2[%c0_113, %c0_114] : memref<4x128xbf16, #tpu.memory_space<vmem>>, vector<4x128xbf16>
    %cst_115 = arith.constant dense<0.000000e+00> : vector<16x128xf32>
    %165 = tpu.matmul %163, %164, %cst_115 {dimension_numbers = #tpu.dot_dimension_numbers<[1], [0], [0], [1], [0, 0, 1, 1], [], []>} : vector<16x4xbf16>, vector<4x128xbf16>, vector<16x128xf32> -> vector<16x128xf32>
    %166 = vector.broadcast %0 : vector<1x128xf32> to vector<16x128xf32>
    %167 = arith.addf %165, %166 : vector<16x128xf32>
    %cst_116 = arith.constant 0.000000e+00 : f32
    %168 = vector.broadcast %cst_116 : f32 to vector<16x128xf32>
    %169 = arith.maximumf %167, %168 : vector<16x128xf32>
    %170 = arith.truncf %169 : vector<16x128xf32> to vector<16x128xbf16>
    %c0_117 = arith.constant 0 : index
    %c2304 = arith.constant 2304 : index
    %171 = vector.load %arg9[%c0_117, %c2304] : memref<16x3200xbf16, #tpu.memory_space<vmem>>, vector<16x128xbf16>
    tpu.vector_store %arg9[%c0_117, %c2304], %170 {strides = array<i32>} : memref<16x3200xbf16, #tpu.memory_space<vmem>>, vector<16x128xbf16>,
    %c304 = arith.constant 304 : index
    %c0_118 = arith.constant 0 : index
    %172 = vector.load %arg1[%c304, %c0_118] : memref<400x4xbf16, #tpu.memory_space<vmem>>, vector<16x4xbf16>
    %c0_119 = arith.constant 0 : index
    %c0_120 = arith.constant 0 : index
    %173 = vector.load %arg2[%c0_119, %c0_120] : memref<4x128xbf16, #tpu.memory_space<vmem>>, vector<4x128xbf16>
    %cst_121 = arith.constant dense<0.000000e+00> : vector<16x128xf32>
    %174 = tpu.matmul %172, %173, %cst_121 {dimension_numbers = #tpu.dot_dimension_numbers<[1], [0], [0], [1], [0, 0, 1, 1], [], []>} : vector<16x4xbf16>, vector<4x128xbf16>, vector<16x128xf32> -> vector<16x128xf32>
    %175 = vector.broadcast %0 : vector<1x128xf32> to vector<16x128xf32>
    %176 = arith.addf %174, %175 : vector<16x128xf32>
    %cst_122 = arith.constant 0.000000e+00 : f32
    %177 = vector.broadcast %cst_122 : f32 to vector<16x128xf32>
    %178 = arith.maximumf %176, %177 : vector<16x128xf32>
    %179 = arith.truncf %178 : vector<16x128xf32> to vector<16x128xbf16>
    %c0_123 = arith.constant 0 : index
    %c2432 = arith.constant 2432 : index
    %180 = vector.load %arg9[%c0_123, %c2432] : memref<16x3200xbf16, #tpu.memory_space<vmem>>, vector<16x128xbf16>
    tpu.vector_store %arg9[%c0_123, %c2432], %179 {strides = array<i32>} : memref<16x3200xbf16, #tpu.memory_space<vmem>>, vector<16x128xbf16>,
    %c320 = arith.constant 320 : index
    %c0_124 = arith.constant 0 : index
    %181 = vector.load %arg1[%c320, %c0_124] : memref<400x4xbf16, #tpu.memory_space<vmem>>, vector<16x4xbf16>
    %c0_125 = arith.constant 0 : index
    %c0_126 = arith.constant 0 : index
    %182 = vector.load %arg2[%c0_125, %c0_126] : memref<4x128xbf16, #tpu.memory_space<vmem>>, vector<4x128xbf16>
    %cst_127 = arith.constant dense<0.000000e+00> : vector<16x128xf32>
    %183 = tpu.matmul %181, %182, %cst_127 {dimension_numbers = #tpu.dot_dimension_numbers<[1], [0], [0], [1], [0, 0, 1, 1], [], []>} : vector<16x4xbf16>, vector<4x128xbf16>, vector<16x128xf32> -> vector<16x128xf32>
    %184 = vector.broadcast %0 : vector<1x128xf32> to vector<16x128xf32>
    %185 = arith.addf %183, %184 : vector<16x128xf32>
    %cst_128 = arith.constant 0.000000e+00 : f32
    %186 = vector.broadcast %cst_128 : f32 to vector<16x128xf32>
    %187 = arith.maximumf %185, %186 : vector<16x128xf32>
    %188 = arith.truncf %187 : vector<16x128xf32> to vector<16x128xbf16>
    %c0_129 = arith.constant 0 : index
    %c2560 = arith.constant 2560 : index
    %189 = vector.load %arg9[%c0_129, %c2560] : memref<16x3200xbf16, #tpu.memory_space<vmem>>, vector<16x128xbf16>
    tpu.vector_store %arg9[%c0_129, %c2560], %188 {strides = array<i32>} : memref<16x3200xbf16, #tpu.memory_space<vmem>>, vector<16x128xbf16>,
    %c336 = arith.constant 336 : index
    %c0_130 = arith.constant 0 : index
    %190 = vector.load %arg1[%c336, %c0_130] : memref<400x4xbf16, #tpu.memory_space<vmem>>, vector<16x4xbf16>
    %c0_131 = arith.constant 0 : index
    %c0_132 = arith.constant 0 : index
    %191 = vector.load %arg2[%c0_131, %c0_132] : memref<4x128xbf16, #tpu.memory_space<vmem>>, vector<4x128xbf16>
    %cst_133 = arith.constant dense<0.000000e+00> : vector<16x128xf32>
    %192 = tpu.matmul %190, %191, %cst_133 {dimension_numbers = #tpu.dot_dimension_numbers<[1], [0], [0], [1], [0, 0, 1, 1], [], []>} : vector<16x4xbf16>, vector<4x128xbf16>, vector<16x128xf32> -> vector<16x128xf32>
    %193 = vector.broadcast %0 : vector<1x128xf32> to vector<16x128xf32>
    %194 = arith.addf %192, %193 : vector<16x128xf32>
    %cst_134 = arith.constant 0.000000e+00 : f32
    %195 = vector.broadcast %cst_134 : f32 to vector<16x128xf32>
    %196 = arith.maximumf %194, %195 : vector<16x128xf32>
    %197 = arith.truncf %196 : vector<16x128xf32> to vector<16x128xbf16>
    %c0_135 = arith.constant 0 : index
    %c2688 = arith.constant 2688 : index
    %198 = vector.load %arg9[%c0_135, %c2688] : memref<16x3200xbf16, #tpu.memory_space<vmem>>, vector<16x128xbf16>
    tpu.vector_store %arg9[%c0_135, %c2688], %197 {strides = array<i32>} : memref<16x3200xbf16, #tpu.memory_space<vmem>>, vector<16x128xbf16>,
    %c352 = arith.constant 352 : index
    %c0_136 = arith.constant 0 : index
    %199 = vector.load %arg1[%c352, %c0_136] : memref<400x4xbf16, #tpu.memory_space<vmem>>, vector<16x4xbf16>
    %c0_137 = arith.constant 0 : index
    %c0_138 = arith.constant 0 : index
    %200 = vector.load %arg2[%c0_137, %c0_138] : memref<4x128xbf16, #tpu.memory_space<vmem>>, vector<4x128xbf16>
    %cst_139 = arith.constant dense<0.000000e+00> : vector<16x128xf32>
    %201 = tpu.matmul %199, %200, %cst_139 {dimension_numbers = #tpu.dot_dimension_numbers<[1], [0], [0], [1], [0, 0, 1, 1], [], []>} : vector<16x4xbf16>, vector<4x128xbf16>, vector<16x128xf32> -> vector<16x128xf32>
    %202 = vector.broadcast %0 : vector<1x128xf32> to vector<16x128xf32>
    %203 = arith.addf %201, %202 : vector<16x128xf32>
    %cst_140 = arith.constant 0.000000e+00 : f32
    %204 = vector.broadcast %cst_140 : f32 to vector<16x128xf32>
    %205 = arith.maximumf %203, %204 : vector<16x128xf32>
    %206 = arith.truncf %205 : vector<16x128xf32> to vector<16x128xbf16>
    %c0_141 = arith.constant 0 : index
    %c2816 = arith.constant 2816 : index
    %207 = vector.load %arg9[%c0_141, %c2816] : memref<16x3200xbf16, #tpu.memory_space<vmem>>, vector<16x128xbf16>
    tpu.vector_store %arg9[%c0_141, %c2816], %206 {strides = array<i32>} : memref<16x3200xbf16, #tpu.memory_space<vmem>>, vector<16x128xbf16>,
    %c368 = arith.constant 368 : index
    %c0_142 = arith.constant 0 : index
    %208 = vector.load %arg1[%c368, %c0_142] : memref<400x4xbf16, #tpu.memory_space<vmem>>, vector<16x4xbf16>
    %c0_143 = arith.constant 0 : index
    %c0_144 = arith.constant 0 : index
    %209 = vector.load %arg2[%c0_143, %c0_144] : memref<4x128xbf16, #tpu.memory_space<vmem>>, vector<4x128xbf16>
    %cst_145 = arith.constant dense<0.000000e+00> : vector<16x128xf32>
    %210 = tpu.matmul %208, %209, %cst_145 {dimension_numbers = #tpu.dot_dimension_numbers<[1], [0], [0], [1], [0, 0, 1, 1], [], []>} : vector<16x4xbf16>, vector<4x128xbf16>, vector<16x128xf32> -> vector<16x128xf32>
    %211 = vector.broadcast %0 : vector<1x128xf32> to vector<16x128xf32>
    %212 = arith.addf %210, %211 : vector<16x128xf32>
    %cst_146 = arith.constant 0.000000e+00 : f32
    %213 = vector.broadcast %cst_146 : f32 to vector<16x128xf32>
    %214 = arith.maximumf %212, %213 : vector<16x128xf32>
    %215 = arith.truncf %214 : vector<16x128xf32> to vector<16x128xbf16>
    %c0_147 = arith.constant 0 : index
    %c2944 = arith.constant 2944 : index
    %216 = vector.load %arg9[%c0_147, %c2944] : memref<16x3200xbf16, #tpu.memory_space<vmem>>, vector<16x128xbf16>
    tpu.vector_store %arg9[%c0_147, %c2944], %215 {strides = array<i32>} : memref<16x3200xbf16, #tpu.memory_space<vmem>>, vector<16x128xbf16>,
    %c384_148 = arith.constant 384 : index
    %c0_149 = arith.constant 0 : index
    %217 = vector.load %arg1[%c384_148, %c0_149] : memref<400x4xbf16, #tpu.memory_space<vmem>>, vector<16x4xbf16>
    %c0_150 = arith.constant 0 : index
    %c0_151 = arith.constant 0 : index
    %218 = vector.load %arg2[%c0_150, %c0_151] : memref<4x128xbf16, #tpu.memory_space<vmem>>, vector<4x128xbf16>
    %cst_152 = arith.constant dense<0.000000e+00> : vector<16x128xf32>
    %219 = tpu.matmul %217, %218, %cst_152 {dimension_numbers = #tpu.dot_dimension_numbers<[1], [0], [0], [1], [0, 0, 1, 1], [], []>} : vector<16x4xbf16>, vector<4x128xbf16>, vector<16x128xf32> -> vector<16x128xf32>
    %220 = vector.broadcast %0 : vector<1x128xf32> to vector<16x128xf32>
    %221 = arith.addf %219, %220 : vector<16x128xf32>
    %cst_153 = arith.constant 0.000000e+00 : f32
    %222 = vector.broadcast %cst_153 : f32 to vector<16x128xf32>
    %223 = arith.maximumf %221, %222 : vector<16x128xf32>
    %224 = arith.truncf %223 : vector<16x128xf32> to vector<16x128xbf16>
    %c0_154 = arith.constant 0 : index
    %c3072 = arith.constant 3072 : index
    %225 = vector.load %arg9[%c0_154, %c3072] : memref<16x3200xbf16, #tpu.memory_space<vmem>>, vector<16x128xbf16>
    tpu.vector_store %arg9[%c0_154, %c3072], %224 {strides = array<i32>} : memref<16x3200xbf16, #tpu.memory_space<vmem>>, vector<16x128xbf16>,
    %c0_155 = arith.constant 0 : index
    %c0_156 = arith.constant 0 : index
    %226 = vector.load %arg9[%c0_155, %c0_156] : memref<16x3200xbf16, #tpu.memory_space<vmem>>, vector<16x3200xbf16>
    %c0_157 = arith.constant 0 : index
    %c0_158 = arith.constant 0 : index
    %227 = vector.load %arg4[%c0_157, %c0_158] : memref<3200x768xbf16, #tpu.memory_space<vmem>>, vector<3200x768xbf16>
    %cst_159 = arith.constant dense<0.000000e+00> : vector<16x768xf32>
    %228 = tpu.matmul %226, %227, %cst_159 {dimension_numbers = #tpu.dot_dimension_numbers<[1], [0], [0], [1], [0, 0, 1, 1], [], []>} : vector<16x3200xbf16>, vector<3200x768xbf16>, vector<16x768xf32> -> vector<16x768xf32>
    %c0_160 = arith.constant 0 : index
    %c0_161 = arith.constant 0 : index
    %229 = vector.load %arg5[%c0_160, %c0_161] : memref<1x768xf32, #tpu.memory_space<vmem>>, vector<1x768xf32>
    %230 = vector.broadcast %229 : vector<1x768xf32> to vector<16x768xf32>
    %231 = arith.addf %228, %230 : vector<16x768xf32>
    %cst_162 = arith.constant 0.000000e+00 : f32
    %232 = vector.broadcast %cst_162 : f32 to vector<16x768xf32>
    %233 = arith.maximumf %231, %232 : vector<16x768xf32>
    %234 = arith.truncf %233 : vector<16x768xf32> to vector<16x768xbf16>
    %c0_163 = arith.constant 0 : index
    %c0_164 = arith.constant 0 : index
    %235 = vector.load %arg6[%c0_163, %c0_164] : memref<768x128xbf16, #tpu.memory_space<vmem>>, vector<768x128xbf16>
    %cst_165 = arith.constant dense<0.000000e+00> : vector<16x128xf32>
    %236 = tpu.matmul %234, %235, %cst_165 {dimension_numbers = #tpu.dot_dimension_numbers<[1], [0], [0], [1], [0, 0, 1, 1], [], []>} : vector<16x768xbf16>, vector<768x128xbf16>, vector<16x128xf32> -> vector<16x128xf32>
    %c0_166 = arith.constant 0 : index
    %c0_167 = arith.constant 0 : index
    %237 = vector.load %arg7[%c0_166, %c0_167] : memref<1x128xf32, #tpu.memory_space<vmem>>, vector<1x128xf32>
    %238 = vector.broadcast %237 : vector<1x128xf32> to vector<16x128xf32>
    %239 = arith.addf %236, %238 : vector<16x128xf32>
    %c0_168 = arith.constant 0 : index
    %c0_169 = arith.constant 0 : index
    %240 = vector.load %arg8[%c0_168, %c0_169] : memref<16x128xf32, #tpu.memory_space<vmem>>, vector<16x128xf32>
    tpu.vector_store %arg8[%c0_168, %c0_169], %239 {strides = array<i32>} : memref<16x128xf32, #tpu.memory_space<vmem>>, vector<16x128xf32>,
    return
  }
  func.func @transform_0(%arg0: i32) -> (i32, i32) {
    %c0_i32 = arith.constant 0 : i32
    %c0_i32_0 = arith.constant 0 : i32
    return %arg0, %c0_i32 : i32, i32
  }
  func.func @transform_1(%arg0: i32) -> (i32, i32) {
    %c0_i32 = arith.constant 0 : i32
    %c0_i32_0 = arith.constant 0 : i32
    %c0_i32_1 = arith.constant 0 : i32
    return %c0_i32, %c0_i32_0 : i32, i32
  }
  func.func @transform_2(%arg0: i32) -> (i32, i32) {
    %c0_i32 = arith.constant 0 : i32
    %c0_i32_0 = arith.constant 0 : i32
    %c0_i32_1 = arith.constant 0 : i32
    return %c0_i32, %c0_i32_0 : i32, i32
  }
  func.func @transform_3(%arg0: i32) -> (i32, i32) {
    %c0_i32 = arith.constant 0 : i32
    %c0_i32_0 = arith.constant 0 : i32
    %c0_i32_1 = arith.constant 0 : i32
    return %c0_i32, %c0_i32_0 : i32, i32
  }
  func.func @transform_4(%arg0: i32) -> (i32, i32) {
    %c0_i32 = arith.constant 0 : i32
    %c0_i32_0 = arith.constant 0 : i32
    %c0_i32_1 = arith.constant 0 : i32
    return %c0_i32, %c0_i32_0 : i32, i32
  }
  func.func @transform_5(%arg0: i32) -> (i32, i32) {
    %c0_i32 = arith.constant 0 : i32
    %c0_i32_0 = arith.constant 0 : i32
    %c0_i32_1 = arith.constant 0 : i32
    return %c0_i32, %c0_i32_0 : i32, i32
  }
  func.func @transform_6(%arg0: i32) -> (i32, i32) {
    %c0_i32 = arith.constant 0 : i32
    %c0_i32_0 = arith.constant 0 : i32
    %c0_i32_1 = arith.constant 0 : i32
    return %c0_i32, %c0_i32_0 : i32, i32
  }
  func.func @transform_7(%arg0: i32) -> (i32, i32) {
    %c0_i32 = arith.constant 0 : i32
    %c0_i32_0 = arith.constant 0 : i32
    return %arg0, %c0_i32 : i32, i32
  }
}

</mosaic_0001>

<llo_original>
// kernel: inception_aux_forward.1
$region0: #{inception_aux_forward.1}
  #allocation0 [shape = 'u32[]', space=smem, size = 0x4, offset = 0x4, fixed_abs, tag = 'smem constant byte address 0x4 - core index']
  #allocation1 [shape = 'u32[72,128]{1,0:T(1,128)}', space=vmem, size = 0x9000, scoped, tag = 'internal scratch']
  #allocation2 [shape = 'bf16[16,3200]{1,0:T(8,128)(2,1)}', space=vmem, size = 0x19000, scoped, tag = 'scratch operand']
  %s0 = inlined_call_operand.vmem [shape: bf16[400,4], index: 0, kind: input, shape index: {}]
  %s1 = inlined_call_operand.vmem [shape: bf16[4,128], index: 1, kind: input, shape index: {}]
  %s2 = inlined_call_operand.vmem [shape: f32[1,128], index: 2, kind: input, shape index: {}]
  %s3 = inlined_call_operand.vmem [shape: bf16[3200,768], index: 3, kind: input, shape index: {}]
  %s4 = inlined_call_operand.vmem [shape: f32[1,768], index: 4, kind: input, shape index: {}]
  %s5 = inlined_call_operand.vmem [shape: bf16[768,128], index: 5, kind: input, shape index: {}]
  %s6 = inlined_call_operand.vmem [shape: f32[1,128], index: 6, kind: input, shape index: {}]
  %s7 = inlined_call_operand.vmem [shape: f32[16,128], index: 7, kind: output, shape index: {}]
  %s8 = sld [smem:[#allocation0]]
  $region38: #{inception_aux_forward.1} parent=0
    _
  %s10 = ssub.s32 1, %s8
  %s11 = scalar_select 0, %s10, %s8
  // Predicated region
  $region2: #{inception_aux_forward.1} parent=0 // pred_check
    _
  $region3: #{inception_aux_forward.1} parent=0 // pred_check_branch
    %13 = sbr.rel (0) target = $region5
  $region4: #{inception_aux_forward.1} parent=0 // pred_region
    _
  $region5: #{inception_aux_forward.1} parent=0 // pred_fallthru
    _
  // Predicated region
  $region6: #{inception_aux_forward.1} parent=0 // pred_check
    _
  $region7: #{inception_aux_forward.1} parent=0 // pred_check_branch
    %15 = sbr.rel (0) target = $region9
  $region8: #{inception_aux_forward.1} parent=0 // pred_region
    _
  $region9: #{inception_aux_forward.1} parent=0 // pred_fallthru
    _
  // Predicated region
  $region10: #{inception_aux_forward.1} parent=0 // pred_check
    _
  $region11: #{inception_aux_forward.1} parent=0 // pred_check_branch
    %17 = sbr.rel (0) target = $region13
  $region12: #{inception_aux_forward.1} parent=0 // pred_region
    _
  $region13: #{inception_aux_forward.1} parent=0 // pred_fallthru
    _
  // Predicated region
  $region14: #{inception_aux_forward.1} parent=0 // pred_check
    _
  $region15: #{inception_aux_forward.1} parent=0 // pred_check_branch
    %19 = sbr.rel (0) target = $region17
  $region16: #{inception_aux_forward.1} parent=0 // pred_region
    _
  $region17: #{inception_aux_forward.1} parent=0 // pred_fallthru
    _
  // Predicated region
  $region18: #{inception_aux_forward.1} parent=0 // pred_check
    _
  $region19: #{inception_aux_forward.1} parent=0 // pred_check_branch
    %21 = sbr.rel (0) target = $region21
  $region20: #{inception_aux_forward.1} parent=0 // pred_region
    _
  $region21: #{inception_aux_forward.1} parent=0 // pred_fallthru
    _
  // Predicated region
  $region22: #{inception_aux_forward.1} parent=0 // pred_check
    _
  $region23: #{inception_aux_forward.1} parent=0 // pred_check_branch
    %23 = sbr.rel (0) target = $region25
  $region24: #{inception_aux_forward.1} parent=0 // pred_region
    _
  $region25: #{inception_aux_forward.1} parent=0 // pred_fallthru
    _
  // Predicated region
  $region26: #{inception_aux_forward.1} parent=0 // pred_check
    _
  $region27: #{inception_aux_forward.1} parent=0 // pred_check_branch
    %25 = sbr.rel (0) target = $region29
  $region28: #{inception_aux_forward.1} parent=0 // pred_region
    _
  $region29: #{inception_aux_forward.1} parent=0 // pred_fallthru
    _
  %v27 = vld [vmem:[%s2] sm:$0x1]
  %v28 = vld [vmem:[%s0] sm:$0xf]
  %v29 = vld [vmem:[%s0 + $0x4] sm:$0xf]
  %v30 = vld [vmem:[%s1] sm:$0x3]
  %v32 = vperm.slane %v27, 0
  %v36 = vunpack.c.l.b16 %v28
  %v37 = vunpack.c.l.b16 %v29
  %v38 = vpack.c.b16 %v37, %v36
  %vm39 = vcmask 31744
  %v41 = vsel %vm39, %v38, 0
  %vm43 = vcmask 1041408
  %v45 = vsel %vm43, %v30, 0
  %47 = vmatpush.bf16.msra.mxu0 0
  %48 = vmatpush.bf16.msra.mxu0 0
  %49 = vmatpush.bf16.msra.mxu0 0
  %50 = vmatpush.bf16.msra.mxu0 0
  %51 = vmatpush.bf16.msra.mxu0 0
  %52 = vmatpush.bf16.msra.mxu0 0
  %53 = vmatpush.bf16.msra.mxu0 0
  %54 = vmatpush.bf16.msra.mxu0 %v45
  %55 = vmatmul.bf16.gmra.mxu0 %v41
  %v56 = vpop.f32.mrf.mxu0
  %v57 = vadd.f32 %v32, %v56
  %v58 = vpop.f32.mrf.mxu0
  %v59 = vadd.f32 %v32, %v58
  %60 = vdwg.mxu0
  %v61 = vmax.f32 %v57, 0.0
  %v62 = vmax.f32 %v59, 0.0
  %v63 = vpack.c.bf16 %v61, %v61
  %v64 = vpack.c.bf16 %v62, %v62
  %65 = vst [vmem:[#allocation2] sm:$0xf] %v63
  %66 = vst [vmem:[#allocation2 + $0x64] sm:$0xf] %v64
  %v67 = vld [vmem:[%s0 + $0x8] sm:$0xf]
  %v68 = vld [vmem:[%s0 + $0xc] sm:$0xf]
  %v69 = vld [vmem:[%s1] sm:$0x3]
  %v72 = vunpack.c.l.b16 %v67
  %v73 = vunpack.c.l.b16 %v68
  %v74 = vpack.c.b16 %v73, %v72
  %v76 = vsel %vm39, %v74, 0
  %v79 = vsel %vm43, %v69, 0
  %81 = vmatpush.bf16.msra.mxu0 0
  %82 = vmatpush.bf16.msra.mxu0 0
  %83 = vmatpush.bf16.msra.mxu0 0
  %84 = vmatpush.bf16.msra.mxu0 0
  %85 = vmatpush.bf16.msra.mxu0 0
  %86 = vmatpush.bf16.msra.mxu0 0
  %87 = vmatpush.bf16.msra.mxu0 0
  %88 = vmatpush.bf16.msra.mxu0 %v79
  %89 = vmatmul.bf16.gmra.mxu0 %v76
  %v90 = vpop.f32.mrf.mxu0
  %v91 = vadd.f32 %v32, %v90
  %v92 = vpop.f32.mrf.mxu0
  %v93 = vadd.f32 %v32, %v92
  %94 = vdwg.mxu0
  %v95 = vmax.f32 %v91, 0.0
  %v96 = vmax.f32 %v93, 0.0
  %v97 = vpack.c.bf16 %v95, %v95
  %v98 = vpack.c.bf16 %v96, %v96
  %99 = vst [vmem:[#allocation2 + $0x4] sm:$0xf] %v97
  %100 = vst [vmem:[#allocation2 + $0x68] sm:$0xf] %v98
  %v101 = vld [vmem:[%s0 + $0x10] sm:$0xf]
  %v102 = vld [vmem:[%s0 + $0x14] sm:$0xf]
  %v103 = vld [vmem:[%s1] sm:$0x3]
  %v106 = vunpack.c.l.b16 %v101
  %v107 = vunpack.c.l.b16 %v102
  %v108 = vpack.c.b16 %v107, %v106
  %v110 = vsel %vm39, %v108, 0
  %v113 = vsel %vm43, %v103, 0
  %115 = vmatpush.bf16.msra.mxu0 0
  %116 = vmatpush.bf16.msra.mxu0 0
  %117 = vmatpush.bf16.msra.mxu0 0
  %118 = vmatpush.bf16.msra.mxu0 0
  %119 = vmatpush.bf16.msra.mxu0 0
  %120 = vmatpush.bf16.msra.mxu0 0
  %121 = vmatpush.bf16.msra.mxu0 0
  %122 = vmatpush.bf16.msra.mxu0 %v113
  %123 = vmatmul.bf16.gmra.mxu0 %v110
  %v124 = vpop.f32.mrf.mxu0
  %v125 = vadd.f32 %v32, %v124
  %v126 = vpop.f32.mrf.mxu0
  %v127 = vadd.f32 %v32, %v126
  %128 = vdwg.mxu0
  %v129 = vmax.f32 %v125, 0.0
  %v130 = vmax.f32 %v127, 0.0
  %v131 = vpack.c.bf16 %v129, %v129
  %v132 = vpack.c.bf16 %v130, %v130
  %133 = vst [vmem:[#allocation2 + $0x8] sm:$0xf] %v131
  %134 = vst [vmem:[#allocation2 + $0x6c] sm:$0xf] %v132
  %v135 = vld [vmem:[%s0 + $0x18] sm:$0xf]
  %v136 = vld [vmem:[%s0 + $0x1c] sm:$0xf]
  %v137 = vld [vmem:[%s1] sm:$0x3]
  %v140 = vunpack.c.l.b16 %v135
  %v141 = vunpack.c.l.b16 %v136
  %v142 = vpack.c.b16 %v141, %v140
  %v144 = vsel %vm39, %v142, 0
  %v147 = vsel %vm43, %v137, 0
  %149 = vmatpush.bf16.msra.mxu0 0
  %150 = vmatpush.bf16.msra.mxu0 0
  %151 = vmatpush.bf16.msra.mxu0 0
  %152 = vmatpush.bf16.msra.mxu0 0
  %153 = vmatpush.bf16.msra.mxu0 0
  %154 = vmatpush.bf16.msra.mxu0 0
  %155 = vmatpush.bf16.msra.mxu0 0
  %156 = vmatpush.bf16.msra.mxu0 %v147
  %157 = vmatmul.bf16.gmra.mxu0 %v144
  %v158 = vpop.f32.mrf.mxu0
  %v159 = vadd.f32 %v32, %v158
  %v160 = vpop.f32.mrf.mxu0
  %v161 = vadd.f32 %v32, %v160
  %162 = vdwg.mxu0
  %v163 = vmax.f32 %v159, 0.0
  %v164 = vmax.f32 %v161, 0.0
  %v165 = vpack.c.bf16 %v163, %v163
  %v166 = vpack.c.bf16 %v164, %v164
  %167 = vst [vmem:[#allocation2 + $0xc] sm:$0xf] %v165
  %168 = vst [vmem:[#allocation2 + $0x70] sm:$0xf] %v166
  %v169 = vld [vmem:[%s0 + $0x20] sm:$0xf]
  %v170 = vld [vmem:[%s0 + $0x24] sm:$0xf]
  %v171 = vld [vmem:[%s1] sm:$0x3]
  %v174 = vunpack.c.l.b16 %v169
  %v175 = vunpack.c.l.b16 %v170
  %v176 = vpack.c.b16 %v175, %v174
  %v178 = vsel %vm39, %v176, 0
  %v181 = vsel %vm43, %v171, 0
  %183 = vmatpush.bf16.msra.mxu0 0
  %184 = vmatpush.bf16.msra.mxu0 0
  %185 = vmatpush.bf16.msra.mxu0 0
  %186 = vmatpush.bf16.msra.mxu0 0
  %187 = vmatpush.bf16.msra.mxu0 0
  %188 = vmatpush.bf16.msra.mxu0 0
  %189 = vmatpush.bf16.msra.mxu0 0
  %190 = vmatpush.bf16.msra.mxu0 %v181
  %191 = vmatmul.bf16.gmra.mxu0 %v178
  %v192 = vpop.f32.mrf.mxu0
  %v193 = vadd.f32 %v32, %v192
  %v194 = vpop.f32.mrf.mxu0
  %v195 = vadd.f32 %v32, %v194
  %196 = vdwg.mxu0
  %v197 = vmax.f32 %v193, 0.0
  %v198 = vmax.f32 %v195, 0.0
  %v199 = vpack.c.bf16 %v197, %v197
  %v200 = vpack.c.bf16 %v198, %v198
  %201 = vst [vmem:[#allocation2 + $0x10] sm:$0xf] %v199
  %202 = vst [vmem:[#allocation2 + $0x74] sm:$0xf] %v200
  %v203 = vld [vmem:[%s0 + $0x28] sm:$0xf]
  %v204 = vld [vmem:[%s0 + $0x2c] sm:$0xf]
  %v205 = vld [vmem:[%s1] sm:$0x3]
  %v208 = vunpack.c.l.b16 %v203
  %v209 = vunpack.c.l.b16 %v204
  %v210 = vpack.c.b16 %v209, %v208
  %v212 = vsel %vm39, %v210, 0
  %v215 = vsel %vm43, %v205, 0
  %217 = vmatpush.bf16.msra.mxu0 0
  %218 = vmatpush.bf16.msra.mxu0 0
  %219 = vmatpush.bf16.msra.mxu0 0
  %220 = vmatpush.bf16.msra.mxu0 0
  %221 = vmatpush.bf16.msra.mxu0 0
  %222 = vmatpush.bf16.msra.mxu0 0
  %223 = vmatpush.bf16.msra.mxu0 0
  %224 = vmatpush.bf16.msra.mxu0 %v215
  %225 = vmatmul.bf16.gmra.mxu0 %v212
  %v226 = vpop.f32.mrf.mxu0
  %v227 = vadd.f32 %v32, %v226
  %v228 = vpop.f32.mrf.mxu0
  %v229 = vadd.f32 %v32, %v228
  %230 = vdwg.mxu0
  %v231 = vmax.f32 %v227, 0.0
  %v232 = vmax.f32 %v229, 0.0
  %v233 = vpack.c.bf16 %v231, %v231
  %v234 = vpack.c.bf16 %v232, %v232
  %235 = vst [vmem:[#allocation2 + $0x14] sm:$0xf] %v233
  %236 = vst [vmem:[#allocation2 + $0x78] sm:$0xf] %v234
  %v237 = vld [vmem:[%s0 + $0x30] sm:$0xf]
  %v238 = vld [vmem:[%s0 + $0x34] sm:$0xf]
  %v239 = vld [vmem:[%s1] sm:$0x3]
  %v242 = vunpack.c.l.b16 %v237
  %v243 = vunpack.c.l.b16 %v238
  %v244 = vpack.c.b16 %v243, %v242
  %v246 = vsel %vm39, %v244, 0
  %v249 = vsel %vm43, %v239, 0
  %251 = vmatpush.bf16.msra.mxu0 0
  %252 = vmatpush.bf16.msra.mxu0 0
  %253 = vmatpush.bf16.msra.mxu0 0
  %254 = vmatpush.bf16.msra.mxu0 0
  %255 = vmatpush.bf16.msra.mxu0 0
  %256 = vmatpush.bf16.msra.mxu0 0
  %257 = vmatpush.bf16.msra.mxu0 0
  %258 = vmatpush.bf16.msra.mxu0 %v249
  %259 = vmatmul.bf16.gmra.mxu0 %v246
  %v260 = vpop.f32.mrf.mxu0
  %v261 = vadd.f32 %v32, %v260
  %v262 = vpop.f32.mrf.mxu0
  %v263 = vadd.f32 %v32, %v262
  %264 = vdwg.mxu0
  %v265 = vmax.f32 %v261, 0.0
  %v266 = vmax.f32 %v263, 0.0
  %v267 = vpack.c.bf16 %v265, %v265
  %v268 = vpack.c.bf16 %v266, %v266
  %269 = vst [vmem:[#allocation2 + $0x18] sm:$0xf] %v267
  %270 = vst [vmem:[#allocation2 + $0x7c] sm:$0xf] %v268
  %v271 = vld [vmem:[%s0 + $0x38] sm:$0xf]
  %v272 = vld [vmem:[%s0 + $0x3c] sm:$0xf]
  %v273 = vld [vmem:[%s1] sm:$0x3]
  %v276 = vunpack.c.l.b16 %v271
  %v277 = vunpack.c.l.b16 %v272
  %v278 = vpack.c.b16 %v277, %v276
  %v280 = vsel %vm39, %v278, 0
  %v283 = vsel %vm43, %v273, 0
  %285 = vmatpush.bf16.msra.mxu0 0
  %286 = vmatpush.bf16.msra.mxu0 0
  %287 = vmatpush.bf16.msra.mxu0 0
  %288 = vmatpush.bf16.msra.mxu0 0
  %289 = vmatpush.bf16.msra.mxu0 0
  %290 = vmatpush.bf16.msra.mxu0 0
  %291 = vmatpush.bf16.msra.mxu0 0
  %292 = vmatpush.bf16.msra.mxu0 %v283
  %293 = vmatmul.bf16.gmra.mxu0 %v280
  %v294 = vpop.f32.mrf.mxu0
  %v295 = vadd.f32 %v32, %v294
  %v296 = vpop.f32.mrf.mxu0
  %v297 = vadd.f32 %v32, %v296
  %298 = vdwg.mxu0
  %v299 = vmax.f32 %v295, 0.0
  %v300 = vmax.f32 %v297, 0.0
  %v301 = vpack.c.bf16 %v299, %v299
  %v302 = vpack.c.bf16 %v300, %v300
  %303 = vst [vmem:[#allocation2 + $0x1c] sm:$0xf] %v301
  %304 = vst [vmem:[#allocation2 + $0x80] sm:$0xf] %v302
  %v305 = vld [vmem:[%s0 + $0x40] sm:$0xf]
  %v306 = vld [vmem:[%s0 + $0x44] sm:$0xf]
  %v307 = vld [vmem:[%s1] sm:$0x3]
  %v310 = vunpack.c.l.b16 %v305
  %v311 = vunpack.c.l.b16 %v306
  %v312 = vpack.c.b16 %v311, %v310
  %v314 = vsel %vm39, %v312, 0
  %v317 = vsel %vm43, %v307, 0
  %319 = vmatpush.bf16.msra.mxu0 0
  %320 = vmatpush.bf16.msra.mxu0 0
  %321 = vmatpush.bf16.msra.mxu0 0
  %322 = vmatpush.bf16.msra.mxu0 0
  %323 = vmatpush.bf16.msra.mxu0 0
  %324 = vmatpush.bf16.msra.mxu0 0
  %325 = vmatpush.bf16.msra.mxu0 0
  %326 = vmatpush.bf16.msra.mxu0 %v317
  %327 = vmatmul.bf16.gmra.mxu0 %v314
  %v328 = vpop.f32.mrf.mxu0
  %v329 = vadd.f32 %v32, %v328
  %v330 = vpop.f32.mrf.mxu0
  %v331 = vadd.f32 %v32, %v330
  %332 = vdwg.mxu0
  %v333 = vmax.f32 %v329, 0.0
  %v334 = vmax.f32 %v331, 0.0
  %v335 = vpack.c.bf16 %v333, %v333
  %v336 = vpack.c.bf16 %v334, %v334
  %337 = vst [vmem:[#allocation2 + $0x20] sm:$0xf] %v335
  %338 = vst [vmem:[#allocation2 + $0x84] sm:$0xf] %v336
  %v339 = vld [vmem:[%s0 + $0x48] sm:$0xf]
  %v340 = vld [vmem:[%s0 + $0x4c] sm:$0xf]
  %v341 = vld [vmem:[%s1] sm:$0x3]
  %v344 = vunpack.c.l.b16 %v339
  %v345 = vunpack.c.l.b16 %v340
  %v346 = vpack.c.b16 %v345, %v344
  %v348 = vsel %vm39, %v346, 0
  %v351 = vsel %vm43, %v341, 0
  %353 = vmatpush.bf16.msra.mxu0 0
  %354 = vmatpush.bf16.msra.mxu0 0
  %355 = vmatpush.bf16.msra.mxu0 0
  %356 = vmatpush.bf16.msra.mxu0 0
  %357 = vmatpush.bf16.msra.mxu0 0
  %358 = vmatpush.bf16.msra.mxu0 0
  %359 = vmatpush.bf16.msra.mxu0 0
  %360 = vmatpush.bf16.msra.mxu0 %v351
  %361 = vmatmul.bf16.gmra.mxu0 %v348
  %v362 = vpop.f32.mrf.mxu0
  %v363 = vadd.f32 %v32, %v362
  %v364 = vpop.f32.mrf.mxu0
  %v365 = vadd.f32 %v32, %v364
  %366 = vdwg.mxu0
  %v367 = vmax.f32 %v363, 0.0
  %v368 = vmax.f32 %v365, 0.0
  %v369 = vpack.c.bf16 %v367, %v367
  %v370 = vpack.c.bf16 %v368, %v368
  %371 = vst [vmem:[#allocation2 + $0x24] sm:$0xf] %v369
  %372 = vst [vmem:[#allocation2 + $0x88] sm:$0xf] %v370
  %v373 = vld [vmem:[%s0 + $0x50] sm:$0xf]
  %v374 = vld [vmem:[%s0 + $0x54] sm:$0xf]
  %v375 = vld [vmem:[%s1] sm:$0x3]
  %v378 = vunpack.c.l.b16 %v373
  %v379 = vunpack.c.l.b16 %v374
  %v380 = vpack.c.b16 %v379, %v378
  %v382 = vsel %vm39, %v380, 0
  %v385 = vsel %vm43, %v375, 0
  %387 = vmatpush.bf16.msra.mxu0 0
  %388 = vmatpush.bf16.msra.mxu0 0
  %389 = vmatpush.bf16.msra.mxu0 0
  %390 = vmatpush.bf16.msra.mxu0 0
  %391 = vmatpush.bf16.msra.mxu0 0
  %392 = vmatpush.bf16.msra.mxu0 0
  %393 = vmatpush.bf16.msra.mxu0 0
  %394 = vmatpush.bf16.msra.mxu0 %v385
  %395 = vmatmul.bf16.gmra.mxu0 %v382
  %v396 = vpop.f32.mrf.mxu0
  %v397 = vadd.f32 %v32, %v396
  %v398 = vpop.f32.mrf.mxu0
  %v399 = vadd.f32 %v32, %v398
  %400 = vdwg.mxu0
  %v401 = vmax.f32 %v397, 0.0
  %v402 = vmax.f32 %v399, 0.0
  %v403 = vpack.c.bf16 %v401, %v401
  %v404 = vpack.c.bf16 %v402, %v402
  %405 = vst [vmem:[#allocation2 + $0x28] sm:$0xf] %v403
  %406 = vst [vmem:[#allocation2 + $0x8c] sm:$0xf] %v404
  %v407 = vld [vmem:[%s0 + $0x58] sm:$0xf]
  %v408 = vld [vmem:[%s0 + $0x5c] sm:$0xf]
  %v409 = vld [vmem:[%s1] sm:$0x3]
  %v412 = vunpack.c.l.b16 %v407
  %v413 = vunpack.c.l.b16 %v408
  %v414 = vpack.c.b16 %v413, %v412
  %v416 = vsel %vm39, %v414, 0
  %v419 = vsel %vm43, %v409, 0
  %421 = vmatpush.bf16.msra.mxu0 0
  %422 = vmatpush.bf16.msra.mxu0 0
  %423 = vmatpush.bf16.msra.mxu0 0
  %424 = vmatpush.bf16.msra.mxu0 0
  %425 = vmatpush.bf16.msra.mxu0 0
  %426 = vmatpush.bf16.msra.mxu0 0
  %427 = vmatpush.bf16.msra.mxu0 0
  %428 = vmatpush.bf16.msra.mxu0 %v419
  %429 = vmatmul.bf16.gmra.mxu0 %v416
  %v430 = vpop.f32.mrf.mxu0
  %v431 = vadd.f32 %v32, %v430
  %v432 = vpop.f32.mrf.mxu0
  %v433 = vadd.f32 %v32, %v432
  %434 = vdwg.mxu0
  %v435 = vmax.f32 %v431, 0.0
  %v436 = vmax.f32 %v433, 0.0
  %v437 = vpack.c.bf16 %v435, %v435
  %v438 = vpack.c.bf16 %v436, %v436
  %439 = vst [vmem:[#allocation2 + $0x2c] sm:$0xf] %v437
  %440 = vst [vmem:[#allocation2 + $0x90] sm:$0xf] %v438
  %v441 = vld [vmem:[%s0 + $0x60] sm:$0xf]
  %v442 = vld [vmem:[%s0 + $0x64] sm:$0xf]
  %v443 = vld [vmem:[%s1] sm:$0x3]
  %v446 = vunpack.c.l.b16 %v441
  %v447 = vunpack.c.l.b16 %v442
  %v448 = vpack.c.b16 %v447, %v446
  %v450 = vsel %vm39, %v448, 0
  %v453 = vsel %vm43, %v443, 0
  %455 = vmatpush.bf16.msra.mxu0 0
  %456 = vmatpush.bf16.msra.mxu0 0
  %457 = vmatpush.bf16.msra.mxu0 0
  %458 = vmatpush.bf16.msra.mxu0 0
  %459 = vmatpush.bf16.msra.mxu0 0
  %460 = vmatpush.bf16.msra.mxu0 0
  %461 = vmatpush.bf16.msra.mxu0 0
  %462 = vmatpush.bf16.msra.mxu0 %v453
  %463 = vmatmul.bf16.gmra.mxu0 %v450
  %v464 = vpop.f32.mrf.mxu0
  %v465 = vadd.f32 %v32, %v464
  %v466 = vpop.f32.mrf.mxu0
  %v467 = vadd.f32 %v32, %v466
  %468 = vdwg.mxu0
  %v469 = vmax.f32 %v465, 0.0
  %v470 = vmax.f32 %v467, 0.0
  %v471 = vpack.c.bf16 %v469, %v469
  %v472 = vpack.c.bf16 %v470, %v470
  %473 = vst [vmem:[#allocation2 + $0x30] sm:$0xf] %v471
  %474 = vst [vmem:[#allocation2 + $0x94] sm:$0xf] %v472
  %v475 = vld [vmem:[%s0 + $0x68] sm:$0xf]
  %v476 = vld [vmem:[%s0 + $0x6c] sm:$0xf]
  %v477 = vld [vmem:[%s1] sm:$0x3]
  %v480 = vunpack.c.l.b16 %v475
  %v481 = vunpack.c.l.b16 %v476
  %v482 = vpack.c.b16 %v481, %v480
  %v484 = vsel %vm39, %v482, 0
  %v487 = vsel %vm43, %v477, 0
  %489 = vmatpush.bf16.msra.mxu0 0
  %490 = vmatpush.bf16.msra.mxu0 0
  %491 = vmatpush.bf16.msra.mxu0 0
  %492 = vmatpush.bf16.msra.mxu0 0
  %493 = vmatpush.bf16.msra.mxu0 0
  %494 = vmatpush.bf16.msra.mxu0 0
  %495 = vmatpush.bf16.msra.mxu0 0
  %496 = vmatpush.bf16.msra.mxu0 %v487
  %497 = vmatmul.bf16.gmra.mxu0 %v484
  %v498 = vpop.f32.mrf.mxu0
  %v499 = vadd.f32 %v32, %v498
  %v500 = vpop.f32.mrf.mxu0
  %v501 = vadd.f32 %v32, %v500
  %502 = vdwg.mxu0
  %v503 = vmax.f32 %v499, 0.0
  %v504 = vmax.f32 %v501, 0.0
  %v505 = vpack.c.bf16 %v503, %v503
  %v506 = vpack.c.bf16 %v504, %v504
  %507 = vst [vmem:[#allocation2 + $0x34] sm:$0xf] %v505
  %508 = vst [vmem:[#allocation2 + $0x98] sm:$0xf] %v506
  %v509 = vld [vmem:[%s0 + $0x70] sm:$0xf]
  %v510 = vld [vmem:[%s0 + $0x74] sm:$0xf]
  %v511 = vld [vmem:[%s1] sm:$0x3]
  %v514 = vunpack.c.l.b16 %v509
  %v515 = vunpack.c.l.b16 %v510
  %v516 = vpack.c.b16 %v515, %v514
  %v518 = vsel %vm39, %v516, 0
  %v521 = vsel %vm43, %v511, 0
  %523 = vmatpush.bf16.msra.mxu0 0
  %524 = vmatpush.bf16.msra.mxu0 0
  %525 = vmatpush.bf16.msra.mxu0 0
  %526 = vmatpush.bf16.msra.mxu0 0
  %527 = vmatpush.bf16.msra.mxu0 0
  %528 = vmatpush.bf16.msra.mxu0 0
  %529 = vmatpush.bf16.msra.mxu0 0
  %530 = vmatpush.bf16.msra.mxu0 %v521
  %531 = vmatmul.bf16.gmra.mxu0 %v518
  %v532 = vpop.f32.mrf.mxu0
  %v533 = vadd.f32 %v32, %v532
  %v534 = vpop.f32.mrf.mxu0
  %v535 = vadd.f32 %v32, %v534
  %536 = vdwg.mxu0
  %v537 = vmax.f32 %v533, 0.0
  %v538 = vmax.f32 %v535, 0.0
  %v539 = vpack.c.bf16 %v537, %v537
  %v540 = vpack.c.bf16 %v538, %v538
  %541 = vst [vmem:[#allocation2 + $0x38] sm:$0xf] %v539
  %542 = vst [vmem:[#allocation2 + $0x9c] sm:$0xf] %v540
  %v543 = vld [vmem:[%s0 + $0x78] sm:$0xf]
  %v544 = vld [vmem:[%s0 + $0x7c] sm:$0xf]
  %v545 = vld [vmem:[%s1] sm:$0x3]
  %v548 = vunpack.c.l.b16 %v543
  %v549 = vunpack.c.l.b16 %v544
  %v550 = vpack.c.b16 %v549, %v548
  %v552 = vsel %vm39, %v550, 0
  %v555 = vsel %vm43, %v545, 0
  %557 = vmatpush.bf16.msra.mxu0 0
  %558 = vmatpush.bf16.msra.mxu0 0
  %559 = vmatpush.bf16.msra.mxu0 0
  %560 = vmatpush.bf16.msra.mxu0 0
  %561 = vmatpush.bf16.msra.mxu0 0
  %562 = vmatpush.bf16.msra.mxu0 0
  %563 = vmatpush.bf16.msra.mxu0 0
  %564 = vmatpush.bf16.msra.mxu0 %v555
  %565 = vmatmul.bf16.gmra.mxu0 %v552
  %v566 = vpop.f32.mrf.mxu0
  %v567 = vadd.f32 %v32, %v566
  %v568 = vpop.f32.mrf.mxu0
  %v569 = vadd.f32 %v32, %v568
  %570 = vdwg.mxu0
  %v571 = vmax.f32 %v567, 0.0
  %v572 = vmax.f32 %v569, 0.0
  %v573 = vpack.c.bf16 %v571, %v571
  %v574 = vpack.c.bf16 %v572, %v572
  %575 = vst [vmem:[#allocation2 + $0x3c] sm:$0xf] %v573
  %576 = vst [vmem:[#allocation2 + $0xa0] sm:$0xf] %v574
  %v577 = vld [vmem:[%s0 + $0x80] sm:$0xf]
  %v578 = vld [vmem:[%s0 + $0x84] sm:$0xf]
  %v579 = vld [vmem:[%s1] sm:$0x3]
  %v582 = vunpack.c.l.b16 %v577
  %v583 = vunpack.c.l.b16 %v578
  %v584 = vpack.c.b16 %v583, %v582
  %v586 = vsel %vm39, %v584, 0
  %v589 = vsel %vm43, %v579, 0
  %591 = vmatpush.bf16.msra.mxu0 0
  %592 = vmatpush.bf16.msra.mxu0 0
  %593 = vmatpush.bf16.msra.mxu0 0
  %594 = vmatpush.bf16.msra.mxu0 0
  %595 = vmatpush.bf16.msra.mxu0 0
  %596 = vmatpush.bf16.msra.mxu0 0
  %597 = vmatpush.bf16.msra.mxu0 0
  %598 = vmatpush.bf16.msra.mxu0 %v589
  %599 = vmatmul.bf16.gmra.mxu0 %v586
  %v600 = vpop.f32.mrf.mxu0
  %v601 = vadd.f32 %v32, %v600
  %v602 = vpop.f32.mrf.mxu0
  %v603 = vadd.f32 %v32, %v602
  %604 = vdwg.mxu0
  %v605 = vmax.f32 %v601, 0.0
  %v606 = vmax.f32 %v603, 0.0
  %v607 = vpack.c.bf16 %v605, %v605
  %v608 = vpack.c.bf16 %v606, %v606
  %609 = vst [vmem:[#allocation2 + $0x40] sm:$0xf] %v607
  %610 = vst [vmem:[#allocation2 + $0xa4] sm:$0xf] %v608
  %v611 = vld [vmem:[%s0 + $0x88] sm:$0xf]
  %v612 = vld [vmem:[%s0 + $0x8c] sm:$0xf]
  %v613 = vld [vmem:[%s1] sm:$0x3]
  %v616 = vunpack.c.l.b16 %v611
  %v617 = vunpack.c.l.b16 %v612
  %v618 = vpack.c.b16 %v617, %v616
  %v620 = vsel %vm39, %v618, 0
  %v623 = vsel %vm43, %v613, 0
  %625 = vmatpush.bf16.msra.mxu0 0
  %626 = vmatpush.bf16.msra.mxu0 0
  %627 = vmatpush.bf16.msra.mxu0 0
  %628 = vmatpush.bf16.msra.mxu0 0
  %629 = vmatpush.bf16.msra.mxu0 0
  %630 = vmatpush.bf16.msra.mxu0 0
  %631 = vmatpush.bf16.msra.mxu0 0
  %632 = vmatpush.bf16.msra.mxu0 %v623
  %633 = vmatmul.bf16.gmra.mxu0 %v620
  %v634 = vpop.f32.mrf.mxu0
  %v635 = vadd.f32 %v32, %v634
  %v636 = vpop.f32.mrf.mxu0
  %v637 = vadd.f32 %v32, %v636
  %638 = vdwg.mxu0
  %v639 = vmax.f32 %v635, 0.0
  %v640 = vmax.f32 %v637, 0.0
  %v641 = vpack.c.bf16 %v639, %v639
  %v642 = vpack.c.bf16 %v640, %v640
  %643 = vst [vmem:[#allocation2 + $0x44] sm:$0xf] %v641
  %644 = vst [vmem:[#allocation2 + $0xa8] sm:$0xf] %v642
  %v645 = vld [vmem:[%s0 + $0x90] sm:$0xf]
  %v646 = vld [vmem:[%s0 + $0x94] sm:$0xf]
  %v647 = vld [vmem:[%s1] sm:$0x3]
  %v650 = vunpack.c.l.b16 %v645
  %v651 = vunpack.c.l.b16 %v646
  %v652 = vpack.c.b16 %v651, %v650
  %v654 = vsel %vm39, %v652, 0
  %v657 = vsel %vm43, %v647, 0
  %659 = vmatpush.bf16.msra.mxu0 0
  %660 = vmatpush.bf16.msra.mxu0 0
  %661 = vmatpush.bf16.msra.mxu0 0
  %662 = vmatpush.bf16.msra.mxu0 0
  %663 = vmatpush.bf16.msra.mxu0 0
  %664 = vmatpush.bf16.msra.mxu0 0
  %665 = vmatpush.bf16.msra.mxu0 0
  %666 = vmatpush.bf16.msra.mxu0 %v657
  %667 = vmatmul.bf16.gmra.mxu0 %v654
  %v668 = vpop.f32.mrf.mxu0
  %v669 = vadd.f32 %v32, %v668
  %v670 = vpop.f32.mrf.mxu0
  %v671 = vadd.f32 %v32, %v670
  %672 = vdwg.mxu0
  %v673 = vmax.f32 %v669, 0.0
  %v674 = vmax.f32 %v671, 0.0
  %v675 = vpack.c.bf16 %v673, %v673
  %v676 = vpack.c.bf16 %v674, %v674
  %677 = vst [vmem:[#allocation2 + $0x48] sm:$0xf] %v675
  %678 = vst [vmem:[#allocation2 + $0xac] sm:$0xf] %v676
  %v679 = vld [vmem:[%s0 + $0x98] sm:$0xf]
  %v680 = vld [vmem:[%s0 + $0x9c] sm:$0xf]
  %v681 = vld [vmem:[%s1] sm:$0x3]
  %v684 = vunpack.c.l.b16 %v679
  %v685 = vunpack.c.l.b16 %v680
  %v686 = vpack.c.b16 %v685, %v684
  %v688 = vsel %vm39, %v686, 0
  %v691 = vsel %vm43, %v681, 0
  %693 = vmatpush.bf16.msra.mxu0 0
  %694 = vmatpush.bf16.msra.mxu0 0
  %695 = vmatpush.bf16.msra.mxu0 0
  %696 = vmatpush.bf16.msra.mxu0 0
  %697 = vmatpush.bf16.msra.mxu0 0
  %698 = vmatpush.bf16.msra.mxu0 0
  %699 = vmatpush.bf16.msra.mxu0 0
  %700 = vmatpush.bf16.msra.mxu0 %v691
  %701 = vmatmul.bf16.gmra.mxu0 %v688
  %v702 = vpop.f32.mrf.mxu0
  %v703 = vadd.f32 %v32, %v702
  %v704 = vpop.f32.mrf.mxu0
  %v705 = vadd.f32 %v32, %v704
  %706 = vdwg.mxu0
  %v707 = vmax.f32 %v703, 0.0
  %v708 = vmax.f32 %v705, 0.0
  %v709 = vpack.c.bf16 %v707, %v707
  %v710 = vpack.c.bf16 %v708, %v708
  %711 = vst [vmem:[#allocation2 + $0x4c] sm:$0xf] %v709
  %712 = vst [vmem:[#allocation2 + $0xb0] sm:$0xf] %v710
  %v713 = vld [vmem:[%s0 + $0xa0] sm:$0xf]
  %v714 = vld [vmem:[%s0 + $0xa4] sm:$0xf]
  %v715 = vld [vmem:[%s1] sm:$0x3]
  %v718 = vunpack.c.l.b16 %v713
  %v719 = vunpack.c.l.b16 %v714
  %v720 = vpack.c.b16 %v719, %v718
  %v722 = vsel %vm39, %v720, 0
  %v725 = vsel %vm43, %v715, 0
  %727 = vmatpush.bf16.msra.mxu0 0
  %728 = vmatpush.bf16.msra.mxu0 0
  %729 = vmatpush.bf16.msra.mxu0 0
  %730 = vmatpush.bf16.msra.mxu0 0
  %731 = vmatpush.bf16.msra.mxu0 0
  %732 = vmatpush.bf16.msra.mxu0 0
  %733 = vmatpush.bf16.msra.mxu0 0
  %734 = vmatpush.bf16.msra.mxu0 %v725
  %735 = vmatmul.bf16.gmra.mxu0 %v722
  %v736 = vpop.f32.mrf.mxu0
  %v737 = vadd.f32 %v32, %v736
  %v738 = vpop.f32.mrf.mxu0
  %v739 = vadd.f32 %v32, %v738
  %740 = vdwg.mxu0
  %v741 = vmax.f32 %v737, 0.0
  %v742 = vmax.f32 %v739, 0.0
  %v743 = vpack.c.bf16 %v741, %v741
  %v744 = vpack.c.bf16 %v742, %v742
  %745 = vst [vmem:[#allocation2 + $0x50] sm:$0xf] %v743
  %746 = vst [vmem:[#allocation2 + $0xb4] sm:$0xf] %v744
  %v747 = vld [vmem:[%s0 + $0xa8] sm:$0xf]
  %v748 = vld [vmem:[%s0 + $0xac] sm:$0xf]
  %v749 = vld [vmem:[%s1] sm:$0x3]
  %v752 = vunpack.c.l.b16 %v747
  %v753 = vunpack.c.l.b16 %v748
  %v754 = vpack.c.b16 %v753, %v752
  %v756 = vsel %vm39, %v754, 0
  %v759 = vsel %vm43, %v749, 0
  %761 = vmatpush.bf16.msra.mxu0 0
  %762 = vmatpush.bf16.msra.mxu0 0
  %763 = vmatpush.bf16.msra.mxu0 0
  %764 = vmatpush.bf16.msra.mxu0 0
  %765 = vmatpush.bf16.msra.mxu0 0
  %766 = vmatpush.bf16.msra.mxu0 0
  %767 = vmatpush.bf16.msra.mxu0 0
  %768 = vmatpush.bf16.msra.mxu0 %v759
  %769 = vmatmul.bf16.gmra.mxu0 %v756
  %v770 = vpop.f32.mrf.mxu0
  %v771 = vadd.f32 %v32, %v770
  %v772 = vpop.f32.mrf.mxu0
  %v773 = vadd.f32 %v32, %v772
  %774 = vdwg.mxu0
  %v775 = vmax.f32 %v771, 0.0
  %v776 = vmax.f32 %v773, 0.0
  %v777 = vpack.c.bf16 %v775, %v775
  %v778 = vpack.c.bf16 %v776, %v776
  %779 = vst [vmem:[#allocation2 + $0x54] sm:$0xf] %v777
  %780 = vst [vmem:[#allocation2 + $0xb8] sm:$0xf] %v778
  %v781 = vld [vmem:[%s0 + $0xb0] sm:$0xf]
  %v782 = vld [vmem:[%s0 + $0xb4] sm:$0xf]
  %v783 = vld [vmem:[%s1] sm:$0x3]
  %v786 = vunpack.c.l.b16 %v781
  %v787 = vunpack.c.l.b16 %v782
  %v788 = vpack.c.b16 %v787, %v786
  %v790 = vsel %vm39, %v788, 0
  %v793 = vsel %vm43, %v783, 0
  %795 = vmatpush.bf16.msra.mxu0 0
  %796 = vmatpush.bf16.msra.mxu0 0
  %797 = vmatpush.bf16.msra.mxu0 0
  %798 = vmatpush.bf16.msra.mxu0 0
  %799 = vmatpush.bf16.msra.mxu0 0
  %800 = vmatpush.bf16.msra.mxu0 0
  %801 = vmatpush.bf16.msra.mxu0 0
  %802 = vmatpush.bf16.msra.mxu0 %v793
  %803 = vmatmul.bf16.gmra.mxu0 %v790
  %v804 = vpop.f32.mrf.mxu0
  %v805 = vadd.f32 %v32, %v804
  %v806 = vpop.f32.mrf.mxu0
  %v807 = vadd.f32 %v32, %v806
  %808 = vdwg.mxu0
  %v809 = vmax.f32 %v805, 0.0
  %v810 = vmax.f32 %v807, 0.0
  %v811 = vpack.c.bf16 %v809, %v809
  %v812 = vpack.c.bf16 %v810, %v810
  %813 = vst [vmem:[#allocation2 + $0x58] sm:$0xf] %v811
  %814 = vst [vmem:[#allocation2 + $0xbc] sm:$0xf] %v812
  %v815 = vld [vmem:[%s0 + $0xb8] sm:$0xf]
  %v816 = vld [vmem:[%s0 + $0xbc] sm:$0xf]
  %v817 = vld [vmem:[%s1] sm:$0x3]
  %v820 = vunpack.c.l.b16 %v815
  %v821 = vunpack.c.l.b16 %v816
  %v822 = vpack.c.b16 %v821, %v820
  %v824 = vsel %vm39, %v822, 0
  %v827 = vsel %vm43, %v817, 0
  %829 = vmatpush.bf16.msra.mxu0 0
  %830 = vmatpush.bf16.msra.mxu0 0
  %831 = vmatpush.bf16.msra.mxu0 0
  %832 = vmatpush.bf16.msra.mxu0 0
  %833 = vmatpush.bf16.msra.mxu0 0
  %834 = vmatpush.bf16.msra.mxu0 0
  %835 = vmatpush.bf16.msra.mxu0 0
  %836 = vmatpush.bf16.msra.mxu0 %v827
  %837 = vmatmul.bf16.gmra.mxu0 %v824
  %v838 = vpop.f32.mrf.mxu0
  %v839 = vadd.f32 %v32, %v838
  %v840 = vpop.f32.mrf.mxu0
  %v841 = vadd.f32 %v32, %v840
  %842 = vdwg.mxu0
  %v843 = vmax.f32 %v839, 0.0
  %v844 = vmax.f32 %v841, 0.0
  %v845 = vpack.c.bf16 %v843, %v843
  %v846 = vpack.c.bf16 %v844, %v844
  %847 = vst [vmem:[#allocation2 + $0x5c] sm:$0xf] %v845
  %848 = vst [vmem:[#allocation2 + $0xc0] sm:$0xf] %v846
  %v849 = vld [vmem:[%s0 + $0xc0] sm:$0xf]
  %v850 = vld [vmem:[%s0 + $0xc4] sm:$0xf]
  %v851 = vld [vmem:[%s1] sm:$0x3]
  %v854 = vunpack.c.l.b16 %v849
  %v855 = vunpack.c.l.b16 %v850
  %v856 = vpack.c.b16 %v855, %v854
  %v858 = vsel %vm39, %v856, 0
  %v861 = vsel %vm43, %v851, 0
  %863 = vmatpush.bf16.msra.mxu0 0
  %864 = vmatpush.bf16.msra.mxu0 0
  %865 = vmatpush.bf16.msra.mxu0 0
  %866 = vmatpush.bf16.msra.mxu0 0
  %867 = vmatpush.bf16.msra.mxu0 0
  %868 = vmatpush.bf16.msra.mxu0 0
  %869 = vmatpush.bf16.msra.mxu0 0
  %870 = vmatpush.bf16.msra.mxu0 %v861
  %871 = vmatmul.bf16.gmra.mxu0 %v858
  %v872 = vpop.f32.mrf.mxu0
  %v873 = vadd.f32 %v32, %v872
  %v874 = vpop.f32.mrf.mxu0
  %v875 = vadd.f32 %v32, %v874
  %876 = vdwg.mxu0
  %v877 = vmax.f32 %v873, 0.0
  %v878 = vmax.f32 %v875, 0.0
  %v879 = vpack.c.bf16 %v877, %v877
  %v880 = vpack.c.bf16 %v878, %v878
  %881 = vst [vmem:[#allocation2 + $0x60] sm:$0xf] %v879
  %882 = vst [vmem:[#allocation2 + $0xc4] sm:$0xf] %v880
  %v883 = vld [vmem:[#allocation2] sm:$0xff]
  %v884 = vld [vmem:[#allocation2 + $0x8] sm:$0xff]
  %v885 = vld [vmem:[#allocation2 + $0x10] sm:$0xff]
  %v886 = vld [vmem:[#allocation2 + $0x18] sm:$0xff]
  %v887 = vld [vmem:[#allocation2 + $0x20] sm:$0xff]
  %v888 = vld [vmem:[#allocation2 + $0x28] sm:$0xff]
  %v889 = vld [vmem:[#allocation2 + $0x30] sm:$0xff]
  %v890 = vld [vmem:[#allocation2 + $0x38] sm:$0xff]
  %v891 = vld [vmem:[#allocation2 + $0x40] sm:$0xff]
  %v892 = vld [vmem:[#allocation2 + $0x48] sm:$0xff]
  %v893 = vld [vmem:[#allocation2 + $0x50] sm:$0xff]
  %v894 = vld [vmem:[#allocation2 + $0x58] sm:$0xff]
  %v895 = vld [vmem:[#allocation2 + $0x60] sm:$0xf]
  %v896 = vld [vmem:[#allocation2 + $0x64] sm:$0xff]
  %v897 = vld [vmem:[#allocation2 + $0x6c] sm:$0xff]
  %v898 = vld [vmem:[#allocation2 + $0x74] sm:$0xff]
  %v899 = vld [vmem:[#allocation2 + $0x7c] sm:$0xff]
  %v900 = vld [vmem:[#allocation2 + $0x84] sm:$0xff]
  %v901 = vld [vmem:[#allocation2 + $0x8c] sm:$0xff]
  %v902 = vld [vmem:[#allocation2 + $0x94] sm:$0xff]
  %v903 = vld [vmem:[#allocation2 + $0x9c] sm:$0xff]
  %v904 = vld [vmem:[#allocation2 + $0xa4] sm:$0xff]
  %v905 = vld [vmem:[#allocation2 + $0xac] sm:$0xff]
  %v906 = vld [vmem:[#allocation2 + $0xb4] sm:$0xff]
  %v907 = vld [vmem:[#allocation2 + $0xbc] sm:$0xff]
  %v908 = vld [vmem:[#allocation2 + $0xc4] sm:$0xf]
  %v909 = vld [vmem:[%s3] sm:$0xff]
  %v910 = vld [vmem:[%s3 + $0x8] sm:$0xff]
  %v911 = vld [vmem:[%s3 + $0x10] sm:$0xff]
  %v912 = vld [vmem:[%s3 + $0x18] sm:$0xff]
  %v913 = vld [vmem:[%s3 + $0x20] sm:$0xff]
  %v914 = vld [vmem:[%s3 + $0x28] sm:$0xff]
  %v915 = vld [vmem:[%s3 + $0x30] sm:$0xff]
  %v916 = vld [vmem:[%s3 + $0x38] sm:$0xff]
  %v917 = vld [vmem:[%s3 + $0x40] sm:$0xff]
  %v918 = vld [vmem:[%s3 + $0x48] sm:$0xff]
  %v919 = vld [vmem:[%s3 + $0x50] sm:$0xff]
  %v920 = vld [vmem:[%s3 + $0x58] sm:$0xff]
  %v921 = vld [vmem:[%s3 + $0x60] sm:$0xff]
  %v922 = vld [vmem:[%s3 + $0x68] sm:$0xff]
  %v923 = vld [vmem:[%s3 + $0x70] sm:$0xff]
  %v924 = vld [vmem:[%s3 + $0x78] sm:$0xff]
  %v925 = vld [vmem:[%s3 + $0x80] sm:$0xff]
  %v926 = vld [vmem:[%s3 + $0x88] sm:$0xff]
  %v927 = vld [vmem:[%s3 + $0x90] sm:$0xff]
  %v928 = vld [vmem:[%s3 + $0x98] sm:$0xff]
  %v929 = vld [vmem:[%s3 + $0xa0] sm:$0xff]
  %v930 = vld [vmem:[%s3 + $0xa8] sm:$0xff]
  %v931 = vld [vmem:[%s3 + $0xb0] sm:$0xff]
  %v932 = vld [vmem:[%s3 + $0xb8] sm:$0xff]
  %v933 = vld [vmem:[%s3 + $0xc0] sm:$0xff]
  %v934 = vld [vmem:[%s3 + $0xc8] sm:$0xff]
  %v935 = vld [vmem:[%s3 + $0xd0] sm:$0xff]
  %v936 = vld [vmem:[%s3 + $0xd8] sm:$0xff]
  %v937 = vld [vmem:[%s3 + $0xe0] sm:$0xff]
  %v938 = vld [vmem:[%s3 + $0xe8] sm:$0xff]
  %v939 = vld [vmem:[%s3 + $0xf0] sm:$0xff]
  %v940 = vld [vmem:[%s3 + $0xf8] sm:$0xff]
  %v941 = vld [vmem:[%s3 + $0x100] sm:$0xff]
  %v942 = vld [vmem:[%s3 + $0x108] sm:$0xff]
  %v943 = vld [vmem:[%s3 + $0x110] sm:$0xff]
  %v944 = vld [vmem:[%s3 + $0x118] sm:$0xff]
  %v945 = vld [vmem:[%s3 + $0x120] sm:$0xff]
  %v946 = vld [vmem:[%s3 + $0x128] sm:$0xff]
  %v947 = vld [vmem:[%s3 + $0x130] sm:$0xff]
  %v948 = vld [vmem:[%s3 + $0x138] sm:$0xff]
  %v949 = vld [vmem:[%s3 + $0x140] sm:$0xff]
  %v950 = vld [vmem:[%s3 + $0x148] sm:$0xff]
  %v951 = vld [vmem:[%s3 + $0x150] sm:$0xff]
  %v952 = vld [vmem:[%s3 + $0x158] sm:$0xff]
  %v953 = vld [vmem:[%s3 + $0x160] sm:$0xff]
  %v954 = vld [vmem:[%s3 + $0x168] sm:$0xff]
  %v955 = vld [vmem:[%s3 + $0x170] sm:$0xff]
  %v956 = vld [vmem:[%s3 + $0x178] sm:$0xff]
  %v957 = vld [vmem:[%s3 + $0x180] sm:$0xff]
  %v958 = vld [vmem:[%s3 + $0x188] sm:$0xff]
  %v959 = vld [vmem:[%s3 + $0x190] sm:$0xff]
  %v960 = vld [vmem:[%s3 + $0x198] sm:$0xff]
  %v961 = vld [vmem:[%s3 + $0x1a0] sm:$0xff]
  %v962 = vld [vmem:[%s3 + $0x1a8] sm:$0xff]
  %v963 = vld [vmem:[%s3 + $0x1b0] sm:$0xff]
  %v964 = vld [vmem:[%s3 + $0x1b8] sm:$0xff]
  %v965 = vld [vmem:[%s3 + $0x1c0] sm:$0xff]
  %v966 = vld [vmem:[%s3 + $0x1c8] sm:$0xff]
  %v967 = vld [vmem:[%s3 + $0x1d0] sm:$0xff]
  %v968 = vld [vmem:[%s3 + $0x1d8] sm:$0xff]
  %v969 = vld [vmem:[%s3 + $0x1e0] sm:$0xff]
  %v970 = vld [vmem:[%s3 + $0x1e8] sm:$0xff]
  %v971 = vld [vmem:[%s3 + $0x1f0] sm:$0xff]
  %v972 = vld [vmem:[%s3 + $0x1f8] sm:$0xff]
  %v973 = vld [vmem:[%s3 + $0x200] sm:$0xff]
  %v974 = vld [vmem:[%s3 + $0x208] sm:$0xff]
  %v975 = vld [vmem:[%s3 + $0x210] sm:$0xff]
  %v976 = vld [vmem:[%s3 + $0x218] sm:$0xff]
  %v977 = vld [vmem:[%s3 + $0x220] sm:$0xff]
  %v978 = vld [vmem:[%s3 + $0x228] sm:$0xff]
  %v979 = vld [vmem:[%s3 + $0x230] sm:$0xff]
  %v980 = vld [vmem:[%s3 + $0x238] sm:$0xff]
  %v981 = vld [vmem:[%s3 + $0x240] sm:$0xff]
  %v982 = vld [vmem:[%s3 + $0x248] sm:$0xff]
  %v983 = vld [vmem:[%s3 + $0x250] sm:$0xff]
  %v984 = vld [vmem:[%s3 + $0x258] sm:$0xff]
  %v985 = vld [vmem:[%s3 + $0x260] sm:$0xff]
  %v986 = vld [vmem:[%s3 + $0x268] sm:$0xff]
  %v987 = vld [vmem:[%s3 + $0x270] sm:$0xff]
  %v988 = vld [vmem:[%s3 + $0x278] sm:$0xff]
  %v989 = vld [vmem:[%s3 + $0x280] sm:$0xff]
  %v990 = vld [vmem:[%s3 + $0x288] sm:$0xff]
  %v991 = vld [vmem:[%s3 + $0x290] sm:$0xff]
  %v992 = vld [vmem:[%s3 + $0x298] sm:$0xff]
  %v993 = vld [vmem:[%s3 + $0x2a0] sm:$0xff]
  %v994 = vld [vmem:[%s3 + $0x2a8] sm:$0xff]
  %v995 = vld [vmem:[%s3 + $0x2b0] sm:$0xff]
  %v996 = vld [vmem:[%s3 + $0x2b8] sm:$0xff]
  %v997 = vld [vmem:[%s3 + $0x2c0] sm:$0xff]
  %v998 = vld [vmem:[%s3 + $0x2c8] sm:$0xff]
  %v999 = vld [vmem:[%s3 + $0x2d0] sm:$0xff]
  %v1000 = vld [vmem:[%s3 + $0x2d8] sm:$0xff]
  %v1001 = vld [vmem:[%s3 + $0x2e0] sm:$0xff]
  %v1002 = vld [vmem:[%s3 + $0x2e8] sm:$0xff]
  %v1003 = vld [vmem:[%s3 + $0x2f0] sm:$0xff]
  %v1004 = vld [vmem:[%s3 + $0x2f8] sm:$0xff]
  %v1005 = vld [vmem:[%s3 + $0x300] sm:$0xff]
  %v1006 = vld [vmem:[%s3 + $0x308] sm:$0xff]
  %v1007 = vld [vmem:[%s3 + $0x310] sm:$0xff]
  %v1008 = vld [vmem:[%s3 + $0x318] sm:$0xff]
  %v1009 = vld [vmem:[%s3 + $0x320] sm:$0xff]
  %v1010 = vld [vmem:[%s3 + $0x328] sm:$0xff]
  %v1011 = vld [vmem:[%s3 + $0x330] sm:$0xff]
  %v1012 = vld [vmem:[%s3 + $0x338] sm:$0xff]
  %v1013 = vld [vmem:[%s3 + $0x340] sm:$0xff]
  %v1014 = vld [vmem:[%s3 + $0x348] sm:$0xff]
  %v1015 = vld [vmem:[%s3 + $0x350] sm:$0xff]
  %v1016 = vld [vmem:[%s3 + $0x358] sm:$0xff]
  %v1017 = vld [vmem:[%s3 + $0x360] sm:$0xff]
  %v1018 = vld [vmem:[%s3 + $0x368] sm:$0xff]
  %v1019 = vld [vmem:[%s3 + $0x370] sm:$0xff]
  %v1020 = vld [vmem:[%s3 + $0x378] sm:$0xff]
  %v1021 = vld [vmem:[%s3 + $0x380] sm:$0xff]
  %v1022 = vld [vmem:[%s3 + $0x388] sm:$0xff]
  %v1023 = vld [vmem:[%s3 + $0x390] sm:$0xff]
  %v1024 = vld [vmem:[%s3 + $0x398] sm:$0xff]
  %v1025 = vld [vmem:[%s3 + $0x3a0] sm:$0xff]
  %v1026 = vld [vmem:[%s3 + $0x3a8] sm:$0xff]
  %v1027 = vld [vmem:[%s3 + $0x3b0] sm:$0xff]
  %v1028 = vld [vmem:[%s3 + $0x3b8] sm:$0xff]
  %v1029 = vld [vmem:[%s3 + $0x3c0] sm:$0xff]
  %v1030 = vld [vmem:[%s3 + $0x3c8] sm:$0xff]
  %v1031 = vld [vmem:[%s3 + $0x3d0] sm:$0xff]
  %v1032 = vld [vmem:[%s3 + $0x3d8] sm:$0xff]
  %v1033 = vld [vmem:[%s3 + $0x3e0] sm:$0xff]
  %v1034 = vld [vmem:[%s3 + $0x3e8] sm:$0xff]
  %v1035 = vld [vmem:[%s3 + $0x3f0] sm:$0xff]
  %v1036 = vld [vmem:[%s3 + $0x3f8] sm:$0xff]
  %v1037 = vld [vmem:[%s3 + $0x400] sm:$0xff]
  %v1038 = vld [vmem:[%s3 + $0x408] sm:$0xff]
  %v1039 = vld [vmem:[%s3 + $0x410] sm:$0xff]
  %v1040 = vld [vmem:[%s3 + $0x418] sm:$0xff]
  %v1041 = vld [vmem:[%s3 + $0x420] sm:$0xff]
  %v1042 = vld [vmem:[%s3 + $0x428] sm:$0xff]
  %v1043 = vld [vmem:[%s3 + $0x430] sm:$0xff]
  %v1044 = vld [vmem:[%s3 + $0x438] sm:$0xff]
  %v1045 = vld [vmem:[%s3 + $0x440] sm:$0xff]
  %v1046 = vld [vmem:[%s3 + $0x448] sm:$0xff]
  %v1047 = vld [vmem:[%s3 + $0x450] sm:$0xff]
  %v1048 = vld [vmem:[%s3 + $0x458] sm:$0xff]
  %v1049 = vld [vmem:[%s3 + $0x460] sm:$0xff]
  %v1050 = vld [vmem:[%s3 + $0x468] sm:$0xff]
  %v1051 = vld [vmem:[%s3 + $0x470] sm:$0xff]
  %v1052 = vld [vmem:[%s3 + $0x478] sm:$0xff]
  %v1053 = vld [vmem:[%s3 + $0x480] sm:$0xff]
  %v1054 = vld [vmem:[%s3 + $0x488] sm:$0xff]
  %v1055 = vld [vmem:[%s3 + $0x490] sm:$0xff]
  %v1056 = vld [vmem:[%s3 + $0x498] sm:$0xff]
  %v1057 = vld [vmem:[%s3 + $0x4a0] sm:$0xff]
  %v1058 = vld [vmem:[%s3 + $0x4a8] sm:$0xff]
  %v1059 = vld [vmem:[%s3 + $0x4b0] sm:$0xff]
  %v1060 = vld [vmem:[%s3 + $0x4b8] sm:$0xff]
  %v1061 = vld [vmem:[%s3 + $0x4c0] sm:$0xff]
  %v1062 = vld [vmem:[%s3 + $0x4c8] sm:$0xff]
  %v1063 = vld [vmem:[%s3 + $0x4d0] sm:$0xff]
  %v1064 = vld [vmem:[%s3 + $0x4d8] sm:$0xff]
  %v1065 = vld [vmem:[%s3 + $0x4e0] sm:$0xff]
  %v1066 = vld [vmem:[%s3 + $0x4e8] sm:$0xff]
  %v1067 = vld [vmem:[%s3 + $0x4f0] sm:$0xff]
  %v1068 = vld [vmem:[%s3 + $0x4f8] sm:$0xff]
  %v1069 = vld [vmem:[%s3 + $0x500] sm:$0xff]
  %v1070 = vld [vmem:[%s3 + $0x508] sm:$0xff]
  %v1071 = vld [vmem:[%s3 + $0x510] sm:$0xff]
  %v1072 = vld [vmem:[%s3 + $0x518] sm:$0xff]
  %v1073 = vld [vmem:[%s3 + $0x520] sm:$0xff]
  %v1074 = vld [vmem:[%s3 + $0x528] sm:$0xff]
  %v1075 = vld [vmem:[%s3 + $0x530] sm:$0xff]
  %v1076 = vld [vmem:[%s3 + $0x538] sm:$0xff]
  %v1077 = vld [vmem:[%s3 + $0x540] sm:$0xff]
  %v1078 = vld [vmem:[%s3 + $0x548] sm:$0xff]
  %v1079 = vld [vmem:[%s3 + $0x550] sm:$0xff]
  %v1080 = vld [vmem:[%s3 + $0x558] sm:$0xff]
  %v1081 = vld [vmem:[%s3 + $0x560] sm:$0xff]
  %v1082 = vld [vmem:[%s3 + $0x568] sm:$0xff]
  %v1083 = vld [vmem:[%s3 + $0x570] sm:$0xff]
  %v1084 = vld [vmem:[%s3 + $0x578] sm:$0xff]
  %v1085 = vld [vmem:[%s3 + $0x580] sm:$0xff]
  %v1086 = vld [vmem:[%s3 + $0x588] sm:$0xff]
  %v1087 = vld [vmem:[%s3 + $0x590] sm:$0xff]
  %v1088 = vld [vmem:[%s3 + $0x598] sm:$0xff]
  %v1089 = vld [vmem:[%s3 + $0x5a0] sm:$0xff]
  %v1090 = vld [vmem:[%s3 + $0x5a8] sm:$0xff]
  %v1091 = vld [vmem:[%s3 + $0x5b0] sm:$0xff]
  %v1092 = vld [vmem:[%s3 + $0x5b8] sm:$0xff]
  %v1093 = vld [vmem:[%s3 + $0x5c0] sm:$0xff]
  %v1094 = vld [vmem:[%s3 + $0x5c8] sm:$0xff]
  %v1095 = vld [vmem:[%s3 + $0x5d0] sm:$0xff]
  %v1096 = vld [vmem:[%s3 + $0x5d8] sm:$0xff]
  %v1097 = vld [vmem:[%s3 + $0x5e0] sm:$0xff]
  %v1098 = vld [vmem:[%s3 + $0x5e8] sm:$0xff]
  %v1099 = vld [vmem:[%s3 + $0x5f0] sm:$0xff]
  %v1100 = vld [vmem:[%s3 + $0x5f8] sm:$0xff]
  %v1101 = vld [vmem:[%s3 + $0x600] sm:$0xff]
  %v1102 = vld [vmem:[%s3 + $0x608] sm:$0xff]
  %v1103 = vld [vmem:[%s3 + $0x610] sm:$0xff]
  %v1104 = vld [vmem:[%s3 + $0x618] sm:$0xff]
  %v1105 = vld [vmem:[%s3 + $0x620] sm:$0xff]
  %v1106 = vld [vmem:[%s3 + $0x628] sm:$0xff]
  %v1107 = vld [vmem:[%s3 + $0x630] sm:$0xff]
  %v1108 = vld [vmem:[%s3 + $0x638] sm:$0xff]
  %v1109 = vld [vmem:[%s3 + $0x640] sm:$0xff]
  %v1110 = vld [vmem:[%s3 + $0x648] sm:$0xff]
  %v1111 = vld [vmem:[%s3 + $0x650] sm:$0xff]
  %v1112 = vld [vmem:[%s3 + $0x658] sm:$0xff]
  %v1113 = vld [vmem:[%s3 + $0x660] sm:$0xff]
  %v1114 = vld [vmem:[%s3 + $0x668] sm:$0xff]
  %v1115 = vld [vmem:[%s3 + $0x670] sm:$0xff]
  %v1116 = vld [vmem:[%s3 + $0x678] sm:$0xff]
  %v1117 = vld [vmem:[%s3 + $0x680] sm:$0xff]
  %v1118 = vld [vmem:[%s3 + $0x688] sm:$0xff]
  %v1119 = vld [vmem:[%s3 + $0x690] sm:$0xff]
  %v1120 = vld [vmem:[%s3 + $0x698] sm:$0xff]
  %v1121 = vld [vmem:[%s3 + $0x6a0] sm:$0xff]
  %v1122 = vld [vmem:[%s3 + $0x6a8] sm:$0xff]
  %v1123 = vld [vmem:[%s3 + $0x6b0] sm:$0xff]
  %v1124 = vld [vmem:[%s3 + $0x6b8] sm:$0xff]
  %v1125 = vld [vmem:[%s3 + $0x6c0] sm:$0xff]
  %v1126 = vld [vmem:[%s3 + $0x6c8] sm:$0xff]
  %v1127 = vld [vmem:[%s3 + $0x6d0] sm:$0xff]
  %v1128 = vld [vmem:[%s3 + $0x6d8] sm:$0xff]
  %v1129 = vld [vmem:[%s3 + $0x6e0] sm:$0xff]
  %v1130 = vld [vmem:[%s3 + $0x6e8] sm:$0xff]
  %v1131 = vld [vmem:[%s3 + $0x6f0] sm:$0xff]
  %v1132 = vld [vmem:[%s3 + $0x6f8] sm:$0xff]
  %v1133 = vld [vmem:[%s3 + $0x700] sm:$0xff]
  %v1134 = vld [vmem:[%s3 + $0x708] sm:$0xff]
  %v1135 = vld [vmem:[%s3 + $0x710] sm:$0xff]
  %v1136 = vld [vmem:[%s3 + $0x718] sm:$0xff]
  %v1137 = vld [vmem:[%s3 + $0x720] sm:$0xff]
  %v1138 = vld [vmem:[%s3 + $0x728] sm:$0xff]
  %v1139 = vld [vmem:[%s3 + $0x730] sm:$0xff]
  %v1140 = vld [vmem:[%s3 + $0x738] sm:$0xff]
  %v1141 = vld [vmem:[%s3 + $0x740] sm:$0xff]
  %v1142 = vld [vmem:[%s3 + $0x748] sm:$0xff]
  %v1143 = vld [vmem:[%s3 + $0x750] sm:$0xff]
  %v1144 = vld [vmem:[%s3 + $0x758] sm:$0xff]
  %v1145 = vld [vmem:[%s3 + $0x760] sm:$0xff]
  %v1146 = vld [vmem:[%s3 + $0x768] sm:$0xff]
  %v1147 = vld [vmem:[%s3 + $0x770] sm:$0xff]
  %v1148 = vld [vmem:[%s3 + $0x778] sm:$0xff]
  %v1149 = vld [vmem:[%s3 + $0x780] sm:$0xff]
  %v1150 = vld [vmem:[%s3 + $0x788] sm:$0xff]
  %v1151 = vld [vmem:[%s3 + $0x790] sm:$0xff]
  %v1152 = vld [vmem:[%s3 + $0x798] sm:$0xff]
  %v1153 = vld [vmem:[%s3 + $0x7a0] sm:$0xff]
  %v1154 = vld [vmem:[%s3 + $0x7a8] sm:$0xff]
  %v1155 = vld [vmem:[%s3 + $0x7b0] sm:$0xff]
  %v1156 = vld [vmem:[%s3 + $0x7b8] sm:$0xff]
  %v1157 = vld [vmem:[%s3 + $0x7c0] sm:$0xff]
  %v1158 = vld [vmem:[%s3 + $0x7c8] sm:$0xff]
  %v1159 = vld [vmem:[%s3 + $0x7d0] sm:$0xff]
  %v1160 = vld [vmem:[%s3 + $0x7d8] sm:$0xff]
  %v1161 = vld [vmem:[%s3 + $0x7e0] sm:$0xff]
  %v1162 = vld [vmem:[%s3 + $0x7e8] sm:$0xff]
  %v1163 = vld [vmem:[%s3 + $0x7f0] sm:$0xff]
  %v1164 = vld [vmem:[%s3 + $0x7f8] sm:$0xff]
  %v1165 = vld [vmem:[%s3 + $0x800] sm:$0xff]
  %v1166 = vld [vmem:[%s3 + $0x808] sm:$0xff]
  %v1167 = vld [vmem:[%s3 + $0x810] sm:$0xff]
  %v1168 = vld [vmem:[%s3 + $0x818] sm:$0xff]
  %v1169 = vld [vmem:[%s3 + $0x820] sm:$0xff]
  %v1170 = vld [vmem:[%s3 + $0x828] sm:$0xff]
  %v1171 = vld [vmem:[%s3 + $0x830] sm:$0xff]
  %v1172 = vld [vmem:[%s3 + $0x838] sm:$0xff]
  %v1173 = vld [vmem:[%s3 + $0x840] sm:$0xff]
  %v1174 = vld [vmem:[%s3 + $0x848] sm:$0xff]
  %v1175 = vld [vmem:[%s3 + $0x850] sm:$0xff]
  %v1176 = vld [vmem:[%s3 + $0x858] sm:$0xff]
  %v1177 = vld [vmem:[%s3 + $0x860] sm:$0xff]
  %v1178 = vld [vmem:[%s3 + $0x868] sm:$0xff]
  %v1179 = vld [vmem:[%s3 + $0x870] sm:$0xff]
  %v1180 = vld [vmem:[%s3 + $0x878] sm:$0xff]
  %v1181 = vld [vmem:[%s3 + $0x880] sm:$0xff]
  %v1182 = vld [vmem:[%s3 + $0x888] sm:$0xff]
  %v1183 = vld [vmem:[%s3 + $0x890] sm:$0xff]
  %v1184 = vld [vmem:[%s3 + $0x898] sm:$0xff]
  %v1185 = vld [vmem:[%s3 + $0x8a0] sm:$0xff]
  %v1186 = vld [vmem:[%s3 + $0x8a8] sm:$0xff]
  %v1187 = vld [vmem:[%s3 + $0x8b0] sm:$0xff]
  %v1188 = vld [vmem:[%s3 + $0x8b8] sm:$0xff]
  %v1189 = vld [vmem:[%s3 + $0x8c0] sm:$0xff]
  %v1190 = vld [vmem:[%s3 + $0x8c8] sm:$0xff]
  %v1191 = vld [vmem:[%s3 + $0x8d0] sm:$0xff]
  %v1192 = vld [vmem:[%s3 + $0x8d8] sm:$0xff]
  %v1193 = vld [vmem:[%s3 + $0x8e0] sm:$0xff]
  %v1194 = vld [vmem:[%s3 + $0x8e8] sm:$0xff]
  %v1195 = vld [vmem:[%s3 + $0x8f0] sm:$0xff]
  %v1196 = vld [vmem:[%s3 + $0x8f8] sm:$0xff]
  %v1197 = vld [vmem:[%s3 + $0x900] sm:$0xff]
  %v1198 = vld [vmem:[%s3 + $0x908] sm:$0xff]
  %v1199 = vld [vmem:[%s3 + $0x910] sm:$0xff]
  %v1200 = vld [vmem:[%s3 + $0x918] sm:$0xff]
  %v1201 = vld [vmem:[%s3 + $0x920] sm:$0xff]
  %v1202 = vld [vmem:[%s3 + $0x928] sm:$0xff]
  %v1203 = vld [vmem:[%s3 + $0x930] sm:$0xff]
  %v1204 = vld [vmem:[%s3 + $0x938] sm:$0xff]
  %v1205 = vld [vmem:[%s3 + $0x940] sm:$0xff]
  %v1206 = vld [vmem:[%s3 + $0x948] sm:$0xff]
  %v1207 = vld [vmem:[%s3 + $0x950] sm:$0xff]
  %v1208 = vld [vmem:[%s3 + $0x958] sm:$0xff]
  %v1209 = vld [vmem:[%s3 + $0x960] sm:$0xff]
  %v1210 = vld [vmem:[%s3 + $0x968] sm:$0xff]
  %v1211 = vld [vmem:[%s3 + $0x970] sm:$0xff]
  %v1212 = vld [vmem:[%s3 + $0x978] sm:$0xff]
  %v1213 = vld [vmem:[%s3 + $0x980] sm:$0xff]
  %v1214 = vld [vmem:[%s3 + $0x988] sm:$0xff]
  %v1215 = vld [vmem:[%s3 + $0x990] sm:$0xff]
  %v1216 = vld [vmem:[%s3 + $0x998] sm:$0xff]
  %v1217 = vld [vmem:[%s3 + $0x9a0] sm:$0xff]
  %v1218 = vld [vmem:[%s3 + $0x9a8] sm:$0xff]
  %v1219 = vld [vmem:[%s3 + $0x9b0] sm:$0xff]
  %v1220 = vld [vmem:[%s3 + $0x9b8] sm:$0xff]
  %v1221 = vld [vmem:[%s3 + $0x9c0] sm:$0xff]
  %v1222 = vld [vmem:[%s3 + $0x9c8] sm:$0xff]
  %v1223 = vld [vmem:[%s3 + $0x9d0] sm:$0xff]
  %v1224 = vld [vmem:[%s3 + $0x9d8] sm:$0xff]
  %v1225 = vld [vmem:[%s3 + $0x9e0] sm:$0xff]
  %v1226 = vld [vmem:[%s3 + $0x9e8] sm:$0xff]
  %v1227 = vld [vmem:[%s3 + $0x9f0] sm:$0xff]
  %v1228 = vld [vmem:[%s3 + $0x9f8] sm:$0xff]
  %v1229 = vld [vmem:[%s3 + $0xa00] sm:$0xff]
  %v1230 = vld [vmem:[%s3 + $0xa08] sm:$0xff]
  %v1231 = vld [vmem:[%s3 + $0xa10] sm:$0xff]
  %v1232 = vld [vmem:[%s3 + $0xa18] sm:$0xff]
  %v1233 = vld [vmem:[%s3 + $0xa20] sm:$0xff]
  %v1234 = vld [vmem:[%s3 + $0xa28] sm:$0xff]
  %v1235 = vld [vmem:[%s3 + $0xa30] sm:$0xff]
  %v1236 = vld [vmem:[%s3 + $0xa38] sm:$0xff]
  %v1237 = vld [vmem:[%s3 + $0xa40] sm:$0xff]
  %v1238 = vld [vmem:[%s3 + $0xa48] sm:$0xff]
  %v1239 = vld [vmem:[%s3 + $0xa50] sm:$0xff]
  %v1240 = vld [vmem:[%s3 + $0xa58] sm:$0xff]
  %v1241 = vld [vmem:[%s3 + $0xa60] sm:$0xff]
  %v1242 = vld [vmem:[%s3 + $0xa68] sm:$0xff]
  %v1243 = vld [vmem:[%s3 + $0xa70] sm:$0xff]
  %v1244 = vld [vmem:[%s3 + $0xa78] sm:$0xff]
  %v1245 = vld [vmem:[%s3 + $0xa80] sm:$0xff]
  %v1246 = vld [vmem:[%s3 + $0xa88] sm:$0xff]
  %v1247 = vld [vmem:[%s3 + $0xa90] sm:$0xff]
  %v1248 = vld [vmem:[%s3 + $0xa98] sm:$0xff]
  %v1249 = vld [vmem:[%s3 + $0xaa0] sm:$0xff]
  %v1250 = vld [vmem:[%s3 + $0xaa8] sm:$0xff]
  %v1251 = vld [vmem:[%s3 + $0xab0] sm:$0xff]
  %v1252 = vld [vmem:[%s3 + $0xab8] sm:$0xff]
  %v1253 = vld [vmem:[%s3 + $0xac0] sm:$0xff]
  %v1254 = vld [vmem:[%s3 + $0xac8] sm:$0xff]
  %v1255 = vld [vmem:[%s3 + $0xad0] sm:$0xff]
  %v1256 = vld [vmem:[%s3 + $0xad8] sm:$0xff]
  %v1257 = vld [vmem:[%s3 + $0xae0] sm:$0xff]
  %v1258 = vld [vmem:[%s3 + $0xae8] sm:$0xff]
  %v1259 = vld [vmem:[%s3 + $0xaf0] sm:$0xff]
  %v1260 = vld [vmem:[%s3 + $0xaf8] sm:$0xff]
  %v1261 = vld [vmem:[%s3 + $0xb00] sm:$0xff]
  %v1262 = vld [vmem:[%s3 + $0xb08] sm:$0xff]
  %v1263 = vld [vmem:[%s3 + $0xb10] sm:$0xff]
  %v1264 = vld [vmem:[%s3 + $0xb18] sm:$0xff]
  %v1265 = vld [vmem:[%s3 + $0xb20] sm:$0xff]
  %v1266 = vld [vmem:[%s3 + $0xb28] sm:$0xff]
  %v1267 = vld [vmem:[%s3 + $0xb30] sm:$0xff]
  %v1268 = vld [vmem:[%s3 + $0xb38] sm:$0xff]
  %v1269 = vld [vmem:[%s3 + $0xb40] sm:$0xff]
  %v1270 = vld [vmem:[%s3 + $0xb48] sm:$0xff]
  %v1271 = vld [vmem:[%s3 + $0xb50] sm:$0xff]
  %v1272 = vld [vmem:[%s3 + $0xb58] sm:$0xff]
  %v1273 = vld [vmem:[%s3 + $0xb60] sm:$0xff]
  %v1274 = vld [vmem:[%s3 + $0xb68] sm:$0xff]
  %v1275 = vld [vmem:[%s3 + $0xb70] sm:$0xff]
  %v1276 = vld [vmem:[%s3 + $0xb78] sm:$0xff]
  %v1277 = vld [vmem:[%s3 + $0xb80] sm:$0xff]
  %v1278 = vld [vmem:[%s3 + $0xb88] sm:$0xff]
  %v1279 = vld [vmem:[%s3 + $0xb90] sm:$0xff]
  %v1280 = vld [vmem:[%s3 + $0xb98] sm:$0xff]
  %v1281 = vld [vmem:[%s3 + $0xba0] sm:$0xff]
  %v1282 = vld [vmem:[%s3 + $0xba8] sm:$0xff]
  %v1283 = vld [vmem:[%s3 + $0xbb0] sm:$0xff]
  %v1284 = vld [vmem:[%s3 + $0xbb8] sm:$0xff]
  %v1285 = vld [vmem:[%s3 + $0xbc0] sm:$0xff]
  %v1286 = vld [vmem:[%s3 + $0xbc8] sm:$0xff]
  %v1287 = vld [vmem:[%s3 + $0xbd0] sm:$0xff]
  %v1288 = vld [vmem:[%s3 + $0xbd8] sm:$0xff]
  %v1289 = vld [vmem:[%s3 + $0xbe0] sm:$0xff]
  %v1290 = vld [vmem:[%s3 + $0xbe8] sm:$0xff]
  %v1291 = vld [vmem:[%s3 + $0xbf0] sm:$0xff]
  %v1292 = vld [vmem:[%s3 + $0xbf8] sm:$0xff]
  %v1293 = vld [vmem:[%s3 + $0xc00] sm:$0xff]
  %v1294 = vld [vmem:[%s3 + $0xc08] sm:$0xff]
  %v1295 = vld [vmem:[%s3 + $0xc10] sm:$0xff]
  %v1296 = vld [vmem:[%s3 + $0xc18] sm:$0xff]
  %v1297 = vld [vmem:[%s3 + $0xc20] sm:$0xff]
  %v1298 = vld [vmem:[%s3 + $0xc28] sm:$0xff]
  %v1299 = vld [vmem:[%s3 + $0xc30] sm:$0xff]
  %v1300 = vld [vmem:[%s3 + $0xc38] sm:$0xff]
  %v1301 = vld [vmem:[%s3 + $0xc40] sm:$0xff]
  %v1302 = vld [vmem:[%s3 + $0xc48] sm:$0xff]
  %v1303 = vld [vmem:[%s3 + $0xc50] sm:$0xff]
  %v1304 = vld [vmem:[%s3 + $0xc58] sm:$0xff]
  %v1305 = vld [vmem:[%s3 + $0xc60] sm:$0xff]
  %v1306 = vld [vmem:[%s3 + $0xc68] sm:$0xff]
  %v1307 = vld [vmem:[%s3 + $0xc70] sm:$0xff]
  %v1308 = vld [vmem:[%s3 + $0xc78] sm:$0xff]
  %v1309 = vld [vmem:[%s3 + $0xc80] sm:$0xff]
  %v1310 = vld [vmem:[%s3 + $0xc88] sm:$0xff]
  %v1311 = vld [vmem:[%s3 + $0xc90] sm:$0xff]
  %v1312 = vld [vmem:[%s3 + $0xc98] sm:$0xff]
  %v1313 = vld [vmem:[%s3 + $0xca0] sm:$0xff]
  %v1314 = vld [vmem:[%s3 + $0xca8] sm:$0xff]
  %v1315 = vld [vmem:[%s3 + $0xcb0] sm:$0xff]
  %v1316 = vld [vmem:[%s3 + $0xcb8] sm:$0xff]
  %v1317 = vld [vmem:[%s3 + $0xcc0] sm:$0xff]
  %v1318 = vld [vmem:[%s3 + $0xcc8] sm:$0xff]
  %v1319 = vld [vmem:[%s3 + $0xcd0] sm:$0xff]
  %v1320 = vld [vmem:[%s3 + $0xcd8] sm:$0xff]
  %v1321 = vld [vmem:[%s3 + $0xce0] sm:$0xff]
  %v1322 = vld [vmem:[%s3 + $0xce8] sm:$0xff]
  %v1323 = vld [vmem:[%s3 + $0xcf0] sm:$0xff]
  %v1324 = vld [vmem:[%s3 + $0xcf8] sm:$0xff]
  %v1325 = vld [vmem:[%s3 + $0xd00] sm:$0xff]
  %v1326 = vld [vmem:[%s3 + $0xd08] sm:$0xff]
  %v1327 = vld [vmem:[%s3 + $0xd10] sm:$0xff]
  %v1328 = vld [vmem:[%s3 + $0xd18] sm:$0xff]
  %v1329 = vld [vmem:[%s3 + $0xd20] sm:$0xff]
  %v1330 = vld [vmem:[%s3 + $0xd28] sm:$0xff]
  %v1331 = vld [vmem:[%s3 + $0xd30] sm:$0xff]
  %v1332 = vld [vmem:[%s3 + $0xd38] sm:$0xff]
  %v1333 = vld [vmem:[%s3 + $0xd40] sm:$0xff]
  %v1334 = vld [vmem:[%s3 + $0xd48] sm:$0xff]
  %v1335 = vld [vmem:[%s3 + $0xd50] sm:$0xff]
  %v1336 = vld [vmem:[%s3 + $0xd58] sm:$0xff]
  %v1337 = vld [vmem:[%s3 + $0xd60] sm:$0xff]
  %v1338 = vld [vmem:[%s3 + $0xd68] sm:$0xff]
  %v1339 = vld [vmem:[%s3 + $0xd70] sm:$0xff]
  %v1340 = vld [vmem:[%s3 + $0xd78] sm:$0xff]
  %v1341 = vld [vmem:[%s3 + $0xd80] sm:$0xff]
  %v1342 = vld [vmem:[%s3 + $0xd88] sm:$0xff]
  %v1343 = vld [vmem:[%s3 + $0xd90] sm:$0xff]
  %v1344 = vld [vmem:[%s3 + $0xd98] sm:$0xff]
  %v1345 = vld [vmem:[%s3 + $0xda0] sm:$0xff]
  %v1346 = vld [vmem:[%s3 + $0xda8] sm:$0xff]
  %v1347 = vld [vmem:[%s3 + $0xdb0] sm:$0xff]
  %v1348 = vld [vmem:[%s3 + $0xdb8] sm:$0xff]
  %v1349 = vld [vmem:[%s3 + $0xdc0] sm:$0xff]
  %v1350 = vld [vmem:[%s3 + $0xdc8] sm:$0xff]
  %v1351 = vld [vmem:[%s3 + $0xdd0] sm:$0xff]
  %v1352 = vld [vmem:[%s3 + $0xdd8] sm:$0xff]
  %v1353 = vld [vmem:[%s3 + $0xde0] sm:$0xff]
  %v1354 = vld [vmem:[%s3 + $0xde8] sm:$0xff]
  %v1355 = vld [vmem:[%s3 + $0xdf0] sm:$0xff]
  %v1356 = vld [vmem:[%s3 + $0xdf8] sm:$0xff]
  %v1357 = vld [vmem:[%s3 + $0xe00] sm:$0xff]
  %v1358 = vld [vmem:[%s3 + $0xe08] sm:$0xff]
  %v1359 = vld [vmem:[%s3 + $0xe10] sm:$0xff]
  %v1360 = vld [vmem:[%s3 + $0xe18] sm:$0xff]
  %v1361 = vld [vmem:[%s3 + $0xe20] sm:$0xff]
  %v1362 = vld [vmem:[%s3 + $0xe28] sm:$0xff]
  %v1363 = vld [vmem:[%s3 + $0xe30] sm:$0xff]
  %v1364 = vld [vmem:[%s3 + $0xe38] sm:$0xff]
  %v1365 = vld [vmem:[%s3 + $0xe40] sm:$0xff]
  %v1366 = vld [vmem:[%s3 + $0xe48] sm:$0xff]
  %v1367 = vld [vmem:[%s3 + $0xe50] sm:$0xff]
  %v1368 = vld [vmem:[%s3 + $0xe58] sm:$0xff]
  %v1369 = vld [vmem:[%s3 + $0xe60] sm:$0xff]
  %v1370 = vld [vmem:[%s3 + $0xe68] sm:$0xff]
  %v1371 = vld [vmem:[%s3 + $0xe70] sm:$0xff]
  %v1372 = vld [vmem:[%s3 + $0xe78] sm:$0xff]
  %v1373 = vld [vmem:[%s3 + $0xe80] sm:$0xff]
  %v1374 = vld [vmem:[%s3 + $0xe88] sm:$0xff]
  %v1375 = vld [vmem:[%s3 + $0xe90] sm:$0xff]
  %v1376 = vld [vmem:[%s3 + $0xe98] sm:$0xff]
  %v1377 = vld [vmem:[%s3 + $0xea0] sm:$0xff]
  %v1378 = vld [vmem:[%s3 + $0xea8] sm:$0xff]
  %v1379 = vld [vmem:[%s3 + $0xeb0] sm:$0xff]
  %v1380 = vld [vmem:[%s3 + $0xeb8] sm:$0xff]
  %v1381 = vld [vmem:[%s3 + $0xec0] sm:$0xff]
  %v1382 = vld [vmem:[%s3 + $0xec8] sm:$0xff]
  %v1383 = vld [vmem:[%s3 + $0xed0] sm:$0xff]
  %v1384 = vld [vmem:[%s3 + $0xed8] sm:$0xff]
  %v1385 = vld [vmem:[%s3 + $0xee0] sm:$0xff]
  %v1386 = vld [vmem:[%s3 + $0xee8] sm:$0xff]
  %v1387 = vld [vmem:[%s3 + $0xef0] sm:$0xff]
  %v1388 = vld [vmem:[%s3 + $0xef8] sm:$0xff]
  %v1389 = vld [vmem:[%s3 + $0xf00] sm:$0xff]
  %v1390 = vld [vmem:[%s3 + $0xf08] sm:$0xff]
  %v1391 = vld [vmem:[%s3 + $0xf10] sm:$0xff]
  %v1392 = vld [vmem:[%s3 + $0xf18] sm:$0xff]
  %v1393 = vld [vmem:[%s3 + $0xf20] sm:$0xff]
  %v1394 = vld [vmem:[%s3 + $0xf28] sm:$0xff]
  %v1395 = vld [vmem:[%s3 + $0xf30] sm:$0xff]
  %v1396 = vld [vmem:[%s3 + $0xf38] sm:$0xff]
  %v1397 = vld [vmem:[%s3 + $0xf40] sm:$0xff]
  %v1398 = vld [vmem:[%s3 + $0xf48] sm:$0xff]
  %v1399 = vld [vmem:[%s3 + $0xf50] sm:$0xff]
  %v1400 = vld [vmem:[%s3 + $0xf58] sm:$0xff]
  %v1401 = vld [vmem:[%s3 + $0xf60] sm:$0xff]
  %v1402 = vld [vmem:[%s3 + $0xf68] sm:$0xff]
  %v1403 = vld [vmem:[%s3 + $0xf70] sm:$0xff]
  %v1404 = vld [vmem:[%s3 + $0xf78] sm:$0xff]
  %v1405 = vld [vmem:[%s3 + $0xf80] sm:$0xff]
  %v1406 = vld [vmem:[%s3 + $0xf88] sm:$0xff]
  %v1407 = vld [vmem:[%s3 + $0xf90] sm:$0xff]
  %v1408 = vld [vmem:[%s3 + $0xf98] sm:$0xff]
  %v1409 = vld [vmem:[%s3 + $0xfa0] sm:$0xff]
  %v1410 = vld [vmem:[%s3 + $0xfa8] sm:$0xff]
  %v1411 = vld [vmem:[%s3 + $0xfb0] sm:$0xff]
  %v1412 = vld [vmem:[%s3 + $0xfb8] sm:$0xff]
  %v1413 = vld [vmem:[%s3 + $0xfc0] sm:$0xff]
  %v1414 = vld [vmem:[%s3 + $0xfc8] sm:$0xff]
  %v1415 = vld [vmem:[%s3 + $0xfd0] sm:$0xff]
  %v1416 = vld [vmem:[%s3 + $0xfd8] sm:$0xff]
  %v1417 = vld [vmem:[%s3 + $0xfe0] sm:$0xff]
  %v1418 = vld [vmem:[%s3 + $0xfe8] sm:$0xff]
  %v1419 = vld [vmem:[%s3 + $0xff0] sm:$0xff]
  %v1420 = vld [vmem:[%s3 + $0xff8] sm:$0xff]
  %v1421 = vld [vmem:[%s3 + $0x1000] sm:$0xff]
  %v1422 = vld [vmem:[%s3 + $0x1008] sm:$0xff]
  %v1423 = vld [vmem:[%s3 + $0x1010] sm:$0xff]
  %v1424 = vld [vmem:[%s3 + $0x1018] sm:$0xff]
  %v1425 = vld [vmem:[%s3 + $0x1020] sm:$0xff]
  %v1426 = vld [vmem:[%s3 + $0x1028] sm:$0xff]
  %v1427 = vld [vmem:[%s3 + $0x1030] sm:$0xff]
  %v1428 = vld [vmem:[%s3 + $0x1038] sm:$0xff]
  %v1429 = vld [vmem:[%s3 + $0x1040] sm:$0xff]
  %v1430 = vld [vmem:[%s3 + $0x1048] sm:$0xff]
  %v1431 = vld [vmem:[%s3 + $0x1050] sm:$0xff]
  %v1432 = vld [vmem:[%s3 + $0x1058] sm:$0xff]
  %v1433 = vld [vmem:[%s3 + $0x1060] sm:$0xff]
  %v1434 = vld [vmem:[%s3 + $0x1068] sm:$0xff]
  %v1435 = vld [vmem:[%s3 + $0x1070] sm:$0xff]
  %v1436 = vld [vmem:[%s3 + $0x1078] sm:$0xff]
  %v1437 = vld [vmem:[%s3 + $0x1080] sm:$0xff]
  %v1438 = vld [vmem:[%s3 + $0x1088] sm:$0xff]
  %v1439 = vld [vmem:[%s3 + $0x1090] sm:$0xff]
  %v1440 = vld [vmem:[%s3 + $0x1098] sm:$0xff]
  %v1441 = vld [vmem:[%s3 + $0x10a0] sm:$0xff]
  %v1442 = vld [vmem:[%s3 + $0x10a8] sm:$0xff]
  %v1443 = vld [vmem:[%s3 + $0x10b0] sm:$0xff]
  %v1444 = vld [vmem:[%s3 + $0x10b8] sm:$0xff]
  %v1445 = vld [vmem:[%s3 + $0x10c0] sm:$0xff]
  %v1446 = vld [vmem:[%s3 + $0x10c8] sm:$0xff]
  %v1447 = vld [vmem:[%s3 + $0x10d0] sm:$0xff]
  %v1448 = vld [vmem:[%s3 + $0x10d8] sm:$0xff]
  %v1449 = vld [vmem:[%s3 + $0x10e0] sm:$0xff]
  %v1450 = vld [vmem:[%s3 + $0x10e8] sm:$0xff]
  %v1451 = vld [vmem:[%s3 + $0x10f0] sm:$0xff]
  %v1452 = vld [vmem:[%s3 + $0x10f8] sm:$0xff]
  %v1453 = vld [vmem:[%s3 + $0x1100] sm:$0xff]
  %v1454 = vld [vmem:[%s3 + $0x1108] sm:$0xff]
  %v1455 = vld [vmem:[%s3 + $0x1110] sm:$0xff]
  %v1456 = vld [vmem:[%s3 + $0x1118] sm:$0xff]
  %v1457 = vld [vmem:[%s3 + $0x1120] sm:$0xff]
  %v1458 = vld [vmem:[%s3 + $0x1128] sm:$0xff]
  %v1459 = vld [vmem:[%s3 + $0x1130] sm:$0xff]
  %v1460 = vld [vmem:[%s3 + $0x1138] sm:$0xff]
  %v1461 = vld [vmem:[%s3 + $0x1140] sm:$0xff]
  %v1462 = vld [vmem:[%s3 + $0x1148] sm:$0xff]
  %v1463 = vld [vmem:[%s3 + $0x1150] sm:$0xff]
  %v1464 = vld [vmem:[%s3 + $0x1158] sm:$0xff]
  %v1465 = vld [vmem:[%s3 + $0x1160] sm:$0xff]
  %v1466 = vld [vmem:[%s3 + $0x1168] sm:$0xff]
  %v1467 = vld [vmem:[%s3 + $0x1170] sm:$0xff]
  %v1468 = vld [vmem:[%s3 + $0x1178] sm:$0xff]
  %v1469 = vld [vmem:[%s3 + $0x1180] sm:$0xff]
  %v1470 = vld [vmem:[%s3 + $0x1188] sm:$0xff]
  %v1471 = vld [vmem:[%s3 + $0x1190] sm:$0xff]
  %v1472 = vld [vmem:[%s3 + $0x1198] sm:$0xff]
  %v1473 = vld [vmem:[%s3 + $0x11a0] sm:$0xff]
  %v1474 = vld [vmem:[%s3 + $0x11a8] sm:$0xff]
  %v1475 = vld [vmem:[%s3 + $0x11b0] sm:$0xff]
  %v1476 = vld [vmem:[%s3 + $0x11b8] sm:$0xff]
  %v1477 = vld [vmem:[%s3 + $0x11c0] sm:$0xff]
  %v1478 = vld [vmem:[%s3 + $0x11c8] sm:$0xff]
  %v1479 = vld [vmem:[%s3 + $0x11d0] sm:$0xff]
  %v1480 = vld [vmem:[%s3 + $0x11d8] sm:$0xff]
  %v1481 = vld [vmem:[%s3 + $0x11e0] sm:$0xff]
  %v1482 = vld [vmem:[%s3 + $0x11e8] sm:$0xff]
  %v1483 = vld [vmem:[%s3 + $0x11f0] sm:$0xff]
  %v1484 = vld [vmem:[%s3 + $0x11f8] sm:$0xff]
  %v1485 = vld [vmem:[%s3 + $0x1200] sm:$0xff]
  %v1486 = vld [vmem:[%s3 + $0x1208] sm:$0xff]
  %v1487 = vld [vmem:[%s3 + $0x1210] sm:$0xff]
  %v1488 = vld [vmem:[%s3 + $0x1218] sm:$0xff]
  %v1489 = vld [vmem:[%s3 + $0x1220] sm:$0xff]
  %v1490 = vld [vmem:[%s3 + $0x1228] sm:$0xff]
  %v1491 = vld [vmem:[%s3 + $0x1230] sm:$0xff]
  %v1492 = vld [vmem:[%s3 + $0x1238] sm:$0xff]
  %v1493 = vld [vmem:[%s3 + $0x1240] sm:$0xff]
  %v1494 = vld [vmem:[%s3 + $0x1248] sm:$0xff]
  %v1495 = vld [vmem:[%s3 + $0x1250] sm:$0xff]
  %v1496 = vld [vmem:[%s3 + $0x1258] sm:$0xff]
  %v1497 = vld [vmem:[%s3 + $0x1260] sm:$0xff]
  %v1498 = vld [vmem:[%s3 + $0x1268] sm:$0xff]
  %v1499 = vld [vmem:[%s3 + $0x1270] sm:$0xff]
  %v1500 = vld [vmem:[%s3 + $0x1278] sm:$0xff]
  %v1501 = vld [vmem:[%s3 + $0x1280] sm:$0xff]
  %v1502 = vld [vmem:[%s3 + $0x1288] sm:$0xff]
  %v1503 = vld [vmem:[%s3 + $0x1290] sm:$0xff]
  %v1504 = vld [vmem:[%s3 + $0x1298] sm:$0xff]
  %v1505 = vld [vmem:[%s3 + $0x12a0] sm:$0xff]
  %v1506 = vld [vmem:[%s3 + $0x12a8] sm:$0xff]
  %v1507 = vld [vmem:[%s3 + $0x12b0] sm:$0xff]
  %v1508 = vld [vmem:[%s3 + $0x12b8] sm:$0xff]
  %v1509 = vld [vmem:[%s3 + $0x12c0] sm:$0xff]
  %v1510 = vld [vmem:[%s3 + $0x12c8] sm:$0xff]
  %v1511 = vld [vmem:[%s3 + $0x12d0] sm:$0xff]
  %v1512 = vld [vmem:[%s3 + $0x12d8] sm:$0xff]
  %v1513 = vld [vmem:[%s3 + $0x12e0] sm:$0xff]
  %v1514 = vld [vmem:[%s3 + $0x12e8] sm:$0xff]
  %v1515 = vld [vmem:[%s3 + $0x12f0] sm:$0xff]
  %v1516 = vld [vmem:[%s3 + $0x12f8] sm:$0xff]
  %v1517 = vld [vmem:[%s3 + $0x1300] sm:$0xff]
  %v1518 = vld [vmem:[%s3 + $0x1308] sm:$0xff]
  %v1519 = vld [vmem:[%s3 + $0x1310] sm:$0xff]
  %v1520 = vld [vmem:[%s3 + $0x1318] sm:$0xff]
  %v1521 = vld [vmem:[%s3 + $0x1320] sm:$0xff]
  %v1522 = vld [vmem:[%s3 + $0x1328] sm:$0xff]
  %v1523 = vld [vmem:[%s3 + $0x1330] sm:$0xff]
  %v1524 = vld [vmem:[%s3 + $0x1338] sm:$0xff]
  %v1525 = vld [vmem:[%s3 + $0x1340] sm:$0xff]
  %v1526 = vld [vmem:[%s3 + $0x1348] sm:$0xff]
  %v1527 = vld [vmem:[%s3 + $0x1350] sm:$0xff]
  %v1528 = vld [vmem:[%s3 + $0x1358] sm:$0xff]
  %v1529 = vld [vmem:[%s3 + $0x1360] sm:$0xff]
  %v1530 = vld [vmem:[%s3 + $0x1368] sm:$0xff]
  %v1531 = vld [vmem:[%s3 + $0x1370] sm:$0xff]
  %v1532 = vld [vmem:[%s3 + $0x1378] sm:$0xff]
  %v1533 = vld [vmem:[%s3 + $0x1380] sm:$0xff]
  %v1534 = vld [vmem:[%s3 + $0x1388] sm:$0xff]
  %v1535 = vld [vmem:[%s3 + $0x1390] sm:$0xff]
  %v1536 = vld [vmem:[%s3 + $0x1398] sm:$0xff]
  %v1537 = vld [vmem:[%s3 + $0x13a0] sm:$0xff]
  %v1538 = vld [vmem:[%s3 + $0x13a8] sm:$0xff]
  %v1539 = vld [vmem:[%s3 + $0x13b0] sm:$0xff]
  %v1540 = vld [vmem:[%s3 + $0x13b8] sm:$0xff]
  %v1541 = vld [vmem:[%s3 + $0x13c0] sm:$0xff]
  %v1542 = vld [vmem:[%s3 + $0x13c8] sm:$0xff]
  %v1543 = vld [vmem:[%s3 + $0x13d0] sm:$0xff]
  %v1544 = vld [vmem:[%s3 + $0x13d8] sm:$0xff]
  %v1545 = vld [vmem:[%s3 + $0x13e0] sm:$0xff]
  %v1546 = vld [vmem:[%s3 + $0x13e8] sm:$0xff]
  %v1547 = vld [vmem:[%s3 + $0x13f0] sm:$0xff]
  %v1548 = vld [vmem:[%s3 + $0x13f8] sm:$0xff]
  %v1549 = vld [vmem:[%s3 + $0x1400] sm:$0xff]
  %v1550 = vld [vmem:[%s3 + $0x1408] sm:$0xff]
  %v1551 = vld [vmem:[%s3 + $0x1410] sm:$0xff]
  %v1552 = vld [vmem:[%s3 + $0x1418] sm:$0xff]
  %v1553 = vld [vmem:[%s3 + $0x1420] sm:$0xff]
  %v1554 = vld [vmem:[%s3 + $0x1428] sm:$0xff]
  %v1555 = vld [vmem:[%s3 + $0x1430] sm:$0xff]
  %v1556 = vld [vmem:[%s3 + $0x1438] sm:$0xff]
  %v1557 = vld [vmem:[%s3 + $0x1440] sm:$0xff]
  %v1558 = vld [vmem:[%s3 + $0x1448] sm:$0xff]
  %v1559 = vld [vmem:[%s3 + $0x1450] sm:$0xff]
  %v1560 = vld [vmem:[%s3 + $0x1458] sm:$0xff]
  %v1561 = vld [vmem:[%s3 + $0x1460] sm:$0xff]
  %v1562 = vld [vmem:[%s3 + $0x1468] sm:$0xff]
  %v1563 = vld [vmem:[%s3 + $0x1470] sm:$0xff]
  %v1564 = vld [vmem:[%s3 + $0x1478] sm:$0xff]
  %v1565 = vld [vmem:[%s3 + $0x1480] sm:$0xff]
  %v1566 = vld [vmem:[%s3 + $0x1488] sm:$0xff]
  %v1567 = vld [vmem:[%s3 + $0x1490] sm:$0xff]
  %v1568 = vld [vmem:[%s3 + $0x1498] sm:$0xff]
  %v1569 = vld [vmem:[%s3 + $0x14a0] sm:$0xff]
  %v1570 = vld [vmem:[%s3 + $0x14a8] sm:$0xff]
  %v1571 = vld [vmem:[%s3 + $0x14b0] sm:$0xff]
  %v1572 = vld [vmem:[%s3 + $0x14b8] sm:$0xff]
  %v1573 = vld [vmem:[%s3 + $0x14c0] sm:$0xff]
  %v1574 = vld [vmem:[%s3 + $0x14c8] sm:$0xff]
  %v1575 = vld [vmem:[%s3 + $0x14d0] sm:$0xff]
  %v1576 = vld [vmem:[%s3 + $0x14d8] sm:$0xff]
  %v1577 = vld [vmem:[%s3 + $0x14e0] sm:$0xff]
  %v1578 = vld [vmem:[%s3 + $0x14e8] sm:$0xff]
  %v1579 = vld [vmem:[%s3 + $0x14f0] sm:$0xff]
  %v1580 = vld [vmem:[%s3 + $0x14f8] sm:$0xff]
  %v1581 = vld [vmem:[%s3 + $0x1500] sm:$0xff]
  %v1582 = vld [vmem:[%s3 + $0x1508] sm:$0xff]
  %v1583 = vld [vmem:[%s3 + $0x1510] sm:$0xff]
  %v1584 = vld [vmem:[%s3 + $0x1518] sm:$0xff]
  %v1585 = vld [vmem:[%s3 + $0x1520] sm:$0xff]
  %v1586 = vld [vmem:[%s3 + $0x1528] sm:$0xff]
  %v1587 = vld [vmem:[%s3 + $0x1530] sm:$0xff]
  %v1588 = vld [vmem:[%s3 + $0x1538] sm:$0xff]
  %v1589 = vld [vmem:[%s3 + $0x1540] sm:$0xff]
  %v1590 = vld [vmem:[%s3 + $0x1548] sm:$0xff]
  %v1591 = vld [vmem:[%s3 + $0x1550] sm:$0xff]
  %v1592 = vld [vmem:[%s3 + $0x1558] sm:$0xff]
  %v1593 = vld [vmem:[%s3 + $0x1560] sm:$0xff]
  %v1594 = vld [vmem:[%s3 + $0x1568] sm:$0xff]
  %v1595 = vld [vmem:[%s3 + $0x1570] sm:$0xff]
  %v1596 = vld [vmem:[%s3 + $0x1578] sm:$0xff]
  %v1597 = vld [vmem:[%s3 + $0x1580] sm:$0xff]
  %v1598 = vld [vmem:[%s3 + $0x1588] sm:$0xff]
  %v1599 = vld [vmem:[%s3 + $0x1590] sm:$0xff]
  %v1600 = vld [vmem:[%s3 + $0x1598] sm:$0xff]
  %v1601 = vld [vmem:[%s3 + $0x15a0] sm:$0xff]
  %v1602 = vld [vmem:[%s3 + $0x15a8] sm:$0xff]
  %v1603 = vld [vmem:[%s3 + $0x15b0] sm:$0xff]
  %v1604 = vld [vmem:[%s3 + $0x15b8] sm:$0xff]
  %v1605 = vld [vmem:[%s3 + $0x15c0] sm:$0xff]
  %v1606 = vld [vmem:[%s3 + $0x15c8] sm:$0xff]
  %v1607 = vld [vmem:[%s3 + $0x15d0] sm:$0xff]
  %v1608 = vld [vmem:[%s3 + $0x15d8] sm:$0xff]
  %v1609 = vld [vmem:[%s3 + $0x15e0] sm:$0xff]
  %v1610 = vld [vmem:[%s3 + $0x15e8] sm:$0xff]
  %v1611 = vld [vmem:[%s3 + $0x15f0] sm:$0xff]
  %v1612 = vld [vmem:[%s3 + $0x15f8] sm:$0xff]
  %v1613 = vld [vmem:[%s3 + $0x1600] sm:$0xff]
  %v1614 = vld [vmem:[%s3 + $0x1608] sm:$0xff]
  %v1615 = vld [vmem:[%s3 + $0x1610] sm:$0xff]
  %v1616 = vld [vmem:[%s3 + $0x1618] sm:$0xff]
  %v1617 = vld [vmem:[%s3 + $0x1620] sm:$0xff]
  %v1618 = vld [vmem:[%s3 + $0x1628] sm:$0xff]
  %v1619 = vld [vmem:[%s3 + $0x1630] sm:$0xff]
  %v1620 = vld [vmem:[%s3 + $0x1638] sm:$0xff]
  %v1621 = vld [vmem:[%s3 + $0x1640] sm:$0xff]
  %v1622 = vld [vmem:[%s3 + $0x1648] sm:$0xff]
  %v1623 = vld [vmem:[%s3 + $0x1650] sm:$0xff]
  %v1624 = vld [vmem:[%s3 + $0x1658] sm:$0xff]
  %v1625 = vld [vmem:[%s3 + $0x1660] sm:$0xff]
  %v1626 = vld [vmem:[%s3 + $0x1668] sm:$0xff]
  %v1627 = vld [vmem:[%s3 + $0x1670] sm:$0xff]
  %v1628 = vld [vmem:[%s3 + $0x1678] sm:$0xff]
  %v1629 = vld [vmem:[%s3 + $0x1680] sm:$0xff]
  %v1630 = vld [vmem:[%s3 + $0x1688] sm:$0xff]
  %v1631 = vld [vmem:[%s3 + $0x1690] sm:$0xff]
  %v1632 = vld [vmem:[%s3 + $0x1698] sm:$0xff]
  %v1633 = vld [vmem:[%s3 + $0x16a0] sm:$0xff]
  %v1634 = vld [vmem:[%s3 + $0x16a8] sm:$0xff]
  %v1635 = vld [vmem:[%s3 + $0x16b0] sm:$0xff]
  %v1636 = vld [vmem:[%s3 + $0x16b8] sm:$0xff]
  %v1637 = vld [vmem:[%s3 + $0x16c0] sm:$0xff]
  %v1638 = vld [vmem:[%s3 + $0x16c8] sm:$0xff]
  %v1639 = vld [vmem:[%s3 + $0x16d0] sm:$0xff]
  %v1640 = vld [vmem:[%s3 + $0x16d8] sm:$0xff]
  %v1641 = vld [vmem:[%s3 + $0x16e0] sm:$0xff]
  %v1642 = vld [vmem:[%s3 + $0x16e8] sm:$0xff]
  %v1643 = vld [vmem:[%s3 + $0x16f0] sm:$0xff]
  %v1644 = vld [vmem:[%s3 + $0x16f8] sm:$0xff]
  %v1645 = vld [vmem:[%s3 + $0x1700] sm:$0xff]
  %v1646 = vld [vmem:[%s3 + $0x1708] sm:$0xff]
  %v1647 = vld [vmem:[%s3 + $0x1710] sm:$0xff]
  %v1648 = vld [vmem:[%s3 + $0x1718] sm:$0xff]
  %v1649 = vld [vmem:[%s3 + $0x1720] sm:$0xff]
  %v1650 = vld [vmem:[%s3 + $0x1728] sm:$0xff]
  %v1651 = vld [vmem:[%s3 + $0x1730] sm:$0xff]
  %v1652 = vld [vmem:[%s3 + $0x1738] sm:$0xff]
  %v1653 = vld [vmem:[%s3 + $0x1740] sm:$0xff]
  %v1654 = vld [vmem:[%s3 + $0x1748] sm:$0xff]
  %v1655 = vld [vmem:[%s3 + $0x1750] sm:$0xff]
  %v1656 = vld [vmem:[%s3 + $0x1758] sm:$0xff]
  %v1657 = vld [vmem:[%s3 + $0x1760] sm:$0xff]
  %v1658 = vld [vmem:[%s3 + $0x1768] sm:$0xff]
  %v1659 = vld [vmem:[%s3 + $0x1770] sm:$0xff]
  %v1660 = vld [vmem:[%s3 + $0x1778] sm:$0xff]
  %v1661 = vld [vmem:[%s3 + $0x1780] sm:$0xff]
  %v1662 = vld [vmem:[%s3 + $0x1788] sm:$0xff]
  %v1663 = vld [vmem:[%s3 + $0x1790] sm:$0xff]
  %v1664 = vld [vmem:[%s3 + $0x1798] sm:$0xff]
  %v1665 = vld [vmem:[%s3 + $0x17a0] sm:$0xff]
  %v1666 = vld [vmem:[%s3 + $0x17a8] sm:$0xff]
  %v1667 = vld [vmem:[%s3 + $0x17b0] sm:$0xff]
  %v1668 = vld [vmem:[%s3 + $0x17b8] sm:$0xff]
  %v1669 = vld [vmem:[%s3 + $0x17c0] sm:$0xff]
  %v1670 = vld [vmem:[%s3 + $0x17c8] sm:$0xff]
  %v1671 = vld [vmem:[%s3 + $0x17d0] sm:$0xff]
  %v1672 = vld [vmem:[%s3 + $0x17d8] sm:$0xff]
  %v1673 = vld [vmem:[%s3 + $0x17e0] sm:$0xff]
  %v1674 = vld [vmem:[%s3 + $0x17e8] sm:$0xff]
  %v1675 = vld [vmem:[%s3 + $0x17f0] sm:$0xff]
  %v1676 = vld [vmem:[%s3 + $0x17f8] sm:$0xff]
  %v1677 = vld [vmem:[%s3 + $0x1800] sm:$0xff]
  %v1678 = vld [vmem:[%s3 + $0x1808] sm:$0xff]
  %v1679 = vld [vmem:[%s3 + $0x1810] sm:$0xff]
  %v1680 = vld [vmem:[%s3 + $0x1818] sm:$0xff]
  %v1681 = vld [vmem:[%s3 + $0x1820] sm:$0xff]
  %v1682 = vld [vmem:[%s3 + $0x1828] sm:$0xff]
  %v1683 = vld [vmem:[%s3 + $0x1830] sm:$0xff]
  %v1684 = vld [vmem:[%s3 + $0x1838] sm:$0xff]
  %v1685 = vld [vmem:[%s3 + $0x1840] sm:$0xff]
  %v1686 = vld [vmem:[%s3 + $0x1848] sm:$0xff]
  %v1687 = vld [vmem:[%s3 + $0x1850] sm:$0xff]
  %v1688 = vld [vmem:[%s3 + $0x1858] sm:$0xff]
  %v1689 = vld [vmem:[%s3 + $0x1860] sm:$0xff]
  %v1690 = vld [vmem:[%s3 + $0x1868] sm:$0xff]
  %v1691 = vld [vmem:[%s3 + $0x1870] sm:$0xff]
  %v1692 = vld [vmem:[%s3 + $0x1878] sm:$0xff]
  %v1693 = vld [vmem:[%s3 + $0x1880] sm:$0xff]
  %v1694 = vld [vmem:[%s3 + $0x1888] sm:$0xff]
  %v1695 = vld [vmem:[%s3 + $0x1890] sm:$0xff]
  %v1696 = vld [vmem:[%s3 + $0x1898] sm:$0xff]
  %v1697 = vld [vmem:[%s3 + $0x18a0] sm:$0xff]
  %v1698 = vld [vmem:[%s3 + $0x18a8] sm:$0xff]
  %v1699 = vld [vmem:[%s3 + $0x18b0] sm:$0xff]
  %v1700 = vld [vmem:[%s3 + $0x18b8] sm:$0xff]
  %v1701 = vld [vmem:[%s3 + $0x18c0] sm:$0xff]
  %v1702 = vld [vmem:[%s3 + $0x18c8] sm:$0xff]
  %v1703 = vld [vmem:[%s3 + $0x18d0] sm:$0xff]
  %v1704 = vld [vmem:[%s3 + $0x18d8] sm:$0xff]
  %v1705 = vld [vmem:[%s3 + $0x18e0] sm:$0xff]
  %v1706 = vld [vmem:[%s3 + $0x18e8] sm:$0xff]
  %v1707 = vld [vmem:[%s3 + $0x18f0] sm:$0xff]
  %v1708 = vld [vmem:[%s3 + $0x18f8] sm:$0xff]
  %v1709 = vld [vmem:[%s3 + $0x1900] sm:$0xff]
  %v1710 = vld [vmem:[%s3 + $0x1908] sm:$0xff]
  %v1711 = vld [vmem:[%s3 + $0x1910] sm:$0xff]
  %v1712 = vld [vmem:[%s3 + $0x1918] sm:$0xff]
  %v1713 = vld [vmem:[%s3 + $0x1920] sm:$0xff]
  %v1714 = vld [vmem:[%s3 + $0x1928] sm:$0xff]
  %v1715 = vld [vmem:[%s3 + $0x1930] sm:$0xff]
  %v1716 = vld [vmem:[%s3 + $0x1938] sm:$0xff]
  %v1717 = vld [vmem:[%s3 + $0x1940] sm:$0xff]
  %v1718 = vld [vmem:[%s3 + $0x1948] sm:$0xff]
  %v1719 = vld [vmem:[%s3 + $0x1950] sm:$0xff]
  %v1720 = vld [vmem:[%s3 + $0x1958] sm:$0xff]
  %v1721 = vld [vmem:[%s3 + $0x1960] sm:$0xff]
  %v1722 = vld [vmem:[%s3 + $0x1968] sm:$0xff]
  %v1723 = vld [vmem:[%s3 + $0x1970] sm:$0xff]
  %v1724 = vld [vmem:[%s3 + $0x1978] sm:$0xff]
  %v1725 = vld [vmem:[%s3 + $0x1980] sm:$0xff]
  %v1726 = vld [vmem:[%s3 + $0x1988] sm:$0xff]
  %v1727 = vld [vmem:[%s3 + $0x1990] sm:$0xff]
  %v1728 = vld [vmem:[%s3 + $0x1998] sm:$0xff]
  %v1729 = vld [vmem:[%s3 + $0x19a0] sm:$0xff]
  %v1730 = vld [vmem:[%s3 + $0x19a8] sm:$0xff]
  %v1731 = vld [vmem:[%s3 + $0x19b0] sm:$0xff]
  %v1732 = vld [vmem:[%s3 + $0x19b8] sm:$0xff]
  %v1733 = vld [vmem:[%s3 + $0x19c0] sm:$0xff]
  %v1734 = vld [vmem:[%s3 + $0x19c8] sm:$0xff]
  %v1735 = vld [vmem:[%s3 + $0x19d0] sm:$0xff]
  %v1736 = vld [vmem:[%s3 + $0x19d8] sm:$0xff]
  %v1737 = vld [vmem:[%s3 + $0x19e0] sm:$0xff]
  %v1738 = vld [vmem:[%s3 + $0x19e8] sm:$0xff]
  %v1739 = vld [vmem:[%s3 + $0x19f0] sm:$0xff]
  %v1740 = vld [vmem:[%s3 + $0x19f8] sm:$0xff]
  %v1741 = vld [vmem:[%s3 + $0x1a00] sm:$0xff]
  %v1742 = vld [vmem:[%s3 + $0x1a08] sm:$0xff]
  %v1743 = vld [vmem:[%s3 + $0x1a10] sm:$0xff]
  %v1744 = vld [vmem:[%s3 + $0x1a18] sm:$0xff]
  %v1745 = vld [vmem:[%s3 + $0x1a20] sm:$0xff]
  %v1746 = vld [vmem:[%s3 + $0x1a28] sm:$0xff]
  %v1747 = vld [vmem:[%s3 + $0x1a30] sm:$0xff]
  %v1748 = vld [vmem:[%s3 + $0x1a38] sm:$0xff]
  %v1749 = vld [vmem:[%s3 + $0x1a40] sm:$0xff]
  %v1750 = vld [vmem:[%s3 + $0x1a48] sm:$0xff]
  %v1751 = vld [vmem:[%s3 + $0x1a50] sm:$0xff]
  %v1752 = vld [vmem:[%s3 + $0x1a58] sm:$0xff]
  %v1753 = vld [vmem:[%s3 + $0x1a60] sm:$0xff]
  %v1754 = vld [vmem:[%s3 + $0x1a68] sm:$0xff]
  %v1755 = vld [vmem:[%s3 + $0x1a70] sm:$0xff]
  %v1756 = vld [vmem:[%s3 + $0x1a78] sm:$0xff]
  %v1757 = vld [vmem:[%s3 + $0x1a80] sm:$0xff]
  %v1758 = vld [vmem:[%s3 + $0x1a88] sm:$0xff]
  %v1759 = vld [vmem:[%s3 + $0x1a90] sm:$0xff]
  %v1760 = vld [vmem:[%s3 + $0x1a98] sm:$0xff]
  %v1761 = vld [vmem:[%s3 + $0x1aa0] sm:$0xff]
  %v1762 = vld [vmem:[%s3 + $0x1aa8] sm:$0xff]
  %v1763 = vld [vmem:[%s3 + $0x1ab0] sm:$0xff]
  %v1764 = vld [vmem:[%s3 + $0x1ab8] sm:$0xff]
  %v1765 = vld [vmem:[%s3 + $0x1ac0] sm:$0xff]
  %v1766 = vld [vmem:[%s3 + $0x1ac8] sm:$0xff]
  %v1767 = vld [vmem:[%s3 + $0x1ad0] sm:$0xff]
  %v1768 = vld [vmem:[%s3 + $0x1ad8] sm:$0xff]
  %v1769 = vld [vmem:[%s3 + $0x1ae0] sm:$0xff]
  %v1770 = vld [vmem:[%s3 + $0x1ae8] sm:$0xff]
  %v1771 = vld [vmem:[%s3 + $0x1af0] sm:$0xff]
  %v1772 = vld [vmem:[%s3 + $0x1af8] sm:$0xff]
  %v1773 = vld [vmem:[%s3 + $0x1b00] sm:$0xff]
  %v1774 = vld [vmem:[%s3 + $0x1b08] sm:$0xff]
  %v1775 = vld [vmem:[%s3 + $0x1b10] sm:$0xff]
  %v1776 = vld [vmem:[%s3 + $0x1b18] sm:$0xff]
  %v1777 = vld [vmem:[%s3 + $0x1b20] sm:$0xff]
  %v1778 = vld [vmem:[%s3 + $0x1b28] sm:$0xff]
  %v1779 = vld [vmem:[%s3 + $0x1b30] sm:$0xff]
  %v1780 = vld [vmem:[%s3 + $0x1b38] sm:$0xff]
  %v1781 = vld [vmem:[%s3 + $0x1b40] sm:$0xff]
  %v1782 = vld [vmem:[%s3 + $0x1b48] sm:$0xff]
  %v1783 = vld [vmem:[%s3 + $0x1b50] sm:$0xff]
  %v1784 = vld [vmem:[%s3 + $0x1b58] sm:$0xff]
  %v1785 = vld [vmem:[%s3 + $0x1b60] sm:$0xff]
  %v1786 = vld [vmem:[%s3 + $0x1b68] sm:$0xff]
  %v1787 = vld [vmem:[%s3 + $0x1b70] sm:$0xff]
  %v1788 = vld [vmem:[%s3 + $0x1b78] sm:$0xff]
  %v1789 = vld [vmem:[%s3 + $0x1b80] sm:$0xff]
  %v1790 = vld [vmem:[%s3 + $0x1b88] sm:$0xff]
  %v1791 = vld [vmem:[%s3 + $0x1b90] sm:$0xff]
  %v1792 = vld [vmem:[%s3 + $0x1b98] sm:$0xff]
  %v1793 = vld [vmem:[%s3 + $0x1ba0] sm:$0xff]
  %v1794 = vld [vmem:[%s3 + $0x1ba8] sm:$0xff]
  %v1795 = vld [vmem:[%s3 + $0x1bb0] sm:$0xff]
  %v1796 = vld [vmem:[%s3 + $0x1bb8] sm:$0xff]
  %v1797 = vld [vmem:[%s3 + $0x1bc0] sm:$0xff]
  %v1798 = vld [vmem:[%s3 + $0x1bc8] sm:$0xff]
  %v1799 = vld [vmem:[%s3 + $0x1bd0] sm:$0xff]
  %v1800 = vld [vmem:[%s3 + $0x1bd8] sm:$0xff]
  %v1801 = vld [vmem:[%s3 + $0x1be0] sm:$0xff]
  %v1802 = vld [vmem:[%s3 + $0x1be8] sm:$0xff]
  %v1803 = vld [vmem:[%s3 + $0x1bf0] sm:$0xff]
  %v1804 = vld [vmem:[%s3 + $0x1bf8] sm:$0xff]
  %v1805 = vld [vmem:[%s3 + $0x1c00] sm:$0xff]
  %v1806 = vld [vmem:[%s3 + $0x1c08] sm:$0xff]
  %v1807 = vld [vmem:[%s3 + $0x1c10] sm:$0xff]
  %v1808 = vld [vmem:[%s3 + $0x1c18] sm:$0xff]
  %v1809 = vld [vmem:[%s3 + $0x1c20] sm:$0xff]
  %v1810 = vld [vmem:[%s3 + $0x1c28] sm:$0xff]
  %v1811 = vld [vmem:[%s3 + $0x1c30] sm:$0xff]
  %v1812 = vld [vmem:[%s3 + $0x1c38] sm:$0xff]
  %v1813 = vld [vmem:[%s3 + $0x1c40] sm:$0xff]
  %v1814 = vld [vmem:[%s3 + $0x1c48] sm:$0xff]
  %v1815 = vld [vmem:[%s3 + $0x1c50] sm:$0xff]
  %v1816 = vld [vmem:[%s3 + $0x1c58] sm:$0xff]
  %v1817 = vld [vmem:[%s3 + $0x1c60] sm:$0xff]
  %v1818 = vld [vmem:[%s3 + $0x1c68] sm:$0xff]
  %v1819 = vld [vmem:[%s3 + $0x1c70] sm:$0xff]
  %v1820 = vld [vmem:[%s3 + $0x1c78] sm:$0xff]
  %v1821 = vld [vmem:[%s3 + $0x1c80] sm:$0xff]
  %v1822 = vld [vmem:[%s3 + $0x1c88] sm:$0xff]
  %v1823 = vld [vmem:[%s3 + $0x1c90] sm:$0xff]
  %v1824 = vld [vmem:[%s3 + $0x1c98] sm:$0xff]
  %v1825 = vld [vmem:[%s3 + $0x1ca0] sm:$0xff]
  %v1826 = vld [vmem:[%s3 + $0x1ca8] sm:$0xff]
  %v1827 = vld [vmem:[%s3 + $0x1cb0] sm:$0xff]
  %v1828 = vld [vmem:[%s3 + $0x1cb8] sm:$0xff]
  %v1829 = vld [vmem:[%s3 + $0x1cc0] sm:$0xff]
  %v1830 = vld [vmem:[%s3 + $0x1cc8] sm:$0xff]
  %v1831 = vld [vmem:[%s3 + $0x1cd0] sm:$0xff]
  %v1832 = vld [vmem:[%s3 + $0x1cd8] sm:$0xff]
  %v1833 = vld [vmem:[%s3 + $0x1ce0] sm:$0xff]
  %v1834 = vld [vmem:[%s3 + $0x1ce8] sm:$0xff]
  %v1835 = vld [vmem:[%s3 + $0x1cf0] sm:$0xff]
  %v1836 = vld [vmem:[%s3 + $0x1cf8] sm:$0xff]
  %v1837 = vld [vmem:[%s3 + $0x1d00] sm:$0xff]
  %v1838 = vld [vmem:[%s3 + $0x1d08] sm:$0xff]
  %v1839 = vld [vmem:[%s3 + $0x1d10] sm:$0xff]
  %v1840 = vld [vmem:[%s3 + $0x1d18] sm:$0xff]
  %v1841 = vld [vmem:[%s3 + $0x1d20] sm:$0xff]
  %v1842 = vld [vmem:[%s3 + $0x1d28] sm:$0xff]
  %v1843 = vld [vmem:[%s3 + $0x1d30] sm:$0xff]
  %v1844 = vld [vmem:[%s3 + $0x1d38] sm:$0xff]
  %v1845 = vld [vmem:[%s3 + $0x1d40] sm:$0xff]
  %v1846 = vld [vmem:[%s3 + $0x1d48] sm:$0xff]
  %v1847 = vld [vmem:[%s3 + $0x1d50] sm:$0xff]
  %v1848 = vld [vmem:[%s3 + $0x1d58] sm:$0xff]
  %v1849 = vld [vmem:[%s3 + $0x1d60] sm:$0xff]
  %v1850 = vld [vmem:[%s3 + $0x1d68] sm:$0xff]
  %v1851 = vld [vmem:[%s3 + $0x1d70] sm:$0xff]
  %v1852 = vld [vmem:[%s3 + $0x1d78] sm:$0xff]
  %v1853 = vld [vmem:[%s3 + $0x1d80] sm:$0xff]
  %v1854 = vld [vmem:[%s3 + $0x1d88] sm:$0xff]
  %v1855 = vld [vmem:[%s3 + $0x1d90] sm:$0xff]
  %v1856 = vld [vmem:[%s3 + $0x1d98] sm:$0xff]
  %v1857 = vld [vmem:[%s3 + $0x1da0] sm:$0xff]
  %v1858 = vld [vmem:[%s3 + $0x1da8] sm:$0xff]
  %v1859 = vld [vmem:[%s3 + $0x1db0] sm:$0xff]
  %v1860 = vld [vmem:[%s3 + $0x1db8] sm:$0xff]
  %v1861 = vld [vmem:[%s3 + $0x1dc0] sm:$0xff]
  %v1862 = vld [vmem:[%s3 + $0x1dc8] sm:$0xff]
  %v1863 = vld [vmem:[%s3 + $0x1dd0] sm:$0xff]
  %v1864 = vld [vmem:[%s3 + $0x1dd8] sm:$0xff]
  %v1865 = vld [vmem:[%s3 + $0x1de0] sm:$0xff]
  %v1866 = vld [vmem:[%s3 + $0x1de8] sm:$0xff]
  %v1867 = vld [vmem:[%s3 + $0x1df0] sm:$0xff]
  %v1868 = vld [vmem:[%s3 + $0x1df8] sm:$0xff]
  %v1869 = vld [vmem:[%s3 + $0x1e00] sm:$0xff]
  %v1870 = vld [vmem:[%s3 + $0x1e08] sm:$0xff]
  %v1871 = vld [vmem:[%s3 + $0x1e10] sm:$0xff]
  %v1872 = vld [vmem:[%s3 + $0x1e18] sm:$0xff]
  %v1873 = vld [vmem:[%s3 + $0x1e20] sm:$0xff]
  %v1874 = vld [vmem:[%s3 + $0x1e28] sm:$0xff]
  %v1875 = vld [vmem:[%s3 + $0x1e30] sm:$0xff]
  %v1876 = vld [vmem:[%s3 + $0x1e38] sm:$0xff]
  %v1877 = vld [vmem:[%s3 + $0x1e40] sm:$0xff]
  %v1878 = vld [vmem:[%s3 + $0x1e48] sm:$0xff]
  %v1879 = vld [vmem:[%s3 + $0x1e50] sm:$0xff]
  %v1880 = vld [vmem:[%s3 + $0x1e58] sm:$0xff]
  %v1881 = vld [vmem:[%s3 + $0x1e60] sm:$0xff]
  %v1882 = vld [vmem:[%s3 + $0x1e68] sm:$0xff]
  %v1883 = vld [vmem:[%s3 + $0x1e70] sm:$0xff]
  %v1884 = vld [vmem:[%s3 + $0x1e78] sm:$0xff]
  %v1885 = vld [vmem:[%s3 + $0x1e80] sm:$0xff]
  %v1886 = vld [vmem:[%s3 + $0x1e88] sm:$0xff]
  %v1887 = vld [vmem:[%s3 + $0x1e90] sm:$0xff]
  %v1888 = vld [vmem:[%s3 + $0x1e98] sm:$0xff]
  %v1889 = vld [vmem:[%s3 + $0x1ea0] sm:$0xff]
  %v1890 = vld [vmem:[%s3 + $0x1ea8] sm:$0xff]
  %v1891 = vld [vmem:[%s3 + $0x1eb0] sm:$0xff]
  %v1892 = vld [vmem:[%s3 + $0x1eb8] sm:$0xff]
  %v1893 = vld [vmem:[%s3 + $0x1ec0] sm:$0xff]
  %v1894 = vld [vmem:[%s3 + $0x1ec8] sm:$0xff]
  %v1895 = vld [vmem:[%s3 + $0x1ed0] sm:$0xff]
  %v1896 = vld [vmem:[%s3 + $0x1ed8] sm:$0xff]
  %v1897 = vld [vmem:[%s3 + $0x1ee0] sm:$0xff]
  %v1898 = vld [vmem:[%s3 + $0x1ee8] sm:$0xff]
  %v1899 = vld [vmem:[%s3 + $0x1ef0] sm:$0xff]
  %v1900 = vld [vmem:[%s3 + $0x1ef8] sm:$0xff]
  %v1901 = vld [vmem:[%s3 + $0x1f00] sm:$0xff]
  %v1902 = vld [vmem:[%s3 + $0x1f08] sm:$0xff]
  %v1903 = vld [vmem:[%s3 + $0x1f10] sm:$0xff]
  %v1904 = vld [vmem:[%s3 + $0x1f18] sm:$0xff]
  %v1905 = vld [vmem:[%s3 + $0x1f20] sm:$0xff]
  %v1906 = vld [vmem:[%s3 + $0x1f28] sm:$0xff]
  %v1907 = vld [vmem:[%s3 + $0x1f30] sm:$0xff]
  %v1908 = vld [vmem:[%s3 + $0x1f38] sm:$0xff]
  %v1909 = vld [vmem:[%s3 + $0x1f40] sm:$0xff]
  %v1910 = vld [vmem:[%s3 + $0x1f48] sm:$0xff]
  %v1911 = vld [vmem:[%s3 + $0x1f50] sm:$0xff]
  %v1912 = vld [vmem:[%s3 + $0x1f58] sm:$0xff]
  %v1913 = vld [vmem:[%s3 + $0x1f60] sm:$0xff]
  %v1914 = vld [vmem:[%s3 + $0x1f68] sm:$0xff]
  %v1915 = vld [vmem:[%s3 + $0x1f70] sm:$0xff]
  %v1916 = vld [vmem:[%s3 + $0x1f78] sm:$0xff]
  %v1917 = vld [vmem:[%s3 + $0x1f80] sm:$0xff]
  %v1918 = vld [vmem:[%s3 + $0x1f88] sm:$0xff]
  %v1919 = vld [vmem:[%s3 + $0x1f90] sm:$0xff]
  %v1920 = vld [vmem:[%s3 + $0x1f98] sm:$0xff]
  %v1921 = vld [vmem:[%s3 + $0x1fa0] sm:$0xff]
  %v1922 = vld [vmem:[%s3 + $0x1fa8] sm:$0xff]
  %v1923 = vld [vmem:[%s3 + $0x1fb0] sm:$0xff]
  %v1924 = vld [vmem:[%s3 + $0x1fb8] sm:$0xff]
  %v1925 = vld [vmem:[%s3 + $0x1fc0] sm:$0xff]
  %v1926 = vld [vmem:[%s3 + $0x1fc8] sm:$0xff]
  %v1927 = vld [vmem:[%s3 + $0x1fd0] sm:$0xff]
  %v1928 = vld [vmem:[%s3 + $0x1fd8] sm:$0xff]
  %v1929 = vld [vmem:[%s3 + $0x1fe0] sm:$0xff]
  %v1930 = vld [vmem:[%s3 + $0x1fe8] sm:$0xff]
  %v1931 = vld [vmem:[%s3 + $0x1ff0] sm:$0xff]
  %v1932 = vld [vmem:[%s3 + $0x1ff8] sm:$0xff]
  %v1933 = vld [vmem:[%s3 + $0x2000] sm:$0xff]
  %v1934 = vld [vmem:[%s3 + $0x2008] sm:$0xff]
  %v1935 = vld [vmem:[%s3 + $0x2010] sm:$0xff]
  %v1936 = vld [vmem:[%s3 + $0x2018] sm:$0xff]
  %v1937 = vld [vmem:[%s3 + $0x2020] sm:$0xff]
  %v1938 = vld [vmem:[%s3 + $0x2028] sm:$0xff]
  %v1939 = vld [vmem:[%s3 + $0x2030] sm:$0xff]
  %v1940 = vld [vmem:[%s3 + $0x2038] sm:$0xff]
  %v1941 = vld [vmem:[%s3 + $0x2040] sm:$0xff]
  %v1942 = vld [vmem:[%s3 + $0x2048] sm:$0xff]
  %v1943 = vld [vmem:[%s3 + $0x2050] sm:$0xff]
  %v1944 = vld [vmem:[%s3 + $0x2058] sm:$0xff]
  %v1945 = vld [vmem:[%s3 + $0x2060] sm:$0xff]
  %v1946 = vld [vmem:[%s3 + $0x2068] sm:$0xff]
  %v1947 = vld [vmem:[%s3 + $0x2070] sm:$0xff]
  %v1948 = vld [vmem:[%s3 + $0x2078] sm:$0xff]
  %v1949 = vld [vmem:[%s3 + $0x2080] sm:$0xff]
  %v1950 = vld [vmem:[%s3 + $0x2088] sm:$0xff]
  %v1951 = vld [vmem:[%s3 + $0x2090] sm:$0xff]
  %v1952 = vld [vmem:[%s3 + $0x2098] sm:$0xff]
  %v1953 = vld [vmem:[%s3 + $0x20a0] sm:$0xff]
  %v1954 = vld [vmem:[%s3 + $0x20a8] sm:$0xff]
  %v1955 = vld [vmem:[%s3 + $0x20b0] sm:$0xff]
  %v1956 = vld [vmem:[%s3 + $0x20b8] sm:$0xff]
  %v1957 = vld [vmem:[%s3 + $0x20c0] sm:$0xff]
  %v1958 = vld [vmem:[%s3 + $0x20c8] sm:$0xff]
  %v1959 = vld [vmem:[%s3 + $0x20d0] sm:$0xff]
  %v1960 = vld [vmem:[%s3 + $0x20d8] sm:$0xff]
  %v1961 = vld [vmem:[%s3 + $0x20e0] sm:$0xff]
  %v1962 = vld [vmem:[%s3 + $0x20e8] sm:$0xff]
  %v1963 = vld [vmem:[%s3 + $0x20f0] sm:$0xff]
  %v1964 = vld [vmem:[%s3 + $0x20f8] sm:$0xff]
  %v1965 = vld [vmem:[%s3 + $0x2100] sm:$0xff]
  %v1966 = vld [vmem:[%s3 + $0x2108] sm:$0xff]
  %v1967 = vld [vmem:[%s3 + $0x2110] sm:$0xff]
  %v1968 = vld [vmem:[%s3 + $0x2118] sm:$0xff]
  %v1969 = vld [vmem:[%s3 + $0x2120] sm:$0xff]
  %v1970 = vld [vmem:[%s3 + $0x2128] sm:$0xff]
  %v1971 = vld [vmem:[%s3 + $0x2130] sm:$0xff]
  %v1972 = vld [vmem:[%s3 + $0x2138] sm:$0xff]
  %v1973 = vld [vmem:[%s3 + $0x2140] sm:$0xff]
  %v1974 = vld [vmem:[%s3 + $0x2148] sm:$0xff]
  %v1975 = vld [vmem:[%s3 + $0x2150] sm:$0xff]
  %v1976 = vld [vmem:[%s3 + $0x2158] sm:$0xff]
  %v1977 = vld [vmem:[%s3 + $0x2160] sm:$0xff]
  %v1978 = vld [vmem:[%s3 + $0x2168] sm:$0xff]
  %v1979 = vld [vmem:[%s3 + $0x2170] sm:$0xff]
  %v1980 = vld [vmem:[%s3 + $0x2178] sm:$0xff]
  %v1981 = vld [vmem:[%s3 + $0x2180] sm:$0xff]
  %v1982 = vld [vmem:[%s3 + $0x2188] sm:$0xff]
  %v1983 = vld [vmem:[%s3 + $0x2190] sm:$0xff]
  %v1984 = vld [vmem:[%s3 + $0x2198] sm:$0xff]
  %v1985 = vld [vmem:[%s3 + $0x21a0] sm:$0xff]
  %v1986 = vld [vmem:[%s3 + $0x21a8] sm:$0xff]
  %v1987 = vld [vmem:[%s3 + $0x21b0] sm:$0xff]
  %v1988 = vld [vmem:[%s3 + $0x21b8] sm:$0xff]
  %v1989 = vld [vmem:[%s3 + $0x21c0] sm:$0xff]
  %v1990 = vld [vmem:[%s3 + $0x21c8] sm:$0xff]
  %v1991 = vld [vmem:[%s3 + $0x21d0] sm:$0xff]
  %v1992 = vld [vmem:[%s3 + $0x21d8] sm:$0xff]
  %v1993 = vld [vmem:[%s3 + $0x21e0] sm:$0xff]
  %v1994 = vld [vmem:[%s3 + $0x21e8] sm:$0xff]
  %v1995 = vld [vmem:[%s3 + $0x21f0] sm:$0xff]
  %v1996 = vld [vmem:[%s3 + $0x21f8] sm:$0xff]
  %v1997 = vld [vmem:[%s3 + $0x2200] sm:$0xff]
  %v1998 = vld [vmem:[%s3 + $0x2208] sm:$0xff]
  %v1999 = vld [vmem:[%s3 + $0x2210] sm:$0xff]
  %v2000 = vld [vmem:[%s3 + $0x2218] sm:$0xff]
  %v2001 = vld [vmem:[%s3 + $0x2220] sm:$0xff]
  %v2002 = vld [vmem:[%s3 + $0x2228] sm:$0xff]
  %v2003 = vld [vmem:[%s3 + $0x2230] sm:$0xff]
  %v2004 = vld [vmem:[%s3 + $0x2238] sm:$0xff]
  %v2005 = vld [vmem:[%s3 + $0x2240] sm:$0xff]
  %v2006 = vld [vmem:[%s3 + $0x2248] sm:$0xff]
  %v2007 = vld [vmem:[%s3 + $0x2250] sm:$0xff]
  %v2008 = vld [vmem:[%s3 + $0x2258] sm:$0xff]
  %v2009 = vld [vmem:[%s3 + $0x2260] sm:$0xff]
  %v2010 = vld [vmem:[%s3 + $0x2268] sm:$0xff]
  %v2011 = vld [vmem:[%s3 + $0x2270] sm:$0xff]
  %v2012 = vld [vmem:[%s3 + $0x2278] sm:$0xff]
  %v2013 = vld [vmem:[%s3 + $0x2280] sm:$0xff]
  %v2014 = vld [vmem:[%s3 + $0x2288] sm:$0xff]
  %v2015 = vld [vmem:[%s3 + $0x2290] sm:$0xff]
  %v2016 = vld [vmem:[%s3 + $0x2298] sm:$0xff]
  %v2017 = vld [vmem:[%s3 + $0x22a0] sm:$0xff]
  %v2018 = vld [vmem:[%s3 + $0x22a8] sm:$0xff]
  %v2019 = vld [vmem:[%s3 + $0x22b0] sm:$0xff]
  %v2020 = vld [vmem:[%s3 + $0x22b8] sm:$0xff]
  %v2021 = vld [vmem:[%s3 + $0x22c0] sm:$0xff]
  %v2022 = vld [vmem:[%s3 + $0x22c8] sm:$0xff]
  %v2023 = vld [vmem:[%s3 + $0x22d0] sm:$0xff]
  %v2024 = vld [vmem:[%s3 + $0x22d8] sm:$0xff]
  %v2025 = vld [vmem:[%s3 + $0x22e0] sm:$0xff]
  %v2026 = vld [vmem:[%s3 + $0x22e8] sm:$0xff]
  %v2027 = vld [vmem:[%s3 + $0x22f0] sm:$0xff]
  %v2028 = vld [vmem:[%s3 + $0x22f8] sm:$0xff]
  %v2029 = vld [vmem:[%s3 + $0x2300] sm:$0xff]
  %v2030 = vld [vmem:[%s3 + $0x2308] sm:$0xff]
  %v2031 = vld [vmem:[%s3 + $0x2310] sm:$0xff]
  %v2032 = vld [vmem:[%s3 + $0x2318] sm:$0xff]
  %v2033 = vld [vmem:[%s3 + $0x2320] sm:$0xff]
  %v2034 = vld [vmem:[%s3 + $0x2328] sm:$0xff]
  %v2035 = vld [vmem:[%s3 + $0x2330] sm:$0xff]
  %v2036 = vld [vmem:[%s3 + $0x2338] sm:$0xff]
  %v2037 = vld [vmem:[%s3 + $0x2340] sm:$0xff]
  %v2038 = vld [vmem:[%s3 + $0x2348] sm:$0xff]
  %v2039 = vld [vmem:[%s3 + $0x2350] sm:$0xff]
  %v2040 = vld [vmem:[%s3 + $0x2358] sm:$0xff]
  %v2041 = vld [vmem:[%s3 + $0x2360] sm:$0xff]
  %v2042 = vld [vmem:[%s3 + $0x2368] sm:$0xff]
  %v2043 = vld [vmem:[%s3 + $0x2370] sm:$0xff]
  %v2044 = vld [vmem:[%s3 + $0x2378] sm:$0xff]
  %v2045 = vld [vmem:[%s3 + $0x2380] sm:$0xff]
  %v2046 = vld [vmem:[%s3 + $0x2388] sm:$0xff]
  %v2047 = vld [vmem:[%s3 + $0x2390] sm:$0xff]
  %v2048 = vld [vmem:[%s3 + $0x2398] sm:$0xff]
  %v2049 = vld [vmem:[%s3 + $0x23a0] sm:$0xff]
  %v2050 = vld [vmem:[%s3 + $0x23a8] sm:$0xff]
  %v2051 = vld [vmem:[%s3 + $0x23b0] sm:$0xff]
  %v2052 = vld [vmem:[%s3 + $0x23b8] sm:$0xff]
  %v2053 = vld [vmem:[%s3 + $0x23c0] sm:$0xff]
  %v2054 = vld [vmem:[%s3 + $0x23c8] sm:$0xff]
  %v2055 = vld [vmem:[%s3 + $0x23d0] sm:$0xff]
  %v2056 = vld [vmem:[%s3 + $0x23d8] sm:$0xff]
  %v2057 = vld [vmem:[%s3 + $0x23e0] sm:$0xff]
  %v2058 = vld [vmem:[%s3 + $0x23e8] sm:$0xff]
  %v2059 = vld [vmem:[%s3 + $0x23f0] sm:$0xff]
  %v2060 = vld [vmem:[%s3 + $0x23f8] sm:$0xff]
  %v2061 = vld [vmem:[%s3 + $0x2400] sm:$0xff]
  %v2062 = vld [vmem:[%s3 + $0x2408] sm:$0xff]
  %v2063 = vld [vmem:[%s3 + $0x2410] sm:$0xff]
  %v2064 = vld [vmem:[%s3 + $0x2418] sm:$0xff]
  %v2065 = vld [vmem:[%s3 + $0x2420] sm:$0xff]
  %v2066 = vld [vmem:[%s3 + $0x2428] sm:$0xff]
  %v2067 = vld [vmem:[%s3 + $0x2430] sm:$0xff]
  %v2068 = vld [vmem:[%s3 + $0x2438] sm:$0xff]
  %v2069 = vld [vmem:[%s3 + $0x2440] sm:$0xff]
  %v2070 = vld [vmem:[%s3 + $0x2448] sm:$0xff]
  %v2071 = vld [vmem:[%s3 + $0x2450] sm:$0xff]
  %v2072 = vld [vmem:[%s3 + $0x2458] sm:$0xff]
  %v2073 = vld [vmem:[%s3 + $0x2460] sm:$0xff]
  %v2074 = vld [vmem:[%s3 + $0x2468] sm:$0xff]
  %v2075 = vld [vmem:[%s3 + $0x2470] sm:$0xff]
  %v2076 = vld [vmem:[%s3 + $0x2478] sm:$0xff]
  %v2077 = vld [vmem:[%s3 + $0x2480] sm:$0xff]
  %v2078 = vld [vmem:[%s3 + $0x2488] sm:$0xff]
  %v2079 = vld [vmem:[%s3 + $0x2490] sm:$0xff]
  %v2080 = vld [vmem:[%s3 + $0x2498] sm:$0xff]
  %v2081 = vld [vmem:[%s3 + $0x24a0] sm:$0xff]
  %v2082 = vld [vmem:[%s3 + $0x24a8] sm:$0xff]
  %v2083 = vld [vmem:[%s3 + $0x24b0] sm:$0xff]
  %v2084 = vld [vmem:[%s3 + $0x24b8] sm:$0xff]
  %v2085 = vld [vmem:[%s3 + $0x24c0] sm:$0xff]
  %v2086 = vld [vmem:[%s3 + $0x24c8] sm:$0xff]
  %v2087 = vld [vmem:[%s3 + $0x24d0] sm:$0xff]
  %v2088 = vld [vmem:[%s3 + $0x24d8] sm:$0xff]
  %v2089 = vld [vmem:[%s3 + $0x24e0] sm:$0xff]
  %v2090 = vld [vmem:[%s3 + $0x24e8] sm:$0xff]
  %v2091 = vld [vmem:[%s3 + $0x24f0] sm:$0xff]
  %v2092 = vld [vmem:[%s3 + $0x24f8] sm:$0xff]
  %v2093 = vld [vmem:[%s3 + $0x2500] sm:$0xff]
  %v2094 = vld [vmem:[%s3 + $0x2508] sm:$0xff]
  %v2095 = vld [vmem:[%s3 + $0x2510] sm:$0xff]
  %v2096 = vld [vmem:[%s3 + $0x2518] sm:$0xff]
  %v2097 = vld [vmem:[%s3 + $0x2520] sm:$0xff]
  %v2098 = vld [vmem:[%s3 + $0x2528] sm:$0xff]
  %v2099 = vld [vmem:[%s3 + $0x2530] sm:$0xff]
  %v2100 = vld [vmem:[%s3 + $0x2538] sm:$0xff]
  %v2101 = vld [vmem:[%s3 + $0x2540] sm:$0xff]
  %v2102 = vld [vmem:[%s3 + $0x2548] sm:$0xff]
  %v2103 = vld [vmem:[%s3 + $0x2550] sm:$0xff]
  %v2104 = vld [vmem:[%s3 + $0x2558] sm:$0xff]
  %v2105 = vld [vmem:[%s3 + $0x2560] sm:$0xff]
  %v2106 = vld [vmem:[%s3 + $0x2568] sm:$0xff]
  %v2107 = vld [vmem:[%s3 + $0x2570] sm:$0xff]
  %v2108 = vld [vmem:[%s3 + $0x2578] sm:$0xff]
  %v2109 = vld [vmem:[%s4] sm:$0x3f]
  %v2111 = vperm.slane %v2109, 0
  %v2112 = vperm.slane %v2109, 1
  %v2113 = vperm.slane %v2109, 2
  %v2114 = vperm.slane %v2109, 3
  %v2115 = vperm.slane %v2109, 4
  %v2116 = vperm.slane %v2109, 5
  %v2149 = vunpack.c.l.b16 %v883
  %v2150 = vunpack.c.h.b16 %v883
  %v2151 = vunpack.c.l.b16 %v884
  %v2152 = vunpack.c.h.b16 %v884
  %v2153 = vunpack.c.l.b16 %v885
  %v2154 = vunpack.c.h.b16 %v885
  %v2155 = vunpack.c.l.b16 %v886
  %v2156 = vunpack.c.h.b16 %v886
  %v2157 = vunpack.c.l.b16 %v887
  %v2158 = vunpack.c.h.b16 %v887
  %v2159 = vunpack.c.l.b16 %v888
  %v2160 = vunpack.c.h.b16 %v888
  %v2161 = vunpack.c.l.b16 %v889
  %v2162 = vunpack.c.h.b16 %v889
  %v2163 = vunpack.c.l.b16 %v890
  %v2164 = vunpack.c.h.b16 %v890
  %v2165 = vunpack.c.l.b16 %v891
  %v2166 = vunpack.c.h.b16 %v891
  %v2167 = vunpack.c.l.b16 %v892
  %v2168 = vunpack.c.h.b16 %v892
  %v2169 = vunpack.c.l.b16 %v893
  %v2170 = vunpack.c.h.b16 %v893
  %v2171 = vunpack.c.l.b16 %v894
  %v2172 = vunpack.c.h.b16 %v894
  %v2173 = vunpack.c.l.b16 %v895
  %v2174 = vunpack.c.l.b16 %v896
  %v2175 = vunpack.c.h.b16 %v896
  %v2176 = vunpack.c.l.b16 %v897
  %v2177 = vunpack.c.h.b16 %v897
  %v2178 = vunpack.c.l.b16 %v898
  %v2179 = vunpack.c.h.b16 %v898
  %v2180 = vunpack.c.l.b16 %v899
  %v2181 = vunpack.c.h.b16 %v899
  %v2182 = vunpack.c.l.b16 %v900
  %v2183 = vunpack.c.h.b16 %v900
  %v2184 = vunpack.c.l.b16 %v901
  %v2185 = vunpack.c.h.b16 %v901
  %v2186 = vunpack.c.l.b16 %v902
  %v2187 = vunpack.c.h.b16 %v902
  %v2188 = vunpack.c.l.b16 %v903
  %v2189 = vunpack.c.h.b16 %v903
  %v2190 = vunpack.c.l.b16 %v904
  %v2191 = vunpack.c.h.b16 %v904
  %v2192 = vunpack.c.l.b16 %v905
  %v2193 = vunpack.c.h.b16 %v905
  %v2194 = vunpack.c.l.b16 %v906
  %v2195 = vunpack.c.h.b16 %v906
  %v2196 = vunpack.c.l.b16 %v907
  %v2197 = vunpack.c.h.b16 %v907
  %v2198 = vunpack.c.l.b16 %v908
  %v2199 = vpack.c.b16 %v2174, %v2149
  %v2200 = vpack.c.b16 %v2175, %v2150
  %v2201 = vpack.c.b16 %v2176, %v2151
  %v2202 = vpack.c.b16 %v2177, %v2152
  %v2203 = vpack.c.b16 %v2178, %v2153
  %v2204 = vpack.c.b16 %v2179, %v2154
  %v2205 = vpack.c.b16 %v2180, %v2155
  %v2206 = vpack.c.b16 %v2181, %v2156
  %v2207 = vpack.c.b16 %v2182, %v2157
  %v2208 = vpack.c.b16 %v2183, %v2158
  %v2209 = vpack.c.b16 %v2184, %v2159
  %v2210 = vpack.c.b16 %v2185, %v2160
  %v2211 = vpack.c.b16 %v2186, %v2161
  %v2212 = vpack.c.b16 %v2187, %v2162
  %v2213 = vpack.c.b16 %v2188, %v2163
  %v2214 = vpack.c.b16 %v2189, %v2164
  %v2215 = vpack.c.b16 %v2190, %v2165
  %v2216 = vpack.c.b16 %v2191, %v2166
  %v2217 = vpack.c.b16 %v2192, %v2167
  %v2218 = vpack.c.b16 %v2193, %v2168
  %v2219 = vpack.c.b16 %v2194, %v2169
  %v2220 = vpack.c.b16 %v2195, %v2170
  %v2221 = vpack.c.b16 %v2196, %v2171
  %v2222 = vpack.c.b16 %v2197, %v2172
  %v2223 = vpack.c.b16 %v2198, %v2173
  %v3449 = vunpack.c.l.b16 %v909
  %v3450 = vunpack.c.h.b16 %v909
  %v3451 = vunpack.c.l.b16 %v910
  %v3452 = vunpack.c.h.b16 %v910
  %v3453 = vunpack.c.l.b16 %v911
  %v3454 = vunpack.c.h.b16 %v911
  %v3455 = vunpack.c.l.b16 %v912
  %v3456 = vunpack.c.h.b16 %v912
  %v3457 = vunpack.c.l.b16 %v913
  %v3458 = vunpack.c.h.b16 %v913
  %v3459 = vunpack.c.l.b16 %v914
  %v3460 = vunpack.c.h.b16 %v914
  %v3461 = vunpack.c.l.b16 %v915
  %v3462 = vunpack.c.h.b16 %v915
  %v3463 = vunpack.c.l.b16 %v916
  %v3464 = vunpack.c.h.b16 %v916
  %v3465 = vunpack.c.l.b16 %v917
  %v3466 = vunpack.c.h.b16 %v917
  %v3467 = vunpack.c.l.b16 %v918
  %v3468 = vunpack.c.h.b16 %v918
  %v3469 = vunpack.c.l.b16 %v919
  %v3470 = vunpack.c.h.b16 %v919
  %v3471 = vunpack.c.l.b16 %v920
  %v3472 = vunpack.c.h.b16 %v920
  %v3473 = vunpack.c.l.b16 %v921
  %v3474 = vunpack.c.h.b16 %v921
  %v3475 = vunpack.c.l.b16 %v922
  %v3476 = vunpack.c.h.b16 %v922
  %v3477 = vunpack.c.l.b16 %v923
  %v3478 = vunpack.c.h.b16 %v923
  %v3479 = vunpack.c.l.b16 %v924
  %v3480 = vunpack.c.h.b16 %v924
  %v3481 = vunpack.c.l.b16 %v925
  %v3482 = vunpack.c.h.b16 %v925
  %v3483 = vunpack.c.l.b16 %v926
  %v3484 = vunpack.c.h.b16 %v926
  %v3485 = vunpack.c.l.b16 %v927
  %v3486 = vunpack.c.h.b16 %v927
  %v3487 = vunpack.c.l.b16 %v928
  %v3488 = vunpack.c.h.b16 %v928
  %v3489 = vunpack.c.l.b16 %v929
  %v3490 = vunpack.c.h.b16 %v929
  %v3491 = vunpack.c.l.b16 %v930
  %v3492 = vunpack.c.h.b16 %v930
  %v3493 = vunpack.c.l.b16 %v931
  %v3494 = vunpack.c.h.b16 %v931
  %v3495 = vunpack.c.l.b16 %v932
  %v3496 = vunpack.c.h.b16 %v932
  %v3497 = vunpack.c.l.b16 %v933
  %v3498 = vunpack.c.h.b16 %v933
  %v3499 = vunpack.c.l.b16 %v934
  %v3500 = vunpack.c.h.b16 %v934
  %v3501 = vunpack.c.l.b16 %v935
  %v3502 = vunpack.c.h.b16 %v935
  %v3503 = vunpack.c.l.b16 %v936
  %v3504 = vunpack.c.h.b16 %v936
  %v3505 = vunpack.c.l.b16 %v937
  %v3506 = vunpack.c.h.b16 %v937
  %v3507 = vunpack.c.l.b16 %v938
  %v3508 = vunpack.c.h.b16 %v938
  %v3509 = vunpack.c.l.b16 %v939
  %v3510 = vunpack.c.h.b16 %v939
  %v3511 = vunpack.c.l.b16 %v940
  %v3512 = vunpack.c.h.b16 %v940
  %v3513 = vunpack.c.l.b16 %v941
  %v3514 = vunpack.c.h.b16 %v941
  %v3515 = vunpack.c.l.b16 %v942
  %v3516 = vunpack.c.h.b16 %v942
  %v3517 = vunpack.c.l.b16 %v943
  %v3518 = vunpack.c.h.b16 %v943
  %v3519 = vunpack.c.l.b16 %v944
  %v3520 = vunpack.c.h.b16 %v944
  %v3521 = vunpack.c.l.b16 %v945
  %v3522 = vunpack.c.h.b16 %v945
  %v3523 = vunpack.c.l.b16 %v946
  %v3524 = vunpack.c.h.b16 %v946
  %v3525 = vunpack.c.l.b16 %v947
  %v3526 = vunpack.c.h.b16 %v947
  %v3527 = vunpack.c.l.b16 %v948
  %v3528 = vunpack.c.h.b16 %v948
  %v3529 = vunpack.c.l.b16 %v949
  %v3530 = vunpack.c.h.b16 %v949
  %v3531 = vunpack.c.l.b16 %v950
  %v3532 = vunpack.c.h.b16 %v950
  %v3533 = vunpack.c.l.b16 %v951
  %v3534 = vunpack.c.h.b16 %v951
  %v3535 = vunpack.c.l.b16 %v952
  %v3536 = vunpack.c.h.b16 %v952
  %v3537 = vunpack.c.l.b16 %v953
  %v3538 = vunpack.c.h.b16 %v953
  %v3539 = vunpack.c.l.b16 %v954
  %v3540 = vunpack.c.h.b16 %v954
  %v3541 = vunpack.c.l.b16 %v955
  %v3542 = vunpack.c.h.b16 %v955
  %v3543 = vunpack.c.l.b16 %v956
  %v3544 = vunpack.c.h.b16 %v956
  %v3545 = vunpack.c.l.b16 %v957
  %v3546 = vunpack.c.h.b16 %v957
  %v3547 = vunpack.c.l.b16 %v958
  %v3548 = vunpack.c.h.b16 %v958
  %v3549 = vunpack.c.l.b16 %v959
  %v3550 = vunpack.c.h.b16 %v959
  %v3551 = vunpack.c.l.b16 %v960
  %v3552 = vunpack.c.h.b16 %v960
  %v3553 = vunpack.c.l.b16 %v961
  %v3554 = vunpack.c.h.b16 %v961
  %v3555 = vunpack.c.l.b16 %v962
  %v3556 = vunpack.c.h.b16 %v962
  %v3557 = vunpack.c.l.b16 %v963
  %v3558 = vunpack.c.h.b16 %v963
  %v3559 = vunpack.c.l.b16 %v964
  %v3560 = vunpack.c.h.b16 %v964
  %v3561 = vunpack.c.l.b16 %v965
  %v3562 = vunpack.c.h.b16 %v965
  %v3563 = vunpack.c.l.b16 %v966
  %v3564 = vunpack.c.h.b16 %v966
  %v3565 = vunpack.c.l.b16 %v967
  %v3566 = vunpack.c.h.b16 %v967
  %v3567 = vunpack.c.l.b16 %v968
  %v3568 = vunpack.c.h.b16 %v968
  %v3569 = vunpack.c.l.b16 %v969
  %v3570 = vunpack.c.h.b16 %v969
  %v3571 = vunpack.c.l.b16 %v970
  %v3572 = vunpack.c.h.b16 %v970
  %v3573 = vunpack.c.l.b16 %v971
  %v3574 = vunpack.c.h.b16 %v971
  %v3575 = vunpack.c.l.b16 %v972
  %v3576 = vunpack.c.h.b16 %v972
  %v3577 = vunpack.c.l.b16 %v973
  %v3578 = vunpack.c.h.b16 %v973
  %v3579 = vunpack.c.l.b16 %v974
  %v3580 = vunpack.c.h.b16 %v974
  %v3581 = vunpack.c.l.b16 %v975
  %v3582 = vunpack.c.h.b16 %v975
  %v3583 = vunpack.c.l.b16 %v976
  %v3584 = vunpack.c.h.b16 %v976
  %v3585 = vunpack.c.l.b16 %v977
  %v3586 = vunpack.c.h.b16 %v977
  %v3587 = vunpack.c.l.b16 %v978
  %v3588 = vunpack.c.h.b16 %v978
  %v3589 = vunpack.c.l.b16 %v979
  %v3590 = vunpack.c.h.b16 %v979
  %v3591 = vunpack.c.l.b16 %v980
  %v3592 = vunpack.c.h.b16 %v980
  %v3593 = vunpack.c.l.b16 %v981
  %v3594 = vunpack.c.h.b16 %v981
  %v3595 = vunpack.c.l.b16 %v982
  %v3596 = vunpack.c.h.b16 %v982
  %v3597 = vunpack.c.l.b16 %v983
  %v3598 = vunpack.c.h.b16 %v983
  %v3599 = vunpack.c.l.b16 %v984
  %v3600 = vunpack.c.h.b16 %v984
  %v3601 = vunpack.c.l.b16 %v985
  %v3602 = vunpack.c.h.b16 %v985
  %v3603 = vunpack.c.l.b16 %v986
  %v3604 = vunpack.c.h.b16 %v986
  %v3605 = vunpack.c.l.b16 %v987
  %v3606 = vunpack.c.h.b16 %v987
  %v3607 = vunpack.c.l.b16 %v988
  %v3608 = vunpack.c.h.b16 %v988
  %v3609 = vunpack.c.l.b16 %v989
  %v3610 = vunpack.c.h.b16 %v989
  %v3611 = vunpack.c.l.b16 %v990
  %v3612 = vunpack.c.h.b16 %v990
  %v3613 = vunpack.c.l.b16 %v991
  %v3614 = vunpack.c.h.b16 %v991
  %v3615 = vunpack.c.l.b16 %v992
  %v3616 = vunpack.c.h.b16 %v992
  %v3617 = vunpack.c.l.b16 %v993
  %v3618 = vunpack.c.h.b16 %v993
  %v3619 = vunpack.c.l.b16 %v994
  %v3620 = vunpack.c.h.b16 %v994
  %v3621 = vunpack.c.l.b16 %v995
  %v3622 = vunpack.c.h.b16 %v995
  %v3623 = vunpack.c.l.b16 %v996
  %v3624 = vunpack.c.h.b16 %v996
  %v3625 = vunpack.c.l.b16 %v997
  %v3626 = vunpack.c.h.b16 %v997
  %v3627 = vunpack.c.l.b16 %v998
  %v3628 = vunpack.c.h.b16 %v998
  %v3629 = vunpack.c.l.b16 %v999
  %v3630 = vunpack.c.h.b16 %v999
  %v3631 = vunpack.c.l.b16 %v1000
  %v3632 = vunpack.c.h.b16 %v1000
  %v3633 = vunpack.c.l.b16 %v1001
  %v3634 = vunpack.c.h.b16 %v1001
  %v3635 = vunpack.c.l.b16 %v1002
  %v3636 = vunpack.c.h.b16 %v1002
  %v3637 = vunpack.c.l.b16 %v1003
  %v3638 = vunpack.c.h.b16 %v1003
  %v3639 = vunpack.c.l.b16 %v1004
  %v3640 = vunpack.c.h.b16 %v1004
  %v3641 = vunpack.c.l.b16 %v1005
  %v3642 = vunpack.c.h.b16 %v1005
  %v3643 = vunpack.c.l.b16 %v1006
  %v3644 = vunpack.c.h.b16 %v1006
  %v3645 = vunpack.c.l.b16 %v1007
  %v3646 = vunpack.c.h.b16 %v1007
  %v3647 = vunpack.c.l.b16 %v1008
  %v3648 = vunpack.c.h.b16 %v1008
  %v3649 = vunpack.c.l.b16 %v1009
  %v3650 = vunpack.c.h.b16 %v1009
  %v3651 = vunpack.c.l.b16 %v1010
  %v3652 = vunpack.c.h.b16 %v1010
  %v3653 = vunpack.c.l.b16 %v1011
  %v3654 = vunpack.c.h.b16 %v1011
  %v3655 = vunpack.c.l.b16 %v1012
  %v3656 = vunpack.c.h.b16 %v1012
  %v3657 = vunpack.c.l.b16 %v1013
  %v3658 = vunpack.c.h.b16 %v1013
  %v3659 = vunpack.c.l.b16 %v1014
  %v3660 = vunpack.c.h.b16 %v1014
  %v3661 = vunpack.c.l.b16 %v1015
  %v3662 = vunpack.c.h.b16 %v1015
  %v3663 = vunpack.c.l.b16 %v1016
  %v3664 = vunpack.c.h.b16 %v1016
  %v3665 = vunpack.c.l.b16 %v1017
  %v3666 = vunpack.c.h.b16 %v1017
  %v3667 = vunpack.c.l.b16 %v1018
  %v3668 = vunpack.c.h.b16 %v1018
  %v3669 = vunpack.c.l.b16 %v1019
  %v3670 = vunpack.c.h.b16 %v1019
  %v3671 = vunpack.c.l.b16 %v1020
  %v3672 = vunpack.c.h.b16 %v1020
  %v3673 = vunpack.c.l.b16 %v1021
  %v3674 = vunpack.c.h.b16 %v1021
  %v3675 = vunpack.c.l.b16 %v1022
  %v3676 = vunpack.c.h.b16 %v1022
  %v3677 = vunpack.c.l.b16 %v1023
  %v3678 = vunpack.c.h.b16 %v1023
  %v3679 = vunpack.c.l.b16 %v1024
  %v3680 = vunpack.c.h.b16 %v1024
  %v3681 = vunpack.c.l.b16 %v1025
  %v3682 = vunpack.c.h.b16 %v1025
  %v3683 = vunpack.c.l.b16 %v1026
  %v3684 = vunpack.c.h.b16 %v1026
  %v3685 = vunpack.c.l.b16 %v1027
  %v3686 = vunpack.c.h.b16 %v1027
  %v3687 = vunpack.c.l.b16 %v1028
  %v3688 = vunpack.c.h.b16 %v1028
  %v3689 = vunpack.c.l.b16 %v1029
  %v3690 = vunpack.c.h.b16 %v1029
  %v3691 = vunpack.c.l.b16 %v1030
  %v3692 = vunpack.c.h.b16 %v1030
  %v3693 = vunpack.c.l.b16 %v1031
  %v3694 = vunpack.c.h.b16 %v1031
  %v3695 = vunpack.c.l.b16 %v1032
  %v3696 = vunpack.c.h.b16 %v1032
  %v3697 = vunpack.c.l.b16 %v1033
  %v3698 = vunpack.c.h.b16 %v1033
  %v3699 = vunpack.c.l.b16 %v1034
  %v3700 = vunpack.c.h.b16 %v1034
  %v3701 = vunpack.c.l.b16 %v1035
  %v3702 = vunpack.c.h.b16 %v1035
  %v3703 = vunpack.c.l.b16 %v1036
  %v3704 = vunpack.c.h.b16 %v1036
  %v3705 = vunpack.c.l.b16 %v1037
  %v3706 = vunpack.c.h.b16 %v1037
  %v3707 = vunpack.c.l.b16 %v1038
  %v3708 = vunpack.c.h.b16 %v1038
  %v3709 = vunpack.c.l.b16 %v1039
  %v3710 = vunpack.c.h.b16 %v1039
  %v3711 = vunpack.c.l.b16 %v1040
  %v3712 = vunpack.c.h.b16 %v1040
  %v3713 = vunpack.c.l.b16 %v1041
  %v3714 = vunpack.c.h.b16 %v1041
  %v3715 = vunpack.c.l.b16 %v1042
  %v3716 = vunpack.c.h.b16 %v1042
  %v3717 = vunpack.c.l.b16 %v1043
  %v3718 = vunpack.c.h.b16 %v1043
  %v3719 = vunpack.c.l.b16 %v1044
  %v3720 = vunpack.c.h.b16 %v1044
  %v3721 = vunpack.c.l.b16 %v1045
  %v3722 = vunpack.c.h.b16 %v1045
  %v3723 = vunpack.c.l.b16 %v1046
  %v3724 = vunpack.c.h.b16 %v1046
  %v3725 = vunpack.c.l.b16 %v1047
  %v3726 = vunpack.c.h.b16 %v1047
  %v3727 = vunpack.c.l.b16 %v1048
  %v3728 = vunpack.c.h.b16 %v1048
  %v3729 = vunpack.c.l.b16 %v1049
  %v3730 = vunpack.c.h.b16 %v1049
  %v3731 = vunpack.c.l.b16 %v1050
  %v3732 = vunpack.c.h.b16 %v1050
  %v3733 = vunpack.c.l.b16 %v1051
  %v3734 = vunpack.c.h.b16 %v1051
  %v3735 = vunpack.c.l.b16 %v1052
  %v3736 = vunpack.c.h.b16 %v1052
  %v3737 = vunpack.c.l.b16 %v1053
  %v3738 = vunpack.c.h.b16 %v1053
  %v3739 = vunpack.c.l.b16 %v1054
  %v3740 = vunpack.c.h.b16 %v1054
  %v3741 = vunpack.c.l.b16 %v1055
  %v3742 = vunpack.c.h.b16 %v1055
  %v3743 = vunpack.c.l.b16 %v1056
  %v3744 = vunpack.c.h.b16 %v1056
  %v3745 = vunpack.c.l.b16 %v1057
  %v3746 = vunpack.c.h.b16 %v1057
  %v3747 = vunpack.c.l.b16 %v1058
  %v3748 = vunpack.c.h.b16 %v1058
  %v3749 = vunpack.c.l.b16 %v1059
  %v3750 = vunpack.c.h.b16 %v1059
  %v3751 = vunpack.c.l.b16 %v1060
  %v3752 = vunpack.c.h.b16 %v1060
  %v3753 = vunpack.c.l.b16 %v1061
  %v3754 = vunpack.c.h.b16 %v1061
  %v3755 = vunpack.c.l.b16 %v1062
  %v3756 = vunpack.c.h.b16 %v1062
  %v3757 = vunpack.c.l.b16 %v1063
  %v3758 = vunpack.c.h.b16 %v1063
  %v3759 = vunpack.c.l.b16 %v1064
  %v3760 = vunpack.c.h.b16 %v1064
  %v3761 = vunpack.c.l.b16 %v1065
  %v3762 = vunpack.c.h.b16 %v1065
  %v3763 = vunpack.c.l.b16 %v1066
  %v3764 = vunpack.c.h.b16 %v1066
  %v3765 = vunpack.c.l.b16 %v1067
  %v3766 = vunpack.c.h.b16 %v1067
  %v3767 = vunpack.c.l.b16 %v1068
  %v3768 = vunpack.c.h.b16 %v1068
  %v3769 = vunpack.c.l.b16 %v1069
  %v3770 = vunpack.c.h.b16 %v1069
  %v3771 = vunpack.c.l.b16 %v1070
  %v3772 = vunpack.c.h.b16 %v1070
  %v3773 = vunpack.c.l.b16 %v1071
  %v3774 = vunpack.c.h.b16 %v1071
  %v3775 = vunpack.c.l.b16 %v1072
  %v3776 = vunpack.c.h.b16 %v1072
  %v3777 = vunpack.c.l.b16 %v1073
  %v3778 = vunpack.c.h.b16 %v1073
  %v3779 = vunpack.c.l.b16 %v1074
  %v3780 = vunpack.c.h.b16 %v1074
  %v3781 = vunpack.c.l.b16 %v1075
  %v3782 = vunpack.c.h.b16 %v1075
  %v3783 = vunpack.c.l.b16 %v1076
  %v3784 = vunpack.c.h.b16 %v1076
  %v3785 = vunpack.c.l.b16 %v1077
  %v3786 = vunpack.c.h.b16 %v1077
  %v3787 = vunpack.c.l.b16 %v1078
  %v3788 = vunpack.c.h.b16 %v1078
  %v3789 = vunpack.c.l.b16 %v1079
  %v3790 = vunpack.c.h.b16 %v1079
  %v3791 = vunpack.c.l.b16 %v1080
  %v3792 = vunpack.c.h.b16 %v1080
  %v3793 = vunpack.c.l.b16 %v1081
  %v3794 = vunpack.c.h.b16 %v1081
  %v3795 = vunpack.c.l.b16 %v1082
  %v3796 = vunpack.c.h.b16 %v1082
  %v3797 = vunpack.c.l.b16 %v1083
  %v3798 = vunpack.c.h.b16 %v1083
  %v3799 = vunpack.c.l.b16 %v1084
  %v3800 = vunpack.c.h.b16 %v1084
  %v3801 = vunpack.c.l.b16 %v1085
  %v3802 = vunpack.c.h.b16 %v1085
  %v3803 = vunpack.c.l.b16 %v1086
  %v3804 = vunpack.c.h.b16 %v1086
  %v3805 = vunpack.c.l.b16 %v1087
  %v3806 = vunpack.c.h.b16 %v1087
  %v3807 = vunpack.c.l.b16 %v1088
  %v3808 = vunpack.c.h.b16 %v1088
  %v3809 = vunpack.c.l.b16 %v1089
  %v3810 = vunpack.c.h.b16 %v1089
  %v3811 = vunpack.c.l.b16 %v1090
  %v3812 = vunpack.c.h.b16 %v1090
  %v3813 = vunpack.c.l.b16 %v1091
  %v3814 = vunpack.c.h.b16 %v1091
  %v3815 = vunpack.c.l.b16 %v1092
  %v3816 = vunpack.c.h.b16 %v1092
  %v3817 = vunpack.c.l.b16 %v1093
  %v3818 = vunpack.c.h.b16 %v1093
  %v3819 = vunpack.c.l.b16 %v1094
  %v3820 = vunpack.c.h.b16 %v1094
  %v3821 = vunpack.c.l.b16 %v1095
  %v3822 = vunpack.c.h.b16 %v1095
  %v3823 = vunpack.c.l.b16 %v1096
  %v3824 = vunpack.c.h.b16 %v1096
  %v3825 = vunpack.c.l.b16 %v1097
  %v3826 = vunpack.c.h.b16 %v1097
  %v3827 = vunpack.c.l.b16 %v1098
  %v3828 = vunpack.c.h.b16 %v1098
  %v3829 = vunpack.c.l.b16 %v1099
  %v3830 = vunpack.c.h.b16 %v1099
  %v3831 = vunpack.c.l.b16 %v1100
  %v3832 = vunpack.c.h.b16 %v1100
  %v3833 = vunpack.c.l.b16 %v1101
  %v3834 = vunpack.c.h.b16 %v1101
  %v3835 = vunpack.c.l.b16 %v1102
  %v3836 = vunpack.c.h.b16 %v1102
  %v3837 = vunpack.c.l.b16 %v1103
  %v3838 = vunpack.c.h.b16 %v1103
  %v3839 = vunpack.c.l.b16 %v1104
  %v3840 = vunpack.c.h.b16 %v1104
  %v3841 = vunpack.c.l.b16 %v1105
  %v3842 = vunpack.c.h.b16 %v1105
  %v3843 = vunpack.c.l.b16 %v1106
  %v3844 = vunpack.c.h.b16 %v1106
  %v3845 = vunpack.c.l.b16 %v1107
  %v3846 = vunpack.c.h.b16 %v1107
  %v3847 = vunpack.c.l.b16 %v1108
  %v3848 = vunpack.c.h.b16 %v1108
  %v3849 = vunpack.c.l.b16 %v1109
  %v3850 = vunpack.c.h.b16 %v1109
  %v3851 = vunpack.c.l.b16 %v1110
  %v3852 = vunpack.c.h.b16 %v1110
  %v3853 = vunpack.c.l.b16 %v1111
  %v3854 = vunpack.c.h.b16 %v1111
  %v3855 = vunpack.c.l.b16 %v1112
  %v3856 = vunpack.c.h.b16 %v1112
  %v3857 = vunpack.c.l.b16 %v1113
  %v3858 = vunpack.c.h.b16 %v1113
  %v3859 = vunpack.c.l.b16 %v1114
  %v3860 = vunpack.c.h.b16 %v1114
  %v3861 = vunpack.c.l.b16 %v1115
  %v3862 = vunpack.c.h.b16 %v1115
  %v3863 = vunpack.c.l.b16 %v1116
  %v3864 = vunpack.c.h.b16 %v1116
  %v3865 = vunpack.c.l.b16 %v1117
  %v3866 = vunpack.c.h.b16 %v1117
  %v3867 = vunpack.c.l.b16 %v1118
  %v3868 = vunpack.c.h.b16 %v1118
  %v3869 = vunpack.c.l.b16 %v1119
  %v3870 = vunpack.c.h.b16 %v1119
  %v3871 = vunpack.c.l.b16 %v1120
  %v3872 = vunpack.c.h.b16 %v1120
  %v3873 = vunpack.c.l.b16 %v1121
  %v3874 = vunpack.c.h.b16 %v1121
  %v3875 = vunpack.c.l.b16 %v1122
  %v3876 = vunpack.c.h.b16 %v1122
  %v3877 = vunpack.c.l.b16 %v1123
  %v3878 = vunpack.c.h.b16 %v1123
  %v3879 = vunpack.c.l.b16 %v1124
  %v3880 = vunpack.c.h.b16 %v1124
  %v3881 = vunpack.c.l.b16 %v1125
  %v3882 = vunpack.c.h.b16 %v1125
  %v3883 = vunpack.c.l.b16 %v1126
  %v3884 = vunpack.c.h.b16 %v1126
  %v3885 = vunpack.c.l.b16 %v1127
  %v3886 = vunpack.c.h.b16 %v1127
  %v3887 = vunpack.c.l.b16 %v1128
  %v3888 = vunpack.c.h.b16 %v1128
  %v3889 = vunpack.c.l.b16 %v1129
  %v3890 = vunpack.c.h.b16 %v1129
  %v3891 = vunpack.c.l.b16 %v1130
  %v3892 = vunpack.c.h.b16 %v1130
  %v3893 = vunpack.c.l.b16 %v1131
  %v3894 = vunpack.c.h.b16 %v1131
  %v3895 = vunpack.c.l.b16 %v1132
  %v3896 = vunpack.c.h.b16 %v1132
  %v3897 = vunpack.c.l.b16 %v1133
  %v3898 = vunpack.c.h.b16 %v1133
  %v3899 = vunpack.c.l.b16 %v1134
  %v3900 = vunpack.c.h.b16 %v1134
  %v3901 = vunpack.c.l.b16 %v1135
  %v3902 = vunpack.c.h.b16 %v1135
  %v3903 = vunpack.c.l.b16 %v1136
  %v3904 = vunpack.c.h.b16 %v1136
  %v3905 = vunpack.c.l.b16 %v1137
  %v3906 = vunpack.c.h.b16 %v1137
  %v3907 = vunpack.c.l.b16 %v1138
  %v3908 = vunpack.c.h.b16 %v1138
  %v3909 = vunpack.c.l.b16 %v1139
  %v3910 = vunpack.c.h.b16 %v1139
  %v3911 = vunpack.c.l.b16 %v1140
  %v3912 = vunpack.c.h.b16 %v1140
  %v3913 = vunpack.c.l.b16 %v1141
  %v3914 = vunpack.c.h.b16 %v1141
  %v3915 = vunpack.c.l.b16 %v1142
  %v3916 = vunpack.c.h.b16 %v1142
  %v3917 = vunpack.c.l.b16 %v1143
  %v3918 = vunpack.c.h.b16 %v1143
  %v3919 = vunpack.c.l.b16 %v1144
  %v3920 = vunpack.c.h.b16 %v1144
  %v3921 = vunpack.c.l.b16 %v1145
  %v3922 = vunpack.c.h.b16 %v1145
  %v3923 = vunpack.c.l.b16 %v1146
  %v3924 = vunpack.c.h.b16 %v1146
  %v3925 = vunpack.c.l.b16 %v1147
  %v3926 = vunpack.c.h.b16 %v1147
  %v3927 = vunpack.c.l.b16 %v1148
  %v3928 = vunpack.c.h.b16 %v1148
  %v3929 = vunpack.c.l.b16 %v1149
  %v3930 = vunpack.c.h.b16 %v1149
  %v3931 = vunpack.c.l.b16 %v1150
  %v3932 = vunpack.c.h.b16 %v1150
  %v3933 = vunpack.c.l.b16 %v1151
  %v3934 = vunpack.c.h.b16 %v1151
  %v3935 = vunpack.c.l.b16 %v1152
  %v3936 = vunpack.c.h.b16 %v1152
  %v3937 = vunpack.c.l.b16 %v1153
  %v3938 = vunpack.c.h.b16 %v1153
  %v3939 = vunpack.c.l.b16 %v1154
  %v3940 = vunpack.c.h.b16 %v1154
  %v3941 = vunpack.c.l.b16 %v1155
  %v3942 = vunpack.c.h.b16 %v1155
  %v3943 = vunpack.c.l.b16 %v1156
  %v3944 = vunpack.c.h.b16 %v1156
  %v3945 = vunpack.c.l.b16 %v1157
  %v3946 = vunpack.c.h.b16 %v1157
  %v3947 = vunpack.c.l.b16 %v1158
  %v3948 = vunpack.c.h.b16 %v1158
  %v3949 = vunpack.c.l.b16 %v1159
  %v3950 = vunpack.c.h.b16 %v1159
  %v3951 = vunpack.c.l.b16 %v1160
  %v3952 = vunpack.c.h.b16 %v1160
  %v3953 = vunpack.c.l.b16 %v1161
  %v3954 = vunpack.c.h.b16 %v1161
  %v3955 = vunpack.c.l.b16 %v1162
  %v3956 = vunpack.c.h.b16 %v1162
  %v3957 = vunpack.c.l.b16 %v1163
  %v3958 = vunpack.c.h.b16 %v1163
  %v3959 = vunpack.c.l.b16 %v1164
  %v3960 = vunpack.c.h.b16 %v1164
  %v3961 = vunpack.c.l.b16 %v1165
  %v3962 = vunpack.c.h.b16 %v1165
  %v3963 = vunpack.c.l.b16 %v1166
  %v3964 = vunpack.c.h.b16 %v1166
  %v3965 = vunpack.c.l.b16 %v1167
  %v3966 = vunpack.c.h.b16 %v1167
  %v3967 = vunpack.c.l.b16 %v1168
  %v3968 = vunpack.c.h.b16 %v1168
  %v3969 = vunpack.c.l.b16 %v1169
  %v3970 = vunpack.c.h.b16 %v1169
  %v3971 = vunpack.c.l.b16 %v1170
  %v3972 = vunpack.c.h.b16 %v1170
  %v3973 = vunpack.c.l.b16 %v1171
  %v3974 = vunpack.c.h.b16 %v1171
  %v3975 = vunpack.c.l.b16 %v1172
  %v3976 = vunpack.c.h.b16 %v1172
  %v3977 = vunpack.c.l.b16 %v1173
  %v3978 = vunpack.c.h.b16 %v1173
  %v3979 = vunpack.c.l.b16 %v1174
  %v3980 = vunpack.c.h.b16 %v1174
  %v3981 = vunpack.c.l.b16 %v1175
  %v3982 = vunpack.c.h.b16 %v1175
  %v3983 = vunpack.c.l.b16 %v1176
  %v3984 = vunpack.c.h.b16 %v1176
  %v3985 = vunpack.c.l.b16 %v1177
  %v3986 = vunpack.c.h.b16 %v1177
  %v3987 = vunpack.c.l.b16 %v1178
  %v3988 = vunpack.c.h.b16 %v1178
  %v3989 = vunpack.c.l.b16 %v1179
  %v3990 = vunpack.c.h.b16 %v1179
  %v3991 = vunpack.c.l.b16 %v1180
  %v3992 = vunpack.c.h.b16 %v1180
  %v3993 = vunpack.c.l.b16 %v1181
  %v3994 = vunpack.c.h.b16 %v1181
  %v3995 = vunpack.c.l.b16 %v1182
  %v3996 = vunpack.c.h.b16 %v1182
  %v3997 = vunpack.c.l.b16 %v1183
  %v3998 = vunpack.c.h.b16 %v1183
  %v3999 = vunpack.c.l.b16 %v1184
  %v4000 = vunpack.c.h.b16 %v1184
  %v4001 = vunpack.c.l.b16 %v1185
  %v4002 = vunpack.c.h.b16 %v1185
  %v4003 = vunpack.c.l.b16 %v1186
  %v4004 = vunpack.c.h.b16 %v1186
  %v4005 = vunpack.c.l.b16 %v1187
  %v4006 = vunpack.c.h.b16 %v1187
  %v4007 = vunpack.c.l.b16 %v1188
  %v4008 = vunpack.c.h.b16 %v1188
  %v4009 = vunpack.c.l.b16 %v1189
  %v4010 = vunpack.c.h.b16 %v1189
  %v4011 = vunpack.c.l.b16 %v1190
  %v4012 = vunpack.c.h.b16 %v1190
  %v4013 = vunpack.c.l.b16 %v1191
  %v4014 = vunpack.c.h.b16 %v1191
  %v4015 = vunpack.c.l.b16 %v1192
  %v4016 = vunpack.c.h.b16 %v1192
  %v4017 = vunpack.c.l.b16 %v1193
  %v4018 = vunpack.c.h.b16 %v1193
  %v4019 = vunpack.c.l.b16 %v1194
  %v4020 = vunpack.c.h.b16 %v1194
  %v4021 = vunpack.c.l.b16 %v1195
  %v4022 = vunpack.c.h.b16 %v1195
  %v4023 = vunpack.c.l.b16 %v1196
  %v4024 = vunpack.c.h.b16 %v1196
  %v4025 = vunpack.c.l.b16 %v1197
  %v4026 = vunpack.c.h.b16 %v1197
  %v4027 = vunpack.c.l.b16 %v1198
  %v4028 = vunpack.c.h.b16 %v1198
  %v4029 = vunpack.c.l.b16 %v1199
  %v4030 = vunpack.c.h.b16 %v1199
  %v4031 = vunpack.c.l.b16 %v1200
  %v4032 = vunpack.c.h.b16 %v1200
  %v4033 = vunpack.c.l.b16 %v1201
  %v4034 = vunpack.c.h.b16 %v1201
  %v4035 = vunpack.c.l.b16 %v1202
  %v4036 = vunpack.c.h.b16 %v1202
  %v4037 = vunpack.c.l.b16 %v1203
  %v4038 = vunpack.c.h.b16 %v1203
  %v4039 = vunpack.c.l.b16 %v1204
  %v4040 = vunpack.c.h.b16 %v1204
  %v4041 = vunpack.c.l.b16 %v1205
  %v4042 = vunpack.c.h.b16 %v1205
  %v4043 = vunpack.c.l.b16 %v1206
  %v4044 = vunpack.c.h.b16 %v1206
  %v4045 = vunpack.c.l.b16 %v1207
  %v4046 = vunpack.c.h.b16 %v1207
  %v4047 = vunpack.c.l.b16 %v1208
  %v4048 = vunpack.c.h.b16 %v1208
  %v4049 = vunpack.c.l.b16 %v1209
  %v4050 = vunpack.c.h.b16 %v1209
  %v4051 = vunpack.c.l.b16 %v1210
  %v4052 = vunpack.c.h.b16 %v1210
  %v4053 = vunpack.c.l.b16 %v1211
  %v4054 = vunpack.c.h.b16 %v1211
  %v4055 = vunpack.c.l.b16 %v1212
  %v4056 = vunpack.c.h.b16 %v1212
  %v4057 = vunpack.c.l.b16 %v1213
  %v4058 = vunpack.c.h.b16 %v1213
  %v4059 = vunpack.c.l.b16 %v1214
  %v4060 = vunpack.c.h.b16 %v1214
  %v4061 = vunpack.c.l.b16 %v1215
  %v4062 = vunpack.c.h.b16 %v1215
  %v4063 = vunpack.c.l.b16 %v1216
  %v4064 = vunpack.c.h.b16 %v1216
  %v4065 = vunpack.c.l.b16 %v1217
  %v4066 = vunpack.c.h.b16 %v1217
  %v4067 = vunpack.c.l.b16 %v1218
  %v4068 = vunpack.c.h.b16 %v1218
  %v4069 = vunpack.c.l.b16 %v1219
  %v4070 = vunpack.c.h.b16 %v1219
  %v4071 = vunpack.c.l.b16 %v1220
  %v4072 = vunpack.c.h.b16 %v1220
  %v4073 = vunpack.c.l.b16 %v1221
  %v4074 = vunpack.c.h.b16 %v1221
  %v4075 = vunpack.c.l.b16 %v1222
  %v4076 = vunpack.c.h.b16 %v1222
  %v4077 = vunpack.c.l.b16 %v1223
  %v4078 = vunpack.c.h.b16 %v1223
  %v4079 = vunpack.c.l.b16 %v1224
  %v4080 = vunpack.c.h.b16 %v1224
  %v4081 = vunpack.c.l.b16 %v1225
  %v4082 = vunpack.c.h.b16 %v1225
  %v4083 = vunpack.c.l.b16 %v1226
  %v4084 = vunpack.c.h.b16 %v1226
  %v4085 = vunpack.c.l.b16 %v1227
  %v4086 = vunpack.c.h.b16 %v1227
  %v4087 = vunpack.c.l.b16 %v1228
  %v4088 = vunpack.c.h.b16 %v1228
  %v4089 = vunpack.c.l.b16 %v1229
  %v4090 = vunpack.c.h.b16 %v1229
  %v4091 = vunpack.c.l.b16 %v1230
  %v4092 = vunpack.c.h.b16 %v1230
  %v4093 = vunpack.c.l.b16 %v1231
  %v4094 = vunpack.c.h.b16 %v1231
  %v4095 = vunpack.c.l.b16 %v1232
  %v4096 = vunpack.c.h.b16 %v1232
  %v4097 = vunpack.c.l.b16 %v1233
  %v4098 = vunpack.c.h.b16 %v1233
  %v4099 = vunpack.c.l.b16 %v1234
  %v4100 = vunpack.c.h.b16 %v1234
  %v4101 = vunpack.c.l.b16 %v1235
  %v4102 = vunpack.c.h.b16 %v1235
  %v4103 = vunpack.c.l.b16 %v1236
  %v4104 = vunpack.c.h.b16 %v1236
  %v4105 = vunpack.c.l.b16 %v1237
  %v4106 = vunpack.c.h.b16 %v1237
  %v4107 = vunpack.c.l.b16 %v1238
  %v4108 = vunpack.c.h.b16 %v1238
  %v4109 = vunpack.c.l.b16 %v1239
  %v4110 = vunpack.c.h.b16 %v1239
  %v4111 = vunpack.c.l.b16 %v1240
  %v4112 = vunpack.c.h.b16 %v1240
  %v4113 = vunpack.c.l.b16 %v1241
  %v4114 = vunpack.c.h.b16 %v1241
  %v4115 = vunpack.c.l.b16 %v1242
  %v4116 = vunpack.c.h.b16 %v1242
  %v4117 = vunpack.c.l.b16 %v1243
  %v4118 = vunpack.c.h.b16 %v1243
  %v4119 = vunpack.c.l.b16 %v1244
  %v4120 = vunpack.c.h.b16 %v1244
  %v4121 = vunpack.c.l.b16 %v1245
  %v4122 = vunpack.c.h.b16 %v1245
  %v4123 = vunpack.c.l.b16 %v1246
  %v4124 = vunpack.c.h.b16 %v1246
  %v4125 = vunpack.c.l.b16 %v1247
  %v4126 = vunpack.c.h.b16 %v1247
  %v4127 = vunpack.c.l.b16 %v1248
  %v4128 = vunpack.c.h.b16 %v1248
  %v4129 = vunpack.c.l.b16 %v1249
  %v4130 = vunpack.c.h.b16 %v1249
  %v4131 = vunpack.c.l.b16 %v1250
  %v4132 = vunpack.c.h.b16 %v1250
  %v4133 = vunpack.c.l.b16 %v1251
  %v4134 = vunpack.c.h.b16 %v1251
  %v4135 = vunpack.c.l.b16 %v1252
  %v4136 = vunpack.c.h.b16 %v1252
  %v4137 = vunpack.c.l.b16 %v1253
  %v4138 = vunpack.c.h.b16 %v1253
  %v4139 = vunpack.c.l.b16 %v1254
  %v4140 = vunpack.c.h.b16 %v1254
  %v4141 = vunpack.c.l.b16 %v1255
  %v4142 = vunpack.c.h.b16 %v1255
  %v4143 = vunpack.c.l.b16 %v1256
  %v4144 = vunpack.c.h.b16 %v1256
  %v4145 = vunpack.c.l.b16 %v1257
  %v4146 = vunpack.c.h.b16 %v1257
  %v4147 = vunpack.c.l.b16 %v1258
  %v4148 = vunpack.c.h.b16 %v1258
  %v4149 = vunpack.c.l.b16 %v1259
  %v4150 = vunpack.c.h.b16 %v1259
  %v4151 = vunpack.c.l.b16 %v1260
  %v4152 = vunpack.c.h.b16 %v1260
  %v4153 = vunpack.c.l.b16 %v1261
  %v4154 = vunpack.c.h.b16 %v1261
  %v4155 = vunpack.c.l.b16 %v1262
  %v4156 = vunpack.c.h.b16 %v1262
  %v4157 = vunpack.c.l.b16 %v1263
  %v4158 = vunpack.c.h.b16 %v1263
  %v4159 = vunpack.c.l.b16 %v1264
  %v4160 = vunpack.c.h.b16 %v1264
  %v4161 = vunpack.c.l.b16 %v1265
  %v4162 = vunpack.c.h.b16 %v1265
  %v4163 = vunpack.c.l.b16 %v1266
  %v4164 = vunpack.c.h.b16 %v1266
  %v4165 = vunpack.c.l.b16 %v1267
  %v4166 = vunpack.c.h.b16 %v1267
  %v4167 = vunpack.c.l.b16 %v1268
  %v4168 = vunpack.c.h.b16 %v1268
  %v4169 = vunpack.c.l.b16 %v1269
  %v4170 = vunpack.c.h.b16 %v1269
  %v4171 = vunpack.c.l.b16 %v1270
  %v4172 = vunpack.c.h.b16 %v1270
  %v4173 = vunpack.c.l.b16 %v1271
  %v4174 = vunpack.c.h.b16 %v1271
  %v4175 = vunpack.c.l.b16 %v1272
  %v4176 = vunpack.c.h.b16 %v1272
  %v4177 = vunpack.c.l.b16 %v1273
  %v4178 = vunpack.c.h.b16 %v1273
  %v4179 = vunpack.c.l.b16 %v1274
  %v4180 = vunpack.c.h.b16 %v1274
  %v4181 = vunpack.c.l.b16 %v1275
  %v4182 = vunpack.c.h.b16 %v1275
  %v4183 = vunpack.c.l.b16 %v1276
  %v4184 = vunpack.c.h.b16 %v1276
  %v4185 = vunpack.c.l.b16 %v1277
  %v4186 = vunpack.c.h.b16 %v1277
  %v4187 = vunpack.c.l.b16 %v1278
  %v4188 = vunpack.c.h.b16 %v1278
  %v4189 = vunpack.c.l.b16 %v1279
  %v4190 = vunpack.c.h.b16 %v1279
  %v4191 = vunpack.c.l.b16 %v1280
  %v4192 = vunpack.c.h.b16 %v1280
  %v4193 = vunpack.c.l.b16 %v1281
  %v4194 = vunpack.c.h.b16 %v1281
  %v4195 = vunpack.c.l.b16 %v1282
  %v4196 = vunpack.c.h.b16 %v1282
  %v4197 = vunpack.c.l.b16 %v1283
  %v4198 = vunpack.c.h.b16 %v1283
  %v4199 = vunpack.c.l.b16 %v1284
  %v4200 = vunpack.c.h.b16 %v1284
  %v4201 = vunpack.c.l.b16 %v1285
  %v4202 = vunpack.c.h.b16 %v1285
  %v4203 = vunpack.c.l.b16 %v1286
  %v4204 = vunpack.c.h.b16 %v1286
  %v4205 = vunpack.c.l.b16 %v1287
  %v4206 = vunpack.c.h.b16 %v1287
  %v4207 = vunpack.c.l.b16 %v1288
  %v4208 = vunpack.c.h.b16 %v1288
  %v4209 = vunpack.c.l.b16 %v1289
  %v4210 = vunpack.c.h.b16 %v1289
  %v4211 = vunpack.c.l.b16 %v1290
  %v4212 = vunpack.c.h.b16 %v1290
  %v4213 = vunpack.c.l.b16 %v1291
  %v4214 = vunpack.c.h.b16 %v1291
  %v4215 = vunpack.c.l.b16 %v1292
  %v4216 = vunpack.c.h.b16 %v1292
  %v4217 = vunpack.c.l.b16 %v1293
  %v4218 = vunpack.c.h.b16 %v1293
  %v4219 = vunpack.c.l.b16 %v1294
  %v4220 = vunpack.c.h.b16 %v1294
  %v4221 = vunpack.c.l.b16 %v1295
  %v4222 = vunpack.c.h.b16 %v1295
  %v4223 = vunpack.c.l.b16 %v1296
  %v4224 = vunpack.c.h.b16 %v1296
  %v4225 = vunpack.c.l.b16 %v1297
  %v4226 = vunpack.c.h.b16 %v1297
  %v4227 = vunpack.c.l.b16 %v1298
  %v4228 = vunpack.c.h.b16 %v1298
  %v4229 = vunpack.c.l.b16 %v1299
  %v4230 = vunpack.c.h.b16 %v1299
  %v4231 = vunpack.c.l.b16 %v1300
  %v4232 = vunpack.c.h.b16 %v1300
  %v4233 = vunpack.c.l.b16 %v1301
  %v4234 = vunpack.c.h.b16 %v1301
  %v4235 = vunpack.c.l.b16 %v1302
  %v4236 = vunpack.c.h.b16 %v1302
  %v4237 = vunpack.c.l.b16 %v1303
  %v4238 = vunpack.c.h.b16 %v1303
  %v4239 = vunpack.c.l.b16 %v1304
  %v4240 = vunpack.c.h.b16 %v1304
  %v4241 = vunpack.c.l.b16 %v1305
  %v4242 = vunpack.c.h.b16 %v1305
  %v4243 = vunpack.c.l.b16 %v1306
  %v4244 = vunpack.c.h.b16 %v1306
  %v4245 = vunpack.c.l.b16 %v1307
  %v4246 = vunpack.c.h.b16 %v1307
  %v4247 = vunpack.c.l.b16 %v1308
  %v4248 = vunpack.c.h.b16 %v1308
  %v4249 = vunpack.c.l.b16 %v1309
  %v4250 = vunpack.c.h.b16 %v1309
  %v4251 = vunpack.c.l.b16 %v1310
  %v4252 = vunpack.c.h.b16 %v1310
  %v4253 = vunpack.c.l.b16 %v1311
  %v4254 = vunpack.c.h.b16 %v1311
  %v4255 = vunpack.c.l.b16 %v1312
  %v4256 = vunpack.c.h.b16 %v1312
  %v4257 = vunpack.c.l.b16 %v1313
  %v4258 = vunpack.c.h.b16 %v1313
  %v4259 = vunpack.c.l.b16 %v1314
  %v4260 = vunpack.c.h.b16 %v1314
  %v4261 = vunpack.c.l.b16 %v1315
  %v4262 = vunpack.c.h.b16 %v1315
  %v4263 = vunpack.c.l.b16 %v1316
  %v4264 = vunpack.c.h.b16 %v1316
  %v4265 = vunpack.c.l.b16 %v1317
  %v4266 = vunpack.c.h.b16 %v1317
  %v4267 = vunpack.c.l.b16 %v1318
  %v4268 = vunpack.c.h.b16 %v1318
  %v4269 = vunpack.c.l.b16 %v1319
  %v4270 = vunpack.c.h.b16 %v1319
  %v4271 = vunpack.c.l.b16 %v1320
  %v4272 = vunpack.c.h.b16 %v1320
  %v4273 = vunpack.c.l.b16 %v1321
  %v4274 = vunpack.c.h.b16 %v1321
  %v4275 = vunpack.c.l.b16 %v1322
  %v4276 = vunpack.c.h.b16 %v1322
  %v4277 = vunpack.c.l.b16 %v1323
  %v4278 = vunpack.c.h.b16 %v1323
  %v4279 = vunpack.c.l.b16 %v1324
  %v4280 = vunpack.c.h.b16 %v1324
  %v4281 = vunpack.c.l.b16 %v1325
  %v4282 = vunpack.c.h.b16 %v1325
  %v4283 = vunpack.c.l.b16 %v1326
  %v4284 = vunpack.c.h.b16 %v1326
  %v4285 = vunpack.c.l.b16 %v1327
  %v4286 = vunpack.c.h.b16 %v1327
  %v4287 = vunpack.c.l.b16 %v1328
  %v4288 = vunpack.c.h.b16 %v1328
  %v4289 = vunpack.c.l.b16 %v1329
  %v4290 = vunpack.c.h.b16 %v1329
  %v4291 = vunpack.c.l.b16 %v1330
  %v4292 = vunpack.c.h.b16 %v1330
  %v4293 = vunpack.c.l.b16 %v1331
  %v4294 = vunpack.c.h.b16 %v1331
  %v4295 = vunpack.c.l.b16 %v1332
  %v4296 = vunpack.c.h.b16 %v1332
  %v4297 = vunpack.c.l.b16 %v1333
  %v4298 = vunpack.c.h.b16 %v1333
  %v4299 = vunpack.c.l.b16 %v1334
  %v4300 = vunpack.c.h.b16 %v1334
  %v4301 = vunpack.c.l.b16 %v1335
  %v4302 = vunpack.c.h.b16 %v1335
  %v4303 = vunpack.c.l.b16 %v1336
  %v4304 = vunpack.c.h.b16 %v1336
  %v4305 = vunpack.c.l.b16 %v1337
  %v4306 = vunpack.c.h.b16 %v1337
  %v4307 = vunpack.c.l.b16 %v1338
  %v4308 = vunpack.c.h.b16 %v1338
  %v4309 = vunpack.c.l.b16 %v1339
  %v4310 = vunpack.c.h.b16 %v1339
  %v4311 = vunpack.c.l.b16 %v1340
  %v4312 = vunpack.c.h.b16 %v1340
  %v4313 = vunpack.c.l.b16 %v1341
  %v4314 = vunpack.c.h.b16 %v1341
  %v4315 = vunpack.c.l.b16 %v1342
  %v4316 = vunpack.c.h.b16 %v1342
  %v4317 = vunpack.c.l.b16 %v1343
  %v4318 = vunpack.c.h.b16 %v1343
  %v4319 = vunpack.c.l.b16 %v1344
  %v4320 = vunpack.c.h.b16 %v1344
  %v4321 = vunpack.c.l.b16 %v1345
  %v4322 = vunpack.c.h.b16 %v1345
  %v4323 = vunpack.c.l.b16 %v1346
  %v4324 = vunpack.c.h.b16 %v1346
  %v4325 = vunpack.c.l.b16 %v1347
  %v4326 = vunpack.c.h.b16 %v1347
  %v4327 = vunpack.c.l.b16 %v1348
  %v4328 = vunpack.c.h.b16 %v1348
  %v4329 = vunpack.c.l.b16 %v1349
  %v4330 = vunpack.c.h.b16 %v1349
  %v4331 = vunpack.c.l.b16 %v1350
  %v4332 = vunpack.c.h.b16 %v1350
  %v4333 = vunpack.c.l.b16 %v1351
  %v4334 = vunpack.c.h.b16 %v1351
  %v4335 = vunpack.c.l.b16 %v1352
  %v4336 = vunpack.c.h.b16 %v1352
  %v4337 = vunpack.c.l.b16 %v1353
  %v4338 = vunpack.c.h.b16 %v1353
  %v4339 = vunpack.c.l.b16 %v1354
  %v4340 = vunpack.c.h.b16 %v1354
  %v4341 = vunpack.c.l.b16 %v1355
  %v4342 = vunpack.c.h.b16 %v1355
  %v4343 = vunpack.c.l.b16 %v1356
  %v4344 = vunpack.c.h.b16 %v1356
  %v4345 = vunpack.c.l.b16 %v1357
  %v4346 = vunpack.c.h.b16 %v1357
  %v4347 = vunpack.c.l.b16 %v1358
  %v4348 = vunpack.c.h.b16 %v1358
  %v4349 = vunpack.c.l.b16 %v1359
  %v4350 = vunpack.c.h.b16 %v1359
  %v4351 = vunpack.c.l.b16 %v1360
  %v4352 = vunpack.c.h.b16 %v1360
  %v4353 = vunpack.c.l.b16 %v1361
  %v4354 = vunpack.c.h.b16 %v1361
  %v4355 = vunpack.c.l.b16 %v1362
  %v4356 = vunpack.c.h.b16 %v1362
  %v4357 = vunpack.c.l.b16 %v1363
  %v4358 = vunpack.c.h.b16 %v1363
  %v4359 = vunpack.c.l.b16 %v1364
  %v4360 = vunpack.c.h.b16 %v1364
  %v4361 = vunpack.c.l.b16 %v1365
  %v4362 = vunpack.c.h.b16 %v1365
  %v4363 = vunpack.c.l.b16 %v1366
  %v4364 = vunpack.c.h.b16 %v1366
  %v4365 = vunpack.c.l.b16 %v1367
  %v4366 = vunpack.c.h.b16 %v1367
  %v4367 = vunpack.c.l.b16 %v1368
  %v4368 = vunpack.c.h.b16 %v1368
  %v4369 = vunpack.c.l.b16 %v1369
  %v4370 = vunpack.c.h.b16 %v1369
  %v4371 = vunpack.c.l.b16 %v1370
  %v4372 = vunpack.c.h.b16 %v1370
  %v4373 = vunpack.c.l.b16 %v1371
  %v4374 = vunpack.c.h.b16 %v1371
  %v4375 = vunpack.c.l.b16 %v1372
  %v4376 = vunpack.c.h.b16 %v1372
  %v4377 = vunpack.c.l.b16 %v1373
  %v4378 = vunpack.c.h.b16 %v1373
  %v4379 = vunpack.c.l.b16 %v1374
  %v4380 = vunpack.c.h.b16 %v1374
  %v4381 = vunpack.c.l.b16 %v1375
  %v4382 = vunpack.c.h.b16 %v1375
  %v4383 = vunpack.c.l.b16 %v1376
  %v4384 = vunpack.c.h.b16 %v1376
  %v4385 = vunpack.c.l.b16 %v1377
  %v4386 = vunpack.c.h.b16 %v1377
  %v4387 = vunpack.c.l.b16 %v1378
  %v4388 = vunpack.c.h.b16 %v1378
  %v4389 = vunpack.c.l.b16 %v1379
  %v4390 = vunpack.c.h.b16 %v1379
  %v4391 = vunpack.c.l.b16 %v1380
  %v4392 = vunpack.c.h.b16 %v1380
  %v4393 = vunpack.c.l.b16 %v1381
  %v4394 = vunpack.c.h.b16 %v1381
  %v4395 = vunpack.c.l.b16 %v1382
  %v4396 = vunpack.c.h.b16 %v1382
  %v4397 = vunpack.c.l.b16 %v1383
  %v4398 = vunpack.c.h.b16 %v1383
  %v4399 = vunpack.c.l.b16 %v1384
  %v4400 = vunpack.c.h.b16 %v1384
  %v4401 = vunpack.c.l.b16 %v1385
  %v4402 = vunpack.c.h.b16 %v1385
  %v4403 = vunpack.c.l.b16 %v1386
  %v4404 = vunpack.c.h.b16 %v1386
  %v4405 = vunpack.c.l.b16 %v1387
  %v4406 = vunpack.c.h.b16 %v1387
  %v4407 = vunpack.c.l.b16 %v1388
  %v4408 = vunpack.c.h.b16 %v1388
  %v4409 = vunpack.c.l.b16 %v1389
  %v4410 = vunpack.c.h.b16 %v1389
  %v4411 = vunpack.c.l.b16 %v1390
  %v4412 = vunpack.c.h.b16 %v1390
  %v4413 = vunpack.c.l.b16 %v1391
  %v4414 = vunpack.c.h.b16 %v1391
  %v4415 = vunpack.c.l.b16 %v1392
  %v4416 = vunpack.c.h.b16 %v1392
  %v4417 = vunpack.c.l.b16 %v1393
  %v4418 = vunpack.c.h.b16 %v1393
  %v4419 = vunpack.c.l.b16 %v1394
  %v4420 = vunpack.c.h.b16 %v1394
  %v4421 = vunpack.c.l.b16 %v1395
  %v4422 = vunpack.c.h.b16 %v1395
  %v4423 = vunpack.c.l.b16 %v1396
  %v4424 = vunpack.c.h.b16 %v1396
  %v4425 = vunpack.c.l.b16 %v1397
  %v4426 = vunpack.c.h.b16 %v1397
  %v4427 = vunpack.c.l.b16 %v1398
  %v4428 = vunpack.c.h.b16 %v1398
  %v4429 = vunpack.c.l.b16 %v1399
  %v4430 = vunpack.c.h.b16 %v1399
  %v4431 = vunpack.c.l.b16 %v1400
  %v4432 = vunpack.c.h.b16 %v1400
  %v4433 = vunpack.c.l.b16 %v1401
  %v4434 = vunpack.c.h.b16 %v1401
  %v4435 = vunpack.c.l.b16 %v1402
  %v4436 = vunpack.c.h.b16 %v1402
  %v4437 = vunpack.c.l.b16 %v1403
  %v4438 = vunpack.c.h.b16 %v1403
  %v4439 = vunpack.c.l.b16 %v1404
  %v4440 = vunpack.c.h.b16 %v1404
  %v4441 = vunpack.c.l.b16 %v1405
  %v4442 = vunpack.c.h.b16 %v1405
  %v4443 = vunpack.c.l.b16 %v1406
  %v4444 = vunpack.c.h.b16 %v1406
  %v4445 = vunpack.c.l.b16 %v1407
  %v4446 = vunpack.c.h.b16 %v1407
  %v4447 = vunpack.c.l.b16 %v1408
  %v4448 = vunpack.c.h.b16 %v1408
  %v4449 = vunpack.c.l.b16 %v1409
  %v4450 = vunpack.c.h.b16 %v1409
  %v4451 = vunpack.c.l.b16 %v1410
  %v4452 = vunpack.c.h.b16 %v1410
  %v4453 = vunpack.c.l.b16 %v1411
  %v4454 = vunpack.c.h.b16 %v1411
  %v4455 = vunpack.c.l.b16 %v1412
  %v4456 = vunpack.c.h.b16 %v1412
  %v4457 = vunpack.c.l.b16 %v1413
  %v4458 = vunpack.c.h.b16 %v1413
  %v4459 = vunpack.c.l.b16 %v1414
  %v4460 = vunpack.c.h.b16 %v1414
  %v4461 = vunpack.c.l.b16 %v1415
  %v4462 = vunpack.c.h.b16 %v1415
  %v4463 = vunpack.c.l.b16 %v1416
  %v4464 = vunpack.c.h.b16 %v1416
  %v4465 = vunpack.c.l.b16 %v1417
  %v4466 = vunpack.c.h.b16 %v1417
  %v4467 = vunpack.c.l.b16 %v1418
  %v4468 = vunpack.c.h.b16 %v1418
  %v4469 = vunpack.c.l.b16 %v1419
  %v4470 = vunpack.c.h.b16 %v1419
  %v4471 = vunpack.c.l.b16 %v1420
  %v4472 = vunpack.c.h.b16 %v1420
  %v4473 = vunpack.c.l.b16 %v1421
  %v4474 = vunpack.c.h.b16 %v1421
  %v4475 = vunpack.c.l.b16 %v1422
  %v4476 = vunpack.c.h.b16 %v1422
  %v4477 = vunpack.c.l.b16 %v1423
  %v4478 = vunpack.c.h.b16 %v1423
  %v4479 = vunpack.c.l.b16 %v1424
  %v4480 = vunpack.c.h.b16 %v1424
  %v4481 = vunpack.c.l.b16 %v1425
  %v4482 = vunpack.c.h.b16 %v1425
  %v4483 = vunpack.c.l.b16 %v1426
  %v4484 = vunpack.c.h.b16 %v1426
  %v4485 = vunpack.c.l.b16 %v1427
  %v4486 = vunpack.c.h.b16 %v1427
  %v4487 = vunpack.c.l.b16 %v1428
  %v4488 = vunpack.c.h.b16 %v1428
  %v4489 = vunpack.c.l.b16 %v1429
  %v4490 = vunpack.c.h.b16 %v1429
  %v4491 = vunpack.c.l.b16 %v1430
  %v4492 = vunpack.c.h.b16 %v1430
  %v4493 = vunpack.c.l.b16 %v1431
  %v4494 = vunpack.c.h.b16 %v1431
  %v4495 = vunpack.c.l.b16 %v1432
  %v4496 = vunpack.c.h.b16 %v1432
  %v4497 = vunpack.c.l.b16 %v1433
  %v4498 = vunpack.c.h.b16 %v1433
  %v4499 = vunpack.c.l.b16 %v1434
  %v4500 = vunpack.c.h.b16 %v1434
  %v4501 = vunpack.c.l.b16 %v1435
  %v4502 = vunpack.c.h.b16 %v1435
  %v4503 = vunpack.c.l.b16 %v1436
  %v4504 = vunpack.c.h.b16 %v1436
  %v4505 = vunpack.c.l.b16 %v1437
  %v4506 = vunpack.c.h.b16 %v1437
  %v4507 = vunpack.c.l.b16 %v1438
  %v4508 = vunpack.c.h.b16 %v1438
  %v4509 = vunpack.c.l.b16 %v1439
  %v4510 = vunpack.c.h.b16 %v1439
  %v4511 = vunpack.c.l.b16 %v1440
  %v4512 = vunpack.c.h.b16 %v1440
  %v4513 = vunpack.c.l.b16 %v1441
  %v4514 = vunpack.c.h.b16 %v1441
  %v4515 = vunpack.c.l.b16 %v1442
  %v4516 = vunpack.c.h.b16 %v1442
  %v4517 = vunpack.c.l.b16 %v1443
  %v4518 = vunpack.c.h.b16 %v1443
  %v4519 = vunpack.c.l.b16 %v1444
  %v4520 = vunpack.c.h.b16 %v1444
  %v4521 = vunpack.c.l.b16 %v1445
  %v4522 = vunpack.c.h.b16 %v1445
  %v4523 = vunpack.c.l.b16 %v1446
  %v4524 = vunpack.c.h.b16 %v1446
  %v4525 = vunpack.c.l.b16 %v1447
  %v4526 = vunpack.c.h.b16 %v1447
  %v4527 = vunpack.c.l.b16 %v1448
  %v4528 = vunpack.c.h.b16 %v1448
  %v4529 = vunpack.c.l.b16 %v1449
  %v4530 = vunpack.c.h.b16 %v1449
  %v4531 = vunpack.c.l.b16 %v1450
  %v4532 = vunpack.c.h.b16 %v1450
  %v4533 = vunpack.c.l.b16 %v1451
  %v4534 = vunpack.c.h.b16 %v1451
  %v4535 = vunpack.c.l.b16 %v1452
  %v4536 = vunpack.c.h.b16 %v1452
  %v4537 = vunpack.c.l.b16 %v1453
  %v4538 = vunpack.c.h.b16 %v1453
  %v4539 = vunpack.c.l.b16 %v1454
  %v4540 = vunpack.c.h.b16 %v1454
  %v4541 = vunpack.c.l.b16 %v1455
  %v4542 = vunpack.c.h.b16 %v1455
  %v4543 = vunpack.c.l.b16 %v1456
  %v4544 = vunpack.c.h.b16 %v1456
  %v4545 = vunpack.c.l.b16 %v1457
  %v4546 = vunpack.c.h.b16 %v1457
  %v4547 = vunpack.c.l.b16 %v1458
  %v4548 = vunpack.c.h.b16 %v1458
  %v4549 = vunpack.c.l.b16 %v1459
  %v4550 = vunpack.c.h.b16 %v1459
  %v4551 = vunpack.c.l.b16 %v1460
  %v4552 = vunpack.c.h.b16 %v1460
  %v4553 = vunpack.c.l.b16 %v1461
  %v4554 = vunpack.c.h.b16 %v1461
  %v4555 = vunpack.c.l.b16 %v1462
  %v4556 = vunpack.c.h.b16 %v1462
  %v4557 = vunpack.c.l.b16 %v1463
  %v4558 = vunpack.c.h.b16 %v1463
  %v4559 = vunpack.c.l.b16 %v1464
  %v4560 = vunpack.c.h.b16 %v1464
  %v4561 = vunpack.c.l.b16 %v1465
  %v4562 = vunpack.c.h.b16 %v1465
  %v4563 = vunpack.c.l.b16 %v1466
  %v4564 = vunpack.c.h.b16 %v1466
  %v4565 = vunpack.c.l.b16 %v1467
  %v4566 = vunpack.c.h.b16 %v1467
  %v4567 = vunpack.c.l.b16 %v1468
  %v4568 = vunpack.c.h.b16 %v1468
  %v4569 = vunpack.c.l.b16 %v1469
  %v4570 = vunpack.c.h.b16 %v1469
  %v4571 = vunpack.c.l.b16 %v1470
  %v4572 = vunpack.c.h.b16 %v1470
  %v4573 = vunpack.c.l.b16 %v1471
  %v4574 = vunpack.c.h.b16 %v1471
  %v4575 = vunpack.c.l.b16 %v1472
  %v4576 = vunpack.c.h.b16 %v1472
  %v4577 = vunpack.c.l.b16 %v1473
  %v4578 = vunpack.c.h.b16 %v1473
  %v4579 = vunpack.c.l.b16 %v1474
  %v4580 = vunpack.c.h.b16 %v1474
  %v4581 = vunpack.c.l.b16 %v1475
  %v4582 = vunpack.c.h.b16 %v1475
  %v4583 = vunpack.c.l.b16 %v1476
  %v4584 = vunpack.c.h.b16 %v1476
  %v4585 = vunpack.c.l.b16 %v1477
  %v4586 = vunpack.c.h.b16 %v1477
  %v4587 = vunpack.c.l.b16 %v1478
  %v4588 = vunpack.c.h.b16 %v1478
  %v4589 = vunpack.c.l.b16 %v1479
  %v4590 = vunpack.c.h.b16 %v1479
  %v4591 = vunpack.c.l.b16 %v1480
  %v4592 = vunpack.c.h.b16 %v1480
  %v4593 = vunpack.c.l.b16 %v1481
  %v4594 = vunpack.c.h.b16 %v1481
  %v4595 = vunpack.c.l.b16 %v1482
  %v4596 = vunpack.c.h.b16 %v1482
  %v4597 = vunpack.c.l.b16 %v1483
  %v4598 = vunpack.c.h.b16 %v1483
  %v4599 = vunpack.c.l.b16 %v1484
  %v4600 = vunpack.c.h.b16 %v1484
  %v4601 = vunpack.c.l.b16 %v1485
  %v4602 = vunpack.c.h.b16 %v1485
  %v4603 = vunpack.c.l.b16 %v1486
  %v4604 = vunpack.c.h.b16 %v1486
  %v4605 = vunpack.c.l.b16 %v1487
  %v4606 = vunpack.c.h.b16 %v1487
  %v4607 = vunpack.c.l.b16 %v1488
  %v4608 = vunpack.c.h.b16 %v1488
  %v4609 = vunpack.c.l.b16 %v1489
  %v4610 = vunpack.c.h.b16 %v1489
  %v4611 = vunpack.c.l.b16 %v1490
  %v4612 = vunpack.c.h.b16 %v1490
  %v4613 = vunpack.c.l.b16 %v1491
  %v4614 = vunpack.c.h.b16 %v1491
  %v4615 = vunpack.c.l.b16 %v1492
  %v4616 = vunpack.c.h.b16 %v1492
  %v4617 = vunpack.c.l.b16 %v1493
  %v4618 = vunpack.c.h.b16 %v1493
  %v4619 = vunpack.c.l.b16 %v1494
  %v4620 = vunpack.c.h.b16 %v1494
  %v4621 = vunpack.c.l.b16 %v1495
  %v4622 = vunpack.c.h.b16 %v1495
  %v4623 = vunpack.c.l.b16 %v1496
  %v4624 = vunpack.c.h.b16 %v1496
  %v4625 = vunpack.c.l.b16 %v1497
  %v4626 = vunpack.c.h.b16 %v1497
  %v4627 = vunpack.c.l.b16 %v1498
  %v4628 = vunpack.c.h.b16 %v1498
  %v4629 = vunpack.c.l.b16 %v1499
  %v4630 = vunpack.c.h.b16 %v1499
  %v4631 = vunpack.c.l.b16 %v1500
  %v4632 = vunpack.c.h.b16 %v1500
  %v4633 = vunpack.c.l.b16 %v1501
  %v4634 = vunpack.c.h.b16 %v1501
  %v4635 = vunpack.c.l.b16 %v1502
  %v4636 = vunpack.c.h.b16 %v1502
  %v4637 = vunpack.c.l.b16 %v1503
  %v4638 = vunpack.c.h.b16 %v1503
  %v4639 = vunpack.c.l.b16 %v1504
  %v4640 = vunpack.c.h.b16 %v1504
  %v4641 = vunpack.c.l.b16 %v1505
  %v4642 = vunpack.c.h.b16 %v1505
  %v4643 = vunpack.c.l.b16 %v1506
  %v4644 = vunpack.c.h.b16 %v1506
  %v4645 = vunpack.c.l.b16 %v1507
  %v4646 = vunpack.c.h.b16 %v1507
  %v4647 = vunpack.c.l.b16 %v1508
  %v4648 = vunpack.c.h.b16 %v1508
  %v4649 = vunpack.c.l.b16 %v1509
  %v4650 = vunpack.c.h.b16 %v1509
  %v4651 = vunpack.c.l.b16 %v1510
  %v4652 = vunpack.c.h.b16 %v1510
  %v4653 = vunpack.c.l.b16 %v1511
  %v4654 = vunpack.c.h.b16 %v1511
  %v4655 = vunpack.c.l.b16 %v1512
  %v4656 = vunpack.c.h.b16 %v1512
  %v4657 = vunpack.c.l.b16 %v1513
  %v4658 = vunpack.c.h.b16 %v1513
  %v4659 = vunpack.c.l.b16 %v1514
  %v4660 = vunpack.c.h.b16 %v1514
  %v4661 = vunpack.c.l.b16 %v1515
  %v4662 = vunpack.c.h.b16 %v1515
  %v4663 = vunpack.c.l.b16 %v1516
  %v4664 = vunpack.c.h.b16 %v1516
  %v4665 = vunpack.c.l.b16 %v1517
  %v4666 = vunpack.c.h.b16 %v1517
  %v4667 = vunpack.c.l.b16 %v1518
  %v4668 = vunpack.c.h.b16 %v1518
  %v4669 = vunpack.c.l.b16 %v1519
  %v4670 = vunpack.c.h.b16 %v1519
  %v4671 = vunpack.c.l.b16 %v1520
  %v4672 = vunpack.c.h.b16 %v1520
  %v4673 = vunpack.c.l.b16 %v1521
  %v4674 = vunpack.c.h.b16 %v1521
  %v4675 = vunpack.c.l.b16 %v1522
  %v4676 = vunpack.c.h.b16 %v1522
  %v4677 = vunpack.c.l.b16 %v1523
  %v4678 = vunpack.c.h.b16 %v1523
  %v4679 = vunpack.c.l.b16 %v1524
  %v4680 = vunpack.c.h.b16 %v1524
  %v4681 = vunpack.c.l.b16 %v1525
  %v4682 = vunpack.c.h.b16 %v1525
  %v4683 = vunpack.c.l.b16 %v1526
  %v4684 = vunpack.c.h.b16 %v1526
  %v4685 = vunpack.c.l.b16 %v1527
  %v4686 = vunpack.c.h.b16 %v1527
  %v4687 = vunpack.c.l.b16 %v1528
  %v4688 = vunpack.c.h.b16 %v1528
  %v4689 = vunpack.c.l.b16 %v1529
  %v4690 = vunpack.c.h.b16 %v1529
  %v4691 = vunpack.c.l.b16 %v1530
  %v4692 = vunpack.c.h.b16 %v1530
  %v4693 = vunpack.c.l.b16 %v1531
  %v4694 = vunpack.c.h.b16 %v1531
  %v4695 = vunpack.c.l.b16 %v1532
  %v4696 = vunpack.c.h.b16 %v1532
  %v4697 = vunpack.c.l.b16 %v1533
  %v4698 = vunpack.c.h.b16 %v1533
  %v4699 = vunpack.c.l.b16 %v1534
  %v4700 = vunpack.c.h.b16 %v1534
  %v4701 = vunpack.c.l.b16 %v1535
  %v4702 = vunpack.c.h.b16 %v1535
  %v4703 = vunpack.c.l.b16 %v1536
  %v4704 = vunpack.c.h.b16 %v1536
  %v4705 = vunpack.c.l.b16 %v1537
  %v4706 = vunpack.c.h.b16 %v1537
  %v4707 = vunpack.c.l.b16 %v1538
  %v4708 = vunpack.c.h.b16 %v1538
  %v4709 = vunpack.c.l.b16 %v1539
  %v4710 = vunpack.c.h.b16 %v1539
  %v4711 = vunpack.c.l.b16 %v1540
  %v4712 = vunpack.c.h.b16 %v1540
  %v4713 = vunpack.c.l.b16 %v1541
  %v4714 = vunpack.c.h.b16 %v1541
  %v4715 = vunpack.c.l.b16 %v1542
  %v4716 = vunpack.c.h.b16 %v1542
  %v4717 = vunpack.c.l.b16 %v1543
  %v4718 = vunpack.c.h.b16 %v1543
  %v4719 = vunpack.c.l.b16 %v1544
  %v4720 = vunpack.c.h.b16 %v1544
  %v4721 = vunpack.c.l.b16 %v1545
  %v4722 = vunpack.c.h.b16 %v1545
  %v4723 = vunpack.c.l.b16 %v1546
  %v4724 = vunpack.c.h.b16 %v1546
  %v4725 = vunpack.c.l.b16 %v1547
  %v4726 = vunpack.c.h.b16 %v1547
  %v4727 = vunpack.c.l.b16 %v1548
  %v4728 = vunpack.c.h.b16 %v1548
  %v4729 = vunpack.c.l.b16 %v1549
  %v4730 = vunpack.c.h.b16 %v1549
  %v4731 = vunpack.c.l.b16 %v1550
  %v4732 = vunpack.c.h.b16 %v1550
  %v4733 = vunpack.c.l.b16 %v1551
  %v4734 = vunpack.c.h.b16 %v1551
  %v4735 = vunpack.c.l.b16 %v1552
  %v4736 = vunpack.c.h.b16 %v1552
  %v4737 = vunpack.c.l.b16 %v1553
  %v4738 = vunpack.c.h.b16 %v1553
  %v4739 = vunpack.c.l.b16 %v1554
  %v4740 = vunpack.c.h.b16 %v1554
  %v4741 = vunpack.c.l.b16 %v1555
  %v4742 = vunpack.c.h.b16 %v1555
  %v4743 = vunpack.c.l.b16 %v1556
  %v4744 = vunpack.c.h.b16 %v1556
  %v4745 = vunpack.c.l.b16 %v1557
  %v4746 = vunpack.c.h.b16 %v1557
  %v4747 = vunpack.c.l.b16 %v1558
  %v4748 = vunpack.c.h.b16 %v1558
  %v4749 = vunpack.c.l.b16 %v1559
  %v4750 = vunpack.c.h.b16 %v1559
  %v4751 = vunpack.c.l.b16 %v1560
  %v4752 = vunpack.c.h.b16 %v1560
  %v4753 = vunpack.c.l.b16 %v1561
  %v4754 = vunpack.c.h.b16 %v1561
  %v4755 = vunpack.c.l.b16 %v1562
  %v4756 = vunpack.c.h.b16 %v1562
  %v4757 = vunpack.c.l.b16 %v1563
  %v4758 = vunpack.c.h.b16 %v1563
  %v4759 = vunpack.c.l.b16 %v1564
  %v4760 = vunpack.c.h.b16 %v1564
  %v4761 = vunpack.c.l.b16 %v1565
  %v4762 = vunpack.c.h.b16 %v1565
  %v4763 = vunpack.c.l.b16 %v1566
  %v4764 = vunpack.c.h.b16 %v1566
  %v4765 = vunpack.c.l.b16 %v1567
  %v4766 = vunpack.c.h.b16 %v1567
  %v4767 = vunpack.c.l.b16 %v1568
  %v4768 = vunpack.c.h.b16 %v1568
  %v4769 = vunpack.c.l.b16 %v1569
  %v4770 = vunpack.c.h.b16 %v1569
  %v4771 = vunpack.c.l.b16 %v1570
  %v4772 = vunpack.c.h.b16 %v1570
  %v4773 = vunpack.c.l.b16 %v1571
  %v4774 = vunpack.c.h.b16 %v1571
  %v4775 = vunpack.c.l.b16 %v1572
  %v4776 = vunpack.c.h.b16 %v1572
  %v4777 = vunpack.c.l.b16 %v1573
  %v4778 = vunpack.c.h.b16 %v1573
  %v4779 = vunpack.c.l.b16 %v1574
  %v4780 = vunpack.c.h.b16 %v1574
  %v4781 = vunpack.c.l.b16 %v1575
  %v4782 = vunpack.c.h.b16 %v1575
  %v4783 = vunpack.c.l.b16 %v1576
  %v4784 = vunpack.c.h.b16 %v1576
  %v4785 = vunpack.c.l.b16 %v1577
  %v4786 = vunpack.c.h.b16 %v1577
  %v4787 = vunpack.c.l.b16 %v1578
  %v4788 = vunpack.c.h.b16 %v1578
  %v4789 = vunpack.c.l.b16 %v1579
  %v4790 = vunpack.c.h.b16 %v1579
  %v4791 = vunpack.c.l.b16 %v1580
  %v4792 = vunpack.c.h.b16 %v1580
  %v4793 = vunpack.c.l.b16 %v1581
  %v4794 = vunpack.c.h.b16 %v1581
  %v4795 = vunpack.c.l.b16 %v1582
  %v4796 = vunpack.c.h.b16 %v1582
  %v4797 = vunpack.c.l.b16 %v1583
  %v4798 = vunpack.c.h.b16 %v1583
  %v4799 = vunpack.c.l.b16 %v1584
  %v4800 = vunpack.c.h.b16 %v1584
  %v4801 = vunpack.c.l.b16 %v1585
  %v4802 = vunpack.c.h.b16 %v1585
  %v4803 = vunpack.c.l.b16 %v1586
  %v4804 = vunpack.c.h.b16 %v1586
  %v4805 = vunpack.c.l.b16 %v1587
  %v4806 = vunpack.c.h.b16 %v1587
  %v4807 = vunpack.c.l.b16 %v1588
  %v4808 = vunpack.c.h.b16 %v1588
  %v4809 = vunpack.c.l.b16 %v1589
  %v4810 = vunpack.c.h.b16 %v1589
  %v4811 = vunpack.c.l.b16 %v1590
  %v4812 = vunpack.c.h.b16 %v1590
  %v4813 = vunpack.c.l.b16 %v1591
  %v4814 = vunpack.c.h.b16 %v1591
  %v4815 = vunpack.c.l.b16 %v1592
  %v4816 = vunpack.c.h.b16 %v1592
  %v4817 = vunpack.c.l.b16 %v1593
  %v4818 = vunpack.c.h.b16 %v1593
  %v4819 = vunpack.c.l.b16 %v1594
  %v4820 = vunpack.c.h.b16 %v1594
  %v4821 = vunpack.c.l.b16 %v1595
  %v4822 = vunpack.c.h.b16 %v1595
  %v4823 = vunpack.c.l.b16 %v1596
  %v4824 = vunpack.c.h.b16 %v1596
  %v4825 = vunpack.c.l.b16 %v1597
  %v4826 = vunpack.c.h.b16 %v1597
  %v4827 = vunpack.c.l.b16 %v1598
  %v4828 = vunpack.c.h.b16 %v1598
  %v4829 = vunpack.c.l.b16 %v1599
  %v4830 = vunpack.c.h.b16 %v1599
  %v4831 = vunpack.c.l.b16 %v1600
  %v4832 = vunpack.c.h.b16 %v1600
  %v4833 = vunpack.c.l.b16 %v1601
  %v4834 = vunpack.c.h.b16 %v1601
  %v4835 = vunpack.c.l.b16 %v1602
  %v4836 = vunpack.c.h.b16 %v1602
  %v4837 = vunpack.c.l.b16 %v1603
  %v4838 = vunpack.c.h.b16 %v1603
  %v4839 = vunpack.c.l.b16 %v1604
  %v4840 = vunpack.c.h.b16 %v1604
  %v4841 = vunpack.c.l.b16 %v1605
  %v4842 = vunpack.c.h.b16 %v1605
  %v4843 = vunpack.c.l.b16 %v1606
  %v4844 = vunpack.c.h.b16 %v1606
  %v4845 = vunpack.c.l.b16 %v1607
  %v4846 = vunpack.c.h.b16 %v1607
  %v4847 = vunpack.c.l.b16 %v1608
  %v4848 = vunpack.c.h.b16 %v1608
  %v4849 = vunpack.c.l.b16 %v1609
  %v4850 = vunpack.c.h.b16 %v1609
  %v4851 = vunpack.c.l.b16 %v1610
  %v4852 = vunpack.c.h.b16 %v1610
  %v4853 = vunpack.c.l.b16 %v1611
  %v4854 = vunpack.c.h.b16 %v1611
  %v4855 = vunpack.c.l.b16 %v1612
  %v4856 = vunpack.c.h.b16 %v1612
  %v4857 = vunpack.c.l.b16 %v1613
  %v4858 = vunpack.c.h.b16 %v1613
  %v4859 = vunpack.c.l.b16 %v1614
  %v4860 = vunpack.c.h.b16 %v1614
  %v4861 = vunpack.c.l.b16 %v1615
  %v4862 = vunpack.c.h.b16 %v1615
  %v4863 = vunpack.c.l.b16 %v1616
  %v4864 = vunpack.c.h.b16 %v1616
  %v4865 = vunpack.c.l.b16 %v1617
  %v4866 = vunpack.c.h.b16 %v1617
  %v4867 = vunpack.c.l.b16 %v1618
  %v4868 = vunpack.c.h.b16 %v1618
  %v4869 = vunpack.c.l.b16 %v1619
  %v4870 = vunpack.c.h.b16 %v1619
  %v4871 = vunpack.c.l.b16 %v1620
  %v4872 = vunpack.c.h.b16 %v1620
  %v4873 = vunpack.c.l.b16 %v1621
  %v4874 = vunpack.c.h.b16 %v1621
  %v4875 = vunpack.c.l.b16 %v1622
  %v4876 = vunpack.c.h.b16 %v1622
  %v4877 = vunpack.c.l.b16 %v1623
  %v4878 = vunpack.c.h.b16 %v1623
  %v4879 = vunpack.c.l.b16 %v1624
  %v4880 = vunpack.c.h.b16 %v1624
  %v4881 = vunpack.c.l.b16 %v1625
  %v4882 = vunpack.c.h.b16 %v1625
  %v4883 = vunpack.c.l.b16 %v1626
  %v4884 = vunpack.c.h.b16 %v1626
  %v4885 = vunpack.c.l.b16 %v1627
  %v4886 = vunpack.c.h.b16 %v1627
  %v4887 = vunpack.c.l.b16 %v1628
  %v4888 = vunpack.c.h.b16 %v1628
  %v4889 = vunpack.c.l.b16 %v1629
  %v4890 = vunpack.c.h.b16 %v1629
  %v4891 = vunpack.c.l.b16 %v1630
  %v4892 = vunpack.c.h.b16 %v1630
  %v4893 = vunpack.c.l.b16 %v1631
  %v4894 = vunpack.c.h.b16 %v1631
  %v4895 = vunpack.c.l.b16 %v1632
  %v4896 = vunpack.c.h.b16 %v1632
  %v4897 = vunpack.c.l.b16 %v1633
  %v4898 = vunpack.c.h.b16 %v1633
  %v4899 = vunpack.c.l.b16 %v1634
  %v4900 = vunpack.c.h.b16 %v1634
  %v4901 = vunpack.c.l.b16 %v1635
  %v4902 = vunpack.c.h.b16 %v1635
  %v4903 = vunpack.c.l.b16 %v1636
  %v4904 = vunpack.c.h.b16 %v1636
  %v4905 = vunpack.c.l.b16 %v1637
  %v4906 = vunpack.c.h.b16 %v1637
  %v4907 = vunpack.c.l.b16 %v1638
  %v4908 = vunpack.c.h.b16 %v1638
  %v4909 = vunpack.c.l.b16 %v1639
  %v4910 = vunpack.c.h.b16 %v1639
  %v4911 = vunpack.c.l.b16 %v1640
  %v4912 = vunpack.c.h.b16 %v1640
  %v4913 = vunpack.c.l.b16 %v1641
  %v4914 = vunpack.c.h.b16 %v1641
  %v4915 = vunpack.c.l.b16 %v1642
  %v4916 = vunpack.c.h.b16 %v1642
  %v4917 = vunpack.c.l.b16 %v1643
  %v4918 = vunpack.c.h.b16 %v1643
  %v4919 = vunpack.c.l.b16 %v1644
  %v4920 = vunpack.c.h.b16 %v1644
  %v4921 = vunpack.c.l.b16 %v1645
  %v4922 = vunpack.c.h.b16 %v1645
  %v4923 = vunpack.c.l.b16 %v1646
  %v4924 = vunpack.c.h.b16 %v1646
  %v4925 = vunpack.c.l.b16 %v1647
  %v4926 = vunpack.c.h.b16 %v1647
  %v4927 = vunpack.c.l.b16 %v1648
  %v4928 = vunpack.c.h.b16 %v1648
  %v4929 = vunpack.c.l.b16 %v1649
  %v4930 = vunpack.c.h.b16 %v1649
  %v4931 = vunpack.c.l.b16 %v1650
  %v4932 = vunpack.c.h.b16 %v1650
  %v4933 = vunpack.c.l.b16 %v1651
  %v4934 = vunpack.c.h.b16 %v1651
  %v4935 = vunpack.c.l.b16 %v1652
  %v4936 = vunpack.c.h.b16 %v1652
  %v4937 = vunpack.c.l.b16 %v1653
  %v4938 = vunpack.c.h.b16 %v1653
  %v4939 = vunpack.c.l.b16 %v1654
  %v4940 = vunpack.c.h.b16 %v1654
  %v4941 = vunpack.c.l.b16 %v1655
  %v4942 = vunpack.c.h.b16 %v1655
  %v4943 = vunpack.c.l.b16 %v1656
  %v4944 = vunpack.c.h.b16 %v1656
  %v4945 = vunpack.c.l.b16 %v1657
  %v4946 = vunpack.c.h.b16 %v1657
  %v4947 = vunpack.c.l.b16 %v1658
  %v4948 = vunpack.c.h.b16 %v1658
  %v4949 = vunpack.c.l.b16 %v1659
  %v4950 = vunpack.c.h.b16 %v1659
  %v4951 = vunpack.c.l.b16 %v1660
  %v4952 = vunpack.c.h.b16 %v1660
  %v4953 = vunpack.c.l.b16 %v1661
  %v4954 = vunpack.c.h.b16 %v1661
  %v4955 = vunpack.c.l.b16 %v1662
  %v4956 = vunpack.c.h.b16 %v1662
  %v4957 = vunpack.c.l.b16 %v1663
  %v4958 = vunpack.c.h.b16 %v1663
  %v4959 = vunpack.c.l.b16 %v1664
  %v4960 = vunpack.c.h.b16 %v1664
  %v4961 = vunpack.c.l.b16 %v1665
  %v4962 = vunpack.c.h.b16 %v1665
  %v4963 = vunpack.c.l.b16 %v1666
  %v4964 = vunpack.c.h.b16 %v1666
  %v4965 = vunpack.c.l.b16 %v1667
  %v4966 = vunpack.c.h.b16 %v1667
  %v4967 = vunpack.c.l.b16 %v1668
  %v4968 = vunpack.c.h.b16 %v1668
  %v4969 = vunpack.c.l.b16 %v1669
  %v4970 = vunpack.c.h.b16 %v1669
  %v4971 = vunpack.c.l.b16 %v1670
  %v4972 = vunpack.c.h.b16 %v1670
  %v4973 = vunpack.c.l.b16 %v1671
  %v4974 = vunpack.c.h.b16 %v1671
  %v4975 = vunpack.c.l.b16 %v1672
  %v4976 = vunpack.c.h.b16 %v1672
  %v4977 = vunpack.c.l.b16 %v1673
  %v4978 = vunpack.c.h.b16 %v1673
  %v4979 = vunpack.c.l.b16 %v1674
  %v4980 = vunpack.c.h.b16 %v1674
  %v4981 = vunpack.c.l.b16 %v1675
  %v4982 = vunpack.c.h.b16 %v1675
  %v4983 = vunpack.c.l.b16 %v1676
  %v4984 = vunpack.c.h.b16 %v1676
  %v4985 = vunpack.c.l.b16 %v1677
  %v4986 = vunpack.c.h.b16 %v1677
  %v4987 = vunpack.c.l.b16 %v1678
  %v4988 = vunpack.c.h.b16 %v1678
  %v4989 = vunpack.c.l.b16 %v1679
  %v4990 = vunpack.c.h.b16 %v1679
  %v4991 = vunpack.c.l.b16 %v1680
  %v4992 = vunpack.c.h.b16 %v1680
  %v4993 = vunpack.c.l.b16 %v1681
  %v4994 = vunpack.c.h.b16 %v1681
  %v4995 = vunpack.c.l.b16 %v1682
  %v4996 = vunpack.c.h.b16 %v1682
  %v4997 = vunpack.c.l.b16 %v1683
  %v4998 = vunpack.c.h.b16 %v1683
  %v4999 = vunpack.c.l.b16 %v1684
  %v5000 = vunpack.c.h.b16 %v1684
  %v5001 = vunpack.c.l.b16 %v1685
  %v5002 = vunpack.c.h.b16 %v1685
  %v5003 = vunpack.c.l.b16 %v1686
  %v5004 = vunpack.c.h.b16 %v1686
  %v5005 = vunpack.c.l.b16 %v1687
  %v5006 = vunpack.c.h.b16 %v1687
  %v5007 = vunpack.c.l.b16 %v1688
  %v5008 = vunpack.c.h.b16 %v1688
  %v5009 = vunpack.c.l.b16 %v1689
  %v5010 = vunpack.c.h.b16 %v1689
  %v5011 = vunpack.c.l.b16 %v1690
  %v5012 = vunpack.c.h.b16 %v1690
  %v5013 = vunpack.c.l.b16 %v1691
  %v5014 = vunpack.c.h.b16 %v1691
  %v5015 = vunpack.c.l.b16 %v1692
  %v5016 = vunpack.c.h.b16 %v1692
  %v5017 = vunpack.c.l.b16 %v1693
  %v5018 = vunpack.c.h.b16 %v1693
  %v5019 = vunpack.c.l.b16 %v1694
  %v5020 = vunpack.c.h.b16 %v1694
  %v5021 = vunpack.c.l.b16 %v1695
  %v5022 = vunpack.c.h.b16 %v1695
  %v5023 = vunpack.c.l.b16 %v1696
  %v5024 = vunpack.c.h.b16 %v1696
  %v5025 = vunpack.c.l.b16 %v1697
  %v5026 = vunpack.c.h.b16 %v1697
  %v5027 = vunpack.c.l.b16 %v1698
  %v5028 = vunpack.c.h.b16 %v1698
  %v5029 = vunpack.c.l.b16 %v1699
  %v5030 = vunpack.c.h.b16 %v1699
  %v5031 = vunpack.c.l.b16 %v1700
  %v5032 = vunpack.c.h.b16 %v1700
  %v5033 = vunpack.c.l.b16 %v1701
  %v5034 = vunpack.c.h.b16 %v1701
  %v5035 = vunpack.c.l.b16 %v1702
  %v5036 = vunpack.c.h.b16 %v1702
  %v5037 = vunpack.c.l.b16 %v1703
  %v5038 = vunpack.c.h.b16 %v1703
  %v5039 = vunpack.c.l.b16 %v1704
  %v5040 = vunpack.c.h.b16 %v1704
  %v5041 = vunpack.c.l.b16 %v1705
  %v5042 = vunpack.c.h.b16 %v1705
  %v5043 = vunpack.c.l.b16 %v1706
  %v5044 = vunpack.c.h.b16 %v1706
  %v5045 = vunpack.c.l.b16 %v1707
  %v5046 = vunpack.c.h.b16 %v1707
  %v5047 = vunpack.c.l.b16 %v1708
  %v5048 = vunpack.c.h.b16 %v1708
  %v5049 = vunpack.c.l.b16 %v1709
  %v5050 = vunpack.c.h.b16 %v1709
  %v5051 = vunpack.c.l.b16 %v1710
  %v5052 = vunpack.c.h.b16 %v1710
  %v5053 = vunpack.c.l.b16 %v1711
  %v5054 = vunpack.c.h.b16 %v1711
  %v5055 = vunpack.c.l.b16 %v1712
  %v5056 = vunpack.c.h.b16 %v1712
  %v5057 = vunpack.c.l.b16 %v1713
  %v5058 = vunpack.c.h.b16 %v1713
  %v5059 = vunpack.c.l.b16 %v1714
  %v5060 = vunpack.c.h.b16 %v1714
  %v5061 = vunpack.c.l.b16 %v1715
  %v5062 = vunpack.c.h.b16 %v1715
  %v5063 = vunpack.c.l.b16 %v1716
  %v5064 = vunpack.c.h.b16 %v1716
  %v5065 = vunpack.c.l.b16 %v1717
  %v5066 = vunpack.c.h.b16 %v1717
  %v5067 = vunpack.c.l.b16 %v1718
  %v5068 = vunpack.c.h.b16 %v1718
  %v5069 = vunpack.c.l.b16 %v1719
  %v5070 = vunpack.c.h.b16 %v1719
  %v5071 = vunpack.c.l.b16 %v1720
  %v5072 = vunpack.c.h.b16 %v1720
  %v5073 = vunpack.c.l.b16 %v1721
  %v5074 = vunpack.c.h.b16 %v1721
  %v5075 = vunpack.c.l.b16 %v1722
  %v5076 = vunpack.c.h.b16 %v1722
  %v5077 = vunpack.c.l.b16 %v1723
  %v5078 = vunpack.c.h.b16 %v1723
  %v5079 = vunpack.c.l.b16 %v1724
  %v5080 = vunpack.c.h.b16 %v1724
  %v5081 = vunpack.c.l.b16 %v1725
  %v5082 = vunpack.c.h.b16 %v1725
  %v5083 = vunpack.c.l.b16 %v1726
  %v5084 = vunpack.c.h.b16 %v1726
  %v5085 = vunpack.c.l.b16 %v1727
  %v5086 = vunpack.c.h.b16 %v1727
  %v5087 = vunpack.c.l.b16 %v1728
  %v5088 = vunpack.c.h.b16 %v1728
  %v5089 = vunpack.c.l.b16 %v1729
  %v5090 = vunpack.c.h.b16 %v1729
  %v5091 = vunpack.c.l.b16 %v1730
  %v5092 = vunpack.c.h.b16 %v1730
  %v5093 = vunpack.c.l.b16 %v1731
  %v5094 = vunpack.c.h.b16 %v1731
  %v5095 = vunpack.c.l.b16 %v1732
  %v5096 = vunpack.c.h.b16 %v1732
  %v5097 = vunpack.c.l.b16 %v1733
  %v5098 = vunpack.c.h.b16 %v1733
  %v5099 = vunpack.c.l.b16 %v1734
  %v5100 = vunpack.c.h.b16 %v1734
  %v5101 = vunpack.c.l.b16 %v1735
  %v5102 = vunpack.c.h.b16 %v1735
  %v5103 = vunpack.c.l.b16 %v1736
  %v5104 = vunpack.c.h.b16 %v1736
  %v5105 = vunpack.c.l.b16 %v1737
  %v5106 = vunpack.c.h.b16 %v1737
  %v5107 = vunpack.c.l.b16 %v1738
  %v5108 = vunpack.c.h.b16 %v1738
  %v5109 = vunpack.c.l.b16 %v1739
  %v5110 = vunpack.c.h.b16 %v1739
  %v5111 = vunpack.c.l.b16 %v1740
  %v5112 = vunpack.c.h.b16 %v1740
  %v5113 = vunpack.c.l.b16 %v1741
  %v5114 = vunpack.c.h.b16 %v1741
  %v5115 = vunpack.c.l.b16 %v1742
  %v5116 = vunpack.c.h.b16 %v1742
  %v5117 = vunpack.c.l.b16 %v1743
  %v5118 = vunpack.c.h.b16 %v1743
  %v5119 = vunpack.c.l.b16 %v1744
  %v5120 = vunpack.c.h.b16 %v1744
  %v5121 = vunpack.c.l.b16 %v1745
  %v5122 = vunpack.c.h.b16 %v1745
  %v5123 = vunpack.c.l.b16 %v1746
  %v5124 = vunpack.c.h.b16 %v1746
  %v5125 = vunpack.c.l.b16 %v1747
  %v5126 = vunpack.c.h.b16 %v1747
  %v5127 = vunpack.c.l.b16 %v1748
  %v5128 = vunpack.c.h.b16 %v1748
  %v5129 = vunpack.c.l.b16 %v1749
  %v5130 = vunpack.c.h.b16 %v1749
  %v5131 = vunpack.c.l.b16 %v1750
  %v5132 = vunpack.c.h.b16 %v1750
  %v5133 = vunpack.c.l.b16 %v1751
  %v5134 = vunpack.c.h.b16 %v1751
  %v5135 = vunpack.c.l.b16 %v1752
  %v5136 = vunpack.c.h.b16 %v1752
  %v5137 = vunpack.c.l.b16 %v1753
  %v5138 = vunpack.c.h.b16 %v1753
  %v5139 = vunpack.c.l.b16 %v1754
  %v5140 = vunpack.c.h.b16 %v1754
  %v5141 = vunpack.c.l.b16 %v1755
  %v5142 = vunpack.c.h.b16 %v1755
  %v5143 = vunpack.c.l.b16 %v1756
  %v5144 = vunpack.c.h.b16 %v1756
  %v5145 = vunpack.c.l.b16 %v1757
  %v5146 = vunpack.c.h.b16 %v1757
  %v5147 = vunpack.c.l.b16 %v1758
  %v5148 = vunpack.c.h.b16 %v1758
  %v5149 = vunpack.c.l.b16 %v1759
  %v5150 = vunpack.c.h.b16 %v1759
  %v5151 = vunpack.c.l.b16 %v1760
  %v5152 = vunpack.c.h.b16 %v1760
  %v5153 = vunpack.c.l.b16 %v1761
  %v5154 = vunpack.c.h.b16 %v1761
  %v5155 = vunpack.c.l.b16 %v1762
  %v5156 = vunpack.c.h.b16 %v1762
  %v5157 = vunpack.c.l.b16 %v1763
  %v5158 = vunpack.c.h.b16 %v1763
  %v5159 = vunpack.c.l.b16 %v1764
  %v5160 = vunpack.c.h.b16 %v1764
  %v5161 = vunpack.c.l.b16 %v1765
  %v5162 = vunpack.c.h.b16 %v1765
  %v5163 = vunpack.c.l.b16 %v1766
  %v5164 = vunpack.c.h.b16 %v1766
  %v5165 = vunpack.c.l.b16 %v1767
  %v5166 = vunpack.c.h.b16 %v1767
  %v5167 = vunpack.c.l.b16 %v1768
  %v5168 = vunpack.c.h.b16 %v1768
  %v5169 = vunpack.c.l.b16 %v1769
  %v5170 = vunpack.c.h.b16 %v1769
  %v5171 = vunpack.c.l.b16 %v1770
  %v5172 = vunpack.c.h.b16 %v1770
  %v5173 = vunpack.c.l.b16 %v1771
  %v5174 = vunpack.c.h.b16 %v1771
  %v5175 = vunpack.c.l.b16 %v1772
  %v5176 = vunpack.c.h.b16 %v1772
  %v5177 = vunpack.c.l.b16 %v1773
  %v5178 = vunpack.c.h.b16 %v1773
  %v5179 = vunpack.c.l.b16 %v1774
  %v5180 = vunpack.c.h.b16 %v1774
  %v5181 = vunpack.c.l.b16 %v1775
  %v5182 = vunpack.c.h.b16 %v1775
  %v5183 = vunpack.c.l.b16 %v1776
  %v5184 = vunpack.c.h.b16 %v1776
  %v5185 = vunpack.c.l.b16 %v1777
  %v5186 = vunpack.c.h.b16 %v1777
  %v5187 = vunpack.c.l.b16 %v1778
  %v5188 = vunpack.c.h.b16 %v1778
  %v5189 = vunpack.c.l.b16 %v1779
  %v5190 = vunpack.c.h.b16 %v1779
  %v5191 = vunpack.c.l.b16 %v1780
  %v5192 = vunpack.c.h.b16 %v1780
  %v5193 = vunpack.c.l.b16 %v1781
  %v5194 = vunpack.c.h.b16 %v1781
  %v5195 = vunpack.c.l.b16 %v1782
  %v5196 = vunpack.c.h.b16 %v1782
  %v5197 = vunpack.c.l.b16 %v1783
  %v5198 = vunpack.c.h.b16 %v1783
  %v5199 = vunpack.c.l.b16 %v1784
  %v5200 = vunpack.c.h.b16 %v1784
  %v5201 = vunpack.c.l.b16 %v1785
  %v5202 = vunpack.c.h.b16 %v1785
  %v5203 = vunpack.c.l.b16 %v1786
  %v5204 = vunpack.c.h.b16 %v1786
  %v5205 = vunpack.c.l.b16 %v1787
  %v5206 = vunpack.c.h.b16 %v1787
  %v5207 = vunpack.c.l.b16 %v1788
  %v5208 = vunpack.c.h.b16 %v1788
  %v5209 = vunpack.c.l.b16 %v1789
  %v5210 = vunpack.c.h.b16 %v1789
  %v5211 = vunpack.c.l.b16 %v1790
  %v5212 = vunpack.c.h.b16 %v1790
  %v5213 = vunpack.c.l.b16 %v1791
  %v5214 = vunpack.c.h.b16 %v1791
  %v5215 = vunpack.c.l.b16 %v1792
  %v5216 = vunpack.c.h.b16 %v1792
  %v5217 = vunpack.c.l.b16 %v1793
  %v5218 = vunpack.c.h.b16 %v1793
  %v5219 = vunpack.c.l.b16 %v1794
  %v5220 = vunpack.c.h.b16 %v1794
  %v5221 = vunpack.c.l.b16 %v1795
  %v5222 = vunpack.c.h.b16 %v1795
  %v5223 = vunpack.c.l.b16 %v1796
  %v5224 = vunpack.c.h.b16 %v1796
  %v5225 = vunpack.c.l.b16 %v1797
  %v5226 = vunpack.c.h.b16 %v1797
  %v5227 = vunpack.c.l.b16 %v1798
  %v5228 = vunpack.c.h.b16 %v1798
  %v5229 = vunpack.c.l.b16 %v1799
  %v5230 = vunpack.c.h.b16 %v1799
  %v5231 = vunpack.c.l.b16 %v1800
  %v5232 = vunpack.c.h.b16 %v1800
  %v5233 = vunpack.c.l.b16 %v1801
  %v5234 = vunpack.c.h.b16 %v1801
  %v5235 = vunpack.c.l.b16 %v1802
  %v5236 = vunpack.c.h.b16 %v1802
  %v5237 = vunpack.c.l.b16 %v1803
  %v5238 = vunpack.c.h.b16 %v1803
  %v5239 = vunpack.c.l.b16 %v1804
  %v5240 = vunpack.c.h.b16 %v1804
  %v5241 = vunpack.c.l.b16 %v1805
  %v5242 = vunpack.c.h.b16 %v1805
  %v5243 = vunpack.c.l.b16 %v1806
  %v5244 = vunpack.c.h.b16 %v1806
  %v5245 = vunpack.c.l.b16 %v1807
  %v5246 = vunpack.c.h.b16 %v1807
  %v5247 = vunpack.c.l.b16 %v1808
  %v5248 = vunpack.c.h.b16 %v1808
  %v5249 = vunpack.c.l.b16 %v1809
  %v5250 = vunpack.c.h.b16 %v1809
  %v5251 = vunpack.c.l.b16 %v1810
  %v5252 = vunpack.c.h.b16 %v1810
  %v5253 = vunpack.c.l.b16 %v1811
  %v5254 = vunpack.c.h.b16 %v1811
  %v5255 = vunpack.c.l.b16 %v1812
  %v5256 = vunpack.c.h.b16 %v1812
  %v5257 = vunpack.c.l.b16 %v1813
  %v5258 = vunpack.c.h.b16 %v1813
  %v5259 = vunpack.c.l.b16 %v1814
  %v5260 = vunpack.c.h.b16 %v1814
  %v5261 = vunpack.c.l.b16 %v1815
  %v5262 = vunpack.c.h.b16 %v1815
  %v5263 = vunpack.c.l.b16 %v1816
  %v5264 = vunpack.c.h.b16 %v1816
  %v5265 = vunpack.c.l.b16 %v1817
  %v5266 = vunpack.c.h.b16 %v1817
  %v5267 = vunpack.c.l.b16 %v1818
  %v5268 = vunpack.c.h.b16 %v1818
  %v5269 = vunpack.c.l.b16 %v1819
  %v5270 = vunpack.c.h.b16 %v1819
  %v5271 = vunpack.c.l.b16 %v1820
  %v5272 = vunpack.c.h.b16 %v1820
  %v5273 = vunpack.c.l.b16 %v1821
  %v5274 = vunpack.c.h.b16 %v1821
  %v5275 = vunpack.c.l.b16 %v1822
  %v5276 = vunpack.c.h.b16 %v1822
  %v5277 = vunpack.c.l.b16 %v1823
  %v5278 = vunpack.c.h.b16 %v1823
  %v5279 = vunpack.c.l.b16 %v1824
  %v5280 = vunpack.c.h.b16 %v1824
  %v5281 = vunpack.c.l.b16 %v1825
  %v5282 = vunpack.c.h.b16 %v1825
  %v5283 = vunpack.c.l.b16 %v1826
  %v5284 = vunpack.c.h.b16 %v1826
  %v5285 = vunpack.c.l.b16 %v1827
  %v5286 = vunpack.c.h.b16 %v1827
  %v5287 = vunpack.c.l.b16 %v1828
  %v5288 = vunpack.c.h.b16 %v1828
  %v5289 = vunpack.c.l.b16 %v1829
  %v5290 = vunpack.c.h.b16 %v1829
  %v5291 = vunpack.c.l.b16 %v1830
  %v5292 = vunpack.c.h.b16 %v1830
  %v5293 = vunpack.c.l.b16 %v1831
  %v5294 = vunpack.c.h.b16 %v1831
  %v5295 = vunpack.c.l.b16 %v1832
  %v5296 = vunpack.c.h.b16 %v1832
  %v5297 = vunpack.c.l.b16 %v1833
  %v5298 = vunpack.c.h.b16 %v1833
  %v5299 = vunpack.c.l.b16 %v1834
  %v5300 = vunpack.c.h.b16 %v1834
  %v5301 = vunpack.c.l.b16 %v1835
  %v5302 = vunpack.c.h.b16 %v1835
  %v5303 = vunpack.c.l.b16 %v1836
  %v5304 = vunpack.c.h.b16 %v1836
  %v5305 = vunpack.c.l.b16 %v1837
  %v5306 = vunpack.c.h.b16 %v1837
  %v5307 = vunpack.c.l.b16 %v1838
  %v5308 = vunpack.c.h.b16 %v1838
  %v5309 = vunpack.c.l.b16 %v1839
  %v5310 = vunpack.c.h.b16 %v1839
  %v5311 = vunpack.c.l.b16 %v1840
  %v5312 = vunpack.c.h.b16 %v1840
  %v5313 = vunpack.c.l.b16 %v1841
  %v5314 = vunpack.c.h.b16 %v1841
  %v5315 = vunpack.c.l.b16 %v1842
  %v5316 = vunpack.c.h.b16 %v1842
  %v5317 = vunpack.c.l.b16 %v1843
  %v5318 = vunpack.c.h.b16 %v1843
  %v5319 = vunpack.c.l.b16 %v1844
  %v5320 = vunpack.c.h.b16 %v1844
  %v5321 = vunpack.c.l.b16 %v1845
  %v5322 = vunpack.c.h.b16 %v1845
  %v5323 = vunpack.c.l.b16 %v1846
  %v5324 = vunpack.c.h.b16 %v1846
  %v5325 = vunpack.c.l.b16 %v1847
  %v5326 = vunpack.c.h.b16 %v1847
  %v5327 = vunpack.c.l.b16 %v1848
  %v5328 = vunpack.c.h.b16 %v1848
  %v5329 = vunpack.c.l.b16 %v1849
  %v5330 = vunpack.c.h.b16 %v1849
  %v5331 = vunpack.c.l.b16 %v1850
  %v5332 = vunpack.c.h.b16 %v1850
  %v5333 = vunpack.c.l.b16 %v1851
  %v5334 = vunpack.c.h.b16 %v1851
  %v5335 = vunpack.c.l.b16 %v1852
  %v5336 = vunpack.c.h.b16 %v1852
  %v5337 = vunpack.c.l.b16 %v1853
  %v5338 = vunpack.c.h.b16 %v1853
  %v5339 = vunpack.c.l.b16 %v1854
  %v5340 = vunpack.c.h.b16 %v1854
  %v5341 = vunpack.c.l.b16 %v1855
  %v5342 = vunpack.c.h.b16 %v1855
  %v5343 = vunpack.c.l.b16 %v1856
  %v5344 = vunpack.c.h.b16 %v1856
  %v5345 = vunpack.c.l.b16 %v1857
  %v5346 = vunpack.c.h.b16 %v1857
  %v5347 = vunpack.c.l.b16 %v1858
  %v5348 = vunpack.c.h.b16 %v1858
  %v5349 = vunpack.c.l.b16 %v1859
  %v5350 = vunpack.c.h.b16 %v1859
  %v5351 = vunpack.c.l.b16 %v1860
  %v5352 = vunpack.c.h.b16 %v1860
  %v5353 = vunpack.c.l.b16 %v1861
  %v5354 = vunpack.c.h.b16 %v1861
  %v5355 = vunpack.c.l.b16 %v1862
  %v5356 = vunpack.c.h.b16 %v1862
  %v5357 = vunpack.c.l.b16 %v1863
  %v5358 = vunpack.c.h.b16 %v1863
  %v5359 = vunpack.c.l.b16 %v1864
  %v5360 = vunpack.c.h.b16 %v1864
  %v5361 = vunpack.c.l.b16 %v1865
  %v5362 = vunpack.c.h.b16 %v1865
  %v5363 = vunpack.c.l.b16 %v1866
  %v5364 = vunpack.c.h.b16 %v1866
  %v5365 = vunpack.c.l.b16 %v1867
  %v5366 = vunpack.c.h.b16 %v1867
  %v5367 = vunpack.c.l.b16 %v1868
  %v5368 = vunpack.c.h.b16 %v1868
  %v5369 = vunpack.c.l.b16 %v1869
  %v5370 = vunpack.c.h.b16 %v1869
  %v5371 = vunpack.c.l.b16 %v1870
  %v5372 = vunpack.c.h.b16 %v1870
  %v5373 = vunpack.c.l.b16 %v1871
  %v5374 = vunpack.c.h.b16 %v1871
  %v5375 = vunpack.c.l.b16 %v1872
  %v5376 = vunpack.c.h.b16 %v1872
  %v5377 = vunpack.c.l.b16 %v1873
  %v5378 = vunpack.c.h.b16 %v1873
  %v5379 = vunpack.c.l.b16 %v1874
  %v5380 = vunpack.c.h.b16 %v1874
  %v5381 = vunpack.c.l.b16 %v1875
  %v5382 = vunpack.c.h.b16 %v1875
  %v5383 = vunpack.c.l.b16 %v1876
  %v5384 = vunpack.c.h.b16 %v1876
  %v5385 = vunpack.c.l.b16 %v1877
  %v5386 = vunpack.c.h.b16 %v1877
  %v5387 = vunpack.c.l.b16 %v1878
  %v5388 = vunpack.c.h.b16 %v1878
  %v5389 = vunpack.c.l.b16 %v1879
  %v5390 = vunpack.c.h.b16 %v1879
  %v5391 = vunpack.c.l.b16 %v1880
  %v5392 = vunpack.c.h.b16 %v1880
  %v5393 = vunpack.c.l.b16 %v1881
  %v5394 = vunpack.c.h.b16 %v1881
  %v5395 = vunpack.c.l.b16 %v1882
  %v5396 = vunpack.c.h.b16 %v1882
  %v5397 = vunpack.c.l.b16 %v1883
  %v5398 = vunpack.c.h.b16 %v1883
  %v5399 = vunpack.c.l.b16 %v1884
  %v5400 = vunpack.c.h.b16 %v1884
  %v5401 = vunpack.c.l.b16 %v1885
  %v5402 = vunpack.c.h.b16 %v1885
  %v5403 = vunpack.c.l.b16 %v1886
  %v5404 = vunpack.c.h.b16 %v1886
  %v5405 = vunpack.c.l.b16 %v1887
  %v5406 = vunpack.c.h.b16 %v1887
  %v5407 = vunpack.c.l.b16 %v1888
  %v5408 = vunpack.c.h.b16 %v1888
  %v5409 = vunpack.c.l.b16 %v1889
  %v5410 = vunpack.c.h.b16 %v1889
  %v5411 = vunpack.c.l.b16 %v1890
  %v5412 = vunpack.c.h.b16 %v1890
  %v5413 = vunpack.c.l.b16 %v1891
  %v5414 = vunpack.c.h.b16 %v1891
  %v5415 = vunpack.c.l.b16 %v1892
  %v5416 = vunpack.c.h.b16 %v1892
  %v5417 = vunpack.c.l.b16 %v1893
  %v5418 = vunpack.c.h.b16 %v1893
  %v5419 = vunpack.c.l.b16 %v1894
  %v5420 = vunpack.c.h.b16 %v1894
  %v5421 = vunpack.c.l.b16 %v1895
  %v5422 = vunpack.c.h.b16 %v1895
  %v5423 = vunpack.c.l.b16 %v1896
  %v5424 = vunpack.c.h.b16 %v1896
  %v5425 = vunpack.c.l.b16 %v1897
  %v5426 = vunpack.c.h.b16 %v1897
  %v5427 = vunpack.c.l.b16 %v1898
  %v5428 = vunpack.c.h.b16 %v1898
  %v5429 = vunpack.c.l.b16 %v1899
  %v5430 = vunpack.c.h.b16 %v1899
  %v5431 = vunpack.c.l.b16 %v1900
  %v5432 = vunpack.c.h.b16 %v1900
  %v5433 = vunpack.c.l.b16 %v1901
  %v5434 = vunpack.c.h.b16 %v1901
  %v5435 = vunpack.c.l.b16 %v1902
  %v5436 = vunpack.c.h.b16 %v1902
  %v5437 = vunpack.c.l.b16 %v1903
  %v5438 = vunpack.c.h.b16 %v1903
  %v5439 = vunpack.c.l.b16 %v1904
  %v5440 = vunpack.c.h.b16 %v1904
  %v5441 = vunpack.c.l.b16 %v1905
  %v5442 = vunpack.c.h.b16 %v1905
  %v5443 = vunpack.c.l.b16 %v1906
  %v5444 = vunpack.c.h.b16 %v1906
  %v5445 = vunpack.c.l.b16 %v1907
  %v5446 = vunpack.c.h.b16 %v1907
  %v5447 = vunpack.c.l.b16 %v1908
  %v5448 = vunpack.c.h.b16 %v1908
  %v5449 = vunpack.c.l.b16 %v1909
  %v5450 = vunpack.c.h.b16 %v1909
  %v5451 = vunpack.c.l.b16 %v1910
  %v5452 = vunpack.c.h.b16 %v1910
  %v5453 = vunpack.c.l.b16 %v1911
  %v5454 = vunpack.c.h.b16 %v1911
  %v5455 = vunpack.c.l.b16 %v1912
  %v5456 = vunpack.c.h.b16 %v1912
  %v5457 = vunpack.c.l.b16 %v1913
  %v5458 = vunpack.c.h.b16 %v1913
  %v5459 = vunpack.c.l.b16 %v1914
  %v5460 = vunpack.c.h.b16 %v1914
  %v5461 = vunpack.c.l.b16 %v1915
  %v5462 = vunpack.c.h.b16 %v1915
  %v5463 = vunpack.c.l.b16 %v1916
  %v5464 = vunpack.c.h.b16 %v1916
  %v5465 = vunpack.c.l.b16 %v1917
  %v5466 = vunpack.c.h.b16 %v1917
  %v5467 = vunpack.c.l.b16 %v1918
  %v5468 = vunpack.c.h.b16 %v1918
  %v5469 = vunpack.c.l.b16 %v1919
  %v5470 = vunpack.c.h.b16 %v1919
  %v5471 = vunpack.c.l.b16 %v1920
  %v5472 = vunpack.c.h.b16 %v1920
  %v5473 = vunpack.c.l.b16 %v1921
  %v5474 = vunpack.c.h.b16 %v1921
  %v5475 = vunpack.c.l.b16 %v1922
  %v5476 = vunpack.c.h.b16 %v1922
  %v5477 = vunpack.c.l.b16 %v1923
  %v5478 = vunpack.c.h.b16 %v1923
  %v5479 = vunpack.c.l.b16 %v1924
  %v5480 = vunpack.c.h.b16 %v1924
  %v5481 = vunpack.c.l.b16 %v1925
  %v5482 = vunpack.c.h.b16 %v1925
  %v5483 = vunpack.c.l.b16 %v1926
  %v5484 = vunpack.c.h.b16 %v1926
  %v5485 = vunpack.c.l.b16 %v1927
  %v5486 = vunpack.c.h.b16 %v1927
  %v5487 = vunpack.c.l.b16 %v1928
  %v5488 = vunpack.c.h.b16 %v1928
  %v5489 = vunpack.c.l.b16 %v1929
  %v5490 = vunpack.c.h.b16 %v1929
  %v5491 = vunpack.c.l.b16 %v1930
  %v5492 = vunpack.c.h.b16 %v1930
  %v5493 = vunpack.c.l.b16 %v1931
  %v5494 = vunpack.c.h.b16 %v1931
  %v5495 = vunpack.c.l.b16 %v1932
  %v5496 = vunpack.c.h.b16 %v1932
  %v5497 = vunpack.c.l.b16 %v1933
  %v5498 = vunpack.c.h.b16 %v1933
  %v5499 = vunpack.c.l.b16 %v1934
  %v5500 = vunpack.c.h.b16 %v1934
  %v5501 = vunpack.c.l.b16 %v1935
  %v5502 = vunpack.c.h.b16 %v1935
  %v5503 = vunpack.c.l.b16 %v1936
  %v5504 = vunpack.c.h.b16 %v1936
  %v5505 = vunpack.c.l.b16 %v1937
  %v5506 = vunpack.c.h.b16 %v1937
  %v5507 = vunpack.c.l.b16 %v1938
  %v5508 = vunpack.c.h.b16 %v1938
  %v5509 = vunpack.c.l.b16 %v1939
  %v5510 = vunpack.c.h.b16 %v1939
  %v5511 = vunpack.c.l.b16 %v1940
  %v5512 = vunpack.c.h.b16 %v1940
  %v5513 = vunpack.c.l.b16 %v1941
  %v5514 = vunpack.c.h.b16 %v1941
  %v5515 = vunpack.c.l.b16 %v1942
  %v5516 = vunpack.c.h.b16 %v1942
  %v5517 = vunpack.c.l.b16 %v1943
  %v5518 = vunpack.c.h.b16 %v1943
  %v5519 = vunpack.c.l.b16 %v1944
  %v5520 = vunpack.c.h.b16 %v1944
  %v5521 = vunpack.c.l.b16 %v1945
  %v5522 = vunpack.c.h.b16 %v1945
  %v5523 = vunpack.c.l.b16 %v1946
  %v5524 = vunpack.c.h.b16 %v1946
  %v5525 = vunpack.c.l.b16 %v1947
  %v5526 = vunpack.c.h.b16 %v1947
  %v5527 = vunpack.c.l.b16 %v1948
  %v5528 = vunpack.c.h.b16 %v1948
  %v5529 = vunpack.c.l.b16 %v1949
  %v5530 = vunpack.c.h.b16 %v1949
  %v5531 = vunpack.c.l.b16 %v1950
  %v5532 = vunpack.c.h.b16 %v1950
  %v5533 = vunpack.c.l.b16 %v1951
  %v5534 = vunpack.c.h.b16 %v1951
  %v5535 = vunpack.c.l.b16 %v1952
  %v5536 = vunpack.c.h.b16 %v1952
  %v5537 = vunpack.c.l.b16 %v1953
  %v5538 = vunpack.c.h.b16 %v1953
  %v5539 = vunpack.c.l.b16 %v1954
  %v5540 = vunpack.c.h.b16 %v1954
  %v5541 = vunpack.c.l.b16 %v1955
  %v5542 = vunpack.c.h.b16 %v1955
  %v5543 = vunpack.c.l.b16 %v1956
  %v5544 = vunpack.c.h.b16 %v1956
  %v5545 = vunpack.c.l.b16 %v1957
  %v5546 = vunpack.c.h.b16 %v1957
  %v5547 = vunpack.c.l.b16 %v1958
  %v5548 = vunpack.c.h.b16 %v1958
  %v5549 = vunpack.c.l.b16 %v1959
  %v5550 = vunpack.c.h.b16 %v1959
  %v5551 = vunpack.c.l.b16 %v1960
  %v5552 = vunpack.c.h.b16 %v1960
  %v5553 = vunpack.c.l.b16 %v1961
  %v5554 = vunpack.c.h.b16 %v1961
  %v5555 = vunpack.c.l.b16 %v1962
  %v5556 = vunpack.c.h.b16 %v1962
  %v5557 = vunpack.c.l.b16 %v1963
  %v5558 = vunpack.c.h.b16 %v1963
  %v5559 = vunpack.c.l.b16 %v1964
  %v5560 = vunpack.c.h.b16 %v1964
  %v5561 = vunpack.c.l.b16 %v1965
  %v5562 = vunpack.c.h.b16 %v1965
  %v5563 = vunpack.c.l.b16 %v1966
  %v5564 = vunpack.c.h.b16 %v1966
  %v5565 = vunpack.c.l.b16 %v1967
  %v5566 = vunpack.c.h.b16 %v1967
  %v5567 = vunpack.c.l.b16 %v1968
  %v5568 = vunpack.c.h.b16 %v1968
  %v5569 = vunpack.c.l.b16 %v1969
  %v5570 = vunpack.c.h.b16 %v1969
  %v5571 = vunpack.c.l.b16 %v1970
  %v5572 = vunpack.c.h.b16 %v1970
  %v5573 = vunpack.c.l.b16 %v1971
  %v5574 = vunpack.c.h.b16 %v1971
  %v5575 = vunpack.c.l.b16 %v1972
  %v5576 = vunpack.c.h.b16 %v1972
  %v5577 = vunpack.c.l.b16 %v1973
  %v5578 = vunpack.c.h.b16 %v1973
  %v5579 = vunpack.c.l.b16 %v1974
  %v5580 = vunpack.c.h.b16 %v1974
  %v5581 = vunpack.c.l.b16 %v1975
  %v5582 = vunpack.c.h.b16 %v1975
  %v5583 = vunpack.c.l.b16 %v1976
  %v5584 = vunpack.c.h.b16 %v1976
  %v5585 = vunpack.c.l.b16 %v1977
  %v5586 = vunpack.c.h.b16 %v1977
  %v5587 = vunpack.c.l.b16 %v1978
  %v5588 = vunpack.c.h.b16 %v1978
  %v5589 = vunpack.c.l.b16 %v1979
  %v5590 = vunpack.c.h.b16 %v1979
  %v5591 = vunpack.c.l.b16 %v1980
  %v5592 = vunpack.c.h.b16 %v1980
  %v5593 = vunpack.c.l.b16 %v1981
  %v5594 = vunpack.c.h.b16 %v1981
  %v5595 = vunpack.c.l.b16 %v1982
  %v5596 = vunpack.c.h.b16 %v1982
  %v5597 = vunpack.c.l.b16 %v1983
  %v5598 = vunpack.c.h.b16 %v1983
  %v5599 = vunpack.c.l.b16 %v1984
  %v5600 = vunpack.c.h.b16 %v1984
  %v5601 = vunpack.c.l.b16 %v1985
  %v5602 = vunpack.c.h.b16 %v1985
  %v5603 = vunpack.c.l.b16 %v1986
  %v5604 = vunpack.c.h.b16 %v1986
  %v5605 = vunpack.c.l.b16 %v1987
  %v5606 = vunpack.c.h.b16 %v1987
  %v5607 = vunpack.c.l.b16 %v1988
  %v5608 = vunpack.c.h.b16 %v1988
  %v5609 = vunpack.c.l.b16 %v1989
  %v5610 = vunpack.c.h.b16 %v1989
  %v5611 = vunpack.c.l.b16 %v1990
  %v5612 = vunpack.c.h.b16 %v1990
  %v5613 = vunpack.c.l.b16 %v1991
  %v5614 = vunpack.c.h.b16 %v1991
  %v5615 = vunpack.c.l.b16 %v1992
  %v5616 = vunpack.c.h.b16 %v1992
  %v5617 = vunpack.c.l.b16 %v1993
  %v5618 = vunpack.c.h.b16 %v1993
  %v5619 = vunpack.c.l.b16 %v1994
  %v5620 = vunpack.c.h.b16 %v1994
  %v5621 = vunpack.c.l.b16 %v1995
  %v5622 = vunpack.c.h.b16 %v1995
  %v5623 = vunpack.c.l.b16 %v1996
  %v5624 = vunpack.c.h.b16 %v1996
  %v5625 = vunpack.c.l.b16 %v1997
  %v5626 = vunpack.c.h.b16 %v1997
  %v5627 = vunpack.c.l.b16 %v1998
  %v5628 = vunpack.c.h.b16 %v1998
  %v5629 = vunpack.c.l.b16 %v1999
  %v5630 = vunpack.c.h.b16 %v1999
  %v5631 = vunpack.c.l.b16 %v2000
  %v5632 = vunpack.c.h.b16 %v2000
  %v5633 = vunpack.c.l.b16 %v2001
  %v5634 = vunpack.c.h.b16 %v2001
  %v5635 = vunpack.c.l.b16 %v2002
  %v5636 = vunpack.c.h.b16 %v2002
  %v5637 = vunpack.c.l.b16 %v2003
  %v5638 = vunpack.c.h.b16 %v2003
  %v5639 = vunpack.c.l.b16 %v2004
  %v5640 = vunpack.c.h.b16 %v2004
  %v5641 = vunpack.c.l.b16 %v2005
  %v5642 = vunpack.c.h.b16 %v2005
  %v5643 = vunpack.c.l.b16 %v2006
  %v5644 = vunpack.c.h.b16 %v2006
  %v5645 = vunpack.c.l.b16 %v2007
  %v5646 = vunpack.c.h.b16 %v2007
  %v5647 = vunpack.c.l.b16 %v2008
  %v5648 = vunpack.c.h.b16 %v2008
  %v5649 = vunpack.c.l.b16 %v2009
  %v5650 = vunpack.c.h.b16 %v2009
  %v5651 = vunpack.c.l.b16 %v2010
  %v5652 = vunpack.c.h.b16 %v2010
  %v5653 = vunpack.c.l.b16 %v2011
  %v5654 = vunpack.c.h.b16 %v2011
  %v5655 = vunpack.c.l.b16 %v2012
  %v5656 = vunpack.c.h.b16 %v2012
  %v5657 = vunpack.c.l.b16 %v2013
  %v5658 = vunpack.c.h.b16 %v2013
  %v5659 = vunpack.c.l.b16 %v2014
  %v5660 = vunpack.c.h.b16 %v2014
  %v5661 = vunpack.c.l.b16 %v2015
  %v5662 = vunpack.c.h.b16 %v2015
  %v5663 = vunpack.c.l.b16 %v2016
  %v5664 = vunpack.c.h.b16 %v2016
  %v5665 = vunpack.c.l.b16 %v2017
  %v5666 = vunpack.c.h.b16 %v2017
  %v5667 = vunpack.c.l.b16 %v2018
  %v5668 = vunpack.c.h.b16 %v2018
  %v5669 = vunpack.c.l.b16 %v2019
  %v5670 = vunpack.c.h.b16 %v2019
  %v5671 = vunpack.c.l.b16 %v2020
  %v5672 = vunpack.c.h.b16 %v2020
  %v5673 = vunpack.c.l.b16 %v2021
  %v5674 = vunpack.c.h.b16 %v2021
  %v5675 = vunpack.c.l.b16 %v2022
  %v5676 = vunpack.c.h.b16 %v2022
  %v5677 = vunpack.c.l.b16 %v2023
  %v5678 = vunpack.c.h.b16 %v2023
  %v5679 = vunpack.c.l.b16 %v2024
  %v5680 = vunpack.c.h.b16 %v2024
  %v5681 = vunpack.c.l.b16 %v2025
  %v5682 = vunpack.c.h.b16 %v2025
  %v5683 = vunpack.c.l.b16 %v2026
  %v5684 = vunpack.c.h.b16 %v2026
  %v5685 = vunpack.c.l.b16 %v2027
  %v5686 = vunpack.c.h.b16 %v2027
  %v5687 = vunpack.c.l.b16 %v2028
  %v5688 = vunpack.c.h.b16 %v2028
  %v5689 = vunpack.c.l.b16 %v2029
  %v5690 = vunpack.c.h.b16 %v2029
  %v5691 = vunpack.c.l.b16 %v2030
  %v5692 = vunpack.c.h.b16 %v2030
  %v5693 = vunpack.c.l.b16 %v2031
  %v5694 = vunpack.c.h.b16 %v2031
  %v5695 = vunpack.c.l.b16 %v2032
  %v5696 = vunpack.c.h.b16 %v2032
  %v5697 = vunpack.c.l.b16 %v2033
  %v5698 = vunpack.c.h.b16 %v2033
  %v5699 = vunpack.c.l.b16 %v2034
  %v5700 = vunpack.c.h.b16 %v2034
  %v5701 = vunpack.c.l.b16 %v2035
  %v5702 = vunpack.c.h.b16 %v2035
  %v5703 = vunpack.c.l.b16 %v2036
  %v5704 = vunpack.c.h.b16 %v2036
  %v5705 = vunpack.c.l.b16 %v2037
  %v5706 = vunpack.c.h.b16 %v2037
  %v5707 = vunpack.c.l.b16 %v2038
  %v5708 = vunpack.c.h.b16 %v2038
  %v5709 = vunpack.c.l.b16 %v2039
  %v5710 = vunpack.c.h.b16 %v2039
  %v5711 = vunpack.c.l.b16 %v2040
  %v5712 = vunpack.c.h.b16 %v2040
  %v5713 = vunpack.c.l.b16 %v2041
  %v5714 = vunpack.c.h.b16 %v2041
  %v5715 = vunpack.c.l.b16 %v2042
  %v5716 = vunpack.c.h.b16 %v2042
  %v5717 = vunpack.c.l.b16 %v2043
  %v5718 = vunpack.c.h.b16 %v2043
  %v5719 = vunpack.c.l.b16 %v2044
  %v5720 = vunpack.c.h.b16 %v2044
  %v5721 = vunpack.c.l.b16 %v2045
  %v5722 = vunpack.c.h.b16 %v2045
  %v5723 = vunpack.c.l.b16 %v2046
  %v5724 = vunpack.c.h.b16 %v2046
  %v5725 = vunpack.c.l.b16 %v2047
  %v5726 = vunpack.c.h.b16 %v2047
  %v5727 = vunpack.c.l.b16 %v2048
  %v5728 = vunpack.c.h.b16 %v2048
  %v5729 = vunpack.c.l.b16 %v2049
  %v5730 = vunpack.c.h.b16 %v2049
  %v5731 = vunpack.c.l.b16 %v2050
  %v5732 = vunpack.c.h.b16 %v2050
  %v5733 = vunpack.c.l.b16 %v2051
  %v5734 = vunpack.c.h.b16 %v2051
  %v5735 = vunpack.c.l.b16 %v2052
  %v5736 = vunpack.c.h.b16 %v2052
  %v5737 = vunpack.c.l.b16 %v2053
  %v5738 = vunpack.c.h.b16 %v2053
  %v5739 = vunpack.c.l.b16 %v2054
  %v5740 = vunpack.c.h.b16 %v2054
  %v5741 = vunpack.c.l.b16 %v2055
  %v5742 = vunpack.c.h.b16 %v2055
  %v5743 = vunpack.c.l.b16 %v2056
  %v5744 = vunpack.c.h.b16 %v2056
  %v5745 = vunpack.c.l.b16 %v2057
  %v5746 = vunpack.c.h.b16 %v2057
  %v5747 = vunpack.c.l.b16 %v2058
  %v5748 = vunpack.c.h.b16 %v2058
  %v5749 = vunpack.c.l.b16 %v2059
  %v5750 = vunpack.c.h.b16 %v2059
  %v5751 = vunpack.c.l.b16 %v2060
  %v5752 = vunpack.c.h.b16 %v2060
  %v5753 = vunpack.c.l.b16 %v2061
  %v5754 = vunpack.c.h.b16 %v2061
  %v5755 = vunpack.c.l.b16 %v2062
  %v5756 = vunpack.c.h.b16 %v2062
  %v5757 = vunpack.c.l.b16 %v2063
  %v5758 = vunpack.c.h.b16 %v2063
  %v5759 = vunpack.c.l.b16 %v2064
  %v5760 = vunpack.c.h.b16 %v2064
  %v5761 = vunpack.c.l.b16 %v2065
  %v5762 = vunpack.c.h.b16 %v2065
  %v5763 = vunpack.c.l.b16 %v2066
  %v5764 = vunpack.c.h.b16 %v2066
  %v5765 = vunpack.c.l.b16 %v2067
  %v5766 = vunpack.c.h.b16 %v2067
  %v5767 = vunpack.c.l.b16 %v2068
  %v5768 = vunpack.c.h.b16 %v2068
  %v5769 = vunpack.c.l.b16 %v2069
  %v5770 = vunpack.c.h.b16 %v2069
  %v5771 = vunpack.c.l.b16 %v2070
  %v5772 = vunpack.c.h.b16 %v2070
  %v5773 = vunpack.c.l.b16 %v2071
  %v5774 = vunpack.c.h.b16 %v2071
  %v5775 = vunpack.c.l.b16 %v2072
  %v5776 = vunpack.c.h.b16 %v2072
  %v5777 = vunpack.c.l.b16 %v2073
  %v5778 = vunpack.c.h.b16 %v2073
  %v5779 = vunpack.c.l.b16 %v2074
  %v5780 = vunpack.c.h.b16 %v2074
  %v5781 = vunpack.c.l.b16 %v2075
  %v5782 = vunpack.c.h.b16 %v2075
  %v5783 = vunpack.c.l.b16 %v2076
  %v5784 = vunpack.c.h.b16 %v2076
  %v5785 = vunpack.c.l.b16 %v2077
  %v5786 = vunpack.c.h.b16 %v2077
  %v5787 = vunpack.c.l.b16 %v2078
  %v5788 = vunpack.c.h.b16 %v2078
  %v5789 = vunpack.c.l.b16 %v2079
  %v5790 = vunpack.c.h.b16 %v2079
  %v5791 = vunpack.c.l.b16 %v2080
  %v5792 = vunpack.c.h.b16 %v2080
  %v5793 = vunpack.c.l.b16 %v2081
  %v5794 = vunpack.c.h.b16 %v2081
  %v5795 = vunpack.c.l.b16 %v2082
  %v5796 = vunpack.c.h.b16 %v2082
  %v5797 = vunpack.c.l.b16 %v2083
  %v5798 = vunpack.c.h.b16 %v2083
  %v5799 = vunpack.c.l.b16 %v2084
  %v5800 = vunpack.c.h.b16 %v2084
  %v5801 = vunpack.c.l.b16 %v2085
  %v5802 = vunpack.c.h.b16 %v2085
  %v5803 = vunpack.c.l.b16 %v2086
  %v5804 = vunpack.c.h.b16 %v2086
  %v5805 = vunpack.c.l.b16 %v2087
  %v5806 = vunpack.c.h.b16 %v2087
  %v5807 = vunpack.c.l.b16 %v2088
  %v5808 = vunpack.c.h.b16 %v2088
  %v5809 = vunpack.c.l.b16 %v2089
  %v5810 = vunpack.c.h.b16 %v2089
  %v5811 = vunpack.c.l.b16 %v2090
  %v5812 = vunpack.c.h.b16 %v2090
  %v5813 = vunpack.c.l.b16 %v2091
  %v5814 = vunpack.c.h.b16 %v2091
  %v5815 = vunpack.c.l.b16 %v2092
  %v5816 = vunpack.c.h.b16 %v2092
  %v5817 = vunpack.c.l.b16 %v2093
  %v5818 = vunpack.c.h.b16 %v2093
  %v5819 = vunpack.c.l.b16 %v2094
  %v5820 = vunpack.c.h.b16 %v2094
  %v5821 = vunpack.c.l.b16 %v2095
  %v5822 = vunpack.c.h.b16 %v2095
  %v5823 = vunpack.c.l.b16 %v2096
  %v5824 = vunpack.c.h.b16 %v2096
  %v5825 = vunpack.c.l.b16 %v2097
  %v5826 = vunpack.c.h.b16 %v2097
  %v5827 = vunpack.c.l.b16 %v2098
  %v5828 = vunpack.c.h.b16 %v2098
  %v5829 = vunpack.c.l.b16 %v2099
  %v5830 = vunpack.c.h.b16 %v2099
  %v5831 = vunpack.c.l.b16 %v2100
  %v5832 = vunpack.c.h.b16 %v2100
  %v5833 = vunpack.c.l.b16 %v2101
  %v5834 = vunpack.c.h.b16 %v2101
  %v5835 = vunpack.c.l.b16 %v2102
  %v5836 = vunpack.c.h.b16 %v2102
  %v5837 = vunpack.c.l.b16 %v2103
  %v5838 = vunpack.c.h.b16 %v2103
  %v5839 = vunpack.c.l.b16 %v2104
  %v5840 = vunpack.c.h.b16 %v2104
  %v5841 = vunpack.c.l.b16 %v2105
  %v5842 = vunpack.c.h.b16 %v2105
  %v5843 = vunpack.c.l.b16 %v2106
  %v5844 = vunpack.c.h.b16 %v2106
  %v5845 = vunpack.c.l.b16 %v2107
  %v5846 = vunpack.c.h.b16 %v2107
  %v5847 = vunpack.c.l.b16 %v2108
  %v5848 = vunpack.c.h.b16 %v2108
  %v5849 = vpack.c.b16 %v3455, %v3449
  %v5850 = vpack.c.b16 %v3456, %v3450
  %v5851 = vpack.c.b16 %v3457, %v3451
  %v5852 = vpack.c.b16 %v3458, %v3452
  %v5853 = vpack.c.b16 %v3459, %v3453
  %v5854 = vpack.c.b16 %v3460, %v3454
  %v5855 = vpack.c.b16 %v3467, %v3461
  %v5856 = vpack.c.b16 %v3468, %v3462
  %v5857 = vpack.c.b16 %v3469, %v3463
  %v5858 = vpack.c.b16 %v3470, %v3464
  %v5859 = vpack.c.b16 %v3471, %v3465
  %v5860 = vpack.c.b16 %v3472, %v3466
  %v5861 = vpack.c.b16 %v3479, %v3473
  %v5862 = vpack.c.b16 %v3480, %v3474
  %v5863 = vpack.c.b16 %v3481, %v3475
  %v5864 = vpack.c.b16 %v3482, %v3476
  %v5865 = vpack.c.b16 %v3483, %v3477
  %v5866 = vpack.c.b16 %v3484, %v3478
  %v5867 = vpack.c.b16 %v3491, %v3485
  %v5868 = vpack.c.b16 %v3492, %v3486
  %v5869 = vpack.c.b16 %v3493, %v3487
  %v5870 = vpack.c.b16 %v3494, %v3488
  %v5871 = vpack.c.b16 %v3495, %v3489
  %v5872 = vpack.c.b16 %v3496, %v3490
  %v5873 = vpack.c.b16 %v3503, %v3497
  %v5874 = vpack.c.b16 %v3504, %v3498
  %v5875 = vpack.c.b16 %v3505, %v3499
  %v5876 = vpack.c.b16 %v3506, %v3500
  %v5877 = vpack.c.b16 %v3507, %v3501
  %v5878 = vpack.c.b16 %v3508, %v3502
  %v5879 = vpack.c.b16 %v3515, %v3509
  %v5880 = vpack.c.b16 %v3516, %v3510
  %v5881 = vpack.c.b16 %v3517, %v3511
  %v5882 = vpack.c.b16 %v3518, %v3512
  %v5883 = vpack.c.b16 %v3519, %v3513
  %v5884 = vpack.c.b16 %v3520, %v3514
  %v5885 = vpack.c.b16 %v3527, %v3521
  %v5886 = vpack.c.b16 %v3528, %v3522
  %v5887 = vpack.c.b16 %v3529, %v3523
  %v5888 = vpack.c.b16 %v3530, %v3524
  %v5889 = vpack.c.b16 %v3531, %v3525
  %v5890 = vpack.c.b16 %v3532, %v3526
  %v5891 = vpack.c.b16 %v3539, %v3533
  %v5892 = vpack.c.b16 %v3540, %v3534
  %v5893 = vpack.c.b16 %v3541, %v3535
  %v5894 = vpack.c.b16 %v3542, %v3536
  %v5895 = vpack.c.b16 %v3543, %v3537
  %v5896 = vpack.c.b16 %v3544, %v3538
  %v5897 = vpack.c.b16 %v3551, %v3545
  %v5898 = vpack.c.b16 %v3552, %v3546
  %v5899 = vpack.c.b16 %v3553, %v3547
  %v5900 = vpack.c.b16 %v3554, %v3548
  %v5901 = vpack.c.b16 %v3555, %v3549
  %v5902 = vpack.c.b16 %v3556, %v3550
  %v5903 = vpack.c.b16 %v3563, %v3557
  %v5904 = vpack.c.b16 %v3564, %v3558
  %v5905 = vpack.c.b16 %v3565, %v3559
  %v5906 = vpack.c.b16 %v3566, %v3560
  %v5907 = vpack.c.b16 %v3567, %v3561
  %v5908 = vpack.c.b16 %v3568, %v3562
  %v5909 = vpack.c.b16 %v3575, %v3569
  %v5910 = vpack.c.b16 %v3576, %v3570
  %v5911 = vpack.c.b16 %v3577, %v3571
  %v5912 = vpack.c.b16 %v3578, %v3572
  %v5913 = vpack.c.b16 %v3579, %v3573
  %v5914 = vpack.c.b16 %v3580, %v3574
  %v5915 = vpack.c.b16 %v3587, %v3581
  %v5916 = vpack.c.b16 %v3588, %v3582
  %v5917 = vpack.c.b16 %v3589, %v3583
  %v5918 = vpack.c.b16 %v3590, %v3584
  %v5919 = vpack.c.b16 %v3591, %v3585
  %v5920 = vpack.c.b16 %v3592, %v3586
  %v5921 = vpack.c.b16 %v3599, %v3593
  %v5922 = vpack.c.b16 %v3600, %v3594
  %v5923 = vpack.c.b16 %v3601, %v3595
  %v5924 = vpack.c.b16 %v3602, %v3596
  %v5925 = vpack.c.b16 %v3603, %v3597
  %v5926 = vpack.c.b16 %v3604, %v3598
  %v5927 = vpack.c.b16 %v3611, %v3605
  %v5928 = vpack.c.b16 %v3612, %v3606
  %v5929 = vpack.c.b16 %v3613, %v3607
  %v5930 = vpack.c.b16 %v3614, %v3608
  %v5931 = vpack.c.b16 %v3615, %v3609
  %v5932 = vpack.c.b16 %v3616, %v3610
  %v5933 = vpack.c.b16 %v3623, %v3617
  %v5934 = vpack.c.b16 %v3624, %v3618
  %v5935 = vpack.c.b16 %v3625, %v3619
  %v5936 = vpack.c.b16 %v3626, %v3620
  %v5937 = vpack.c.b16 %v3627, %v3621
  %v5938 = vpack.c.b16 %v3628, %v3622
  %v5939 = vpack.c.b16 %v3635, %v3629
  %v5940 = vpack.c.b16 %v3636, %v3630
  %v5941 = vpack.c.b16 %v3637, %v3631
  %v5942 = vpack.c.b16 %v3638, %v3632
  %v5943 = vpack.c.b16 %v3639, %v3633
  %v5944 = vpack.c.b16 %v3640, %v3634
  %v5945 = vpack.c.b16 %v3647, %v3641
  %v5946 = vpack.c.b16 %v3648, %v3642
  %v5947 = vpack.c.b16 %v3649, %v3643
  %v5948 = vpack.c.b16 %v3650, %v3644
  %v5949 = vpack.c.b16 %v3651, %v3645
  %v5950 = vpack.c.b16 %v3652, %v3646
  %v5951 = vpack.c.b16 %v3659, %v3653
  %v5952 = vpack.c.b16 %v3660, %v3654
  %v5953 = vpack.c.b16 %v3661, %v3655
  %v5954 = vpack.c.b16 %v3662, %v3656
  %v5955 = vpack.c.b16 %v3663, %v3657
  %v5956 = vpack.c.b16 %v3664, %v3658
  %v5957 = vpack.c.b16 %v3671, %v3665
  %v5958 = vpack.c.b16 %v3672, %v3666
  %v5959 = vpack.c.b16 %v3673, %v3667
  %v5960 = vpack.c.b16 %v3674, %v3668
  %v5961 = vpack.c.b16 %v3675, %v3669
  %v5962 = vpack.c.b16 %v3676, %v3670
  %v5963 = vpack.c.b16 %v3683, %v3677
  %v5964 = vpack.c.b16 %v3684, %v3678
  %v5965 = vpack.c.b16 %v3685, %v3679
  %v5966 = vpack.c.b16 %v3686, %v3680
  %v5967 = vpack.c.b16 %v3687, %v3681
  %v5968 = vpack.c.b16 %v3688, %v3682
  %v5969 = vpack.c.b16 %v3695, %v3689
  %v5970 = vpack.c.b16 %v3696, %v3690
  %v5971 = vpack.c.b16 %v3697, %v3691
  %v5972 = vpack.c.b16 %v3698, %v3692
  %v5973 = vpack.c.b16 %v3699, %v3693
  %v5974 = vpack.c.b16 %v3700, %v3694
  %v5975 = vpack.c.b16 %v3707, %v3701
  %v5976 = vpack.c.b16 %v3708, %v3702
  %v5977 = vpack.c.b16 %v3709, %v3703
  %v5978 = vpack.c.b16 %v3710, %v3704
  %v5979 = vpack.c.b16 %v3711, %v3705
  %v5980 = vpack.c.b16 %v3712, %v3706
  %v5981 = vpack.c.b16 %v3719, %v3713
  %v5982 = vpack.c.b16 %v3720, %v3714
  %v5983 = vpack.c.b16 %v3721, %v3715
  %v5984 = vpack.c.b16 %v3722, %v3716
  %v5985 = vpack.c.b16 %v3723, %v3717
  %v5986 = vpack.c.b16 %v3724, %v3718
  %v5987 = vpack.c.b16 %v3731, %v3725
  %v5988 = vpack.c.b16 %v3732, %v3726
  %v5989 = vpack.c.b16 %v3733, %v3727
  %v5990 = vpack.c.b16 %v3734, %v3728
  %v5991 = vpack.c.b16 %v3735, %v3729
  %v5992 = vpack.c.b16 %v3736, %v3730
  %v5993 = vpack.c.b16 %v3743, %v3737
  %v5994 = vpack.c.b16 %v3744, %v3738
  %v5995 = vpack.c.b16 %v3745, %v3739
  %v5996 = vpack.c.b16 %v3746, %v3740
  %v5997 = vpack.c.b16 %v3747, %v3741
  %v5998 = vpack.c.b16 %v3748, %v3742
  %v5999 = vpack.c.b16 %v3755, %v3749
  %v6000 = vpack.c.b16 %v3756, %v3750
  %v6001 = vpack.c.b16 %v3757, %v3751
  %v6002 = vpack.c.b16 %v3758, %v3752
  %v6003 = vpack.c.b16 %v3759, %v3753
  %v6004 = vpack.c.b16 %v3760, %v3754
  %v6005 = vpack.c.b16 %v3767, %v3761
  %v6006 = vpack.c.b16 %v3768, %v3762
  %v6007 = vpack.c.b16 %v3769, %v3763
  %v6008 = vpack.c.b16 %v3770, %v3764
  %v6009 = vpack.c.b16 %v3771, %v3765
  %v6010 = vpack.c.b16 %v3772, %v3766
  %v6011 = vpack.c.b16 %v3779, %v3773
  %v6012 = vpack.c.b16 %v3780, %v3774
  %v6013 = vpack.c.b16 %v3781, %v3775
  %v6014 = vpack.c.b16 %v3782, %v3776
  %v6015 = vpack.c.b16 %v3783, %v3777
  %v6016 = vpack.c.b16 %v3784, %v3778
  %v6017 = vpack.c.b16 %v3791, %v3785
  %v6018 = vpack.c.b16 %v3792, %v3786
  %v6019 = vpack.c.b16 %v3793, %v3787
  %v6020 = vpack.c.b16 %v3794, %v3788
  %v6021 = vpack.c.b16 %v3795, %v3789
  %v6022 = vpack.c.b16 %v3796, %v3790
  %v6023 = vpack.c.b16 %v3803, %v3797
  %v6024 = vpack.c.b16 %v3804, %v3798
  %v6025 = vpack.c.b16 %v3805, %v3799
  %v6026 = vpack.c.b16 %v3806, %v3800
  %v6027 = vpack.c.b16 %v3807, %v3801
  %v6028 = vpack.c.b16 %v3808, %v3802
  %v6029 = vpack.c.b16 %v3815, %v3809
  %v6030 = vpack.c.b16 %v3816, %v3810
  %v6031 = vpack.c.b16 %v3817, %v3811
  %v6032 = vpack.c.b16 %v3818, %v3812
  %v6033 = vpack.c.b16 %v3819, %v3813
  %v6034 = vpack.c.b16 %v3820, %v3814
  %v6035 = vpack.c.b16 %v3827, %v3821
  %v6036 = vpack.c.b16 %v3828, %v3822
  %v6037 = vpack.c.b16 %v3829, %v3823
  %v6038 = vpack.c.b16 %v3830, %v3824
  %v6039 = vpack.c.b16 %v3831, %v3825
  %v6040 = vpack.c.b16 %v3832, %v3826
  %v6041 = vpack.c.b16 %v3839, %v3833
  %v6042 = vpack.c.b16 %v3840, %v3834
  %v6043 = vpack.c.b16 %v3841, %v3835
  %v6044 = vpack.c.b16 %v3842, %v3836
  %v6045 = vpack.c.b16 %v3843, %v3837
  %v6046 = vpack.c.b16 %v3844, %v3838
  %v6047 = vpack.c.b16 %v3851, %v3845
  %v6048 = vpack.c.b16 %v3852, %v3846
  %v6049 = vpack.c.b16 %v3853, %v3847
  %v6050 = vpack.c.b16 %v3854, %v3848
  %v6051 = vpack.c.b16 %v3855, %v3849
  %v6052 = vpack.c.b16 %v3856, %v3850
  %v6053 = vpack.c.b16 %v3863, %v3857
  %v6054 = vpack.c.b16 %v3864, %v3858
  %v6055 = vpack.c.b16 %v3865, %v3859
  %v6056 = vpack.c.b16 %v3866, %v3860
  %v6057 = vpack.c.b16 %v3867, %v3861
  %v6058 = vpack.c.b16 %v3868, %v3862
  %v6059 = vpack.c.b16 %v3875, %v3869
  %v6060 = vpack.c.b16 %v3876, %v3870
  %v6061 = vpack.c.b16 %v3877, %v3871
  %v6062 = vpack.c.b16 %v3878, %v3872
  %v6063 = vpack.c.b16 %v3879, %v3873
  %v6064 = vpack.c.b16 %v3880, %v3874
  %v6065 = vpack.c.b16 %v3887, %v3881
  %v6066 = vpack.c.b16 %v3888, %v3882
  %v6067 = vpack.c.b16 %v3889, %v3883
  %v6068 = vpack.c.b16 %v3890, %v3884
  %v6069 = vpack.c.b16 %v3891, %v3885
  %v6070 = vpack.c.b16 %v3892, %v3886
  %v6071 = vpack.c.b16 %v3899, %v3893
  %v6072 = vpack.c.b16 %v3900, %v3894
  %v6073 = vpack.c.b16 %v3901, %v3895
  %v6074 = vpack.c.b16 %v3902, %v3896
  %v6075 = vpack.c.b16 %v3903, %v3897
  %v6076 = vpack.c.b16 %v3904, %v3898
  %v6077 = vpack.c.b16 %v3911, %v3905
  %v6078 = vpack.c.b16 %v3912, %v3906
  %v6079 = vpack.c.b16 %v3913, %v3907
  %v6080 = vpack.c.b16 %v3914, %v3908
  %v6081 = vpack.c.b16 %v3915, %v3909
  %v6082 = vpack.c.b16 %v3916, %v3910
  %v6083 = vpack.c.b16 %v3923, %v3917
  %v6084 = vpack.c.b16 %v3924, %v3918
  %v6085 = vpack.c.b16 %v3925, %v3919
  %v6086 = vpack.c.b16 %v3926, %v3920
  %v6087 = vpack.c.b16 %v3927, %v3921
  %v6088 = vpack.c.b16 %v3928, %v3922
  %v6089 = vpack.c.b16 %v3935, %v3929
  %v6090 = vpack.c.b16 %v3936, %v3930
  %v6091 = vpack.c.b16 %v3937, %v3931
  %v6092 = vpack.c.b16 %v3938, %v3932
  %v6093 = vpack.c.b16 %v3939, %v3933
  %v6094 = vpack.c.b16 %v3940, %v3934
  %v6095 = vpack.c.b16 %v3947, %v3941
  %v6096 = vpack.c.b16 %v3948, %v3942
  %v6097 = vpack.c.b16 %v3949, %v3943
  %v6098 = vpack.c.b16 %v3950, %v3944
  %v6099 = vpack.c.b16 %v3951, %v3945
  %v6100 = vpack.c.b16 %v3952, %v3946
  %v6101 = vpack.c.b16 %v3959, %v3953
  %v6102 = vpack.c.b16 %v3960, %v3954
  %v6103 = vpack.c.b16 %v3961, %v3955
  %v6104 = vpack.c.b16 %v3962, %v3956
  %v6105 = vpack.c.b16 %v3963, %v3957
  %v6106 = vpack.c.b16 %v3964, %v3958
  %v6107 = vpack.c.b16 %v3971, %v3965
  %v6108 = vpack.c.b16 %v3972, %v3966
  %v6109 = vpack.c.b16 %v3973, %v3967
  %v6110 = vpack.c.b16 %v3974, %v3968
  %v6111 = vpack.c.b16 %v3975, %v3969
  %v6112 = vpack.c.b16 %v3976, %v3970
  %v6113 = vpack.c.b16 %v3983, %v3977
  %v6114 = vpack.c.b16 %v3984, %v3978
  %v6115 = vpack.c.b16 %v3985, %v3979
  %v6116 = vpack.c.b16 %v3986, %v3980
  %v6117 = vpack.c.b16 %v3987, %v3981
  %v6118 = vpack.c.b16 %v3988, %v3982
  %v6119 = vpack.c.b16 %v3995, %v3989
  %v6120 = vpack.c.b16 %v3996, %v3990
  %v6121 = vpack.c.b16 %v3997, %v3991
  %v6122 = vpack.c.b16 %v3998, %v3992
  %v6123 = vpack.c.b16 %v3999, %v3993
  %v6124 = vpack.c.b16 %v4000, %v3994
  %v6125 = vpack.c.b16 %v4007, %v4001
  %v6126 = vpack.c.b16 %v4008, %v4002
  %v6127 = vpack.c.b16 %v4009, %v4003
  %v6128 = vpack.c.b16 %v4010, %v4004
  %v6129 = vpack.c.b16 %v4011, %v4005
  %v6130 = vpack.c.b16 %v4012, %v4006
  %v6131 = vpack.c.b16 %v4019, %v4013
  %v6132 = vpack.c.b16 %v4020, %v4014
  %v6133 = vpack.c.b16 %v4021, %v4015
  %v6134 = vpack.c.b16 %v4022, %v4016
  %v6135 = vpack.c.b16 %v4023, %v4017
  %v6136 = vpack.c.b16 %v4024, %v4018
  %v6137 = vpack.c.b16 %v4031, %v4025
  %v6138 = vpack.c.b16 %v4032, %v4026
  %v6139 = vpack.c.b16 %v4033, %v4027
  %v6140 = vpack.c.b16 %v4034, %v4028
  %v6141 = vpack.c.b16 %v4035, %v4029
  %v6142 = vpack.c.b16 %v4036, %v4030
  %v6143 = vpack.c.b16 %v4043, %v4037
  %v6144 = vpack.c.b16 %v4044, %v4038
  %v6145 = vpack.c.b16 %v4045, %v4039
  %v6146 = vpack.c.b16 %v4046, %v4040
  %v6147 = vpack.c.b16 %v4047, %v4041
  %v6148 = vpack.c.b16 %v4048, %v4042
  %v6149 = vpack.c.b16 %v4055, %v4049
  %v6150 = vpack.c.b16 %v4056, %v4050
  %v6151 = vpack.c.b16 %v4057, %v4051
  %v6152 = vpack.c.b16 %v4058, %v4052
  %v6153 = vpack.c.b16 %v4059, %v4053
  %v6154 = vpack.c.b16 %v4060, %v4054
  %v6155 = vpack.c.b16 %v4067, %v4061
  %v6156 = vpack.c.b16 %v4068, %v4062
  %v6157 = vpack.c.b16 %v4069, %v4063
  %v6158 = vpack.c.b16 %v4070, %v4064
  %v6159 = vpack.c.b16 %v4071, %v4065
  %v6160 = vpack.c.b16 %v4072, %v4066
  %v6161 = vpack.c.b16 %v4079, %v4073
  %v6162 = vpack.c.b16 %v4080, %v4074
  %v6163 = vpack.c.b16 %v4081, %v4075
  %v6164 = vpack.c.b16 %v4082, %v4076
  %v6165 = vpack.c.b16 %v4083, %v4077
  %v6166 = vpack.c.b16 %v4084, %v4078
  %v6167 = vpack.c.b16 %v4091, %v4085
  %v6168 = vpack.c.b16 %v4092, %v4086
  %v6169 = vpack.c.b16 %v4093, %v4087
  %v6170 = vpack.c.b16 %v4094, %v4088
  %v6171 = vpack.c.b16 %v4095, %v4089
  %v6172 = vpack.c.b16 %v4096, %v4090
  %v6173 = vpack.c.b16 %v4103, %v4097
  %v6174 = vpack.c.b16 %v4104, %v4098
  %v6175 = vpack.c.b16 %v4105, %v4099
  %v6176 = vpack.c.b16 %v4106, %v4100
  %v6177 = vpack.c.b16 %v4107, %v4101
  %v6178 = vpack.c.b16 %v4108, %v4102
  %v6179 = vpack.c.b16 %v4115, %v4109
  %v6180 = vpack.c.b16 %v4116, %v4110
  %v6181 = vpack.c.b16 %v4117, %v4111
  %v6182 = vpack.c.b16 %v4118, %v4112
  %v6183 = vpack.c.b16 %v4119, %v4113
  %v6184 = vpack.c.b16 %v4120, %v4114
  %v6185 = vpack.c.b16 %v4127, %v4121
  %v6186 = vpack.c.b16 %v4128, %v4122
  %v6187 = vpack.c.b16 %v4129, %v4123
  %v6188 = vpack.c.b16 %v4130, %v4124
  %v6189 = vpack.c.b16 %v4131, %v4125
  %v6190 = vpack.c.b16 %v4132, %v4126
  %v6191 = vpack.c.b16 %v4139, %v4133
  %v6192 = vpack.c.b16 %v4140, %v4134
  %v6193 = vpack.c.b16 %v4141, %v4135
  %v6194 = vpack.c.b16 %v4142, %v4136
  %v6195 = vpack.c.b16 %v4143, %v4137
  %v6196 = vpack.c.b16 %v4144, %v4138
  %v6197 = vpack.c.b16 %v4151, %v4145
  %v6198 = vpack.c.b16 %v4152, %v4146
  %v6199 = vpack.c.b16 %v4153, %v4147
  %v6200 = vpack.c.b16 %v4154, %v4148
  %v6201 = vpack.c.b16 %v4155, %v4149
  %v6202 = vpack.c.b16 %v4156, %v4150
  %v6203 = vpack.c.b16 %v4163, %v4157
  %v6204 = vpack.c.b16 %v4164, %v4158
  %v6205 = vpack.c.b16 %v4165, %v4159
  %v6206 = vpack.c.b16 %v4166, %v4160
  %v6207 = vpack.c.b16 %v4167, %v4161
  %v6208 = vpack.c.b16 %v4168, %v4162
  %v6209 = vpack.c.b16 %v4175, %v4169
  %v6210 = vpack.c.b16 %v4176, %v4170
  %v6211 = vpack.c.b16 %v4177, %v4171
  %v6212 = vpack.c.b16 %v4178, %v4172
  %v6213 = vpack.c.b16 %v4179, %v4173
  %v6214 = vpack.c.b16 %v4180, %v4174
  %v6215 = vpack.c.b16 %v4187, %v4181
  %v6216 = vpack.c.b16 %v4188, %v4182
  %v6217 = vpack.c.b16 %v4189, %v4183
  %v6218 = vpack.c.b16 %v4190, %v4184
  %v6219 = vpack.c.b16 %v4191, %v4185
  %v6220 = vpack.c.b16 %v4192, %v4186
  %v6221 = vpack.c.b16 %v4199, %v4193
  %v6222 = vpack.c.b16 %v4200, %v4194
  %v6223 = vpack.c.b16 %v4201, %v4195
  %v6224 = vpack.c.b16 %v4202, %v4196
  %v6225 = vpack.c.b16 %v4203, %v4197
  %v6226 = vpack.c.b16 %v4204, %v4198
  %v6227 = vpack.c.b16 %v4211, %v4205
  %v6228 = vpack.c.b16 %v4212, %v4206
  %v6229 = vpack.c.b16 %v4213, %v4207
  %v6230 = vpack.c.b16 %v4214, %v4208
  %v6231 = vpack.c.b16 %v4215, %v4209
  %v6232 = vpack.c.b16 %v4216, %v4210
  %v6233 = vpack.c.b16 %v4223, %v4217
  %v6234 = vpack.c.b16 %v4224, %v4218
  %v6235 = vpack.c.b16 %v4225, %v4219
  %v6236 = vpack.c.b16 %v4226, %v4220
  %v6237 = vpack.c.b16 %v4227, %v4221
  %v6238 = vpack.c.b16 %v4228, %v4222
  %v6239 = vpack.c.b16 %v4235, %v4229
  %v6240 = vpack.c.b16 %v4236, %v4230
  %v6241 = vpack.c.b16 %v4237, %v4231
  %v6242 = vpack.c.b16 %v4238, %v4232
  %v6243 = vpack.c.b16 %v4239, %v4233
  %v6244 = vpack.c.b16 %v4240, %v4234
  %v6245 = vpack.c.b16 %v4247, %v4241
  %v6246 = vpack.c.b16 %v4248, %v4242
  %v6247 = vpack.c.b16 %v4249, %v4243
  %v6248 = vpack.c.b16 %v4250, %v4244
  %v6249 = vpack.c.b16 %v4251, %v4245
  %v6250 = vpack.c.b16 %v4252, %v4246
  %v6251 = vpack.c.b16 %v4259, %v4253
  %v6252 = vpack.c.b16 %v4260, %v4254
  %v6253 = vpack.c.b16 %v4261, %v4255
  %v6254 = vpack.c.b16 %v4262, %v4256
  %v6255 = vpack.c.b16 %v4263, %v4257
  %v6256 = vpack.c.b16 %v4264, %v4258
  %v6257 = vpack.c.b16 %v4271, %v4265
  %v6258 = vpack.c.b16 %v4272, %v4266
  %v6259 = vpack.c.b16 %v4273, %v4267
  %v6260 = vpack.c.b16 %v4274, %v4268
  %v6261 = vpack.c.b16 %v4275, %v4269
  %v6262 = vpack.c.b16 %v4276, %v4270
  %v6263 = vpack.c.b16 %v4283, %v4277
  %v6264 = vpack.c.b16 %v4284, %v4278
  %v6265 = vpack.c.b16 %v4285, %v4279
  %v6266 = vpack.c.b16 %v4286, %v4280
  %v6267 = vpack.c.b16 %v4287, %v4281
  %v6268 = vpack.c.b16 %v4288, %v4282
  %v6269 = vpack.c.b16 %v4295, %v4289
  %v6270 = vpack.c.b16 %v4296, %v4290
  %v6271 = vpack.c.b16 %v4297, %v4291
  %v6272 = vpack.c.b16 %v4298, %v4292
  %v6273 = vpack.c.b16 %v4299, %v4293
  %v6274 = vpack.c.b16 %v4300, %v4294
  %v6275 = vpack.c.b16 %v4307, %v4301
  %v6276 = vpack.c.b16 %v4308, %v4302
  %v6277 = vpack.c.b16 %v4309, %v4303
  %v6278 = vpack.c.b16 %v4310, %v4304
  %v6279 = vpack.c.b16 %v4311, %v4305
  %v6280 = vpack.c.b16 %v4312, %v4306
  %v6281 = vpack.c.b16 %v4319, %v4313
  %v6282 = vpack.c.b16 %v4320, %v4314
  %v6283 = vpack.c.b16 %v4321, %v4315
  %v6284 = vpack.c.b16 %v4322, %v4316
  %v6285 = vpack.c.b16 %v4323, %v4317
  %v6286 = vpack.c.b16 %v4324, %v4318
  %v6287 = vpack.c.b16 %v4331, %v4325
  %v6288 = vpack.c.b16 %v4332, %v4326
  %v6289 = vpack.c.b16 %v4333, %v4327
  %v6290 = vpack.c.b16 %v4334, %v4328
  %v6291 = vpack.c.b16 %v4335, %v4329
  %v6292 = vpack.c.b16 %v4336, %v4330
  %v6293 = vpack.c.b16 %v4343, %v4337
  %v6294 = vpack.c.b16 %v4344, %v4338
  %v6295 = vpack.c.b16 %v4345, %v4339
  %v6296 = vpack.c.b16 %v4346, %v4340
  %v6297 = vpack.c.b16 %v4347, %v4341
  %v6298 = vpack.c.b16 %v4348, %v4342
  %v6299 = vpack.c.b16 %v4355, %v4349
  %v6300 = vpack.c.b16 %v4356, %v4350
  %v6301 = vpack.c.b16 %v4357, %v4351
  %v6302 = vpack.c.b16 %v4358, %v4352
  %v6303 = vpack.c.b16 %v4359, %v4353
  %v6304 = vpack.c.b16 %v4360, %v4354
  %v6305 = vpack.c.b16 %v4367, %v4361
  %v6306 = vpack.c.b16 %v4368, %v4362
  %v6307 = vpack.c.b16 %v4369, %v4363
  %v6308 = vpack.c.b16 %v4370, %v4364
  %v6309 = vpack.c.b16 %v4371, %v4365
  %v6310 = vpack.c.b16 %v4372, %v4366
  %v6311 = vpack.c.b16 %v4379, %v4373
  %v6312 = vpack.c.b16 %v4380, %v4374
  %v6313 = vpack.c.b16 %v4381, %v4375
  %v6314 = vpack.c.b16 %v4382, %v4376
  %v6315 = vpack.c.b16 %v4383, %v4377
  %v6316 = vpack.c.b16 %v4384, %v4378
  %v6317 = vpack.c.b16 %v4391, %v4385
  %v6318 = vpack.c.b16 %v4392, %v4386
  %v6319 = vpack.c.b16 %v4393, %v4387
  %v6320 = vpack.c.b16 %v4394, %v4388
  %v6321 = vpack.c.b16 %v4395, %v4389
  %v6322 = vpack.c.b16 %v4396, %v4390
  %v6323 = vpack.c.b16 %v4403, %v4397
  %v6324 = vpack.c.b16 %v4404, %v4398
  %v6325 = vpack.c.b16 %v4405, %v4399
  %v6326 = vpack.c.b16 %v4406, %v4400
  %v6327 = vpack.c.b16 %v4407, %v4401
  %v6328 = vpack.c.b16 %v4408, %v4402
  %v6329 = vpack.c.b16 %v4415, %v4409
  %v6330 = vpack.c.b16 %v4416, %v4410
  %v6331 = vpack.c.b16 %v4417, %v4411
  %v6332 = vpack.c.b16 %v4418, %v4412
  %v6333 = vpack.c.b16 %v4419, %v4413
  %v6334 = vpack.c.b16 %v4420, %v4414
  %v6335 = vpack.c.b16 %v4427, %v4421
  %v6336 = vpack.c.b16 %v4428, %v4422
  %v6337 = vpack.c.b16 %v4429, %v4423
  %v6338 = vpack.c.b16 %v4430, %v4424
  %v6339 = vpack.c.b16 %v4431, %v4425
  %v6340 = vpack.c.b16 %v4432, %v4426
  %v6341 = vpack.c.b16 %v4439, %v4433
  %v6342 = vpack.c.b16 %v4440, %v4434
  %v6343 = vpack.c.b16 %v4441, %v4435
  %v6344 = vpack.c.b16 %v4442, %v4436
  %v6345 = vpack.c.b16 %v4443, %v4437
  %v6346 = vpack.c.b16 %v4444, %v4438
  %v6347 = vpack.c.b16 %v4451, %v4445
  %v6348 = vpack.c.b16 %v4452, %v4446
  %v6349 = vpack.c.b16 %v4453, %v4447
  %v6350 = vpack.c.b16 %v4454, %v4448
  %v6351 = vpack.c.b16 %v4455, %v4449
  %v6352 = vpack.c.b16 %v4456, %v4450
  %v6353 = vpack.c.b16 %v4463, %v4457
  %v6354 = vpack.c.b16 %v4464, %v4458
  %v6355 = vpack.c.b16 %v4465, %v4459
  %v6356 = vpack.c.b16 %v4466, %v4460
  %v6357 = vpack.c.b16 %v4467, %v4461
  %v6358 = vpack.c.b16 %v4468, %v4462
  %v6359 = vpack.c.b16 %v4475, %v4469
  %v6360 = vpack.c.b16 %v4476, %v4470
  %v6361 = vpack.c.b16 %v4477, %v4471
  %v6362 = vpack.c.b16 %v4478, %v4472
  %v6363 = vpack.c.b16 %v4479, %v4473
  %v6364 = vpack.c.b16 %v4480, %v4474
  %v6365 = vpack.c.b16 %v4487, %v4481
  %v6366 = vpack.c.b16 %v4488, %v4482
  %v6367 = vpack.c.b16 %v4489, %v4483
  %v6368 = vpack.c.b16 %v4490, %v4484
  %v6369 = vpack.c.b16 %v4491, %v4485
  %v6370 = vpack.c.b16 %v4492, %v4486
  %v6371 = vpack.c.b16 %v4499, %v4493
  %v6372 = vpack.c.b16 %v4500, %v4494
  %v6373 = vpack.c.b16 %v4501, %v4495
  %v6374 = vpack.c.b16 %v4502, %v4496
  %v6375 = vpack.c.b16 %v4503, %v4497
  %v6376 = vpack.c.b16 %v4504, %v4498
  %v6377 = vpack.c.b16 %v4511, %v4505
  %v6378 = vpack.c.b16 %v4512, %v4506
  %v6379 = vpack.c.b16 %v4513, %v4507
  %v6380 = vpack.c.b16 %v4514, %v4508
  %v6381 = vpack.c.b16 %v4515, %v4509
  %v6382 = vpack.c.b16 %v4516, %v4510
  %v6383 = vpack.c.b16 %v4523, %v4517
  %v6384 = vpack.c.b16 %v4524, %v4518
  %v6385 = vpack.c.b16 %v4525, %v4519
  %v6386 = vpack.c.b16 %v4526, %v4520
  %v6387 = vpack.c.b16 %v4527, %v4521
  %v6388 = vpack.c.b16 %v4528, %v4522
  %v6389 = vpack.c.b16 %v4535, %v4529
  %v6390 = vpack.c.b16 %v4536, %v4530
  %v6391 = vpack.c.b16 %v4537, %v4531
  %v6392 = vpack.c.b16 %v4538, %v4532
  %v6393 = vpack.c.b16 %v4539, %v4533
  %v6394 = vpack.c.b16 %v4540, %v4534
  %v6395 = vpack.c.b16 %v4547, %v4541
  %v6396 = vpack.c.b16 %v4548, %v4542
  %v6397 = vpack.c.b16 %v4549, %v4543
  %v6398 = vpack.c.b16 %v4550, %v4544
  %v6399 = vpack.c.b16 %v4551, %v4545
  %v6400 = vpack.c.b16 %v4552, %v4546
  %v6401 = vpack.c.b16 %v4559, %v4553
  %v6402 = vpack.c.b16 %v4560, %v4554
  %v6403 = vpack.c.b16 %v4561, %v4555
  %v6404 = vpack.c.b16 %v4562, %v4556
  %v6405 = vpack.c.b16 %v4563, %v4557
  %v6406 = vpack.c.b16 %v4564, %v4558
  %v6407 = vpack.c.b16 %v4571, %v4565
  %v6408 = vpack.c.b16 %v4572, %v4566
  %v6409 = vpack.c.b16 %v4573, %v4567
  %v6410 = vpack.c.b16 %v4574, %v4568
  %v6411 = vpack.c.b16 %v4575, %v4569
  %v6412 = vpack.c.b16 %v4576, %v4570
  %v6413 = vpack.c.b16 %v4583, %v4577
  %v6414 = vpack.c.b16 %v4584, %v4578
  %v6415 = vpack.c.b16 %v4585, %v4579
  %v6416 = vpack.c.b16 %v4586, %v4580
  %v6417 = vpack.c.b16 %v4587, %v4581
  %v6418 = vpack.c.b16 %v4588, %v4582
  %v6419 = vpack.c.b16 %v4595, %v4589
  %v6420 = vpack.c.b16 %v4596, %v4590
  %v6421 = vpack.c.b16 %v4597, %v4591
  %v6422 = vpack.c.b16 %v4598, %v4592
  %v6423 = vpack.c.b16 %v4599, %v4593
  %v6424 = vpack.c.b16 %v4600, %v4594
  %v6425 = vpack.c.b16 %v4607, %v4601
  %v6426 = vpack.c.b16 %v4608, %v4602
  %v6427 = vpack.c.b16 %v4609, %v4603
  %v6428 = vpack.c.b16 %v4610, %v4604
  %v6429 = vpack.c.b16 %v4611, %v4605
  %v6430 = vpack.c.b16 %v4612, %v4606
  %v6431 = vpack.c.b16 %v4619, %v4613
  %v6432 = vpack.c.b16 %v4620, %v4614
  %v6433 = vpack.c.b16 %v4621, %v4615
  %v6434 = vpack.c.b16 %v4622, %v4616
  %v6435 = vpack.c.b16 %v4623, %v4617
  %v6436 = vpack.c.b16 %v4624, %v4618
  %v6437 = vpack.c.b16 %v4631, %v4625
  %v6438 = vpack.c.b16 %v4632, %v4626
  %v6439 = vpack.c.b16 %v4633, %v4627
  %v6440 = vpack.c.b16 %v4634, %v4628
  %v6441 = vpack.c.b16 %v4635, %v4629
  %v6442 = vpack.c.b16 %v4636, %v4630
  %v6443 = vpack.c.b16 %v4643, %v4637
  %v6444 = vpack.c.b16 %v4644, %v4638
  %v6445 = vpack.c.b16 %v4645, %v4639
  %v6446 = vpack.c.b16 %v4646, %v4640
  %v6447 = vpack.c.b16 %v4647, %v4641
  %v6448 = vpack.c.b16 %v4648, %v4642
  %v6449 = vpack.c.b16 %v4655, %v4649
  %v6450 = vpack.c.b16 %v4656, %v4650
  %v6451 = vpack.c.b16 %v4657, %v4651
  %v6452 = vpack.c.b16 %v4658, %v4652
  %v6453 = vpack.c.b16 %v4659, %v4653
  %v6454 = vpack.c.b16 %v4660, %v4654
  %v6455 = vpack.c.b16 %v4667, %v4661
  %v6456 = vpack.c.b16 %v4668, %v4662
  %v6457 = vpack.c.b16 %v4669, %v4663
  %v6458 = vpack.c.b16 %v4670, %v4664
  %v6459 = vpack.c.b16 %v4671, %v4665
  %v6460 = vpack.c.b16 %v4672, %v4666
  %v6461 = vpack.c.b16 %v4679, %v4673
  %v6462 = vpack.c.b16 %v4680, %v4674
  %v6463 = vpack.c.b16 %v4681, %v4675
  %v6464 = vpack.c.b16 %v4682, %v4676
  %v6465 = vpack.c.b16 %v4683, %v4677
  %v6466 = vpack.c.b16 %v4684, %v4678
  %v6467 = vpack.c.b16 %v4691, %v4685
  %v6468 = vpack.c.b16 %v4692, %v4686
  %v6469 = vpack.c.b16 %v4693, %v4687
  %v6470 = vpack.c.b16 %v4694, %v4688
  %v6471 = vpack.c.b16 %v4695, %v4689
  %v6472 = vpack.c.b16 %v4696, %v4690
  %v6473 = vpack.c.b16 %v4703, %v4697
  %v6474 = vpack.c.b16 %v4704, %v4698
  %v6475 = vpack.c.b16 %v4705, %v4699
  %v6476 = vpack.c.b16 %v4706, %v4700
  %v6477 = vpack.c.b16 %v4707, %v4701
  %v6478 = vpack.c.b16 %v4708, %v4702
  %v6479 = vpack.c.b16 %v4715, %v4709
  %v6480 = vpack.c.b16 %v4716, %v4710
  %v6481 = vpack.c.b16 %v4717, %v4711
  %v6482 = vpack.c.b16 %v4718, %v4712
  %v6483 = vpack.c.b16 %v4719, %v4713
  %v6484 = vpack.c.b16 %v4720, %v4714
  %v6485 = vpack.c.b16 %v4727, %v4721
  %v6486 = vpack.c.b16 %v4728, %v4722
  %v6487 = vpack.c.b16 %v4729, %v4723
  %v6488 = vpack.c.b16 %v4730, %v4724
  %v6489 = vpack.c.b16 %v4731, %v4725
  %v6490 = vpack.c.b16 %v4732, %v4726
  %v6491 = vpack.c.b16 %v4739, %v4733
  %v6492 = vpack.c.b16 %v4740, %v4734
  %v6493 = vpack.c.b16 %v4741, %v4735
  %v6494 = vpack.c.b16 %v4742, %v4736
  %v6495 = vpack.c.b16 %v4743, %v4737
  %v6496 = vpack.c.b16 %v4744, %v4738
  %v6497 = vpack.c.b16 %v4751, %v4745
  %v6498 = vpack.c.b16 %v4752, %v4746
  %v6499 = vpack.c.b16 %v4753, %v4747
  %v6500 = vpack.c.b16 %v4754, %v4748
  %v6501 = vpack.c.b16 %v4755, %v4749
  %v6502 = vpack.c.b16 %v4756, %v4750
  %v6503 = vpack.c.b16 %v4763, %v4757
  %v6504 = vpack.c.b16 %v4764, %v4758
  %v6505 = vpack.c.b16 %v4765, %v4759
  %v6506 = vpack.c.b16 %v4766, %v4760
  %v6507 = vpack.c.b16 %v4767, %v4761
  %v6508 = vpack.c.b16 %v4768, %v4762
  %v6509 = vpack.c.b16 %v4775, %v4769
  %v6510 = vpack.c.b16 %v4776, %v4770
  %v6511 = vpack.c.b16 %v4777, %v4771
  %v6512 = vpack.c.b16 %v4778, %v4772
  %v6513 = vpack.c.b16 %v4779, %v4773
  %v6514 = vpack.c.b16 %v4780, %v4774
  %v6515 = vpack.c.b16 %v4787, %v4781
  %v6516 = vpack.c.b16 %v4788, %v4782
  %v6517 = vpack.c.b16 %v4789, %v4783
  %v6518 = vpack.c.b16 %v4790, %v4784
  %v6519 = vpack.c.b16 %v4791, %v4785
  %v6520 = vpack.c.b16 %v4792, %v4786
  %v6521 = vpack.c.b16 %v4799, %v4793
  %v6522 = vpack.c.b16 %v4800, %v4794
  %v6523 = vpack.c.b16 %v4801, %v4795
  %v6524 = vpack.c.b16 %v4802, %v4796
  %v6525 = vpack.c.b16 %v4803, %v4797
  %v6526 = vpack.c.b16 %v4804, %v4798
  %v6527 = vpack.c.b16 %v4811, %v4805
  %v6528 = vpack.c.b16 %v4812, %v4806
  %v6529 = vpack.c.b16 %v4813, %v4807
  %v6530 = vpack.c.b16 %v4814, %v4808
  %v6531 = vpack.c.b16 %v4815, %v4809
  %v6532 = vpack.c.b16 %v4816, %v4810
  %v6533 = vpack.c.b16 %v4823, %v4817
  %v6534 = vpack.c.b16 %v4824, %v4818
  %v6535 = vpack.c.b16 %v4825, %v4819
  %v6536 = vpack.c.b16 %v4826, %v4820
  %v6537 = vpack.c.b16 %v4827, %v4821
  %v6538 = vpack.c.b16 %v4828, %v4822
  %v6539 = vpack.c.b16 %v4835, %v4829
  %v6540 = vpack.c.b16 %v4836, %v4830
  %v6541 = vpack.c.b16 %v4837, %v4831
  %v6542 = vpack.c.b16 %v4838, %v4832
  %v6543 = vpack.c.b16 %v4839, %v4833
  %v6544 = vpack.c.b16 %v4840, %v4834
  %v6545 = vpack.c.b16 %v4847, %v4841
  %v6546 = vpack.c.b16 %v4848, %v4842
  %v6547 = vpack.c.b16 %v4849, %v4843
  %v6548 = vpack.c.b16 %v4850, %v4844
  %v6549 = vpack.c.b16 %v4851, %v4845
  %v6550 = vpack.c.b16 %v4852, %v4846
  %v6551 = vpack.c.b16 %v4859, %v4853
  %v6552 = vpack.c.b16 %v4860, %v4854
  %v6553 = vpack.c.b16 %v4861, %v4855
  %v6554 = vpack.c.b16 %v4862, %v4856
  %v6555 = vpack.c.b16 %v4863, %v4857
  %v6556 = vpack.c.b16 %v4864, %v4858
  %v6557 = vpack.c.b16 %v4871, %v4865
  %v6558 = vpack.c.b16 %v4872, %v4866
  %v6559 = vpack.c.b16 %v4873, %v4867
  %v6560 = vpack.c.b16 %v4874, %v4868
  %v6561 = vpack.c.b16 %v4875, %v4869
  %v6562 = vpack.c.b16 %v4876, %v4870
  %v6563 = vpack.c.b16 %v4883, %v4877
  %v6564 = vpack.c.b16 %v4884, %v4878
  %v6565 = vpack.c.b16 %v4885, %v4879
  %v6566 = vpack.c.b16 %v4886, %v4880
  %v6567 = vpack.c.b16 %v4887, %v4881
  %v6568 = vpack.c.b16 %v4888, %v4882
  %v6569 = vpack.c.b16 %v4895, %v4889
  %v6570 = vpack.c.b16 %v4896, %v4890
  %v6571 = vpack.c.b16 %v4897, %v4891
  %v6572 = vpack.c.b16 %v4898, %v4892
  %v6573 = vpack.c.b16 %v4899, %v4893
  %v6574 = vpack.c.b16 %v4900, %v4894
  %v6575 = vpack.c.b16 %v4907, %v4901
  %v6576 = vpack.c.b16 %v4908, %v4902
  %v6577 = vpack.c.b16 %v4909, %v4903
  %v6578 = vpack.c.b16 %v4910, %v4904
  %v6579 = vpack.c.b16 %v4911, %v4905
  %v6580 = vpack.c.b16 %v4912, %v4906
  %v6581 = vpack.c.b16 %v4919, %v4913
  %v6582 = vpack.c.b16 %v4920, %v4914
  %v6583 = vpack.c.b16 %v4921, %v4915
  %v6584 = vpack.c.b16 %v4922, %v4916
  %v6585 = vpack.c.b16 %v4923, %v4917
  %v6586 = vpack.c.b16 %v4924, %v4918
  %v6587 = vpack.c.b16 %v4931, %v4925
  %v6588 = vpack.c.b16 %v4932, %v4926
  %v6589 = vpack.c.b16 %v4933, %v4927
  %v6590 = vpack.c.b16 %v4934, %v4928
  %v6591 = vpack.c.b16 %v4935, %v4929
  %v6592 = vpack.c.b16 %v4936, %v4930
  %v6593 = vpack.c.b16 %v4943, %v4937
  %v6594 = vpack.c.b16 %v4944, %v4938
  %v6595 = vpack.c.b16 %v4945, %v4939
  %v6596 = vpack.c.b16 %v4946, %v4940
  %v6597 = vpack.c.b16 %v4947, %v4941
  %v6598 = vpack.c.b16 %v4948, %v4942
  %v6599 = vpack.c.b16 %v4955, %v4949
  %v6600 = vpack.c.b16 %v4956, %v4950
  %v6601 = vpack.c.b16 %v4957, %v4951
  %v6602 = vpack.c.b16 %v4958, %v4952
  %v6603 = vpack.c.b16 %v4959, %v4953
  %v6604 = vpack.c.b16 %v4960, %v4954
  %v6605 = vpack.c.b16 %v4967, %v4961
  %v6606 = vpack.c.b16 %v4968, %v4962
  %v6607 = vpack.c.b16 %v4969, %v4963
  %v6608 = vpack.c.b16 %v4970, %v4964
  %v6609 = vpack.c.b16 %v4971, %v4965
  %v6610 = vpack.c.b16 %v4972, %v4966
  %v6611 = vpack.c.b16 %v4979, %v4973
  %v6612 = vpack.c.b16 %v4980, %v4974
  %v6613 = vpack.c.b16 %v4981, %v4975
  %v6614 = vpack.c.b16 %v4982, %v4976
  %v6615 = vpack.c.b16 %v4983, %v4977
  %v6616 = vpack.c.b16 %v4984, %v4978
  %v6617 = vpack.c.b16 %v4991, %v4985
  %v6618 = vpack.c.b16 %v4992, %v4986
  %v6619 = vpack.c.b16 %v4993, %v4987
  %v6620 = vpack.c.b16 %v4994, %v4988
  %v6621 = vpack.c.b16 %v4995, %v4989
  %v6622 = vpack.c.b16 %v4996, %v4990
  %v6623 = vpack.c.b16 %v5003, %v4997
  %v6624 = vpack.c.b16 %v5004, %v4998
  %v6625 = vpack.c.b16 %v5005, %v4999
  %v6626 = vpack.c.b16 %v5006, %v5000
  %v6627 = vpack.c.b16 %v5007, %v5001
  %v6628 = vpack.c.b16 %v5008, %v5002
  %v6629 = vpack.c.b16 %v5015, %v5009
  %v6630 = vpack.c.b16 %v5016, %v5010
  %v6631 = vpack.c.b16 %v5017, %v5011
  %v6632 = vpack.c.b16 %v5018, %v5012
  %v6633 = vpack.c.b16 %v5019, %v5013
  %v6634 = vpack.c.b16 %v5020, %v5014
  %v6635 = vpack.c.b16 %v5027, %v5021
  %v6636 = vpack.c.b16 %v5028, %v5022
  %v6637 = vpack.c.b16 %v5029, %v5023
  %v6638 = vpack.c.b16 %v5030, %v5024
  %v6639 = vpack.c.b16 %v5031, %v5025
  %v6640 = vpack.c.b16 %v5032, %v5026
  %v6641 = vpack.c.b16 %v5039, %v5033
  %v6642 = vpack.c.b16 %v5040, %v5034
  %v6643 = vpack.c.b16 %v5041, %v5035
  %v6644 = vpack.c.b16 %v5042, %v5036
  %v6645 = vpack.c.b16 %v5043, %v5037
  %v6646 = vpack.c.b16 %v5044, %v5038
  %v6647 = vpack.c.b16 %v5051, %v5045
  %v6648 = vpack.c.b16 %v5052, %v5046
  %v6649 = vpack.c.b16 %v5053, %v5047
  %v6650 = vpack.c.b16 %v5054, %v5048
  %v6651 = vpack.c.b16 %v5055, %v5049
  %v6652 = vpack.c.b16 %v5056, %v5050
  %v6653 = vpack.c.b16 %v5063, %v5057
  %v6654 = vpack.c.b16 %v5064, %v5058
  %v6655 = vpack.c.b16 %v5065, %v5059
  %v6656 = vpack.c.b16 %v5066, %v5060
  %v6657 = vpack.c.b16 %v5067, %v5061
  %v6658 = vpack.c.b16 %v5068, %v5062
  %v6659 = vpack.c.b16 %v5075, %v5069
  %v6660 = vpack.c.b16 %v5076, %v5070
  %v6661 = vpack.c.b16 %v5077, %v5071
  %v6662 = vpack.c.b16 %v5078, %v5072
  %v6663 = vpack.c.b16 %v5079, %v5073
  %v6664 = vpack.c.b16 %v5080, %v5074
  %v6665 = vpack.c.b16 %v5087, %v5081
  %v6666 = vpack.c.b16 %v5088, %v5082
  %v6667 = vpack.c.b16 %v5089, %v5083
  %v6668 = vpack.c.b16 %v5090, %v5084
  %v6669 = vpack.c.b16 %v5091, %v5085
  %v6670 = vpack.c.b16 %v5092, %v5086
  %v6671 = vpack.c.b16 %v5099, %v5093
  %v6672 = vpack.c.b16 %v5100, %v5094
  %v6673 = vpack.c.b16 %v5101, %v5095
  %v6674 = vpack.c.b16 %v5102, %v5096
  %v6675 = vpack.c.b16 %v5103, %v5097
  %v6676 = vpack.c.b16 %v5104, %v5098
  %v6677 = vpack.c.b16 %v5111, %v5105
  %v6678 = vpack.c.b16 %v5112, %v5106
  %v6679 = vpack.c.b16 %v5113, %v5107
  %v6680 = vpack.c.b16 %v5114, %v5108
  %v6681 = vpack.c.b16 %v5115, %v5109
  %v6682 = vpack.c.b16 %v5116, %v5110
  %v6683 = vpack.c.b16 %v5123, %v5117
  %v6684 = vpack.c.b16 %v5124, %v5118
  %v6685 = vpack.c.b16 %v5125, %v5119
  %v6686 = vpack.c.b16 %v5126, %v5120
  %v6687 = vpack.c.b16 %v5127, %v5121
  %v6688 = vpack.c.b16 %v5128, %v5122
  %v6689 = vpack.c.b16 %v5135, %v5129
  %v6690 = vpack.c.b16 %v5136, %v5130
  %v6691 = vpack.c.b16 %v5137, %v5131
  %v6692 = vpack.c.b16 %v5138, %v5132
  %v6693 = vpack.c.b16 %v5139, %v5133
  %v6694 = vpack.c.b16 %v5140, %v5134
  %v6695 = vpack.c.b16 %v5147, %v5141
  %v6696 = vpack.c.b16 %v5148, %v5142
  %v6697 = vpack.c.b16 %v5149, %v5143
  %v6698 = vpack.c.b16 %v5150, %v5144
  %v6699 = vpack.c.b16 %v5151, %v5145
  %v6700 = vpack.c.b16 %v5152, %v5146
  %v6701 = vpack.c.b16 %v5159, %v5153
  %v6702 = vpack.c.b16 %v5160, %v5154
  %v6703 = vpack.c.b16 %v5161, %v5155
  %v6704 = vpack.c.b16 %v5162, %v5156
  %v6705 = vpack.c.b16 %v5163, %v5157
  %v6706 = vpack.c.b16 %v5164, %v5158
  %v6707 = vpack.c.b16 %v5171, %v5165
  %v6708 = vpack.c.b16 %v5172, %v5166
  %v6709 = vpack.c.b16 %v5173, %v5167
  %v6710 = vpack.c.b16 %v5174, %v5168
  %v6711 = vpack.c.b16 %v5175, %v5169
  %v6712 = vpack.c.b16 %v5176, %v5170
  %v6713 = vpack.c.b16 %v5183, %v5177
  %v6714 = vpack.c.b16 %v5184, %v5178
  %v6715 = vpack.c.b16 %v5185, %v5179
  %v6716 = vpack.c.b16 %v5186, %v5180
  %v6717 = vpack.c.b16 %v5187, %v5181
  %v6718 = vpack.c.b16 %v5188, %v5182
  %v6719 = vpack.c.b16 %v5195, %v5189
  %v6720 = vpack.c.b16 %v5196, %v5190
  %v6721 = vpack.c.b16 %v5197, %v5191
  %v6722 = vpack.c.b16 %v5198, %v5192
  %v6723 = vpack.c.b16 %v5199, %v5193
  %v6724 = vpack.c.b16 %v5200, %v5194
  %v6725 = vpack.c.b16 %v5207, %v5201
  %v6726 = vpack.c.b16 %v5208, %v5202
  %v6727 = vpack.c.b16 %v5209, %v5203
  %v6728 = vpack.c.b16 %v5210, %v5204
  %v6729 = vpack.c.b16 %v5211, %v5205
  %v6730 = vpack.c.b16 %v5212, %v5206
  %v6731 = vpack.c.b16 %v5219, %v5213
  %v6732 = vpack.c.b16 %v5220, %v5214
  %v6733 = vpack.c.b16 %v5221, %v5215
  %v6734 = vpack.c.b16 %v5222, %v5216
  %v6735 = vpack.c.b16 %v5223, %v5217
  %v6736 = vpack.c.b16 %v5224, %v5218
  %v6737 = vpack.c.b16 %v5231, %v5225
  %v6738 = vpack.c.b16 %v5232, %v5226
  %v6739 = vpack.c.b16 %v5233, %v5227
  %v6740 = vpack.c.b16 %v5234, %v5228
  %v6741 = vpack.c.b16 %v5235, %v5229
  %v6742 = vpack.c.b16 %v5236, %v5230
  %v6743 = vpack.c.b16 %v5243, %v5237
  %v6744 = vpack.c.b16 %v5244, %v5238
  %v6745 = vpack.c.b16 %v5245, %v5239
  %v6746 = vpack.c.b16 %v5246, %v5240
  %v6747 = vpack.c.b16 %v5247, %v5241
  %v6748 = vpack.c.b16 %v5248, %v5242
  %v6749 = vpack.c.b16 %v5255, %v5249
  %v6750 = vpack.c.b16 %v5256, %v5250
  %v6751 = vpack.c.b16 %v5257, %v5251
  %v6752 = vpack.c.b16 %v5258, %v5252
  %v6753 = vpack.c.b16 %v5259, %v5253
  %v6754 = vpack.c.b16 %v5260, %v5254
  %v6755 = vpack.c.b16 %v5267, %v5261
  %v6756 = vpack.c.b16 %v5268, %v5262
  %v6757 = vpack.c.b16 %v5269, %v5263
  %v6758 = vpack.c.b16 %v5270, %v5264
  %v6759 = vpack.c.b16 %v5271, %v5265
  %v6760 = vpack.c.b16 %v5272, %v5266
  %v6761 = vpack.c.b16 %v5279, %v5273
  %v6762 = vpack.c.b16 %v5280, %v5274
  %v6763 = vpack.c.b16 %v5281, %v5275
  %v6764 = vpack.c.b16 %v5282, %v5276
  %v6765 = vpack.c.b16 %v5283, %v5277
  %v6766 = vpack.c.b16 %v5284, %v5278
  %v6767 = vpack.c.b16 %v5291, %v5285
  %v6768 = vpack.c.b16 %v5292, %v5286
  %v6769 = vpack.c.b16 %v5293, %v5287
  %v6770 = vpack.c.b16 %v5294, %v5288
  %v6771 = vpack.c.b16 %v5295, %v5289
  %v6772 = vpack.c.b16 %v5296, %v5290
  %v6773 = vpack.c.b16 %v5303, %v5297
  %v6774 = vpack.c.b16 %v5304, %v5298
  %v6775 = vpack.c.b16 %v5305, %v5299
  %v6776 = vpack.c.b16 %v5306, %v5300
  %v6777 = vpack.c.b16 %v5307, %v5301
  %v6778 = vpack.c.b16 %v5308, %v5302
  %v6779 = vpack.c.b16 %v5315, %v5309
  %v6780 = vpack.c.b16 %v5316, %v5310
  %v6781 = vpack.c.b16 %v5317, %v5311
  %v6782 = vpack.c.b16 %v5318, %v5312
  %v6783 = vpack.c.b16 %v5319, %v5313
  %v6784 = vpack.c.b16 %v5320, %v5314
  %v6785 = vpack.c.b16 %v5327, %v5321
  %v6786 = vpack.c.b16 %v5328, %v5322
  %v6787 = vpack.c.b16 %v5329, %v5323
  %v6788 = vpack.c.b16 %v5330, %v5324
  %v6789 = vpack.c.b16 %v5331, %v5325
  %v6790 = vpack.c.b16 %v5332, %v5326
  %v6791 = vpack.c.b16 %v5339, %v5333
  %v6792 = vpack.c.b16 %v5340, %v5334
  %v6793 = vpack.c.b16 %v5341, %v5335
  %v6794 = vpack.c.b16 %v5342, %v5336
  %v6795 = vpack.c.b16 %v5343, %v5337
  %v6796 = vpack.c.b16 %v5344, %v5338
  %v6797 = vpack.c.b16 %v5351, %v5345
  %v6798 = vpack.c.b16 %v5352, %v5346
  %v6799 = vpack.c.b16 %v5353, %v5347
  %v6800 = vpack.c.b16 %v5354, %v5348
  %v6801 = vpack.c.b16 %v5355, %v5349
  %v6802 = vpack.c.b16 %v5356, %v5350
  %v6803 = vpack.c.b16 %v5363, %v5357
  %v6804 = vpack.c.b16 %v5364, %v5358
  %v6805 = vpack.c.b16 %v5365, %v5359
  %v6806 = vpack.c.b16 %v5366, %v5360
  %v6807 = vpack.c.b16 %v5367, %v5361
  %v6808 = vpack.c.b16 %v5368, %v5362
  %v6809 = vpack.c.b16 %v5375, %v5369
  %v6810 = vpack.c.b16 %v5376, %v5370
  %v6811 = vpack.c.b16 %v5377, %v5371
  %v6812 = vpack.c.b16 %v5378, %v5372
  %v6813 = vpack.c.b16 %v5379, %v5373
  %v6814 = vpack.c.b16 %v5380, %v5374
  %v6815 = vpack.c.b16 %v5387, %v5381
  %v6816 = vpack.c.b16 %v5388, %v5382
  %v6817 = vpack.c.b16 %v5389, %v5383
  %v6818 = vpack.c.b16 %v5390, %v5384
  %v6819 = vpack.c.b16 %v5391, %v5385
  %v6820 = vpack.c.b16 %v5392, %v5386
  %v6821 = vpack.c.b16 %v5399, %v5393
  %v6822 = vpack.c.b16 %v5400, %v5394
  %v6823 = vpack.c.b16 %v5401, %v5395
  %v6824 = vpack.c.b16 %v5402, %v5396
  %v6825 = vpack.c.b16 %v5403, %v5397
  %v6826 = vpack.c.b16 %v5404, %v5398
  %v6827 = vpack.c.b16 %v5411, %v5405
  %v6828 = vpack.c.b16 %v5412, %v5406
  %v6829 = vpack.c.b16 %v5413, %v5407
  %v6830 = vpack.c.b16 %v5414, %v5408
  %v6831 = vpack.c.b16 %v5415, %v5409
  %v6832 = vpack.c.b16 %v5416, %v5410
  %v6833 = vpack.c.b16 %v5423, %v5417
  %v6834 = vpack.c.b16 %v5424, %v5418
  %v6835 = vpack.c.b16 %v5425, %v5419
  %v6836 = vpack.c.b16 %v5426, %v5420
  %v6837 = vpack.c.b16 %v5427, %v5421
  %v6838 = vpack.c.b16 %v5428, %v5422
  %v6839 = vpack.c.b16 %v5435, %v5429
  %v6840 = vpack.c.b16 %v5436, %v5430
  %v6841 = vpack.c.b16 %v5437, %v5431
  %v6842 = vpack.c.b16 %v5438, %v5432
  %v6843 = vpack.c.b16 %v5439, %v5433
  %v6844 = vpack.c.b16 %v5440, %v5434
  %v6845 = vpack.c.b16 %v5447, %v5441
  %v6846 = vpack.c.b16 %v5448, %v5442
  %v6847 = vpack.c.b16 %v5449, %v5443
  %v6848 = vpack.c.b16 %v5450, %v5444
  %v6849 = vpack.c.b16 %v5451, %v5445
  %v6850 = vpack.c.b16 %v5452, %v5446
  %v6851 = vpack.c.b16 %v5459, %v5453
  %v6852 = vpack.c.b16 %v5460, %v5454
  %v6853 = vpack.c.b16 %v5461, %v5455
  %v6854 = vpack.c.b16 %v5462, %v5456
  %v6855 = vpack.c.b16 %v5463, %v5457
  %v6856 = vpack.c.b16 %v5464, %v5458
  %v6857 = vpack.c.b16 %v5471, %v5465
  %v6858 = vpack.c.b16 %v5472, %v5466
  %v6859 = vpack.c.b16 %v5473, %v5467
  %v6860 = vpack.c.b16 %v5474, %v5468
  %v6861 = vpack.c.b16 %v5475, %v5469
  %v6862 = vpack.c.b16 %v5476, %v5470
  %v6863 = vpack.c.b16 %v5483, %v5477
  %v6864 = vpack.c.b16 %v5484, %v5478
  %v6865 = vpack.c.b16 %v5485, %v5479
  %v6866 = vpack.c.b16 %v5486, %v5480
  %v6867 = vpack.c.b16 %v5487, %v5481
  %v6868 = vpack.c.b16 %v5488, %v5482
  %v6869 = vpack.c.b16 %v5495, %v5489
  %v6870 = vpack.c.b16 %v5496, %v5490
  %v6871 = vpack.c.b16 %v5497, %v5491
  %v6872 = vpack.c.b16 %v5498, %v5492
  %v6873 = vpack.c.b16 %v5499, %v5493
  %v6874 = vpack.c.b16 %v5500, %v5494
  %v6875 = vpack.c.b16 %v5507, %v5501
  %v6876 = vpack.c.b16 %v5508, %v5502
  %v6877 = vpack.c.b16 %v5509, %v5503
  %v6878 = vpack.c.b16 %v5510, %v5504
  %v6879 = vpack.c.b16 %v5511, %v5505
  %v6880 = vpack.c.b16 %v5512, %v5506
  %v6881 = vpack.c.b16 %v5519, %v5513
  %v6882 = vpack.c.b16 %v5520, %v5514
  %v6883 = vpack.c.b16 %v5521, %v5515
  %v6884 = vpack.c.b16 %v5522, %v5516
  %v6885 = vpack.c.b16 %v5523, %v5517
  %v6886 = vpack.c.b16 %v5524, %v5518
  %v6887 = vpack.c.b16 %v5531, %v5525
  %v6888 = vpack.c.b16 %v5532, %v5526
  %v6889 = vpack.c.b16 %v5533, %v5527
  %v6890 = vpack.c.b16 %v5534, %v5528
  %v6891 = vpack.c.b16 %v5535, %v5529
  %v6892 = vpack.c.b16 %v5536, %v5530
  %v6893 = vpack.c.b16 %v5543, %v5537
  %v6894 = vpack.c.b16 %v5544, %v5538
  %v6895 = vpack.c.b16 %v5545, %v5539
  %v6896 = vpack.c.b16 %v5546, %v5540
  %v6897 = vpack.c.b16 %v5547, %v5541
  %v6898 = vpack.c.b16 %v5548, %v5542
  %v6899 = vpack.c.b16 %v5555, %v5549
  %v6900 = vpack.c.b16 %v5556, %v5550
  %v6901 = vpack.c.b16 %v5557, %v5551
  %v6902 = vpack.c.b16 %v5558, %v5552
  %v6903 = vpack.c.b16 %v5559, %v5553
  %v6904 = vpack.c.b16 %v5560, %v5554
  %v6905 = vpack.c.b16 %v5567, %v5561
  %v6906 = vpack.c.b16 %v5568, %v5562
  %v6907 = vpack.c.b16 %v5569, %v5563
  %v6908 = vpack.c.b16 %v5570, %v5564
  %v6909 = vpack.c.b16 %v5571, %v5565
  %v6910 = vpack.c.b16 %v5572, %v5566
  %v6911 = vpack.c.b16 %v5579, %v5573
  %v6912 = vpack.c.b16 %v5580, %v5574
  %v6913 = vpack.c.b16 %v5581, %v5575
  %v6914 = vpack.c.b16 %v5582, %v5576
  %v6915 = vpack.c.b16 %v5583, %v5577
  %v6916 = vpack.c.b16 %v5584, %v5578
  %v6917 = vpack.c.b16 %v5591, %v5585
  %v6918 = vpack.c.b16 %v5592, %v5586
  %v6919 = vpack.c.b16 %v5593, %v5587
  %v6920 = vpack.c.b16 %v5594, %v5588
  %v6921 = vpack.c.b16 %v5595, %v5589
  %v6922 = vpack.c.b16 %v5596, %v5590
  %v6923 = vpack.c.b16 %v5603, %v5597
  %v6924 = vpack.c.b16 %v5604, %v5598
  %v6925 = vpack.c.b16 %v5605, %v5599
  %v6926 = vpack.c.b16 %v5606, %v5600
  %v6927 = vpack.c.b16 %v5607, %v5601
  %v6928 = vpack.c.b16 %v5608, %v5602
  %v6929 = vpack.c.b16 %v5615, %v5609
  %v6930 = vpack.c.b16 %v5616, %v5610
  %v6931 = vpack.c.b16 %v5617, %v5611
  %v6932 = vpack.c.b16 %v5618, %v5612
  %v6933 = vpack.c.b16 %v5619, %v5613
  %v6934 = vpack.c.b16 %v5620, %v5614
  %v6935 = vpack.c.b16 %v5627, %v5621
  %v6936 = vpack.c.b16 %v5628, %v5622
  %v6937 = vpack.c.b16 %v5629, %v5623
  %v6938 = vpack.c.b16 %v5630, %v5624
  %v6939 = vpack.c.b16 %v5631, %v5625
  %v6940 = vpack.c.b16 %v5632, %v5626
  %v6941 = vpack.c.b16 %v5639, %v5633
  %v6942 = vpack.c.b16 %v5640, %v5634
  %v6943 = vpack.c.b16 %v5641, %v5635
  %v6944 = vpack.c.b16 %v5642, %v5636
  %v6945 = vpack.c.b16 %v5643, %v5637
  %v6946 = vpack.c.b16 %v5644, %v5638
  %v6947 = vpack.c.b16 %v5651, %v5645
  %v6948 = vpack.c.b16 %v5652, %v5646
  %v6949 = vpack.c.b16 %v5653, %v5647
  %v6950 = vpack.c.b16 %v5654, %v5648
  %v6951 = vpack.c.b16 %v5655, %v5649
  %v6952 = vpack.c.b16 %v5656, %v5650
  %v6953 = vpack.c.b16 %v5663, %v5657
  %v6954 = vpack.c.b16 %v5664, %v5658
  %v6955 = vpack.c.b16 %v5665, %v5659
  %v6956 = vpack.c.b16 %v5666, %v5660
  %v6957 = vpack.c.b16 %v5667, %v5661
  %v6958 = vpack.c.b16 %v5668, %v5662
  %v6959 = vpack.c.b16 %v5675, %v5669
  %v6960 = vpack.c.b16 %v5676, %v5670
  %v6961 = vpack.c.b16 %v5677, %v5671
  %v6962 = vpack.c.b16 %v5678, %v5672
  %v6963 = vpack.c.b16 %v5679, %v5673
  %v6964 = vpack.c.b16 %v5680, %v5674
  %v6965 = vpack.c.b16 %v5687, %v5681
  %v6966 = vpack.c.b16 %v5688, %v5682
  %v6967 = vpack.c.b16 %v5689, %v5683
  %v6968 = vpack.c.b16 %v5690, %v5684
  %v6969 = vpack.c.b16 %v5691, %v5685
  %v6970 = vpack.c.b16 %v5692, %v5686
  %v6971 = vpack.c.b16 %v5699, %v5693
  %v6972 = vpack.c.b16 %v5700, %v5694
  %v6973 = vpack.c.b16 %v5701, %v5695
  %v6974 = vpack.c.b16 %v5702, %v5696
  %v6975 = vpack.c.b16 %v5703, %v5697
  %v6976 = vpack.c.b16 %v5704, %v5698
  %v6977 = vpack.c.b16 %v5711, %v5705
  %v6978 = vpack.c.b16 %v5712, %v5706
  %v6979 = vpack.c.b16 %v5713, %v5707
  %v6980 = vpack.c.b16 %v5714, %v5708
  %v6981 = vpack.c.b16 %v5715, %v5709
  %v6982 = vpack.c.b16 %v5716, %v5710
  %v6983 = vpack.c.b16 %v5723, %v5717
  %v6984 = vpack.c.b16 %v5724, %v5718
  %v6985 = vpack.c.b16 %v5725, %v5719
  %v6986 = vpack.c.b16 %v5726, %v5720
  %v6987 = vpack.c.b16 %v5727, %v5721
  %v6988 = vpack.c.b16 %v5728, %v5722
  %v6989 = vpack.c.b16 %v5735, %v5729
  %v6990 = vpack.c.b16 %v5736, %v5730
  %v6991 = vpack.c.b16 %v5737, %v5731
  %v6992 = vpack.c.b16 %v5738, %v5732
  %v6993 = vpack.c.b16 %v5739, %v5733
  %v6994 = vpack.c.b16 %v5740, %v5734
  %v6995 = vpack.c.b16 %v5747, %v5741
  %v6996 = vpack.c.b16 %v5748, %v5742
  %v6997 = vpack.c.b16 %v5749, %v5743
  %v6998 = vpack.c.b16 %v5750, %v5744
  %v6999 = vpack.c.b16 %v5751, %v5745
  %v7000 = vpack.c.b16 %v5752, %v5746
  %v7001 = vpack.c.b16 %v5759, %v5753
  %v7002 = vpack.c.b16 %v5760, %v5754
  %v7003 = vpack.c.b16 %v5761, %v5755
  %v7004 = vpack.c.b16 %v5762, %v5756
  %v7005 = vpack.c.b16 %v5763, %v5757
  %v7006 = vpack.c.b16 %v5764, %v5758
  %v7007 = vpack.c.b16 %v5771, %v5765
  %v7008 = vpack.c.b16 %v5772, %v5766
  %v7009 = vpack.c.b16 %v5773, %v5767
  %v7010 = vpack.c.b16 %v5774, %v5768
  %v7011 = vpack.c.b16 %v5775, %v5769
  %v7012 = vpack.c.b16 %v5776, %v5770
  %v7013 = vpack.c.b16 %v5783, %v5777
  %v7014 = vpack.c.b16 %v5784, %v5778
  %v7015 = vpack.c.b16 %v5785, %v5779
  %v7016 = vpack.c.b16 %v5786, %v5780
  %v7017 = vpack.c.b16 %v5787, %v5781
  %v7018 = vpack.c.b16 %v5788, %v5782
  %v7019 = vpack.c.b16 %v5795, %v5789
  %v7020 = vpack.c.b16 %v5796, %v5790
  %v7021 = vpack.c.b16 %v5797, %v5791
  %v7022 = vpack.c.b16 %v5798, %v5792
  %v7023 = vpack.c.b16 %v5799, %v5793
  %v7024 = vpack.c.b16 %v5800, %v5794
  %v7025 = vpack.c.b16 %v5807, %v5801
  %v7026 = vpack.c.b16 %v5808, %v5802
  %v7027 = vpack.c.b16 %v5809, %v5803
  %v7028 = vpack.c.b16 %v5810, %v5804
  %v7029 = vpack.c.b16 %v5811, %v5805
  %v7030 = vpack.c.b16 %v5812, %v5806
  %v7031 = vpack.c.b16 %v5819, %v5813
  %v7032 = vpack.c.b16 %v5820, %v5814
  %v7033 = vpack.c.b16 %v5821, %v5815
  %v7034 = vpack.c.b16 %v5822, %v5816
  %v7035 = vpack.c.b16 %v5823, %v5817
  %v7036 = vpack.c.b16 %v5824, %v5818
  %v7037 = vpack.c.b16 %v5831, %v5825
  %v7038 = vpack.c.b16 %v5832, %v5826
  %v7039 = vpack.c.b16 %v5833, %v5827
  %v7040 = vpack.c.b16 %v5834, %v5828
  %v7041 = vpack.c.b16 %v5835, %v5829
  %v7042 = vpack.c.b16 %v5836, %v5830
  %v7043 = vpack.c.b16 %v5843, %v5837
  %v7044 = vpack.c.b16 %v5844, %v5838
  %v7045 = vpack.c.b16 %v5845, %v5839
  %v7046 = vpack.c.b16 %v5846, %v5840
  %v7047 = vpack.c.b16 %v5847, %v5841
  %v7048 = vpack.c.b16 %v5848, %v5842
  %8249 = vmatpush.bf16.msra.mxu0 %v5891
  %8250 = vmatpush.bf16.msra.mxu0 %v5885
  %8251 = vmatpush.bf16.msra.mxu0 %v5879
  %8252 = vmatpush.bf16.msra.mxu0 %v5873
  %8253 = vmatpush.bf16.msra.mxu0 %v5867
  %8254 = vmatpush.bf16.msra.mxu0 %v5861
  %8255 = vmatpush.bf16.msra.mxu0 %v5855
  %8256 = vmatpush.bf16.msra.mxu0 %v5849
  %8257 = vmatmul.bf16.gmra.mxu0 %v2199
  %v8258 = vpop.f32.mrf.mxu0
  %v8259 = vadd.f32 %v2111, %v8258
  %v8260 = vpop.f32.mrf.mxu0
  %v8261 = vadd.f32 %v2111, %v8260
  %8262 = vdwg.mxu0
  %8263 = vmatpush.bf16.msra.mxu0 %v5939
  %8264 = vmatpush.bf16.msra.mxu0 %v5933
  %8265 = vmatpush.bf16.msra.mxu0 %v5927
  %8266 = vmatpush.bf16.msra.mxu0 %v5921
  %8267 = vmatpush.bf16.msra.mxu0 %v5915
  %8268 = vmatpush.bf16.msra.mxu0 %v5909
  %8269 = vmatpush.bf16.msra.mxu0 %v5903
  %8270 = vmatpush.bf16.msra.mxu0 %v5897
  %8271 = vmatmul.bf16.gmra.mxu0 %v2200
  %v8272 = vpop.f32.mrf.mxu0
  %v8273 = vadd.f32 %v8259, %v8272
  %v8274 = vpop.f32.mrf.mxu0
  %v8275 = vadd.f32 %v8261, %v8274
  %8276 = vdwg.mxu0
  %8277 = vmatpush.bf16.msra.mxu0 %v5987
  %8278 = vmatpush.bf16.msra.mxu0 %v5981
  %8279 = vmatpush.bf16.msra.mxu0 %v5975
  %8280 = vmatpush.bf16.msra.mxu0 %v5969
  %8281 = vmatpush.bf16.msra.mxu0 %v5963
  %8282 = vmatpush.bf16.msra.mxu0 %v5957
  %8283 = vmatpush.bf16.msra.mxu0 %v5951
  %8284 = vmatpush.bf16.msra.mxu0 %v5945
  %8285 = vmatmul.bf16.gmra.mxu0 %v2201
  %v8286 = vpop.f32.mrf.mxu0
  %v8287 = vadd.f32 %v8273, %v8286
  %v8288 = vpop.f32.mrf.mxu0
  %v8289 = vadd.f32 %v8275, %v8288
  %8290 = vdwg.mxu0
  %8291 = vmatpush.bf16.msra.mxu0 %v6035
  %8292 = vmatpush.bf16.msra.mxu0 %v6029
  %8293 = vmatpush.bf16.msra.mxu0 %v6023
  %8294 = vmatpush.bf16.msra.mxu0 %v6017
  %8295 = vmatpush.bf16.msra.mxu0 %v6011
  %8296 = vmatpush.bf16.msra.mxu0 %v6005
  %8297 = vmatpush.bf16.msra.mxu0 %v5999
  %8298 = vmatpush.bf16.msra.mxu0 %v5993
  %8299 = vmatmul.bf16.gmra.mxu0 %v2202
  %v8300 = vpop.f32.mrf.mxu0
  %v8301 = vadd.f32 %v8287, %v8300
  %v8302 = vpop.f32.mrf.mxu0
  %v8303 = vadd.f32 %v8289, %v8302
  %8304 = vdwg.mxu0
  %8305 = vmatpush.bf16.msra.mxu0 %v6083
  %8306 = vmatpush.bf16.msra.mxu0 %v6077
  %8307 = vmatpush.bf16.msra.mxu0 %v6071
  %8308 = vmatpush.bf16.msra.mxu0 %v6065
  %8309 = vmatpush.bf16.msra.mxu0 %v6059
  %8310 = vmatpush.bf16.msra.mxu0 %v6053
  %8311 = vmatpush.bf16.msra.mxu0 %v6047
  %8312 = vmatpush.bf16.msra.mxu0 %v6041
  %8313 = vmatmul.bf16.gmra.mxu0 %v2203
  %v8314 = vpop.f32.mrf.mxu0
  %v8315 = vadd.f32 %v8301, %v8314
  %v8316 = vpop.f32.mrf.mxu0
  %v8317 = vadd.f32 %v8303, %v8316
  %8318 = vdwg.mxu0
  %8319 = vmatpush.bf16.msra.mxu0 %v6131
  %8320 = vmatpush.bf16.msra.mxu0 %v6125
  %8321 = vmatpush.bf16.msra.mxu0 %v6119
  %8322 = vmatpush.bf16.msra.mxu0 %v6113
  %8323 = vmatpush.bf16.msra.mxu0 %v6107
  %8324 = vmatpush.bf16.msra.mxu0 %v6101
  %8325 = vmatpush.bf16.msra.mxu0 %v6095
  %8326 = vmatpush.bf16.msra.mxu0 %v6089
  %8327 = vmatmul.bf16.gmra.mxu0 %v2204
  %v8328 = vpop.f32.mrf.mxu0
  %v8329 = vadd.f32 %v8315, %v8328
  %v8330 = vpop.f32.mrf.mxu0
  %v8331 = vadd.f32 %v8317, %v8330
  %8332 = vdwg.mxu0
  %8333 = vmatpush.bf16.msra.mxu0 %v6179
  %8334 = vmatpush.bf16.msra.mxu0 %v6173
  %8335 = vmatpush.bf16.msra.mxu0 %v6167
  %8336 = vmatpush.bf16.msra.mxu0 %v6161
  %8337 = vmatpush.bf16.msra.mxu0 %v6155
  %8338 = vmatpush.bf16.msra.mxu0 %v6149
  %8339 = vmatpush.bf16.msra.mxu0 %v6143
  %8340 = vmatpush.bf16.msra.mxu0 %v6137
  %8341 = vmatmul.bf16.gmra.mxu0 %v2205
  %v8342 = vpop.f32.mrf.mxu0
  %v8343 = vadd.f32 %v8329, %v8342
  %v8344 = vpop.f32.mrf.mxu0
  %v8345 = vadd.f32 %v8331, %v8344
  %8346 = vdwg.mxu0
  %8347 = vmatpush.bf16.msra.mxu0 %v6227
  %8348 = vmatpush.bf16.msra.mxu0 %v6221
  %8349 = vmatpush.bf16.msra.mxu0 %v6215
  %8350 = vmatpush.bf16.msra.mxu0 %v6209
  %8351 = vmatpush.bf16.msra.mxu0 %v6203
  %8352 = vmatpush.bf16.msra.mxu0 %v6197
  %8353 = vmatpush.bf16.msra.mxu0 %v6191
  %8354 = vmatpush.bf16.msra.mxu0 %v6185
  %8355 = vmatmul.bf16.gmra.mxu0 %v2206
  %v8356 = vpop.f32.mrf.mxu0
  %v8357 = vadd.f32 %v8343, %v8356
  %v8358 = vpop.f32.mrf.mxu0
  %v8359 = vadd.f32 %v8345, %v8358
  %8360 = vdwg.mxu0
  %8361 = vmatpush.bf16.msra.mxu0 %v6275
  %8362 = vmatpush.bf16.msra.mxu0 %v6269
  %8363 = vmatpush.bf16.msra.mxu0 %v6263
  %8364 = vmatpush.bf16.msra.mxu0 %v6257
  %8365 = vmatpush.bf16.msra.mxu0 %v6251
  %8366 = vmatpush.bf16.msra.mxu0 %v6245
  %8367 = vmatpush.bf16.msra.mxu0 %v6239
  %8368 = vmatpush.bf16.msra.mxu0 %v6233
  %8369 = vmatmul.bf16.gmra.mxu0 %v2207
  %v8370 = vpop.f32.mrf.mxu0
  %v8371 = vadd.f32 %v8357, %v8370
  %v8372 = vpop.f32.mrf.mxu0
  %v8373 = vadd.f32 %v8359, %v8372
  %8374 = vdwg.mxu0
  %8375 = vmatpush.bf16.msra.mxu0 %v6323
  %8376 = vmatpush.bf16.msra.mxu0 %v6317
  %8377 = vmatpush.bf16.msra.mxu0 %v6311
  %8378 = vmatpush.bf16.msra.mxu0 %v6305
  %8379 = vmatpush.bf16.msra.mxu0 %v6299
  %8380 = vmatpush.bf16.msra.mxu0 %v6293
  %8381 = vmatpush.bf16.msra.mxu0 %v6287
  %8382 = vmatpush.bf16.msra.mxu0 %v6281
  %8383 = vmatmul.bf16.gmra.mxu0 %v2208
  %v8384 = vpop.f32.mrf.mxu0
  %v8385 = vadd.f32 %v8371, %v8384
  %v8386 = vpop.f32.mrf.mxu0
  %v8387 = vadd.f32 %v8373, %v8386
  %8388 = vdwg.mxu0
  %8389 = vmatpush.bf16.msra.mxu0 %v6371
  %8390 = vmatpush.bf16.msra.mxu0 %v6365
  %8391 = vmatpush.bf16.msra.mxu0 %v6359
  %8392 = vmatpush.bf16.msra.mxu0 %v6353
  %8393 = vmatpush.bf16.msra.mxu0 %v6347
  %8394 = vmatpush.bf16.msra.mxu0 %v6341
  %8395 = vmatpush.bf16.msra.mxu0 %v6335
  %8396 = vmatpush.bf16.msra.mxu0 %v6329
  %8397 = vmatmul.bf16.gmra.mxu0 %v2209
  %v8398 = vpop.f32.mrf.mxu0
  %v8399 = vadd.f32 %v8385, %v8398
  %v8400 = vpop.f32.mrf.mxu0
  %v8401 = vadd.f32 %v8387, %v8400
  %8402 = vdwg.mxu0
  %8403 = vmatpush.bf16.msra.mxu0 %v6419
  %8404 = vmatpush.bf16.msra.mxu0 %v6413
  %8405 = vmatpush.bf16.msra.mxu0 %v6407
  %8406 = vmatpush.bf16.msra.mxu0 %v6401
  %8407 = vmatpush.bf16.msra.mxu0 %v6395
  %8408 = vmatpush.bf16.msra.mxu0 %v6389
  %8409 = vmatpush.bf16.msra.mxu0 %v6383
  %8410 = vmatpush.bf16.msra.mxu0 %v6377
  %8411 = vmatmul.bf16.gmra.mxu0 %v2210
  %v8412 = vpop.f32.mrf.mxu0
  %v8413 = vadd.f32 %v8399, %v8412
  %v8414 = vpop.f32.mrf.mxu0
  %v8415 = vadd.f32 %v8401, %v8414
  %8416 = vdwg.mxu0
  %8417 = vmatpush.bf16.msra.mxu0 %v6467
  %8418 = vmatpush.bf16.msra.mxu0 %v6461
  %8419 = vmatpush.bf16.msra.mxu0 %v6455
  %8420 = vmatpush.bf16.msra.mxu0 %v6449
  %8421 = vmatpush.bf16.msra.mxu0 %v6443
  %8422 = vmatpush.bf16.msra.mxu0 %v6437
  %8423 = vmatpush.bf16.msra.mxu0 %v6431
  %8424 = vmatpush.bf16.msra.mxu0 %v6425
  %8425 = vmatmul.bf16.gmra.mxu0 %v2211
  %v8426 = vpop.f32.mrf.mxu0
  %v8427 = vadd.f32 %v8413, %v8426
  %v8428 = vpop.f32.mrf.mxu0
  %v8429 = vadd.f32 %v8415, %v8428
  %8430 = vdwg.mxu0
  %8431 = vmatpush.bf16.msra.mxu0 %v6515
  %8432 = vmatpush.bf16.msra.mxu0 %v6509
  %8433 = vmatpush.bf16.msra.mxu0 %v6503
  %8434 = vmatpush.bf16.msra.mxu0 %v6497
  %8435 = vmatpush.bf16.msra.mxu0 %v6491
  %8436 = vmatpush.bf16.msra.mxu0 %v6485
  %8437 = vmatpush.bf16.msra.mxu0 %v6479
  %8438 = vmatpush.bf16.msra.mxu0 %v6473
  %8439 = vmatmul.bf16.gmra.mxu0 %v2212
  %v8440 = vpop.f32.mrf.mxu0
  %v8441 = vadd.f32 %v8427, %v8440
  %v8442 = vpop.f32.mrf.mxu0
  %v8443 = vadd.f32 %v8429, %v8442
  %8444 = vdwg.mxu0
  %8445 = vmatpush.bf16.msra.mxu0 %v6563
  %8446 = vmatpush.bf16.msra.mxu0 %v6557
  %8447 = vmatpush.bf16.msra.mxu0 %v6551
  %8448 = vmatpush.bf16.msra.mxu0 %v6545
  %8449 = vmatpush.bf16.msra.mxu0 %v6539
  %8450 = vmatpush.bf16.msra.mxu0 %v6533
  %8451 = vmatpush.bf16.msra.mxu0 %v6527
  %8452 = vmatpush.bf16.msra.mxu0 %v6521
  %8453 = vmatmul.bf16.gmra.mxu0 %v2213
  %v8454 = vpop.f32.mrf.mxu0
  %v8455 = vadd.f32 %v8441, %v8454
  %v8456 = vpop.f32.mrf.mxu0
  %v8457 = vadd.f32 %v8443, %v8456
  %8458 = vdwg.mxu0
  %8459 = vmatpush.bf16.msra.mxu0 %v6611
  %8460 = vmatpush.bf16.msra.mxu0 %v6605
  %8461 = vmatpush.bf16.msra.mxu0 %v6599
  %8462 = vmatpush.bf16.msra.mxu0 %v6593
  %8463 = vmatpush.bf16.msra.mxu0 %v6587
  %8464 = vmatpush.bf16.msra.mxu0 %v6581
  %8465 = vmatpush.bf16.msra.mxu0 %v6575
  %8466 = vmatpush.bf16.msra.mxu0 %v6569
  %8467 = vmatmul.bf16.gmra.mxu0 %v2214
  %v8468 = vpop.f32.mrf.mxu0
  %v8469 = vadd.f32 %v8455, %v8468
  %v8470 = vpop.f32.mrf.mxu0
  %v8471 = vadd.f32 %v8457, %v8470
  %8472 = vdwg.mxu0
  %8473 = vmatpush.bf16.msra.mxu0 %v6659
  %8474 = vmatpush.bf16.msra.mxu0 %v6653
  %8475 = vmatpush.bf16.msra.mxu0 %v6647
  %8476 = vmatpush.bf16.msra.mxu0 %v6641
  %8477 = vmatpush.bf16.msra.mxu0 %v6635
  %8478 = vmatpush.bf16.msra.mxu0 %v6629
  %8479 = vmatpush.bf16.msra.mxu0 %v6623
  %8480 = vmatpush.bf16.msra.mxu0 %v6617
  %8481 = vmatmul.bf16.gmra.mxu0 %v2215
  %v8482 = vpop.f32.mrf.mxu0
  %v8483 = vadd.f32 %v8469, %v8482
  %v8484 = vpop.f32.mrf.mxu0
  %v8485 = vadd.f32 %v8471, %v8484
  %8486 = vdwg.mxu0
  %8487 = vmatpush.bf16.msra.mxu0 %v6707
  %8488 = vmatpush.bf16.msra.mxu0 %v6701
  %8489 = vmatpush.bf16.msra.mxu0 %v6695
  %8490 = vmatpush.bf16.msra.mxu0 %v6689
  %8491 = vmatpush.bf16.msra.mxu0 %v6683
  %8492 = vmatpush.bf16.msra.mxu0 %v6677
  %8493 = vmatpush.bf16.msra.mxu0 %v6671
  %8494 = vmatpush.bf16.msra.mxu0 %v6665
  %8495 = vmatmul.bf16.gmra.mxu0 %v2216
  %v8496 = vpop.f32.mrf.mxu0
  %v8497 = vadd.f32 %v8483, %v8496
  %v8498 = vpop.f32.mrf.mxu0
  %v8499 = vadd.f32 %v8485, %v8498
  %8500 = vdwg.mxu0
  %8501 = vmatpush.bf16.msra.mxu0 %v6755
  %8502 = vmatpush.bf16.msra.mxu0 %v6749
  %8503 = vmatpush.bf16.msra.mxu0 %v6743
  %8504 = vmatpush.bf16.msra.mxu0 %v6737
  %8505 = vmatpush.bf16.msra.mxu0 %v6731
  %8506 = vmatpush.bf16.msra.mxu0 %v6725
  %8507 = vmatpush.bf16.msra.mxu0 %v6719
  %8508 = vmatpush.bf16.msra.mxu0 %v6713
  %8509 = vmatmul.bf16.gmra.mxu0 %v2217
  %v8510 = vpop.f32.mrf.mxu0
  %v8511 = vadd.f32 %v8497, %v8510
  %v8512 = vpop.f32.mrf.mxu0
  %v8513 = vadd.f32 %v8499, %v8512
  %8514 = vdwg.mxu0
  %8515 = vmatpush.bf16.msra.mxu0 %v6803
  %8516 = vmatpush.bf16.msra.mxu0 %v6797
  %8517 = vmatpush.bf16.msra.mxu0 %v6791
  %8518 = vmatpush.bf16.msra.mxu0 %v6785
  %8519 = vmatpush.bf16.msra.mxu0 %v6779
  %8520 = vmatpush.bf16.msra.mxu0 %v6773
  %8521 = vmatpush.bf16.msra.mxu0 %v6767
  %8522 = vmatpush.bf16.msra.mxu0 %v6761
  %8523 = vmatmul.bf16.gmra.mxu0 %v2218
  %v8524 = vpop.f32.mrf.mxu0
  %v8525 = vadd.f32 %v8511, %v8524
  %v8526 = vpop.f32.mrf.mxu0
  %v8527 = vadd.f32 %v8513, %v8526
  %8528 = vdwg.mxu0
  %8529 = vmatpush.bf16.msra.mxu0 %v6851
  %8530 = vmatpush.bf16.msra.mxu0 %v6845
  %8531 = vmatpush.bf16.msra.mxu0 %v6839
  %8532 = vmatpush.bf16.msra.mxu0 %v6833
  %8533 = vmatpush.bf16.msra.mxu0 %v6827
  %8534 = vmatpush.bf16.msra.mxu0 %v6821
  %8535 = vmatpush.bf16.msra.mxu0 %v6815
  %8536 = vmatpush.bf16.msra.mxu0 %v6809
  %8537 = vmatmul.bf16.gmra.mxu0 %v2219
  %v8538 = vpop.f32.mrf.mxu0
  %v8539 = vadd.f32 %v8525, %v8538
  %v8540 = vpop.f32.mrf.mxu0
  %v8541 = vadd.f32 %v8527, %v8540
  %8542 = vdwg.mxu0
  %8543 = vmatpush.bf16.msra.mxu0 %v6899
  %8544 = vmatpush.bf16.msra.mxu0 %v6893
  %8545 = vmatpush.bf16.msra.mxu0 %v6887
  %8546 = vmatpush.bf16.msra.mxu0 %v6881
  %8547 = vmatpush.bf16.msra.mxu0 %v6875
  %8548 = vmatpush.bf16.msra.mxu0 %v6869
  %8549 = vmatpush.bf16.msra.mxu0 %v6863
  %8550 = vmatpush.bf16.msra.mxu0 %v6857
  %8551 = vmatmul.bf16.gmra.mxu0 %v2220
  %v8552 = vpop.f32.mrf.mxu0
  %v8553 = vadd.f32 %v8539, %v8552
  %v8554 = vpop.f32.mrf.mxu0
  %v8555 = vadd.f32 %v8541, %v8554
  %8556 = vdwg.mxu0
  %8557 = vmatpush.bf16.msra.mxu0 %v6947
  %8558 = vmatpush.bf16.msra.mxu0 %v6941
  %8559 = vmatpush.bf16.msra.mxu0 %v6935
  %8560 = vmatpush.bf16.msra.mxu0 %v6929
  %8561 = vmatpush.bf16.msra.mxu0 %v6923
  %8562 = vmatpush.bf16.msra.mxu0 %v6917
  %8563 = vmatpush.bf16.msra.mxu0 %v6911
  %8564 = vmatpush.bf16.msra.mxu0 %v6905
  %8565 = vmatmul.bf16.gmra.mxu0 %v2221
  %v8566 = vpop.f32.mrf.mxu0
  %v8567 = vadd.f32 %v8553, %v8566
  %v8568 = vpop.f32.mrf.mxu0
  %v8569 = vadd.f32 %v8555, %v8568
  %8570 = vdwg.mxu0
  %8571 = vmatpush.bf16.msra.mxu0 %v6995
  %8572 = vmatpush.bf16.msra.mxu0 %v6989
  %8573 = vmatpush.bf16.msra.mxu0 %v6983
  %8574 = vmatpush.bf16.msra.mxu0 %v6977
  %8575 = vmatpush.bf16.msra.mxu0 %v6971
  %8576 = vmatpush.bf16.msra.mxu0 %v6965
  %8577 = vmatpush.bf16.msra.mxu0 %v6959
  %8578 = vmatpush.bf16.msra.mxu0 %v6953
  %8579 = vmatmul.bf16.gmra.mxu0 %v2222
  %v8580 = vpop.f32.mrf.mxu0
  %v8581 = vadd.f32 %v8567, %v8580
  %v8582 = vpop.f32.mrf.mxu0
  %v8583 = vadd.f32 %v8569, %v8582
  %8584 = vdwg.mxu0
  %8585 = vmatpush.bf16.msra.mxu0 %v7043
  %8586 = vmatpush.bf16.msra.mxu0 %v7037
  %8587 = vmatpush.bf16.msra.mxu0 %v7031
  %8588 = vmatpush.bf16.msra.mxu0 %v7025
  %8589 = vmatpush.bf16.msra.mxu0 %v7019
  %8590 = vmatpush.bf16.msra.mxu0 %v7013
  %8591 = vmatpush.bf16.msra.mxu0 %v7007
  %8592 = vmatpush.bf16.msra.mxu0 %v7001
  %8593 = vmatmul.bf16.gmra.mxu0 %v2223
  %v8594 = vpop.f32.mrf.mxu0
  %v8595 = vadd.f32 %v8581, %v8594
  %v8596 = vpop.f32.mrf.mxu0
  %v8597 = vadd.f32 %v8583, %v8596
  %8598 = vdwg.mxu0
  %8599 = vmatpush.bf16.msra.mxu0 %v5892
  %8600 = vmatpush.bf16.msra.mxu0 %v5886
  %8601 = vmatpush.bf16.msra.mxu0 %v5880
  %8602 = vmatpush.bf16.msra.mxu0 %v5874
  %8603 = vmatpush.bf16.msra.mxu0 %v5868
  %8604 = vmatpush.bf16.msra.mxu0 %v5862
  %8605 = vmatpush.bf16.msra.mxu0 %v5856
  %8606 = vmatpush.bf16.msra.mxu0 %v5850
  %8607 = vmatmul.bf16.gmra.mxu0 %v2199
  %v8608 = vpop.f32.mrf.mxu0
  %v8609 = vadd.f32 %v2112, %v8608
  %v8610 = vpop.f32.mrf.mxu0
  %v8611 = vadd.f32 %v2112, %v8610
  %8612 = vdwg.mxu0
  %8613 = vmatpush.bf16.msra.mxu0 %v5940
  %8614 = vmatpush.bf16.msra.mxu0 %v5934
  %8615 = vmatpush.bf16.msra.mxu0 %v5928
  %8616 = vmatpush.bf16.msra.mxu0 %v5922
  %8617 = vmatpush.bf16.msra.mxu0 %v5916
  %8618 = vmatpush.bf16.msra.mxu0 %v5910
  %8619 = vmatpush.bf16.msra.mxu0 %v5904
  %8620 = vmatpush.bf16.msra.mxu0 %v5898
  %8621 = vmatmul.bf16.gmra.mxu0 %v2200
  %v8622 = vpop.f32.mrf.mxu0
  %v8623 = vadd.f32 %v8609, %v8622
  %v8624 = vpop.f32.mrf.mxu0
  %v8625 = vadd.f32 %v8611, %v8624
  %8626 = vdwg.mxu0
  %8627 = vmatpush.bf16.msra.mxu0 %v5988
  %8628 = vmatpush.bf16.msra.mxu0 %v5982
  %8629 = vmatpush.bf16.msra.mxu0 %v5976
  %8630 = vmatpush.bf16.msra.mxu0 %v5970
  %8631 = vmatpush.bf16.msra.mxu0 %v5964
  %8632 = vmatpush.bf16.msra.mxu0 %v5958
  %8633 = vmatpush.bf16.msra.mxu0 %v5952
  %8634 = vmatpush.bf16.msra.mxu0 %v5946
  %8635 = vmatmul.bf16.gmra.mxu0 %v2201
  %v8636 = vpop.f32.mrf.mxu0
  %v8637 = vadd.f32 %v8623, %v8636
  %v8638 = vpop.f32.mrf.mxu0
  %v8639 = vadd.f32 %v8625, %v8638
  %8640 = vdwg.mxu0
  %8641 = vmatpush.bf16.msra.mxu0 %v6036
  %8642 = vmatpush.bf16.msra.mxu0 %v6030
  %8643 = vmatpush.bf16.msra.mxu0 %v6024
  %8644 = vmatpush.bf16.msra.mxu0 %v6018
  %8645 = vmatpush.bf16.msra.mxu0 %v6012
  %8646 = vmatpush.bf16.msra.mxu0 %v6006
  %8647 = vmatpush.bf16.msra.mxu0 %v6000
  %8648 = vmatpush.bf16.msra.mxu0 %v5994
  %8649 = vmatmul.bf16.gmra.mxu0 %v2202
  %v8650 = vpop.f32.mrf.mxu0
  %v8651 = vadd.f32 %v8637, %v8650
  %v8652 = vpop.f32.mrf.mxu0
  %v8653 = vadd.f32 %v8639, %v8652
  %8654 = vdwg.mxu0
  %8655 = vmatpush.bf16.msra.mxu0 %v6084
  %8656 = vmatpush.bf16.msra.mxu0 %v6078
  %8657 = vmatpush.bf16.msra.mxu0 %v6072
  %8658 = vmatpush.bf16.msra.mxu0 %v6066
  %8659 = vmatpush.bf16.msra.mxu0 %v6060
  %8660 = vmatpush.bf16.msra.mxu0 %v6054
  %8661 = vmatpush.bf16.msra.mxu0 %v6048
  %8662 = vmatpush.bf16.msra.mxu0 %v6042
  %8663 = vmatmul.bf16.gmra.mxu0 %v2203
  %v8664 = vpop.f32.mrf.mxu0
  %v8665 = vadd.f32 %v8651, %v8664
  %v8666 = vpop.f32.mrf.mxu0
  %v8667 = vadd.f32 %v8653, %v8666
  %8668 = vdwg.mxu0
  %8669 = vmatpush.bf16.msra.mxu0 %v6132
  %8670 = vmatpush.bf16.msra.mxu0 %v6126
  %8671 = vmatpush.bf16.msra.mxu0 %v6120
  %8672 = vmatpush.bf16.msra.mxu0 %v6114
  %8673 = vmatpush.bf16.msra.mxu0 %v6108
  %8674 = vmatpush.bf16.msra.mxu0 %v6102
  %8675 = vmatpush.bf16.msra.mxu0 %v6096
  %8676 = vmatpush.bf16.msra.mxu0 %v6090
  %8677 = vmatmul.bf16.gmra.mxu0 %v2204
  %v8678 = vpop.f32.mrf.mxu0
  %v8679 = vadd.f32 %v8665, %v8678
  %v8680 = vpop.f32.mrf.mxu0
  %v8681 = vadd.f32 %v8667, %v8680
  %8682 = vdwg.mxu0
  %8683 = vmatpush.bf16.msra.mxu0 %v6180
  %8684 = vmatpush.bf16.msra.mxu0 %v6174
  %8685 = vmatpush.bf16.msra.mxu0 %v6168
  %8686 = vmatpush.bf16.msra.mxu0 %v6162
  %8687 = vmatpush.bf16.msra.mxu0 %v6156
  %8688 = vmatpush.bf16.msra.mxu0 %v6150
  %8689 = vmatpush.bf16.msra.mxu0 %v6144
  %8690 = vmatpush.bf16.msra.mxu0 %v6138
  %8691 = vmatmul.bf16.gmra.mxu0 %v2205
  %v8692 = vpop.f32.mrf.mxu0
  %v8693 = vadd.f32 %v8679, %v8692
  %v8694 = vpop.f32.mrf.mxu0
  %v8695 = vadd.f32 %v8681, %v8694
  %8696 = vdwg.mxu0
  %8697 = vmatpush.bf16.msra.mxu0 %v6228
  %8698 = vmatpush.bf16.msra.mxu0 %v6222
  %8699 = vmatpush.bf16.msra.mxu0 %v6216
  %8700 = vmatpush.bf16.msra.mxu0 %v6210
  %8701 = vmatpush.bf16.msra.mxu0 %v6204
  %8702 = vmatpush.bf16.msra.mxu0 %v6198
  %8703 = vmatpush.bf16.msra.mxu0 %v6192
  %8704 = vmatpush.bf16.msra.mxu0 %v6186
  %8705 = vmatmul.bf16.gmra.mxu0 %v2206
  %v8706 = vpop.f32.mrf.mxu0
  %v8707 = vadd.f32 %v8693, %v8706
  %v8708 = vpop.f32.mrf.mxu0
  %v8709 = vadd.f32 %v8695, %v8708
  %8710 = vdwg.mxu0
  %8711 = vmatpush.bf16.msra.mxu0 %v6276
  %8712 = vmatpush.bf16.msra.mxu0 %v6270
  %8713 = vmatpush.bf16.msra.mxu0 %v6264
  %8714 = vmatpush.bf16.msra.mxu0 %v6258
  %8715 = vmatpush.bf16.msra.mxu0 %v6252
  %8716 = vmatpush.bf16.msra.mxu0 %v6246
  %8717 = vmatpush.bf16.msra.mxu0 %v6240
  %8718 = vmatpush.bf16.msra.mxu0 %v6234
  %8719 = vmatmul.bf16.gmra.mxu0 %v2207
  %v8720 = vpop.f32.mrf.mxu0
  %v8721 = vadd.f32 %v8707, %v8720
  %v8722 = vpop.f32.mrf.mxu0
  %v8723 = vadd.f32 %v8709, %v8722
  %8724 = vdwg.mxu0
  %8725 = vmatpush.bf16.msra.mxu0 %v6324
  %8726 = vmatpush.bf16.msra.mxu0 %v6318
  %8727 = vmatpush.bf16.msra.mxu0 %v6312
  %8728 = vmatpush.bf16.msra.mxu0 %v6306
  %8729 = vmatpush.bf16.msra.mxu0 %v6300
  %8730 = vmatpush.bf16.msra.mxu0 %v6294
  %8731 = vmatpush.bf16.msra.mxu0 %v6288
  %8732 = vmatpush.bf16.msra.mxu0 %v6282
  %8733 = vmatmul.bf16.gmra.mxu0 %v2208
  %v8734 = vpop.f32.mrf.mxu0
  %v8735 = vadd.f32 %v8721, %v8734
  %v8736 = vpop.f32.mrf.mxu0
  %v8737 = vadd.f32 %v8723, %v8736
  %8738 = vdwg.mxu0
  %8739 = vmatpush.bf16.msra.mxu0 %v6372
  %8740 = vmatpush.bf16.msra.mxu0 %v6366
  %8741 = vmatpush.bf16.msra.mxu0 %v6360
  %8742 = vmatpush.bf16.msra.mxu0 %v6354
  %8743 = vmatpush.bf16.msra.mxu0 %v6348
  %8744 = vmatpush.bf16.msra.mxu0 %v6342
  %8745 = vmatpush.bf16.msra.mxu0 %v6336
  %8746 = vmatpush.bf16.msra.mxu0 %v6330
  %8747 = vmatmul.bf16.gmra.mxu0 %v2209
  %v8748 = vpop.f32.mrf.mxu0
  %v8749 = vadd.f32 %v8735, %v8748
  %v8750 = vpop.f32.mrf.mxu0
  %v8751 = vadd.f32 %v8737, %v8750
  %8752 = vdwg.mxu0
  %8753 = vmatpush.bf16.msra.mxu0 %v6420
  %8754 = vmatpush.bf16.msra.mxu0 %v6414
  %8755 = vmatpush.bf16.msra.mxu0 %v6408
  %8756 = vmatpush.bf16.msra.mxu0 %v6402
  %8757 = vmatpush.bf16.msra.mxu0 %v6396
  %8758 = vmatpush.bf16.msra.mxu0 %v6390
  %8759 = vmatpush.bf16.msra.mxu0 %v6384
  %8760 = vmatpush.bf16.msra.mxu0 %v6378
  %8761 = vmatmul.bf16.gmra.mxu0 %v2210
  %v8762 = vpop.f32.mrf.mxu0
  %v8763 = vadd.f32 %v8749, %v8762
  %v8764 = vpop.f32.mrf.mxu0
  %v8765 = vadd.f32 %v8751, %v8764
  %8766 = vdwg.mxu0
  %8767 = vmatpush.bf16.msra.mxu0 %v6468
  %8768 = vmatpush.bf16.msra.mxu0 %v6462
  %8769 = vmatpush.bf16.msra.mxu0 %v6456
  %8770 = vmatpush.bf16.msra.mxu0 %v6450
  %8771 = vmatpush.bf16.msra.mxu0 %v6444
  %8772 = vmatpush.bf16.msra.mxu0 %v6438
  %8773 = vmatpush.bf16.msra.mxu0 %v6432
  %8774 = vmatpush.bf16.msra.mxu0 %v6426
  %8775 = vmatmul.bf16.gmra.mxu0 %v2211
  %v8776 = vpop.f32.mrf.mxu0
  %v8777 = vadd.f32 %v8763, %v8776
  %v8778 = vpop.f32.mrf.mxu0
  %v8779 = vadd.f32 %v8765, %v8778
  %8780 = vdwg.mxu0
  %8781 = vmatpush.bf16.msra.mxu0 %v6516
  %8782 = vmatpush.bf16.msra.mxu0 %v6510
  %8783 = vmatpush.bf16.msra.mxu0 %v6504
  %8784 = vmatpush.bf16.msra.mxu0 %v6498
  %8785 = vmatpush.bf16.msra.mxu0 %v6492
  %8786 = vmatpush.bf16.msra.mxu0 %v6486
  %8787 = vmatpush.bf16.msra.mxu0 %v6480
  %8788 = vmatpush.bf16.msra.mxu0 %v6474
  %8789 = vmatmul.bf16.gmra.mxu0 %v2212
  %v8790 = vpop.f32.mrf.mxu0
  %v8791 = vadd.f32 %v8777, %v8790
  %v8792 = vpop.f32.mrf.mxu0
  %v8793 = vadd.f32 %v8779, %v8792
  %8794 = vdwg.mxu0
  %8795 = vmatpush.bf16.msra.mxu0 %v6564
  %8796 = vmatpush.bf16.msra.mxu0 %v6558
  %8797 = vmatpush.bf16.msra.mxu0 %v6552
  %8798 = vmatpush.bf16.msra.mxu0 %v6546
  %8799 = vmatpush.bf16.msra.mxu0 %v6540
  %8800 = vmatpush.bf16.msra.mxu0 %v6534
  %8801 = vmatpush.bf16.msra.mxu0 %v6528
  %8802 = vmatpush.bf16.msra.mxu0 %v6522
  %8803 = vmatmul.bf16.gmra.mxu0 %v2213
  %v8804 = vpop.f32.mrf.mxu0
  %v8805 = vadd.f32 %v8791, %v8804
  %v8806 = vpop.f32.mrf.mxu0
  %v8807 = vadd.f32 %v8793, %v8806
  %8808 = vdwg.mxu0
  %8809 = vmatpush.bf16.msra.mxu0 %v6612
  %8810 = vmatpush.bf16.msra.mxu0 %v6606
  %8811 = vmatpush.bf16.msra.mxu0 %v6600
  %8812 = vmatpush.bf16.msra.mxu0 %v6594
  %8813 = vmatpush.bf16.msra.mxu0 %v6588
  %8814 = vmatpush.bf16.msra.mxu0 %v6582
  %8815 = vmatpush.bf16.msra.mxu0 %v6576
  %8816 = vmatpush.bf16.msra.mxu0 %v6570
  %8817 = vmatmul.bf16.gmra.mxu0 %v2214
  %v8818 = vpop.f32.mrf.mxu0
  %v8819 = vadd.f32 %v8805, %v8818
  %v8820 = vpop.f32.mrf.mxu0
  %v8821 = vadd.f32 %v8807, %v8820
  %8822 = vdwg.mxu0
  %8823 = vmatpush.bf16.msra.mxu0 %v6660
  %8824 = vmatpush.bf16.msra.mxu0 %v6654
  %8825 = vmatpush.bf16.msra.mxu0 %v6648
  %8826 = vmatpush.bf16.msra.mxu0 %v6642
  %8827 = vmatpush.bf16.msra.mxu0 %v6636
  %8828 = vmatpush.bf16.msra.mxu0 %v6630
  %8829 = vmatpush.bf16.msra.mxu0 %v6624
  %8830 = vmatpush.bf16.msra.mxu0 %v6618
  %8831 = vmatmul.bf16.gmra.mxu0 %v2215
  %v8832 = vpop.f32.mrf.mxu0
  %v8833 = vadd.f32 %v8819, %v8832
  %v8834 = vpop.f32.mrf.mxu0
  %v8835 = vadd.f32 %v8821, %v8834
  %8836 = vdwg.mxu0
  %8837 = vmatpush.bf16.msra.mxu0 %v6708
  %8838 = vmatpush.bf16.msra.mxu0 %v6702
  %8839 = vmatpush.bf16.msra.mxu0 %v6696
  %8840 = vmatpush.bf16.msra.mxu0 %v6690
  %8841 = vmatpush.bf16.msra.mxu0 %v6684
  %8842 = vmatpush.bf16.msra.mxu0 %v6678
  %8843 = vmatpush.bf16.msra.mxu0 %v6672
  %8844 = vmatpush.bf16.msra.mxu0 %v6666
  %8845 = vmatmul.bf16.gmra.mxu0 %v2216
  %v8846 = vpop.f32.mrf.mxu0
  %v8847 = vadd.f32 %v8833, %v8846
  %v8848 = vpop.f32.mrf.mxu0
  %v8849 = vadd.f32 %v8835, %v8848
  %8850 = vdwg.mxu0
  %8851 = vmatpush.bf16.msra.mxu0 %v6756
  %8852 = vmatpush.bf16.msra.mxu0 %v6750
  %8853 = vmatpush.bf16.msra.mxu0 %v6744
  %8854 = vmatpush.bf16.msra.mxu0 %v6738
  %8855 = vmatpush.bf16.msra.mxu0 %v6732
  %8856 = vmatpush.bf16.msra.mxu0 %v6726
  %8857 = vmatpush.bf16.msra.mxu0 %v6720
  %8858 = vmatpush.bf16.msra.mxu0 %v6714
  %8859 = vmatmul.bf16.gmra.mxu0 %v2217
  %v8860 = vpop.f32.mrf.mxu0
  %v8861 = vadd.f32 %v8847, %v8860
  %v8862 = vpop.f32.mrf.mxu0
  %v8863 = vadd.f32 %v8849, %v8862
  %8864 = vdwg.mxu0
  %8865 = vmatpush.bf16.msra.mxu0 %v6804
  %8866 = vmatpush.bf16.msra.mxu0 %v6798
  %8867 = vmatpush.bf16.msra.mxu0 %v6792
  %8868 = vmatpush.bf16.msra.mxu0 %v6786
  %8869 = vmatpush.bf16.msra.mxu0 %v6780
  %8870 = vmatpush.bf16.msra.mxu0 %v6774
  %8871 = vmatpush.bf16.msra.mxu0 %v6768
  %8872 = vmatpush.bf16.msra.mxu0 %v6762
  %8873 = vmatmul.bf16.gmra.mxu0 %v2218
  %v8874 = vpop.f32.mrf.mxu0
  %v8875 = vadd.f32 %v8861, %v8874
  %v8876 = vpop.f32.mrf.mxu0
  %v8877 = vadd.f32 %v8863, %v8876
  %8878 = vdwg.mxu0
  %8879 = vmatpush.bf16.msra.mxu0 %v6852
  %8880 = vmatpush.bf16.msra.mxu0 %v6846
  %8881 = vmatpush.bf16.msra.mxu0 %v6840
  %8882 = vmatpush.bf16.msra.mxu0 %v6834
  %8883 = vmatpush.bf16.msra.mxu0 %v6828
  %8884 = vmatpush.bf16.msra.mxu0 %v6822
  %8885 = vmatpush.bf16.msra.mxu0 %v6816
  %8886 = vmatpush.bf16.msra.mxu0 %v6810
  %8887 = vmatmul.bf16.gmra.mxu0 %v2219
  %v8888 = vpop.f32.mrf.mxu0
  %v8889 = vadd.f32 %v8875, %v8888
  %v8890 = vpop.f32.mrf.mxu0
  %v8891 = vadd.f32 %v8877, %v8890
  %8892 = vdwg.mxu0
  %8893 = vmatpush.bf16.msra.mxu0 %v6900
  %8894 = vmatpush.bf16.msra.mxu0 %v6894
  %8895 = vmatpush.bf16.msra.mxu0 %v6888
  %8896 = vmatpush.bf16.msra.mxu0 %v6882
  %8897 = vmatpush.bf16.msra.mxu0 %v6876
  %8898 = vmatpush.bf16.msra.mxu0 %v6870
  %8899 = vmatpush.bf16.msra.mxu0 %v6864
  %8900 = vmatpush.bf16.msra.mxu0 %v6858
  %8901 = vmatmul.bf16.gmra.mxu0 %v2220
  %v8902 = vpop.f32.mrf.mxu0
  %v8903 = vadd.f32 %v8889, %v8902
  %v8904 = vpop.f32.mrf.mxu0
  %v8905 = vadd.f32 %v8891, %v8904
  %8906 = vdwg.mxu0
  %8907 = vmatpush.bf16.msra.mxu0 %v6948
  %8908 = vmatpush.bf16.msra.mxu0 %v6942
  %8909 = vmatpush.bf16.msra.mxu0 %v6936
  %8910 = vmatpush.bf16.msra.mxu0 %v6930
  %8911 = vmatpush.bf16.msra.mxu0 %v6924
  %8912 = vmatpush.bf16.msra.mxu0 %v6918
  %8913 = vmatpush.bf16.msra.mxu0 %v6912
  %8914 = vmatpush.bf16.msra.mxu0 %v6906
  %8915 = vmatmul.bf16.gmra.mxu0 %v2221
  %v8916 = vpop.f32.mrf.mxu0
  %v8917 = vadd.f32 %v8903, %v8916
  %v8918 = vpop.f32.mrf.mxu0
  %v8919 = vadd.f32 %v8905, %v8918
  %8920 = vdwg.mxu0
  %8921 = vmatpush.bf16.msra.mxu0 %v6996
  %8922 = vmatpush.bf16.msra.mxu0 %v6990
  %8923 = vmatpush.bf16.msra.mxu0 %v6984
  %8924 = vmatpush.bf16.msra.mxu0 %v6978
  %8925 = vmatpush.bf16.msra.mxu0 %v6972
  %8926 = vmatpush.bf16.msra.mxu0 %v6966
  %8927 = vmatpush.bf16.msra.mxu0 %v6960
  %8928 = vmatpush.bf16.msra.mxu0 %v6954
  %8929 = vmatmul.bf16.gmra.mxu0 %v2222
  %v8930 = vpop.f32.mrf.mxu0
  %v8931 = vadd.f32 %v8917, %v8930
  %v8932 = vpop.f32.mrf.mxu0
  %v8933 = vadd.f32 %v8919, %v8932
  %8934 = vdwg.mxu0
  %8935 = vmatpush.bf16.msra.mxu0 %v7044
  %8936 = vmatpush.bf16.msra.mxu0 %v7038
  %8937 = vmatpush.bf16.msra.mxu0 %v7032
  %8938 = vmatpush.bf16.msra.mxu0 %v7026
  %8939 = vmatpush.bf16.msra.mxu0 %v7020
  %8940 = vmatpush.bf16.msra.mxu0 %v7014
  %8941 = vmatpush.bf16.msra.mxu0 %v7008
  %8942 = vmatpush.bf16.msra.mxu0 %v7002
  %8943 = vmatmul.bf16.gmra.mxu0 %v2223
  %v8944 = vpop.f32.mrf.mxu0
  %v8945 = vadd.f32 %v8931, %v8944
  %v8946 = vpop.f32.mrf.mxu0
  %v8947 = vadd.f32 %v8933, %v8946
  %8948 = vdwg.mxu0
  %8949 = vmatpush.bf16.msra.mxu0 %v5893
  %8950 = vmatpush.bf16.msra.mxu0 %v5887
  %8951 = vmatpush.bf16.msra.mxu0 %v5881
  %8952 = vmatpush.bf16.msra.mxu0 %v5875
  %8953 = vmatpush.bf16.msra.mxu0 %v5869
  %8954 = vmatpush.bf16.msra.mxu0 %v5863
  %8955 = vmatpush.bf16.msra.mxu0 %v5857
  %8956 = vmatpush.bf16.msra.mxu0 %v5851
  %8957 = vmatmul.bf16.gmra.mxu0 %v2199
  %v8958 = vpop.f32.mrf.mxu0
  %v8959 = vadd.f32 %v2113, %v8958
  %v8960 = vpop.f32.mrf.mxu0
  %v8961 = vadd.f32 %v2113, %v8960
  %8962 = vdwg.mxu0
  %8963 = vmatpush.bf16.msra.mxu0 %v5941
  %8964 = vmatpush.bf16.msra.mxu0 %v5935
  %8965 = vmatpush.bf16.msra.mxu0 %v5929
  %8966 = vmatpush.bf16.msra.mxu0 %v5923
  %8967 = vmatpush.bf16.msra.mxu0 %v5917
  %8968 = vmatpush.bf16.msra.mxu0 %v5911
  %8969 = vmatpush.bf16.msra.mxu0 %v5905
  %8970 = vmatpush.bf16.msra.mxu0 %v5899
  %8971 = vmatmul.bf16.gmra.mxu0 %v2200
  %v8972 = vpop.f32.mrf.mxu0
  %v8973 = vadd.f32 %v8959, %v8972
  %v8974 = vpop.f32.mrf.mxu0
  %v8975 = vadd.f32 %v8961, %v8974
  %8976 = vdwg.mxu0
  %8977 = vmatpush.bf16.msra.mxu0 %v5989
  %8978 = vmatpush.bf16.msra.mxu0 %v5983
  %8979 = vmatpush.bf16.msra.mxu0 %v5977
  %8980 = vmatpush.bf16.msra.mxu0 %v5971
  %8981 = vmatpush.bf16.msra.mxu0 %v5965
  %8982 = vmatpush.bf16.msra.mxu0 %v5959
  %8983 = vmatpush.bf16.msra.mxu0 %v5953
  %8984 = vmatpush.bf16.msra.mxu0 %v5947
  %8985 = vmatmul.bf16.gmra.mxu0 %v2201
  %v8986 = vpop.f32.mrf.mxu0
  %v8987 = vadd.f32 %v8973, %v8986
  %v8988 = vpop.f32.mrf.mxu0
  %v8989 = vadd.f32 %v8975, %v8988
  %8990 = vdwg.mxu0
  %8991 = vmatpush.bf16.msra.mxu0 %v6037
  %8992 = vmatpush.bf16.msra.mxu0 %v6031
  %8993 = vmatpush.bf16.msra.mxu0 %v6025
  %8994 = vmatpush.bf16.msra.mxu0 %v6019
  %8995 = vmatpush.bf16.msra.mxu0 %v6013
  %8996 = vmatpush.bf16.msra.mxu0 %v6007
  %8997 = vmatpush.bf16.msra.mxu0 %v6001
  %8998 = vmatpush.bf16.msra.mxu0 %v5995
  %8999 = vmatmul.bf16.gmra.mxu0 %v2202
  %v9000 = vpop.f32.mrf.mxu0
  %v9001 = vadd.f32 %v8987, %v9000
  %v9002 = vpop.f32.mrf.mxu0
  %v9003 = vadd.f32 %v8989, %v9002
  %9004 = vdwg.mxu0
  %9005 = vmatpush.bf16.msra.mxu0 %v6085
  %9006 = vmatpush.bf16.msra.mxu0 %v6079
  %9007 = vmatpush.bf16.msra.mxu0 %v6073
  %9008 = vmatpush.bf16.msra.mxu0 %v6067
  %9009 = vmatpush.bf16.msra.mxu0 %v6061
  %9010 = vmatpush.bf16.msra.mxu0 %v6055
  %9011 = vmatpush.bf16.msra.mxu0 %v6049
  %9012 = vmatpush.bf16.msra.mxu0 %v6043
  %9013 = vmatmul.bf16.gmra.mxu0 %v2203
  %v9014 = vpop.f32.mrf.mxu0
  %v9015 = vadd.f32 %v9001, %v9014
  %v9016 = vpop.f32.mrf.mxu0
  %v9017 = vadd.f32 %v9003, %v9016
  %9018 = vdwg.mxu0
  %9019 = vmatpush.bf16.msra.mxu0 %v6133
  %9020 = vmatpush.bf16.msra.mxu0 %v6127
  %9021 = vmatpush.bf16.msra.mxu0 %v6121
  %9022 = vmatpush.bf16.msra.mxu0 %v6115
  %9023 = vmatpush.bf16.msra.mxu0 %v6109
  %9024 = vmatpush.bf16.msra.mxu0 %v6103
  %9025 = vmatpush.bf16.msra.mxu0 %v6097
  %9026 = vmatpush.bf16.msra.mxu0 %v6091
  %9027 = vmatmul.bf16.gmra.mxu0 %v2204
  %v9028 = vpop.f32.mrf.mxu0
  %v9029 = vadd.f32 %v9015, %v9028
  %v9030 = vpop.f32.mrf.mxu0
  %v9031 = vadd.f32 %v9017, %v9030
  %9032 = vdwg.mxu0
  %9033 = vmatpush.bf16.msra.mxu0 %v6181
  %9034 = vmatpush.bf16.msra.mxu0 %v6175
  %9035 = vmatpush.bf16.msra.mxu0 %v6169
  %9036 = vmatpush.bf16.msra.mxu0 %v6163
  %9037 = vmatpush.bf16.msra.mxu0 %v6157
  %9038 = vmatpush.bf16.msra.mxu0 %v6151
  %9039 = vmatpush.bf16.msra.mxu0 %v6145
  %9040 = vmatpush.bf16.msra.mxu0 %v6139
  %9041 = vmatmul.bf16.gmra.mxu0 %v2205
  %v9042 = vpop.f32.mrf.mxu0
  %v9043 = vadd.f32 %v9029, %v9042
  %v9044 = vpop.f32.mrf.mxu0
  %v9045 = vadd.f32 %v9031, %v9044
  %9046 = vdwg.mxu0
  %9047 = vmatpush.bf16.msra.mxu0 %v6229
  %9048 = vmatpush.bf16.msra.mxu0 %v6223
  %9049 = vmatpush.bf16.msra.mxu0 %v6217
  %9050 = vmatpush.bf16.msra.mxu0 %v6211
  %9051 = vmatpush.bf16.msra.mxu0 %v6205
  %9052 = vmatpush.bf16.msra.mxu0 %v6199
  %9053 = vmatpush.bf16.msra.mxu0 %v6193
  %9054 = vmatpush.bf16.msra.mxu0 %v6187
  %9055 = vmatmul.bf16.gmra.mxu0 %v2206
  %v9056 = vpop.f32.mrf.mxu0
  %v9057 = vadd.f32 %v9043, %v9056
  %v9058 = vpop.f32.mrf.mxu0
  %v9059 = vadd.f32 %v9045, %v9058
  %9060 = vdwg.mxu0
  %9061 = vmatpush.bf16.msra.mxu0 %v6277
  %9062 = vmatpush.bf16.msra.mxu0 %v6271
  %9063 = vmatpush.bf16.msra.mxu0 %v6265
  %9064 = vmatpush.bf16.msra.mxu0 %v6259
  %9065 = vmatpush.bf16.msra.mxu0 %v6253
  %9066 = vmatpush.bf16.msra.mxu0 %v6247
  %9067 = vmatpush.bf16.msra.mxu0 %v6241
  %9068 = vmatpush.bf16.msra.mxu0 %v6235
  %9069 = vmatmul.bf16.gmra.mxu0 %v2207
  %v9070 = vpop.f32.mrf.mxu0
  %v9071 = vadd.f32 %v9057, %v9070
  %v9072 = vpop.f32.mrf.mxu0
  %v9073 = vadd.f32 %v9059, %v9072
  %9074 = vdwg.mxu0
  %9075 = vmatpush.bf16.msra.mxu0 %v6325
  %9076 = vmatpush.bf16.msra.mxu0 %v6319
  %9077 = vmatpush.bf16.msra.mxu0 %v6313
  %9078 = vmatpush.bf16.msra.mxu0 %v6307
  %9079 = vmatpush.bf16.msra.mxu0 %v6301
  %9080 = vmatpush.bf16.msra.mxu0 %v6295
  %9081 = vmatpush.bf16.msra.mxu0 %v6289
  %9082 = vmatpush.bf16.msra.mxu0 %v6283
  %9083 = vmatmul.bf16.gmra.mxu0 %v2208
  %v9084 = vpop.f32.mrf.mxu0
  %v9085 = vadd.f32 %v9071, %v9084
  %v9086 = vpop.f32.mrf.mxu0
  %v9087 = vadd.f32 %v9073, %v9086
  %9088 = vdwg.mxu0
  %9089 = vmatpush.bf16.msra.mxu0 %v6373
  %9090 = vmatpush.bf16.msra.mxu0 %v6367
  %9091 = vmatpush.bf16.msra.mxu0 %v6361
  %9092 = vmatpush.bf16.msra.mxu0 %v6355
  %9093 = vmatpush.bf16.msra.mxu0 %v6349
  %9094 = vmatpush.bf16.msra.mxu0 %v6343
  %9095 = vmatpush.bf16.msra.mxu0 %v6337
  %9096 = vmatpush.bf16.msra.mxu0 %v6331
  %9097 = vmatmul.bf16.gmra.mxu0 %v2209
  %v9098 = vpop.f32.mrf.mxu0
  %v9099 = vadd.f32 %v9085, %v9098
  %v9100 = vpop.f32.mrf.mxu0
  %v9101 = vadd.f32 %v9087, %v9100
  %9102 = vdwg.mxu0
  %9103 = vmatpush.bf16.msra.mxu0 %v6421
  %9104 = vmatpush.bf16.msra.mxu0 %v6415
  %9105 = vmatpush.bf16.msra.mxu0 %v6409
  %9106 = vmatpush.bf16.msra.mxu0 %v6403
  %9107 = vmatpush.bf16.msra.mxu0 %v6397
  %9108 = vmatpush.bf16.msra.mxu0 %v6391
  %9109 = vmatpush.bf16.msra.mxu0 %v6385
  %9110 = vmatpush.bf16.msra.mxu0 %v6379
  %9111 = vmatmul.bf16.gmra.mxu0 %v2210
  %v9112 = vpop.f32.mrf.mxu0
  %v9113 = vadd.f32 %v9099, %v9112
  %v9114 = vpop.f32.mrf.mxu0
  %v9115 = vadd.f32 %v9101, %v9114
  %9116 = vdwg.mxu0
  %9117 = vmatpush.bf16.msra.mxu0 %v6469
  %9118 = vmatpush.bf16.msra.mxu0 %v6463
  %9119 = vmatpush.bf16.msra.mxu0 %v6457
  %9120 = vmatpush.bf16.msra.mxu0 %v6451
  %9121 = vmatpush.bf16.msra.mxu0 %v6445
  %9122 = vmatpush.bf16.msra.mxu0 %v6439
  %9123 = vmatpush.bf16.msra.mxu0 %v6433
  %9124 = vmatpush.bf16.msra.mxu0 %v6427
  %9125 = vmatmul.bf16.gmra.mxu0 %v2211
  %v9126 = vpop.f32.mrf.mxu0
  %v9127 = vadd.f32 %v9113, %v9126
  %v9128 = vpop.f32.mrf.mxu0
  %v9129 = vadd.f32 %v9115, %v9128
  %9130 = vdwg.mxu0
  %9131 = vmatpush.bf16.msra.mxu0 %v6517
  %9132 = vmatpush.bf16.msra.mxu0 %v6511
  %9133 = vmatpush.bf16.msra.mxu0 %v6505
  %9134 = vmatpush.bf16.msra.mxu0 %v6499
  %9135 = vmatpush.bf16.msra.mxu0 %v6493
  %9136 = vmatpush.bf16.msra.mxu0 %v6487
  %9137 = vmatpush.bf16.msra.mxu0 %v6481
  %9138 = vmatpush.bf16.msra.mxu0 %v6475
  %9139 = vmatmul.bf16.gmra.mxu0 %v2212
  %v9140 = vpop.f32.mrf.mxu0
  %v9141 = vadd.f32 %v9127, %v9140
  %v9142 = vpop.f32.mrf.mxu0
  %v9143 = vadd.f32 %v9129, %v9142
  %9144 = vdwg.mxu0
  %9145 = vmatpush.bf16.msra.mxu0 %v6565
  %9146 = vmatpush.bf16.msra.mxu0 %v6559
  %9147 = vmatpush.bf16.msra.mxu0 %v6553
  %9148 = vmatpush.bf16.msra.mxu0 %v6547
  %9149 = vmatpush.bf16.msra.mxu0 %v6541
  %9150 = vmatpush.bf16.msra.mxu0 %v6535
  %9151 = vmatpush.bf16.msra.mxu0 %v6529
  %9152 = vmatpush.bf16.msra.mxu0 %v6523
  %9153 = vmatmul.bf16.gmra.mxu0 %v2213
  %v9154 = vpop.f32.mrf.mxu0
  %v9155 = vadd.f32 %v9141, %v9154
  %v9156 = vpop.f32.mrf.mxu0
  %v9157 = vadd.f32 %v9143, %v9156
  %9158 = vdwg.mxu0
  %9159 = vmatpush.bf16.msra.mxu0 %v6613
  %9160 = vmatpush.bf16.msra.mxu0 %v6607
  %9161 = vmatpush.bf16.msra.mxu0 %v6601
  %9162 = vmatpush.bf16.msra.mxu0 %v6595
  %9163 = vmatpush.bf16.msra.mxu0 %v6589
  %9164 = vmatpush.bf16.msra.mxu0 %v6583
  %9165 = vmatpush.bf16.msra.mxu0 %v6577
  %9166 = vmatpush.bf16.msra.mxu0 %v6571
  %9167 = vmatmul.bf16.gmra.mxu0 %v2214
  %v9168 = vpop.f32.mrf.mxu0
  %v9169 = vadd.f32 %v9155, %v9168
  %v9170 = vpop.f32.mrf.mxu0
  %v9171 = vadd.f32 %v9157, %v9170
  %9172 = vdwg.mxu0
  %9173 = vmatpush.bf16.msra.mxu0 %v6661
  %9174 = vmatpush.bf16.msra.mxu0 %v6655
  %9175 = vmatpush.bf16.msra.mxu0 %v6649
  %9176 = vmatpush.bf16.msra.mxu0 %v6643
  %9177 = vmatpush.bf16.msra.mxu0 %v6637
  %9178 = vmatpush.bf16.msra.mxu0 %v6631
  %9179 = vmatpush.bf16.msra.mxu0 %v6625
  %9180 = vmatpush.bf16.msra.mxu0 %v6619
  %9181 = vmatmul.bf16.gmra.mxu0 %v2215
  %v9182 = vpop.f32.mrf.mxu0
  %v9183 = vadd.f32 %v9169, %v9182
  %v9184 = vpop.f32.mrf.mxu0
  %v9185 = vadd.f32 %v9171, %v9184
  %9186 = vdwg.mxu0
  %9187 = vmatpush.bf16.msra.mxu0 %v6709
  %9188 = vmatpush.bf16.msra.mxu0 %v6703
  %9189 = vmatpush.bf16.msra.mxu0 %v6697
  %9190 = vmatpush.bf16.msra.mxu0 %v6691
  %9191 = vmatpush.bf16.msra.mxu0 %v6685
  %9192 = vmatpush.bf16.msra.mxu0 %v6679
  %9193 = vmatpush.bf16.msra.mxu0 %v6673
  %9194 = vmatpush.bf16.msra.mxu0 %v6667
  %9195 = vmatmul.bf16.gmra.mxu0 %v2216
  %v9196 = vpop.f32.mrf.mxu0
  %v9197 = vadd.f32 %v9183, %v9196
  %v9198 = vpop.f32.mrf.mxu0
  %v9199 = vadd.f32 %v9185, %v9198
  %9200 = vdwg.mxu0
  %9201 = vmatpush.bf16.msra.mxu0 %v6757
  %9202 = vmatpush.bf16.msra.mxu0 %v6751
  %9203 = vmatpush.bf16.msra.mxu0 %v6745
  %9204 = vmatpush.bf16.msra.mxu0 %v6739
  %9205 = vmatpush.bf16.msra.mxu0 %v6733
  %9206 = vmatpush.bf16.msra.mxu0 %v6727
  %9207 = vmatpush.bf16.msra.mxu0 %v6721
  %9208 = vmatpush.bf16.msra.mxu0 %v6715
  %9209 = vmatmul.bf16.gmra.mxu0 %v2217
  %v9210 = vpop.f32.mrf.mxu0
  %v9211 = vadd.f32 %v9197, %v9210
  %v9212 = vpop.f32.mrf.mxu0
  %v9213 = vadd.f32 %v9199, %v9212
  %9214 = vdwg.mxu0
  %9215 = vmatpush.bf16.msra.mxu0 %v6805
  %9216 = vmatpush.bf16.msra.mxu0 %v6799
  %9217 = vmatpush.bf16.msra.mxu0 %v6793
  %9218 = vmatpush.bf16.msra.mxu0 %v6787
  %9219 = vmatpush.bf16.msra.mxu0 %v6781
  %9220 = vmatpush.bf16.msra.mxu0 %v6775
  %9221 = vmatpush.bf16.msra.mxu0 %v6769
  %9222 = vmatpush.bf16.msra.mxu0 %v6763
  %9223 = vmatmul.bf16.gmra.mxu0 %v2218
  %v9224 = vpop.f32.mrf.mxu0
  %v9225 = vadd.f32 %v9211, %v9224
  %v9226 = vpop.f32.mrf.mxu0
  %v9227 = vadd.f32 %v9213, %v9226
  %9228 = vdwg.mxu0
  %9229 = vmatpush.bf16.msra.mxu0 %v6853
  %9230 = vmatpush.bf16.msra.mxu0 %v6847
  %9231 = vmatpush.bf16.msra.mxu0 %v6841
  %9232 = vmatpush.bf16.msra.mxu0 %v6835
  %9233 = vmatpush.bf16.msra.mxu0 %v6829
  %9234 = vmatpush.bf16.msra.mxu0 %v6823
  %9235 = vmatpush.bf16.msra.mxu0 %v6817
  %9236 = vmatpush.bf16.msra.mxu0 %v6811
  %9237 = vmatmul.bf16.gmra.mxu0 %v2219
  %v9238 = vpop.f32.mrf.mxu0
  %v9239 = vadd.f32 %v9225, %v9238
  %v9240 = vpop.f32.mrf.mxu0
  %v9241 = vadd.f32 %v9227, %v9240
  %9242 = vdwg.mxu0
  %9243 = vmatpush.bf16.msra.mxu0 %v6901
  %9244 = vmatpush.bf16.msra.mxu0 %v6895
  %9245 = vmatpush.bf16.msra.mxu0 %v6889
  %9246 = vmatpush.bf16.msra.mxu0 %v6883
  %9247 = vmatpush.bf16.msra.mxu0 %v6877
  %9248 = vmatpush.bf16.msra.mxu0 %v6871
  %9249 = vmatpush.bf16.msra.mxu0 %v6865
  %9250 = vmatpush.bf16.msra.mxu0 %v6859
  %9251 = vmatmul.bf16.gmra.mxu0 %v2220
  %v9252 = vpop.f32.mrf.mxu0
  %v9253 = vadd.f32 %v9239, %v9252
  %v9254 = vpop.f32.mrf.mxu0
  %v9255 = vadd.f32 %v9241, %v9254
  %9256 = vdwg.mxu0
  %9257 = vmatpush.bf16.msra.mxu0 %v6949
  %9258 = vmatpush.bf16.msra.mxu0 %v6943
  %9259 = vmatpush.bf16.msra.mxu0 %v6937
  %9260 = vmatpush.bf16.msra.mxu0 %v6931
  %9261 = vmatpush.bf16.msra.mxu0 %v6925
  %9262 = vmatpush.bf16.msra.mxu0 %v6919
  %9263 = vmatpush.bf16.msra.mxu0 %v6913
  %9264 = vmatpush.bf16.msra.mxu0 %v6907
  %9265 = vmatmul.bf16.gmra.mxu0 %v2221
  %v9266 = vpop.f32.mrf.mxu0
  %v9267 = vadd.f32 %v9253, %v9266
  %v9268 = vpop.f32.mrf.mxu0
  %v9269 = vadd.f32 %v9255, %v9268
  %9270 = vdwg.mxu0
  %9271 = vmatpush.bf16.msra.mxu0 %v6997
  %9272 = vmatpush.bf16.msra.mxu0 %v6991
  %9273 = vmatpush.bf16.msra.mxu0 %v6985
  %9274 = vmatpush.bf16.msra.mxu0 %v6979
  %9275 = vmatpush.bf16.msra.mxu0 %v6973
  %9276 = vmatpush.bf16.msra.mxu0 %v6967
  %9277 = vmatpush.bf16.msra.mxu0 %v6961
  %9278 = vmatpush.bf16.msra.mxu0 %v6955
  %9279 = vmatmul.bf16.gmra.mxu0 %v2222
  %v9280 = vpop.f32.mrf.mxu0
  %v9281 = vadd.f32 %v9267, %v9280
  %v9282 = vpop.f32.mrf.mxu0
  %v9283 = vadd.f32 %v9269, %v9282
  %9284 = vdwg.mxu0
  %9285 = vmatpush.bf16.msra.mxu0 %v7045
  %9286 = vmatpush.bf16.msra.mxu0 %v7039
  %9287 = vmatpush.bf16.msra.mxu0 %v7033
  %9288 = vmatpush.bf16.msra.mxu0 %v7027
  %9289 = vmatpush.bf16.msra.mxu0 %v7021
  %9290 = vmatpush.bf16.msra.mxu0 %v7015
  %9291 = vmatpush.bf16.msra.mxu0 %v7009
  %9292 = vmatpush.bf16.msra.mxu0 %v7003
  %9293 = vmatmul.bf16.gmra.mxu0 %v2223
  %v9294 = vpop.f32.mrf.mxu0
  %v9295 = vadd.f32 %v9281, %v9294
  %v9296 = vpop.f32.mrf.mxu0
  %v9297 = vadd.f32 %v9283, %v9296
  %9298 = vdwg.mxu0
  %9299 = vmatpush.bf16.msra.mxu0 %v5894
  %9300 = vmatpush.bf16.msra.mxu0 %v5888
  %9301 = vmatpush.bf16.msra.mxu0 %v5882
  %9302 = vmatpush.bf16.msra.mxu0 %v5876
  %9303 = vmatpush.bf16.msra.mxu0 %v5870
  %9304 = vmatpush.bf16.msra.mxu0 %v5864
  %9305 = vmatpush.bf16.msra.mxu0 %v5858
  %9306 = vmatpush.bf16.msra.mxu0 %v5852
  %9307 = vmatmul.bf16.gmra.mxu0 %v2199
  %v9308 = vpop.f32.mrf.mxu0
  %v9309 = vadd.f32 %v2114, %v9308
  %v9310 = vpop.f32.mrf.mxu0
  %v9311 = vadd.f32 %v2114, %v9310
  %9312 = vdwg.mxu0
  %9313 = vmatpush.bf16.msra.mxu0 %v5942
  %9314 = vmatpush.bf16.msra.mxu0 %v5936
  %9315 = vmatpush.bf16.msra.mxu0 %v5930
  %9316 = vmatpush.bf16.msra.mxu0 %v5924
  %9317 = vmatpush.bf16.msra.mxu0 %v5918
  %9318 = vmatpush.bf16.msra.mxu0 %v5912
  %9319 = vmatpush.bf16.msra.mxu0 %v5906
  %9320 = vmatpush.bf16.msra.mxu0 %v5900
  %9321 = vmatmul.bf16.gmra.mxu0 %v2200
  %v9322 = vpop.f32.mrf.mxu0
  %v9323 = vadd.f32 %v9309, %v9322
  %v9324 = vpop.f32.mrf.mxu0
  %v9325 = vadd.f32 %v9311, %v9324
  %9326 = vdwg.mxu0
  %9327 = vmatpush.bf16.msra.mxu0 %v5990
  %9328 = vmatpush.bf16.msra.mxu0 %v5984
  %9329 = vmatpush.bf16.msra.mxu0 %v5978
  %9330 = vmatpush.bf16.msra.mxu0 %v5972
  %9331 = vmatpush.bf16.msra.mxu0 %v5966
  %9332 = vmatpush.bf16.msra.mxu0 %v5960
  %9333 = vmatpush.bf16.msra.mxu0 %v5954
  %9334 = vmatpush.bf16.msra.mxu0 %v5948
  %9335 = vmatmul.bf16.gmra.mxu0 %v2201
  %v9336 = vpop.f32.mrf.mxu0
  %v9337 = vadd.f32 %v9323, %v9336
  %v9338 = vpop.f32.mrf.mxu0
  %v9339 = vadd.f32 %v9325, %v9338
  %9340 = vdwg.mxu0
  %9341 = vmatpush.bf16.msra.mxu0 %v6038
  %9342 = vmatpush.bf16.msra.mxu0 %v6032
  %9343 = vmatpush.bf16.msra.mxu0 %v6026
  %9344 = vmatpush.bf16.msra.mxu0 %v6020
  %9345 = vmatpush.bf16.msra.mxu0 %v6014
  %9346 = vmatpush.bf16.msra.mxu0 %v6008
  %9347 = vmatpush.bf16.msra.mxu0 %v6002
  %9348 = vmatpush.bf16.msra.mxu0 %v5996
  %9349 = vmatmul.bf16.gmra.mxu0 %v2202
  %v9350 = vpop.f32.mrf.mxu0
  %v9351 = vadd.f32 %v9337, %v9350
  %v9352 = vpop.f32.mrf.mxu0
  %v9353 = vadd.f32 %v9339, %v9352
  %9354 = vdwg.mxu0
  %9355 = vmatpush.bf16.msra.mxu0 %v6086
  %9356 = vmatpush.bf16.msra.mxu0 %v6080
  %9357 = vmatpush.bf16.msra.mxu0 %v6074
  %9358 = vmatpush.bf16.msra.mxu0 %v6068
  %9359 = vmatpush.bf16.msra.mxu0 %v6062
  %9360 = vmatpush.bf16.msra.mxu0 %v6056
  %9361 = vmatpush.bf16.msra.mxu0 %v6050
  %9362 = vmatpush.bf16.msra.mxu0 %v6044
  %9363 = vmatmul.bf16.gmra.mxu0 %v2203
  %v9364 = vpop.f32.mrf.mxu0
  %v9365 = vadd.f32 %v9351, %v9364
  %v9366 = vpop.f32.mrf.mxu0
  %v9367 = vadd.f32 %v9353, %v9366
  %9368 = vdwg.mxu0
  %9369 = vmatpush.bf16.msra.mxu0 %v6134
  %9370 = vmatpush.bf16.msra.mxu0 %v6128
  %9371 = vmatpush.bf16.msra.mxu0 %v6122
  %9372 = vmatpush.bf16.msra.mxu0 %v6116
  %9373 = vmatpush.bf16.msra.mxu0 %v6110
  %9374 = vmatpush.bf16.msra.mxu0 %v6104
  %9375 = vmatpush.bf16.msra.mxu0 %v6098
  %9376 = vmatpush.bf16.msra.mxu0 %v6092
  %9377 = vmatmul.bf16.gmra.mxu0 %v2204
  %v9378 = vpop.f32.mrf.mxu0
  %v9379 = vadd.f32 %v9365, %v9378
  %v9380 = vpop.f32.mrf.mxu0
  %v9381 = vadd.f32 %v9367, %v9380
  %9382 = vdwg.mxu0
  %9383 = vmatpush.bf16.msra.mxu0 %v6182
  %9384 = vmatpush.bf16.msra.mxu0 %v6176
  %9385 = vmatpush.bf16.msra.mxu0 %v6170
  %9386 = vmatpush.bf16.msra.mxu0 %v6164
  %9387 = vmatpush.bf16.msra.mxu0 %v6158
  %9388 = vmatpush.bf16.msra.mxu0 %v6152
  %9389 = vmatpush.bf16.msra.mxu0 %v6146
  %9390 = vmatpush.bf16.msra.mxu0 %v6140
  %9391 = vmatmul.bf16.gmra.mxu0 %v2205
  %v9392 = vpop.f32.mrf.mxu0
  %v9393 = vadd.f32 %v9379, %v9392
  %v9394 = vpop.f32.mrf.mxu0
  %v9395 = vadd.f32 %v9381, %v9394
  %9396 = vdwg.mxu0
  %9397 = vmatpush.bf16.msra.mxu0 %v6230
  %9398 = vmatpush.bf16.msra.mxu0 %v6224
  %9399 = vmatpush.bf16.msra.mxu0 %v6218
  %9400 = vmatpush.bf16.msra.mxu0 %v6212
  %9401 = vmatpush.bf16.msra.mxu0 %v6206
  %9402 = vmatpush.bf16.msra.mxu0 %v6200
  %9403 = vmatpush.bf16.msra.mxu0 %v6194
  %9404 = vmatpush.bf16.msra.mxu0 %v6188
  %9405 = vmatmul.bf16.gmra.mxu0 %v2206
  %v9406 = vpop.f32.mrf.mxu0
  %v9407 = vadd.f32 %v9393, %v9406
  %v9408 = vpop.f32.mrf.mxu0
  %v9409 = vadd.f32 %v9395, %v9408
  %9410 = vdwg.mxu0
  %9411 = vmatpush.bf16.msra.mxu0 %v6278
  %9412 = vmatpush.bf16.msra.mxu0 %v6272
  %9413 = vmatpush.bf16.msra.mxu0 %v6266
  %9414 = vmatpush.bf16.msra.mxu0 %v6260
  %9415 = vmatpush.bf16.msra.mxu0 %v6254
  %9416 = vmatpush.bf16.msra.mxu0 %v6248
  %9417 = vmatpush.bf16.msra.mxu0 %v6242
  %9418 = vmatpush.bf16.msra.mxu0 %v6236
  %9419 = vmatmul.bf16.gmra.mxu0 %v2207
  %v9420 = vpop.f32.mrf.mxu0
  %v9421 = vadd.f32 %v9407, %v9420
  %v9422 = vpop.f32.mrf.mxu0
  %v9423 = vadd.f32 %v9409, %v9422
  %9424 = vdwg.mxu0
  %9425 = vmatpush.bf16.msra.mxu0 %v6326
  %9426 = vmatpush.bf16.msra.mxu0 %v6320
  %9427 = vmatpush.bf16.msra.mxu0 %v6314
  %9428 = vmatpush.bf16.msra.mxu0 %v6308
  %9429 = vmatpush.bf16.msra.mxu0 %v6302
  %9430 = vmatpush.bf16.msra.mxu0 %v6296
  %9431 = vmatpush.bf16.msra.mxu0 %v6290
  %9432 = vmatpush.bf16.msra.mxu0 %v6284
  %9433 = vmatmul.bf16.gmra.mxu0 %v2208
  %v9434 = vpop.f32.mrf.mxu0
  %v9435 = vadd.f32 %v9421, %v9434
  %v9436 = vpop.f32.mrf.mxu0
  %v9437 = vadd.f32 %v9423, %v9436
  %9438 = vdwg.mxu0
  %9439 = vmatpush.bf16.msra.mxu0 %v6374
  %9440 = vmatpush.bf16.msra.mxu0 %v6368
  %9441 = vmatpush.bf16.msra.mxu0 %v6362
  %9442 = vmatpush.bf16.msra.mxu0 %v6356
  %9443 = vmatpush.bf16.msra.mxu0 %v6350
  %9444 = vmatpush.bf16.msra.mxu0 %v6344
  %9445 = vmatpush.bf16.msra.mxu0 %v6338
  %9446 = vmatpush.bf16.msra.mxu0 %v6332
  %9447 = vmatmul.bf16.gmra.mxu0 %v2209
  %v9448 = vpop.f32.mrf.mxu0
  %v9449 = vadd.f32 %v9435, %v9448
  %v9450 = vpop.f32.mrf.mxu0
  %v9451 = vadd.f32 %v9437, %v9450
  %9452 = vdwg.mxu0
  %9453 = vmatpush.bf16.msra.mxu0 %v6422
  %9454 = vmatpush.bf16.msra.mxu0 %v6416
  %9455 = vmatpush.bf16.msra.mxu0 %v6410
  %9456 = vmatpush.bf16.msra.mxu0 %v6404
  %9457 = vmatpush.bf16.msra.mxu0 %v6398
  %9458 = vmatpush.bf16.msra.mxu0 %v6392
  %9459 = vmatpush.bf16.msra.mxu0 %v6386
  %9460 = vmatpush.bf16.msra.mxu0 %v6380
  %9461 = vmatmul.bf16.gmra.mxu0 %v2210
  %v9462 = vpop.f32.mrf.mxu0
  %v9463 = vadd.f32 %v9449, %v9462
  %v9464 = vpop.f32.mrf.mxu0
  %v9465 = vadd.f32 %v9451, %v9464
  %9466 = vdwg.mxu0
  %9467 = vmatpush.bf16.msra.mxu0 %v6470
  %9468 = vmatpush.bf16.msra.mxu0 %v6464
  %9469 = vmatpush.bf16.msra.mxu0 %v6458
  %9470 = vmatpush.bf16.msra.mxu0 %v6452
  %9471 = vmatpush.bf16.msra.mxu0 %v6446
  %9472 = vmatpush.bf16.msra.mxu0 %v6440
  %9473 = vmatpush.bf16.msra.mxu0 %v6434
  %9474 = vmatpush.bf16.msra.mxu0 %v6428
  %9475 = vmatmul.bf16.gmra.mxu0 %v2211
  %v9476 = vpop.f32.mrf.mxu0
  %v9477 = vadd.f32 %v9463, %v9476
  %v9478 = vpop.f32.mrf.mxu0
  %v9479 = vadd.f32 %v9465, %v9478
  %9480 = vdwg.mxu0
  %9481 = vmatpush.bf16.msra.mxu0 %v6518
  %9482 = vmatpush.bf16.msra.mxu0 %v6512
  %9483 = vmatpush.bf16.msra.mxu0 %v6506
  %9484 = vmatpush.bf16.msra.mxu0 %v6500
  %9485 = vmatpush.bf16.msra.mxu0 %v6494
  %9486 = vmatpush.bf16.msra.mxu0 %v6488
  %9487 = vmatpush.bf16.msra.mxu0 %v6482
  %9488 = vmatpush.bf16.msra.mxu0 %v6476
  %9489 = vmatmul.bf16.gmra.mxu0 %v2212
  %v9490 = vpop.f32.mrf.mxu0
  %v9491 = vadd.f32 %v9477, %v9490
  %v9492 = vpop.f32.mrf.mxu0
  %v9493 = vadd.f32 %v9479, %v9492
  %9494 = vdwg.mxu0
  %9495 = vmatpush.bf16.msra.mxu0 %v6566
  %9496 = vmatpush.bf16.msra.mxu0 %v6560
  %9497 = vmatpush.bf16.msra.mxu0 %v6554
  %9498 = vmatpush.bf16.msra.mxu0 %v6548
  %9499 = vmatpush.bf16.msra.mxu0 %v6542
  %9500 = vmatpush.bf16.msra.mxu0 %v6536
  %9501 = vmatpush.bf16.msra.mxu0 %v6530
  %9502 = vmatpush.bf16.msra.mxu0 %v6524
  %9503 = vmatmul.bf16.gmra.mxu0 %v2213
  %v9504 = vpop.f32.mrf.mxu0
  %v9505 = vadd.f32 %v9491, %v9504
  %v9506 = vpop.f32.mrf.mxu0
  %v9507 = vadd.f32 %v9493, %v9506
  %9508 = vdwg.mxu0
  %9509 = vmatpush.bf16.msra.mxu0 %v6614
  %9510 = vmatpush.bf16.msra.mxu0 %v6608
  %9511 = vmatpush.bf16.msra.mxu0 %v6602
  %9512 = vmatpush.bf16.msra.mxu0 %v6596
  %9513 = vmatpush.bf16.msra.mxu0 %v6590
  %9514 = vmatpush.bf16.msra.mxu0 %v6584
  %9515 = vmatpush.bf16.msra.mxu0 %v6578
  %9516 = vmatpush.bf16.msra.mxu0 %v6572
  %9517 = vmatmul.bf16.gmra.mxu0 %v2214
  %v9518 = vpop.f32.mrf.mxu0
  %v9519 = vadd.f32 %v9505, %v9518
  %v9520 = vpop.f32.mrf.mxu0
  %v9521 = vadd.f32 %v9507, %v9520
  %9522 = vdwg.mxu0
  %9523 = vmatpush.bf16.msra.mxu0 %v6662
  %9524 = vmatpush.bf16.msra.mxu0 %v6656
  %9525 = vmatpush.bf16.msra.mxu0 %v6650
  %9526 = vmatpush.bf16.msra.mxu0 %v6644
  %9527 = vmatpush.bf16.msra.mxu0 %v6638
  %9528 = vmatpush.bf16.msra.mxu0 %v6632
  %9529 = vmatpush.bf16.msra.mxu0 %v6626
  %9530 = vmatpush.bf16.msra.mxu0 %v6620
  %9531 = vmatmul.bf16.gmra.mxu0 %v2215
  %v9532 = vpop.f32.mrf.mxu0
  %v9533 = vadd.f32 %v9519, %v9532
  %v9534 = vpop.f32.mrf.mxu0
  %v9535 = vadd.f32 %v9521, %v9534
  %9536 = vdwg.mxu0
  %9537 = vmatpush.bf16.msra.mxu0 %v6710
  %9538 = vmatpush.bf16.msra.mxu0 %v6704
  %9539 = vmatpush.bf16.msra.mxu0 %v6698
  %9540 = vmatpush.bf16.msra.mxu0 %v6692
  %9541 = vmatpush.bf16.msra.mxu0 %v6686
  %9542 = vmatpush.bf16.msra.mxu0 %v6680
  %9543 = vmatpush.bf16.msra.mxu0 %v6674
  %9544 = vmatpush.bf16.msra.mxu0 %v6668
  %9545 = vmatmul.bf16.gmra.mxu0 %v2216
  %v9546 = vpop.f32.mrf.mxu0
  %v9547 = vadd.f32 %v9533, %v9546
  %v9548 = vpop.f32.mrf.mxu0
  %v9549 = vadd.f32 %v9535, %v9548
  %9550 = vdwg.mxu0
  %9551 = vmatpush.bf16.msra.mxu0 %v6758
  %9552 = vmatpush.bf16.msra.mxu0 %v6752
  %9553 = vmatpush.bf16.msra.mxu0 %v6746
  %9554 = vmatpush.bf16.msra.mxu0 %v6740
  %9555 = vmatpush.bf16.msra.mxu0 %v6734
  %9556 = vmatpush.bf16.msra.mxu0 %v6728
  %9557 = vmatpush.bf16.msra.mxu0 %v6722
  %9558 = vmatpush.bf16.msra.mxu0 %v6716
  %9559 = vmatmul.bf16.gmra.mxu0 %v2217
  %v9560 = vpop.f32.mrf.mxu0
  %v9561 = vadd.f32 %v9547, %v9560
  %v9562 = vpop.f32.mrf.mxu0
  %v9563 = vadd.f32 %v9549, %v9562
  %9564 = vdwg.mxu0
  %9565 = vmatpush.bf16.msra.mxu0 %v6806
  %9566 = vmatpush.bf16.msra.mxu0 %v6800
  %9567 = vmatpush.bf16.msra.mxu0 %v6794
  %9568 = vmatpush.bf16.msra.mxu0 %v6788
  %9569 = vmatpush.bf16.msra.mxu0 %v6782
  %9570 = vmatpush.bf16.msra.mxu0 %v6776
  %9571 = vmatpush.bf16.msra.mxu0 %v6770
  %9572 = vmatpush.bf16.msra.mxu0 %v6764
  %9573 = vmatmul.bf16.gmra.mxu0 %v2218
  %v9574 = vpop.f32.mrf.mxu0
  %v9575 = vadd.f32 %v9561, %v9574
  %v9576 = vpop.f32.mrf.mxu0
  %v9577 = vadd.f32 %v9563, %v9576
  %9578 = vdwg.mxu0
  %9579 = vmatpush.bf16.msra.mxu0 %v6854
  %9580 = vmatpush.bf16.msra.mxu0 %v6848
  %9581 = vmatpush.bf16.msra.mxu0 %v6842
  %9582 = vmatpush.bf16.msra.mxu0 %v6836
  %9583 = vmatpush.bf16.msra.mxu0 %v6830
  %9584 = vmatpush.bf16.msra.mxu0 %v6824
  %9585 = vmatpush.bf16.msra.mxu0 %v6818
  %9586 = vmatpush.bf16.msra.mxu0 %v6812
  %9587 = vmatmul.bf16.gmra.mxu0 %v2219
  %v9588 = vpop.f32.mrf.mxu0
  %v9589 = vadd.f32 %v9575, %v9588
  %v9590 = vpop.f32.mrf.mxu0
  %v9591 = vadd.f32 %v9577, %v9590
  %9592 = vdwg.mxu0
  %9593 = vmatpush.bf16.msra.mxu0 %v6902
  %9594 = vmatpush.bf16.msra.mxu0 %v6896
  %9595 = vmatpush.bf16.msra.mxu0 %v6890
  %9596 = vmatpush.bf16.msra.mxu0 %v6884
  %9597 = vmatpush.bf16.msra.mxu0 %v6878
  %9598 = vmatpush.bf16.msra.mxu0 %v6872
  %9599 = vmatpush.bf16.msra.mxu0 %v6866
  %9600 = vmatpush.bf16.msra.mxu0 %v6860
  %9601 = vmatmul.bf16.gmra.mxu0 %v2220
  %v9602 = vpop.f32.mrf.mxu0
  %v9603 = vadd.f32 %v9589, %v9602
  %v9604 = vpop.f32.mrf.mxu0
  %v9605 = vadd.f32 %v9591, %v9604
  %9606 = vdwg.mxu0
  %9607 = vmatpush.bf16.msra.mxu0 %v6950
  %9608 = vmatpush.bf16.msra.mxu0 %v6944
  %9609 = vmatpush.bf16.msra.mxu0 %v6938
  %9610 = vmatpush.bf16.msra.mxu0 %v6932
  %9611 = vmatpush.bf16.msra.mxu0 %v6926
  %9612 = vmatpush.bf16.msra.mxu0 %v6920
  %9613 = vmatpush.bf16.msra.mxu0 %v6914
  %9614 = vmatpush.bf16.msra.mxu0 %v6908
  %9615 = vmatmul.bf16.gmra.mxu0 %v2221
  %v9616 = vpop.f32.mrf.mxu0
  %v9617 = vadd.f32 %v9603, %v9616
  %v9618 = vpop.f32.mrf.mxu0
  %v9619 = vadd.f32 %v9605, %v9618
  %9620 = vdwg.mxu0
  %9621 = vmatpush.bf16.msra.mxu0 %v6998
  %9622 = vmatpush.bf16.msra.mxu0 %v6992
  %9623 = vmatpush.bf16.msra.mxu0 %v6986
  %9624 = vmatpush.bf16.msra.mxu0 %v6980
  %9625 = vmatpush.bf16.msra.mxu0 %v6974
  %9626 = vmatpush.bf16.msra.mxu0 %v6968
  %9627 = vmatpush.bf16.msra.mxu0 %v6962
  %9628 = vmatpush.bf16.msra.mxu0 %v6956
  %9629 = vmatmul.bf16.gmra.mxu0 %v2222
  %v9630 = vpop.f32.mrf.mxu0
  %v9631 = vadd.f32 %v9617, %v9630
  %v9632 = vpop.f32.mrf.mxu0
  %v9633 = vadd.f32 %v9619, %v9632
  %9634 = vdwg.mxu0
  %9635 = vmatpush.bf16.msra.mxu0 %v7046
  %9636 = vmatpush.bf16.msra.mxu0 %v7040
  %9637 = vmatpush.bf16.msra.mxu0 %v7034
  %9638 = vmatpush.bf16.msra.mxu0 %v7028
  %9639 = vmatpush.bf16.msra.mxu0 %v7022
  %9640 = vmatpush.bf16.msra.mxu0 %v7016
  %9641 = vmatpush.bf16.msra.mxu0 %v7010
  %9642 = vmatpush.bf16.msra.mxu0 %v7004
  %9643 = vmatmul.bf16.gmra.mxu0 %v2223
  %v9644 = vpop.f32.mrf.mxu0
  %v9645 = vadd.f32 %v9631, %v9644
  %v9646 = vpop.f32.mrf.mxu0
  %v9647 = vadd.f32 %v9633, %v9646
  %9648 = vdwg.mxu0
  %9649 = vmatpush.bf16.msra.mxu0 %v5895
  %9650 = vmatpush.bf16.msra.mxu0 %v5889
  %9651 = vmatpush.bf16.msra.mxu0 %v5883
  %9652 = vmatpush.bf16.msra.mxu0 %v5877
  %9653 = vmatpush.bf16.msra.mxu0 %v5871
  %9654 = vmatpush.bf16.msra.mxu0 %v5865
  %9655 = vmatpush.bf16.msra.mxu0 %v5859
  %9656 = vmatpush.bf16.msra.mxu0 %v5853
  %9657 = vmatmul.bf16.gmra.mxu0 %v2199
  %v9658 = vpop.f32.mrf.mxu0
  %v9659 = vadd.f32 %v2115, %v9658
  %v9660 = vpop.f32.mrf.mxu0
  %v9661 = vadd.f32 %v2115, %v9660
  %9662 = vdwg.mxu0
  %9663 = vmatpush.bf16.msra.mxu0 %v5943
  %9664 = vmatpush.bf16.msra.mxu0 %v5937
  %9665 = vmatpush.bf16.msra.mxu0 %v5931
  %9666 = vmatpush.bf16.msra.mxu0 %v5925
  %9667 = vmatpush.bf16.msra.mxu0 %v5919
  %9668 = vmatpush.bf16.msra.mxu0 %v5913
  %9669 = vmatpush.bf16.msra.mxu0 %v5907
  %9670 = vmatpush.bf16.msra.mxu0 %v5901
  %9671 = vmatmul.bf16.gmra.mxu0 %v2200
  %v9672 = vpop.f32.mrf.mxu0
  %v9673 = vadd.f32 %v9659, %v9672
  %v9674 = vpop.f32.mrf.mxu0
  %v9675 = vadd.f32 %v9661, %v9674
  %9676 = vdwg.mxu0
  %9677 = vmatpush.bf16.msra.mxu0 %v5991
  %9678 = vmatpush.bf16.msra.mxu0 %v5985
  %9679 = vmatpush.bf16.msra.mxu0 %v5979
  %9680 = vmatpush.bf16.msra.mxu0 %v5973
  %9681 = vmatpush.bf16.msra.mxu0 %v5967
  %9682 = vmatpush.bf16.msra.mxu0 %v5961
  %9683 = vmatpush.bf16.msra.mxu0 %v5955
  %9684 = vmatpush.bf16.msra.mxu0 %v5949
  %9685 = vmatmul.bf16.gmra.mxu0 %v2201
  %v9686 = vpop.f32.mrf.mxu0
  %v9687 = vadd.f32 %v9673, %v9686
  %v9688 = vpop.f32.mrf.mxu0
  %v9689 = vadd.f32 %v9675, %v9688
  %9690 = vdwg.mxu0
  %9691 = vmatpush.bf16.msra.mxu0 %v6039
  %9692 = vmatpush.bf16.msra.mxu0 %v6033
  %9693 = vmatpush.bf16.msra.mxu0 %v6027
  %9694 = vmatpush.bf16.msra.mxu0 %v6021
  %9695 = vmatpush.bf16.msra.mxu0 %v6015
  %9696 = vmatpush.bf16.msra.mxu0 %v6009
  %9697 = vmatpush.bf16.msra.mxu0 %v6003
  %9698 = vmatpush.bf16.msra.mxu0 %v5997
  %9699 = vmatmul.bf16.gmra.mxu0 %v2202
  %v9700 = vpop.f32.mrf.mxu0
  %v9701 = vadd.f32 %v9687, %v9700
  %v9702 = vpop.f32.mrf.mxu0
  %v9703 = vadd.f32 %v9689, %v9702
  %9704 = vdwg.mxu0
  %9705 = vmatpush.bf16.msra.mxu0 %v6087
  %9706 = vmatpush.bf16.msra.mxu0 %v6081
  %9707 = vmatpush.bf16.msra.mxu0 %v6075
  %9708 = vmatpush.bf16.msra.mxu0 %v6069
  %9709 = vmatpush.bf16.msra.mxu0 %v6063
  %9710 = vmatpush.bf16.msra.mxu0 %v6057
  %9711 = vmatpush.bf16.msra.mxu0 %v6051
  %9712 = vmatpush.bf16.msra.mxu0 %v6045
  %9713 = vmatmul.bf16.gmra.mxu0 %v2203
  %v9714 = vpop.f32.mrf.mxu0
  %v9715 = vadd.f32 %v9701, %v9714
  %v9716 = vpop.f32.mrf.mxu0
  %v9717 = vadd.f32 %v9703, %v9716
  %9718 = vdwg.mxu0
  %9719 = vmatpush.bf16.msra.mxu0 %v6135
  %9720 = vmatpush.bf16.msra.mxu0 %v6129
  %9721 = vmatpush.bf16.msra.mxu0 %v6123
  %9722 = vmatpush.bf16.msra.mxu0 %v6117
  %9723 = vmatpush.bf16.msra.mxu0 %v6111
  %9724 = vmatpush.bf16.msra.mxu0 %v6105
  %9725 = vmatpush.bf16.msra.mxu0 %v6099
  %9726 = vmatpush.bf16.msra.mxu0 %v6093
  %9727 = vmatmul.bf16.gmra.mxu0 %v2204
  %v9728 = vpop.f32.mrf.mxu0
  %v9729 = vadd.f32 %v9715, %v9728
  %v9730 = vpop.f32.mrf.mxu0
  %v9731 = vadd.f32 %v9717, %v9730
  %9732 = vdwg.mxu0
  %9733 = vmatpush.bf16.msra.mxu0 %v6183
  %9734 = vmatpush.bf16.msra.mxu0 %v6177
  %9735 = vmatpush.bf16.msra.mxu0 %v6171
  %9736 = vmatpush.bf16.msra.mxu0 %v6165
  %9737 = vmatpush.bf16.msra.mxu0 %v6159
  %9738 = vmatpush.bf16.msra.mxu0 %v6153
  %9739 = vmatpush.bf16.msra.mxu0 %v6147
  %9740 = vmatpush.bf16.msra.mxu0 %v6141
  %9741 = vmatmul.bf16.gmra.mxu0 %v2205
  %v9742 = vpop.f32.mrf.mxu0
  %v9743 = vadd.f32 %v9729, %v9742
  %v9744 = vpop.f32.mrf.mxu0
  %v9745 = vadd.f32 %v9731, %v9744
  %9746 = vdwg.mxu0
  %9747 = vmatpush.bf16.msra.mxu0 %v6231
  %9748 = vmatpush.bf16.msra.mxu0 %v6225
  %9749 = vmatpush.bf16.msra.mxu0 %v6219
  %9750 = vmatpush.bf16.msra.mxu0 %v6213
  %9751 = vmatpush.bf16.msra.mxu0 %v6207
  %9752 = vmatpush.bf16.msra.mxu0 %v6201
  %9753 = vmatpush.bf16.msra.mxu0 %v6195
  %9754 = vmatpush.bf16.msra.mxu0 %v6189
  %9755 = vmatmul.bf16.gmra.mxu0 %v2206
  %v9756 = vpop.f32.mrf.mxu0
  %v9757 = vadd.f32 %v9743, %v9756
  %v9758 = vpop.f32.mrf.mxu0
  %v9759 = vadd.f32 %v9745, %v9758
  %9760 = vdwg.mxu0
  %9761 = vmatpush.bf16.msra.mxu0 %v6279
  %9762 = vmatpush.bf16.msra.mxu0 %v6273
  %9763 = vmatpush.bf16.msra.mxu0 %v6267
  %9764 = vmatpush.bf16.msra.mxu0 %v6261
  %9765 = vmatpush.bf16.msra.mxu0 %v6255
  %9766 = vmatpush.bf16.msra.mxu0 %v6249
  %9767 = vmatpush.bf16.msra.mxu0 %v6243
  %9768 = vmatpush.bf16.msra.mxu0 %v6237
  %9769 = vmatmul.bf16.gmra.mxu0 %v2207
  %v9770 = vpop.f32.mrf.mxu0
  %v9771 = vadd.f32 %v9757, %v9770
  %v9772 = vpop.f32.mrf.mxu0
  %v9773 = vadd.f32 %v9759, %v9772
  %9774 = vdwg.mxu0
  %9775 = vmatpush.bf16.msra.mxu0 %v6327
  %9776 = vmatpush.bf16.msra.mxu0 %v6321
  %9777 = vmatpush.bf16.msra.mxu0 %v6315
  %9778 = vmatpush.bf16.msra.mxu0 %v6309
  %9779 = vmatpush.bf16.msra.mxu0 %v6303
  %9780 = vmatpush.bf16.msra.mxu0 %v6297
  %9781 = vmatpush.bf16.msra.mxu0 %v6291
  %9782 = vmatpush.bf16.msra.mxu0 %v6285
  %9783 = vmatmul.bf16.gmra.mxu0 %v2208
  %v9784 = vpop.f32.mrf.mxu0
  %v9785 = vadd.f32 %v9771, %v9784
  %v9786 = vpop.f32.mrf.mxu0
  %v9787 = vadd.f32 %v9773, %v9786
  %9788 = vdwg.mxu0
  %9789 = vmatpush.bf16.msra.mxu0 %v6375
  %9790 = vmatpush.bf16.msra.mxu0 %v6369
  %9791 = vmatpush.bf16.msra.mxu0 %v6363
  %9792 = vmatpush.bf16.msra.mxu0 %v6357
  %9793 = vmatpush.bf16.msra.mxu0 %v6351
  %9794 = vmatpush.bf16.msra.mxu0 %v6345
  %9795 = vmatpush.bf16.msra.mxu0 %v6339
  %9796 = vmatpush.bf16.msra.mxu0 %v6333
  %9797 = vmatmul.bf16.gmra.mxu0 %v2209
  %v9798 = vpop.f32.mrf.mxu0
  %v9799 = vadd.f32 %v9785, %v9798
  %v9800 = vpop.f32.mrf.mxu0
  %v9801 = vadd.f32 %v9787, %v9800
  %9802 = vdwg.mxu0
  %9803 = vmatpush.bf16.msra.mxu0 %v6423
  %9804 = vmatpush.bf16.msra.mxu0 %v6417
  %9805 = vmatpush.bf16.msra.mxu0 %v6411
  %9806 = vmatpush.bf16.msra.mxu0 %v6405
  %9807 = vmatpush.bf16.msra.mxu0 %v6399
  %9808 = vmatpush.bf16.msra.mxu0 %v6393
  %9809 = vmatpush.bf16.msra.mxu0 %v6387
  %9810 = vmatpush.bf16.msra.mxu0 %v6381
  %9811 = vmatmul.bf16.gmra.mxu0 %v2210
  %v9812 = vpop.f32.mrf.mxu0
  %v9813 = vadd.f32 %v9799, %v9812
  %v9814 = vpop.f32.mrf.mxu0
  %v9815 = vadd.f32 %v9801, %v9814
  %9816 = vdwg.mxu0
  %9817 = vmatpush.bf16.msra.mxu0 %v6471
  %9818 = vmatpush.bf16.msra.mxu0 %v6465
  %9819 = vmatpush.bf16.msra.mxu0 %v6459
  %9820 = vmatpush.bf16.msra.mxu0 %v6453
  %9821 = vmatpush.bf16.msra.mxu0 %v6447
  %9822 = vmatpush.bf16.msra.mxu0 %v6441
  %9823 = vmatpush.bf16.msra.mxu0 %v6435
  %9824 = vmatpush.bf16.msra.mxu0 %v6429
  %9825 = vmatmul.bf16.gmra.mxu0 %v2211
  %v9826 = vpop.f32.mrf.mxu0
  %v9827 = vadd.f32 %v9813, %v9826
  %v9828 = vpop.f32.mrf.mxu0
  %v9829 = vadd.f32 %v9815, %v9828
  %9830 = vdwg.mxu0
  %9831 = vmatpush.bf16.msra.mxu0 %v6519
  %9832 = vmatpush.bf16.msra.mxu0 %v6513
  %9833 = vmatpush.bf16.msra.mxu0 %v6507
  %9834 = vmatpush.bf16.msra.mxu0 %v6501
  %9835 = vmatpush.bf16.msra.mxu0 %v6495
  %9836 = vmatpush.bf16.msra.mxu0 %v6489
  %9837 = vmatpush.bf16.msra.mxu0 %v6483
  %9838 = vmatpush.bf16.msra.mxu0 %v6477
  %9839 = vmatmul.bf16.gmra.mxu0 %v2212
  %v9840 = vpop.f32.mrf.mxu0
  %v9841 = vadd.f32 %v9827, %v9840
  %v9842 = vpop.f32.mrf.mxu0
  %v9843 = vadd.f32 %v9829, %v9842
  %9844 = vdwg.mxu0
  %9845 = vmatpush.bf16.msra.mxu0 %v6567
  %9846 = vmatpush.bf16.msra.mxu0 %v6561
  %9847 = vmatpush.bf16.msra.mxu0 %v6555
  %9848 = vmatpush.bf16.msra.mxu0 %v6549
  %9849 = vmatpush.bf16.msra.mxu0 %v6543
  %9850 = vmatpush.bf16.msra.mxu0 %v6537
  %9851 = vmatpush.bf16.msra.mxu0 %v6531
  %9852 = vmatpush.bf16.msra.mxu0 %v6525
  %9853 = vmatmul.bf16.gmra.mxu0 %v2213
  %v9854 = vpop.f32.mrf.mxu0
  %v9855 = vadd.f32 %v9841, %v9854
  %v9856 = vpop.f32.mrf.mxu0
  %v9857 = vadd.f32 %v9843, %v9856
  %9858 = vdwg.mxu0
  %9859 = vmatpush.bf16.msra.mxu0 %v6615
  %9860 = vmatpush.bf16.msra.mxu0 %v6609
  %9861 = vmatpush.bf16.msra.mxu0 %v6603
  %9862 = vmatpush.bf16.msra.mxu0 %v6597
  %9863 = vmatpush.bf16.msra.mxu0 %v6591
  %9864 = vmatpush.bf16.msra.mxu0 %v6585
  %9865 = vmatpush.bf16.msra.mxu0 %v6579
  %9866 = vmatpush.bf16.msra.mxu0 %v6573
  %9867 = vmatmul.bf16.gmra.mxu0 %v2214
  %v9868 = vpop.f32.mrf.mxu0
  %v9869 = vadd.f32 %v9855, %v9868
  %v9870 = vpop.f32.mrf.mxu0
  %v9871 = vadd.f32 %v9857, %v9870
  %9872 = vdwg.mxu0
  %9873 = vmatpush.bf16.msra.mxu0 %v6663
  %9874 = vmatpush.bf16.msra.mxu0 %v6657
  %9875 = vmatpush.bf16.msra.mxu0 %v6651
  %9876 = vmatpush.bf16.msra.mxu0 %v6645
  %9877 = vmatpush.bf16.msra.mxu0 %v6639
  %9878 = vmatpush.bf16.msra.mxu0 %v6633
  %9879 = vmatpush.bf16.msra.mxu0 %v6627
  %9880 = vmatpush.bf16.msra.mxu0 %v6621
  %9881 = vmatmul.bf16.gmra.mxu0 %v2215
  %v9882 = vpop.f32.mrf.mxu0
  %v9883 = vadd.f32 %v9869, %v9882
  %v9884 = vpop.f32.mrf.mxu0
  %v9885 = vadd.f32 %v9871, %v9884
  %9886 = vdwg.mxu0
  %9887 = vmatpush.bf16.msra.mxu0 %v6711
  %9888 = vmatpush.bf16.msra.mxu0 %v6705
  %9889 = vmatpush.bf16.msra.mxu0 %v6699
  %9890 = vmatpush.bf16.msra.mxu0 %v6693
  %9891 = vmatpush.bf16.msra.mxu0 %v6687
  %9892 = vmatpush.bf16.msra.mxu0 %v6681
  %9893 = vmatpush.bf16.msra.mxu0 %v6675
  %9894 = vmatpush.bf16.msra.mxu0 %v6669
  %9895 = vmatmul.bf16.gmra.mxu0 %v2216
  %v9896 = vpop.f32.mrf.mxu0
  %v9897 = vadd.f32 %v9883, %v9896
  %v9898 = vpop.f32.mrf.mxu0
  %v9899 = vadd.f32 %v9885, %v9898
  %9900 = vdwg.mxu0
  %9901 = vmatpush.bf16.msra.mxu0 %v6759
  %9902 = vmatpush.bf16.msra.mxu0 %v6753
  %9903 = vmatpush.bf16.msra.mxu0 %v6747
  %9904 = vmatpush.bf16.msra.mxu0 %v6741
  %9905 = vmatpush.bf16.msra.mxu0 %v6735
  %9906 = vmatpush.bf16.msra.mxu0 %v6729
  %9907 = vmatpush.bf16.msra.mxu0 %v6723
  %9908 = vmatpush.bf16.msra.mxu0 %v6717
  %9909 = vmatmul.bf16.gmra.mxu0 %v2217
  %v9910 = vpop.f32.mrf.mxu0
  %v9911 = vadd.f32 %v9897, %v9910
  %v9912 = vpop.f32.mrf.mxu0
  %v9913 = vadd.f32 %v9899, %v9912
  %9914 = vdwg.mxu0
  %9915 = vmatpush.bf16.msra.mxu0 %v6807
  %9916 = vmatpush.bf16.msra.mxu0 %v6801
  %9917 = vmatpush.bf16.msra.mxu0 %v6795
  %9918 = vmatpush.bf16.msra.mxu0 %v6789
  %9919 = vmatpush.bf16.msra.mxu0 %v6783
  %9920 = vmatpush.bf16.msra.mxu0 %v6777
  %9921 = vmatpush.bf16.msra.mxu0 %v6771
  %9922 = vmatpush.bf16.msra.mxu0 %v6765
  %9923 = vmatmul.bf16.gmra.mxu0 %v2218
  %v9924 = vpop.f32.mrf.mxu0
  %v9925 = vadd.f32 %v9911, %v9924
  %v9926 = vpop.f32.mrf.mxu0
  %v9927 = vadd.f32 %v9913, %v9926
  %9928 = vdwg.mxu0
  %9929 = vmatpush.bf16.msra.mxu0 %v6855
  %9930 = vmatpush.bf16.msra.mxu0 %v6849
  %9931 = vmatpush.bf16.msra.mxu0 %v6843
  %9932 = vmatpush.bf16.msra.mxu0 %v6837
  %9933 = vmatpush.bf16.msra.mxu0 %v6831
  %9934 = vmatpush.bf16.msra.mxu0 %v6825
  %9935 = vmatpush.bf16.msra.mxu0 %v6819
  %9936 = vmatpush.bf16.msra.mxu0 %v6813
  %9937 = vmatmul.bf16.gmra.mxu0 %v2219
  %v9938 = vpop.f32.mrf.mxu0
  %v9939 = vadd.f32 %v9925, %v9938
  %v9940 = vpop.f32.mrf.mxu0
  %v9941 = vadd.f32 %v9927, %v9940
  %9942 = vdwg.mxu0
  %9943 = vmatpush.bf16.msra.mxu0 %v6903
  %9944 = vmatpush.bf16.msra.mxu0 %v6897
  %9945 = vmatpush.bf16.msra.mxu0 %v6891
  %9946 = vmatpush.bf16.msra.mxu0 %v6885
  %9947 = vmatpush.bf16.msra.mxu0 %v6879
  %9948 = vmatpush.bf16.msra.mxu0 %v6873
  %9949 = vmatpush.bf16.msra.mxu0 %v6867
  %9950 = vmatpush.bf16.msra.mxu0 %v6861
  %9951 = vmatmul.bf16.gmra.mxu0 %v2220
  %v9952 = vpop.f32.mrf.mxu0
  %v9953 = vadd.f32 %v9939, %v9952
  %v9954 = vpop.f32.mrf.mxu0
  %v9955 = vadd.f32 %v9941, %v9954
  %9956 = vdwg.mxu0
  %9957 = vmatpush.bf16.msra.mxu0 %v6951
  %9958 = vmatpush.bf16.msra.mxu0 %v6945
  %9959 = vmatpush.bf16.msra.mxu0 %v6939
  %9960 = vmatpush.bf16.msra.mxu0 %v6933
  %9961 = vmatpush.bf16.msra.mxu0 %v6927
  %9962 = vmatpush.bf16.msra.mxu0 %v6921
  %9963 = vmatpush.bf16.msra.mxu0 %v6915
  %9964 = vmatpush.bf16.msra.mxu0 %v6909
  %9965 = vmatmul.bf16.gmra.mxu0 %v2221
  %v9966 = vpop.f32.mrf.mxu0
  %v9967 = vadd.f32 %v9953, %v9966
  %v9968 = vpop.f32.mrf.mxu0
  %v9969 = vadd.f32 %v9955, %v9968
  %9970 = vdwg.mxu0
  %9971 = vmatpush.bf16.msra.mxu0 %v6999
  %9972 = vmatpush.bf16.msra.mxu0 %v6993
  %9973 = vmatpush.bf16.msra.mxu0 %v6987
  %9974 = vmatpush.bf16.msra.mxu0 %v6981
  %9975 = vmatpush.bf16.msra.mxu0 %v6975
  %9976 = vmatpush.bf16.msra.mxu0 %v6969
  %9977 = vmatpush.bf16.msra.mxu0 %v6963
  %9978 = vmatpush.bf16.msra.mxu0 %v6957
  %9979 = vmatmul.bf16.gmra.mxu0 %v2222
  %v9980 = vpop.f32.mrf.mxu0
  %v9981 = vadd.f32 %v9967, %v9980
  %v9982 = vpop.f32.mrf.mxu0
  %v9983 = vadd.f32 %v9969, %v9982
  %9984 = vdwg.mxu0
  %9985 = vmatpush.bf16.msra.mxu0 %v7047
  %9986 = vmatpush.bf16.msra.mxu0 %v7041
  %9987 = vmatpush.bf16.msra.mxu0 %v7035
  %9988 = vmatpush.bf16.msra.mxu0 %v7029
  %9989 = vmatpush.bf16.msra.mxu0 %v7023
  %9990 = vmatpush.bf16.msra.mxu0 %v7017
  %9991 = vmatpush.bf16.msra.mxu0 %v7011
  %9992 = vmatpush.bf16.msra.mxu0 %v7005
  %9993 = vmatmul.bf16.gmra.mxu0 %v2223
  %v9994 = vpop.f32.mrf.mxu0
  %v9995 = vadd.f32 %v9981, %v9994
  %v9996 = vpop.f32.mrf.mxu0
  %v9997 = vadd.f32 %v9983, %v9996
  %9998 = vdwg.mxu0
  %9999 = vmatpush.bf16.msra.mxu0 %v5896
  %10000 = vmatpush.bf16.msra.mxu0 %v5890
  %10001 = vmatpush.bf16.msra.mxu0 %v5884
  %10002 = vmatpush.bf16.msra.mxu0 %v5878
  %10003 = vmatpush.bf16.msra.mxu0 %v5872
  %10004 = vmatpush.bf16.msra.mxu0 %v5866
  %10005 = vmatpush.bf16.msra.mxu0 %v5860
  %10006 = vmatpush.bf16.msra.mxu0 %v5854
  %10007 = vmatmul.bf16.gmra.mxu0 %v2199
  %v10008 = vpop.f32.mrf.mxu0
  %v10009 = vadd.f32 %v2116, %v10008
  %v10010 = vpop.f32.mrf.mxu0
  %v10011 = vadd.f32 %v2116, %v10010
  %10012 = vdwg.mxu0
  %10013 = vmatpush.bf16.msra.mxu0 %v5944
  %10014 = vmatpush.bf16.msra.mxu0 %v5938
  %10015 = vmatpush.bf16.msra.mxu0 %v5932
  %10016 = vmatpush.bf16.msra.mxu0 %v5926
  %10017 = vmatpush.bf16.msra.mxu0 %v5920
  %10018 = vmatpush.bf16.msra.mxu0 %v5914
  %10019 = vmatpush.bf16.msra.mxu0 %v5908
  %10020 = vmatpush.bf16.msra.mxu0 %v5902
  %10021 = vmatmul.bf16.gmra.mxu0 %v2200
  %v10022 = vpop.f32.mrf.mxu0
  %v10023 = vadd.f32 %v10009, %v10022
  %v10024 = vpop.f32.mrf.mxu0
  %v10025 = vadd.f32 %v10011, %v10024
  %10026 = vdwg.mxu0
  %10027 = vmatpush.bf16.msra.mxu0 %v5992
  %10028 = vmatpush.bf16.msra.mxu0 %v5986
  %10029 = vmatpush.bf16.msra.mxu0 %v5980
  %10030 = vmatpush.bf16.msra.mxu0 %v5974
  %10031 = vmatpush.bf16.msra.mxu0 %v5968
  %10032 = vmatpush.bf16.msra.mxu0 %v5962
  %10033 = vmatpush.bf16.msra.mxu0 %v5956
  %10034 = vmatpush.bf16.msra.mxu0 %v5950
  %10035 = vmatmul.bf16.gmra.mxu0 %v2201
  %v10036 = vpop.f32.mrf.mxu0
  %v10037 = vadd.f32 %v10023, %v10036
  %v10038 = vpop.f32.mrf.mxu0
  %v10039 = vadd.f32 %v10025, %v10038
  %10040 = vdwg.mxu0
  %10041 = vmatpush.bf16.msra.mxu0 %v6040
  %10042 = vmatpush.bf16.msra.mxu0 %v6034
  %10043 = vmatpush.bf16.msra.mxu0 %v6028
  %10044 = vmatpush.bf16.msra.mxu0 %v6022
  %10045 = vmatpush.bf16.msra.mxu0 %v6016
  %10046 = vmatpush.bf16.msra.mxu0 %v6010
  %10047 = vmatpush.bf16.msra.mxu0 %v6004
  %10048 = vmatpush.bf16.msra.mxu0 %v5998
  %10049 = vmatmul.bf16.gmra.mxu0 %v2202
  %v10050 = vpop.f32.mrf.mxu0
  %v10051 = vadd.f32 %v10037, %v10050
  %v10052 = vpop.f32.mrf.mxu0
  %v10053 = vadd.f32 %v10039, %v10052
  %10054 = vdwg.mxu0
  %10055 = vmatpush.bf16.msra.mxu0 %v6088
  %10056 = vmatpush.bf16.msra.mxu0 %v6082
  %10057 = vmatpush.bf16.msra.mxu0 %v6076
  %10058 = vmatpush.bf16.msra.mxu0 %v6070
  %10059 = vmatpush.bf16.msra.mxu0 %v6064
  %10060 = vmatpush.bf16.msra.mxu0 %v6058
  %10061 = vmatpush.bf16.msra.mxu0 %v6052
  %10062 = vmatpush.bf16.msra.mxu0 %v6046
  %10063 = vmatmul.bf16.gmra.mxu0 %v2203
  %v10064 = vpop.f32.mrf.mxu0
  %v10065 = vadd.f32 %v10051, %v10064
  %v10066 = vpop.f32.mrf.mxu0
  %v10067 = vadd.f32 %v10053, %v10066
  %10068 = vdwg.mxu0
  %10069 = vmatpush.bf16.msra.mxu0 %v6136
  %10070 = vmatpush.bf16.msra.mxu0 %v6130
  %10071 = vmatpush.bf16.msra.mxu0 %v6124
  %10072 = vmatpush.bf16.msra.mxu0 %v6118
  %10073 = vmatpush.bf16.msra.mxu0 %v6112
  %10074 = vmatpush.bf16.msra.mxu0 %v6106
  %10075 = vmatpush.bf16.msra.mxu0 %v6100
  %10076 = vmatpush.bf16.msra.mxu0 %v6094
  %10077 = vmatmul.bf16.gmra.mxu0 %v2204
  %v10078 = vpop.f32.mrf.mxu0
  %v10079 = vadd.f32 %v10065, %v10078
  %v10080 = vpop.f32.mrf.mxu0
  %v10081 = vadd.f32 %v10067, %v10080
  %10082 = vdwg.mxu0
  %10083 = vmatpush.bf16.msra.mxu0 %v6184
  %10084 = vmatpush.bf16.msra.mxu0 %v6178
  %10085 = vmatpush.bf16.msra.mxu0 %v6172
  %10086 = vmatpush.bf16.msra.mxu0 %v6166
  %10087 = vmatpush.bf16.msra.mxu0 %v6160
  %10088 = vmatpush.bf16.msra.mxu0 %v6154
  %10089 = vmatpush.bf16.msra.mxu0 %v6148
  %10090 = vmatpush.bf16.msra.mxu0 %v6142
  %10091 = vmatmul.bf16.gmra.mxu0 %v2205
  %v10092 = vpop.f32.mrf.mxu0
  %v10093 = vadd.f32 %v10079, %v10092
  %v10094 = vpop.f32.mrf.mxu0
  %v10095 = vadd.f32 %v10081, %v10094
  %10096 = vdwg.mxu0
  %10097 = vmatpush.bf16.msra.mxu0 %v6232
  %10098 = vmatpush.bf16.msra.mxu0 %v6226
  %10099 = vmatpush.bf16.msra.mxu0 %v6220
  %10100 = vmatpush.bf16.msra.mxu0 %v6214
  %10101 = vmatpush.bf16.msra.mxu0 %v6208
  %10102 = vmatpush.bf16.msra.mxu0 %v6202
  %10103 = vmatpush.bf16.msra.mxu0 %v6196
  %10104 = vmatpush.bf16.msra.mxu0 %v6190
  %10105 = vmatmul.bf16.gmra.mxu0 %v2206
  %v10106 = vpop.f32.mrf.mxu0
  %v10107 = vadd.f32 %v10093, %v10106
  %v10108 = vpop.f32.mrf.mxu0
  %v10109 = vadd.f32 %v10095, %v10108
  %10110 = vdwg.mxu0
  %10111 = vmatpush.bf16.msra.mxu0 %v6280
  %10112 = vmatpush.bf16.msra.mxu0 %v6274
  %10113 = vmatpush.bf16.msra.mxu0 %v6268
  %10114 = vmatpush.bf16.msra.mxu0 %v6262
  %10115 = vmatpush.bf16.msra.mxu0 %v6256
  %10116 = vmatpush.bf16.msra.mxu0 %v6250
  %10117 = vmatpush.bf16.msra.mxu0 %v6244
  %10118 = vmatpush.bf16.msra.mxu0 %v6238
  %10119 = vmatmul.bf16.gmra.mxu0 %v2207
  %v10120 = vpop.f32.mrf.mxu0
  %v10121 = vadd.f32 %v10107, %v10120
  %v10122 = vpop.f32.mrf.mxu0
  %v10123 = vadd.f32 %v10109, %v10122
  %10124 = vdwg.mxu0
  %10125 = vmatpush.bf16.msra.mxu0 %v6328
  %10126 = vmatpush.bf16.msra.mxu0 %v6322
  %10127 = vmatpush.bf16.msra.mxu0 %v6316
  %10128 = vmatpush.bf16.msra.mxu0 %v6310
  %10129 = vmatpush.bf16.msra.mxu0 %v6304
  %10130 = vmatpush.bf16.msra.mxu0 %v6298
  %10131 = vmatpush.bf16.msra.mxu0 %v6292
  %10132 = vmatpush.bf16.msra.mxu0 %v6286
  %10133 = vmatmul.bf16.gmra.mxu0 %v2208
  %v10134 = vpop.f32.mrf.mxu0
  %v10135 = vadd.f32 %v10121, %v10134
  %v10136 = vpop.f32.mrf.mxu0
  %v10137 = vadd.f32 %v10123, %v10136
  %10138 = vdwg.mxu0
  %10139 = vmatpush.bf16.msra.mxu0 %v6376
  %10140 = vmatpush.bf16.msra.mxu0 %v6370
  %10141 = vmatpush.bf16.msra.mxu0 %v6364
  %10142 = vmatpush.bf16.msra.mxu0 %v6358
  %10143 = vmatpush.bf16.msra.mxu0 %v6352
  %10144 = vmatpush.bf16.msra.mxu0 %v6346
  %10145 = vmatpush.bf16.msra.mxu0 %v6340
  %10146 = vmatpush.bf16.msra.mxu0 %v6334
  %10147 = vmatmul.bf16.gmra.mxu0 %v2209
  %v10148 = vpop.f32.mrf.mxu0
  %v10149 = vadd.f32 %v10135, %v10148
  %v10150 = vpop.f32.mrf.mxu0
  %v10151 = vadd.f32 %v10137, %v10150
  %10152 = vdwg.mxu0
  %10153 = vmatpush.bf16.msra.mxu0 %v6424
  %10154 = vmatpush.bf16.msra.mxu0 %v6418
  %10155 = vmatpush.bf16.msra.mxu0 %v6412
  %10156 = vmatpush.bf16.msra.mxu0 %v6406
  %10157 = vmatpush.bf16.msra.mxu0 %v6400
  %10158 = vmatpush.bf16.msra.mxu0 %v6394
  %10159 = vmatpush.bf16.msra.mxu0 %v6388
  %10160 = vmatpush.bf16.msra.mxu0 %v6382
  %10161 = vmatmul.bf16.gmra.mxu0 %v2210
  %v10162 = vpop.f32.mrf.mxu0
  %v10163 = vadd.f32 %v10149, %v10162
  %v10164 = vpop.f32.mrf.mxu0
  %v10165 = vadd.f32 %v10151, %v10164
  %10166 = vdwg.mxu0
  %10167 = vmatpush.bf16.msra.mxu0 %v6472
  %10168 = vmatpush.bf16.msra.mxu0 %v6466
  %10169 = vmatpush.bf16.msra.mxu0 %v6460
  %10170 = vmatpush.bf16.msra.mxu0 %v6454
  %10171 = vmatpush.bf16.msra.mxu0 %v6448
  %10172 = vmatpush.bf16.msra.mxu0 %v6442
  %10173 = vmatpush.bf16.msra.mxu0 %v6436
  %10174 = vmatpush.bf16.msra.mxu0 %v6430
  %10175 = vmatmul.bf16.gmra.mxu0 %v2211
  %v10176 = vpop.f32.mrf.mxu0
  %v10177 = vadd.f32 %v10163, %v10176
  %v10178 = vpop.f32.mrf.mxu0
  %v10179 = vadd.f32 %v10165, %v10178
  %10180 = vdwg.mxu0
  %10181 = vmatpush.bf16.msra.mxu0 %v6520
  %10182 = vmatpush.bf16.msra.mxu0 %v6514
  %10183 = vmatpush.bf16.msra.mxu0 %v6508
  %10184 = vmatpush.bf16.msra.mxu0 %v6502
  %10185 = vmatpush.bf16.msra.mxu0 %v6496
  %10186 = vmatpush.bf16.msra.mxu0 %v6490
  %10187 = vmatpush.bf16.msra.mxu0 %v6484
  %10188 = vmatpush.bf16.msra.mxu0 %v6478
  %10189 = vmatmul.bf16.gmra.mxu0 %v2212
  %v10190 = vpop.f32.mrf.mxu0
  %v10191 = vadd.f32 %v10177, %v10190
  %v10192 = vpop.f32.mrf.mxu0
  %v10193 = vadd.f32 %v10179, %v10192
  %10194 = vdwg.mxu0
  %10195 = vmatpush.bf16.msra.mxu0 %v6568
  %10196 = vmatpush.bf16.msra.mxu0 %v6562
  %10197 = vmatpush.bf16.msra.mxu0 %v6556
  %10198 = vmatpush.bf16.msra.mxu0 %v6550
  %10199 = vmatpush.bf16.msra.mxu0 %v6544
  %10200 = vmatpush.bf16.msra.mxu0 %v6538
  %10201 = vmatpush.bf16.msra.mxu0 %v6532
  %10202 = vmatpush.bf16.msra.mxu0 %v6526
  %10203 = vmatmul.bf16.gmra.mxu0 %v2213
  %v10204 = vpop.f32.mrf.mxu0
  %v10205 = vadd.f32 %v10191, %v10204
  %v10206 = vpop.f32.mrf.mxu0
  %v10207 = vadd.f32 %v10193, %v10206
  %10208 = vdwg.mxu0
  %10209 = vmatpush.bf16.msra.mxu0 %v6616
  %10210 = vmatpush.bf16.msra.mxu0 %v6610
  %10211 = vmatpush.bf16.msra.mxu0 %v6604
  %10212 = vmatpush.bf16.msra.mxu0 %v6598
  %10213 = vmatpush.bf16.msra.mxu0 %v6592
  %10214 = vmatpush.bf16.msra.mxu0 %v6586
  %10215 = vmatpush.bf16.msra.mxu0 %v6580
  %10216 = vmatpush.bf16.msra.mxu0 %v6574
  %10217 = vmatmul.bf16.gmra.mxu0 %v2214
  %v10218 = vpop.f32.mrf.mxu0
  %v10219 = vadd.f32 %v10205, %v10218
  %v10220 = vpop.f32.mrf.mxu0
  %v10221 = vadd.f32 %v10207, %v10220
  %10222 = vdwg.mxu0
  %10223 = vmatpush.bf16.msra.mxu0 %v6664
  %10224 = vmatpush.bf16.msra.mxu0 %v6658
  %10225 = vmatpush.bf16.msra.mxu0 %v6652
  %10226 = vmatpush.bf16.msra.mxu0 %v6646
  %10227 = vmatpush.bf16.msra.mxu0 %v6640
  %10228 = vmatpush.bf16.msra.mxu0 %v6634
  %10229 = vmatpush.bf16.msra.mxu0 %v6628
  %10230 = vmatpush.bf16.msra.mxu0 %v6622
  %10231 = vmatmul.bf16.gmra.mxu0 %v2215
  %v10232 = vpop.f32.mrf.mxu0
  %v10233 = vadd.f32 %v10219, %v10232
  %v10234 = vpop.f32.mrf.mxu0
  %v10235 = vadd.f32 %v10221, %v10234
  %10236 = vdwg.mxu0
  %10237 = vmatpush.bf16.msra.mxu0 %v6712
  %10238 = vmatpush.bf16.msra.mxu0 %v6706
  %10239 = vmatpush.bf16.msra.mxu0 %v6700
  %10240 = vmatpush.bf16.msra.mxu0 %v6694
  %10241 = vmatpush.bf16.msra.mxu0 %v6688
  %10242 = vmatpush.bf16.msra.mxu0 %v6682
  %10243 = vmatpush.bf16.msra.mxu0 %v6676
  %10244 = vmatpush.bf16.msra.mxu0 %v6670
  %10245 = vmatmul.bf16.gmra.mxu0 %v2216
  %v10246 = vpop.f32.mrf.mxu0
  %v10247 = vadd.f32 %v10233, %v10246
  %v10248 = vpop.f32.mrf.mxu0
  %v10249 = vadd.f32 %v10235, %v10248
  %10250 = vdwg.mxu0
  %10251 = vmatpush.bf16.msra.mxu0 %v6760
  %10252 = vmatpush.bf16.msra.mxu0 %v6754
  %10253 = vmatpush.bf16.msra.mxu0 %v6748
  %10254 = vmatpush.bf16.msra.mxu0 %v6742
  %10255 = vmatpush.bf16.msra.mxu0 %v6736
  %10256 = vmatpush.bf16.msra.mxu0 %v6730
  %10257 = vmatpush.bf16.msra.mxu0 %v6724
  %10258 = vmatpush.bf16.msra.mxu0 %v6718
  %10259 = vmatmul.bf16.gmra.mxu0 %v2217
  %v10260 = vpop.f32.mrf.mxu0
  %v10261 = vadd.f32 %v10247, %v10260
  %v10262 = vpop.f32.mrf.mxu0
  %v10263 = vadd.f32 %v10249, %v10262
  %10264 = vdwg.mxu0
  %10265 = vmatpush.bf16.msra.mxu0 %v6808
  %10266 = vmatpush.bf16.msra.mxu0 %v6802
  %10267 = vmatpush.bf16.msra.mxu0 %v6796
  %10268 = vmatpush.bf16.msra.mxu0 %v6790
  %10269 = vmatpush.bf16.msra.mxu0 %v6784
  %10270 = vmatpush.bf16.msra.mxu0 %v6778
  %10271 = vmatpush.bf16.msra.mxu0 %v6772
  %10272 = vmatpush.bf16.msra.mxu0 %v6766
  %10273 = vmatmul.bf16.gmra.mxu0 %v2218
  %v10274 = vpop.f32.mrf.mxu0
  %v10275 = vadd.f32 %v10261, %v10274
  %v10276 = vpop.f32.mrf.mxu0
  %v10277 = vadd.f32 %v10263, %v10276
  %10278 = vdwg.mxu0
  %10279 = vmatpush.bf16.msra.mxu0 %v6856
  %10280 = vmatpush.bf16.msra.mxu0 %v6850
  %10281 = vmatpush.bf16.msra.mxu0 %v6844
  %10282 = vmatpush.bf16.msra.mxu0 %v6838
  %10283 = vmatpush.bf16.msra.mxu0 %v6832
  %10284 = vmatpush.bf16.msra.mxu0 %v6826
  %10285 = vmatpush.bf16.msra.mxu0 %v6820
  %10286 = vmatpush.bf16.msra.mxu0 %v6814
  %10287 = vmatmul.bf16.gmra.mxu0 %v2219
  %v10288 = vpop.f32.mrf.mxu0
  %v10289 = vadd.f32 %v10275, %v10288
  %v10290 = vpop.f32.mrf.mxu0
  %v10291 = vadd.f32 %v10277, %v10290
  %10292 = vdwg.mxu0
  %10293 = vmatpush.bf16.msra.mxu0 %v6904
  %10294 = vmatpush.bf16.msra.mxu0 %v6898
  %10295 = vmatpush.bf16.msra.mxu0 %v6892
  %10296 = vmatpush.bf16.msra.mxu0 %v6886
  %10297 = vmatpush.bf16.msra.mxu0 %v6880
  %10298 = vmatpush.bf16.msra.mxu0 %v6874
  %10299 = vmatpush.bf16.msra.mxu0 %v6868
  %10300 = vmatpush.bf16.msra.mxu0 %v6862
  %10301 = vmatmul.bf16.gmra.mxu0 %v2220
  %v10302 = vpop.f32.mrf.mxu0
  %v10303 = vadd.f32 %v10289, %v10302
  %v10304 = vpop.f32.mrf.mxu0
  %v10305 = vadd.f32 %v10291, %v10304
  %10306 = vdwg.mxu0
  %10307 = vmatpush.bf16.msra.mxu0 %v6952
  %10308 = vmatpush.bf16.msra.mxu0 %v6946
  %10309 = vmatpush.bf16.msra.mxu0 %v6940
  %10310 = vmatpush.bf16.msra.mxu0 %v6934
  %10311 = vmatpush.bf16.msra.mxu0 %v6928
  %10312 = vmatpush.bf16.msra.mxu0 %v6922
  %10313 = vmatpush.bf16.msra.mxu0 %v6916
  %10314 = vmatpush.bf16.msra.mxu0 %v6910
  %10315 = vmatmul.bf16.gmra.mxu0 %v2221
  %v10316 = vpop.f32.mrf.mxu0
  %v10317 = vadd.f32 %v10303, %v10316
  %v10318 = vpop.f32.mrf.mxu0
  %v10319 = vadd.f32 %v10305, %v10318
  %10320 = vdwg.mxu0
  %10321 = vmatpush.bf16.msra.mxu0 %v7000
  %10322 = vmatpush.bf16.msra.mxu0 %v6994
  %10323 = vmatpush.bf16.msra.mxu0 %v6988
  %10324 = vmatpush.bf16.msra.mxu0 %v6982
  %10325 = vmatpush.bf16.msra.mxu0 %v6976
  %10326 = vmatpush.bf16.msra.mxu0 %v6970
  %10327 = vmatpush.bf16.msra.mxu0 %v6964
  %10328 = vmatpush.bf16.msra.mxu0 %v6958
  %10329 = vmatmul.bf16.gmra.mxu0 %v2222
  %v10330 = vpop.f32.mrf.mxu0
  %v10331 = vadd.f32 %v10317, %v10330
  %v10332 = vpop.f32.mrf.mxu0
  %v10333 = vadd.f32 %v10319, %v10332
  %10334 = vdwg.mxu0
  %10335 = vmatpush.bf16.msra.mxu0 %v7048
  %10336 = vmatpush.bf16.msra.mxu0 %v7042
  %10337 = vmatpush.bf16.msra.mxu0 %v7036
  %10338 = vmatpush.bf16.msra.mxu0 %v7030
  %10339 = vmatpush.bf16.msra.mxu0 %v7024
  %10340 = vmatpush.bf16.msra.mxu0 %v7018
  %10341 = vmatpush.bf16.msra.mxu0 %v7012
  %10342 = vmatpush.bf16.msra.mxu0 %v7006
  %10343 = vmatmul.bf16.gmra.mxu0 %v2223
  %v10344 = vpop.f32.mrf.mxu0
  %v10345 = vadd.f32 %v10331, %v10344
  %v10346 = vpop.f32.mrf.mxu0
  %v10347 = vadd.f32 %v10333, %v10346
  %10348 = vdwg.mxu0
  %v10349 = vmax.f32 %v8595, 0.0
  %v10350 = vmax.f32 %v8945, 0.0
  %v10351 = vmax.f32 %v9295, 0.0
  %v10352 = vmax.f32 %v9645, 0.0
  %v10353 = vmax.f32 %v9995, 0.0
  %v10354 = vmax.f32 %v10345, 0.0
  %v10355 = vmax.f32 %v8597, 0.0
  %v10356 = vmax.f32 %v8947, 0.0
  %v10357 = vmax.f32 %v9297, 0.0
  %v10358 = vmax.f32 %v9647, 0.0
  %v10359 = vmax.f32 %v9997, 0.0
  %v10360 = vmax.f32 %v10347, 0.0
  %v10361 = vpack.c.bf16 %v10355, %v10349
  %v10362 = vpack.c.bf16 %v10356, %v10350
  %v10363 = vpack.c.bf16 %v10357, %v10351
  %v10364 = vpack.c.bf16 %v10358, %v10352
  %v10365 = vpack.c.bf16 %v10359, %v10353
  %v10366 = vpack.c.bf16 %v10360, %v10354
  %v10367 = vld [vmem:[%s5] sm:$0xf]
  %v10368 = vld [vmem:[%s5 + $0x4] sm:$0xf]
  %v10369 = vld [vmem:[%s5 + $0x8] sm:$0xf]
  %v10370 = vld [vmem:[%s5 + $0xc] sm:$0xf]
  %v10371 = vld [vmem:[%s5 + $0x10] sm:$0xf]
  %v10372 = vld [vmem:[%s5 + $0x14] sm:$0xf]
  %v10373 = vld [vmem:[%s5 + $0x18] sm:$0xf]
  %v10374 = vld [vmem:[%s5 + $0x1c] sm:$0xf]
  %v10375 = vld [vmem:[%s5 + $0x20] sm:$0xf]
  %v10376 = vld [vmem:[%s5 + $0x24] sm:$0xf]
  %v10377 = vld [vmem:[%s5 + $0x28] sm:$0xf]
  %v10378 = vld [vmem:[%s5 + $0x2c] sm:$0xf]
  %v10379 = vld [vmem:[%s5 + $0x30] sm:$0xf]
  %v10380 = vld [vmem:[%s5 + $0x34] sm:$0xf]
  %v10381 = vld [vmem:[%s5 + $0x38] sm:$0xf]
  %v10382 = vld [vmem:[%s5 + $0x3c] sm:$0xf]
  %v10383 = vld [vmem:[%s5 + $0x40] sm:$0xf]
  %v10384 = vld [vmem:[%s5 + $0x44] sm:$0xf]
  %v10385 = vld [vmem:[%s5 + $0x48] sm:$0xf]
  %v10386 = vld [vmem:[%s5 + $0x4c] sm:$0xf]
  %v10387 = vld [vmem:[%s5 + $0x50] sm:$0xf]
  %v10388 = vld [vmem:[%s5 + $0x54] sm:$0xf]
  %v10389 = vld [vmem:[%s5 + $0x58] sm:$0xf]
  %v10390 = vld [vmem:[%s5 + $0x5c] sm:$0xf]
  %v10391 = vld [vmem:[%s5 + $0x60] sm:$0xf]
  %v10392 = vld [vmem:[%s5 + $0x64] sm:$0xf]
  %v10393 = vld [vmem:[%s5 + $0x68] sm:$0xf]
  %v10394 = vld [vmem:[%s5 + $0x6c] sm:$0xf]
  %v10395 = vld [vmem:[%s5 + $0x70] sm:$0xf]
  %v10396 = vld [vmem:[%s5 + $0x74] sm:$0xf]
  %v10397 = vld [vmem:[%s5 + $0x78] sm:$0xf]
  %v10398 = vld [vmem:[%s5 + $0x7c] sm:$0xf]
  %v10399 = vld [vmem:[%s5 + $0x80] sm:$0xf]
  %v10400 = vld [vmem:[%s5 + $0x84] sm:$0xf]
  %v10401 = vld [vmem:[%s5 + $0x88] sm:$0xf]
  %v10402 = vld [vmem:[%s5 + $0x8c] sm:$0xf]
  %v10403 = vld [vmem:[%s5 + $0x90] sm:$0xf]
  %v10404 = vld [vmem:[%s5 + $0x94] sm:$0xf]
  %v10405 = vld [vmem:[%s5 + $0x98] sm:$0xf]
  %v10406 = vld [vmem:[%s5 + $0x9c] sm:$0xf]
  %v10407 = vld [vmem:[%s5 + $0xa0] sm:$0xf]
  %v10408 = vld [vmem:[%s5 + $0xa4] sm:$0xf]
  %v10409 = vld [vmem:[%s5 + $0xa8] sm:$0xf]
  %v10410 = vld [vmem:[%s5 + $0xac] sm:$0xf]
  %v10411 = vld [vmem:[%s5 + $0xb0] sm:$0xf]
  %v10412 = vld [vmem:[%s5 + $0xb4] sm:$0xf]
  %v10413 = vld [vmem:[%s5 + $0xb8] sm:$0xf]
  %v10414 = vld [vmem:[%s5 + $0xbc] sm:$0xf]
  %v10415 = vld [vmem:[%s5 + $0xc0] sm:$0xf]
  %v10416 = vld [vmem:[%s5 + $0xc4] sm:$0xf]
  %v10417 = vld [vmem:[%s5 + $0xc8] sm:$0xf]
  %v10418 = vld [vmem:[%s5 + $0xcc] sm:$0xf]
  %v10419 = vld [vmem:[%s5 + $0xd0] sm:$0xf]
  %v10420 = vld [vmem:[%s5 + $0xd4] sm:$0xf]
  %v10421 = vld [vmem:[%s5 + $0xd8] sm:$0xf]
  %v10422 = vld [vmem:[%s5 + $0xdc] sm:$0xf]
  %v10423 = vld [vmem:[%s5 + $0xe0] sm:$0xf]
  %v10424 = vld [vmem:[%s5 + $0xe4] sm:$0xf]
  %v10425 = vld [vmem:[%s5 + $0xe8] sm:$0xf]
  %v10426 = vld [vmem:[%s5 + $0xec] sm:$0xf]
  %v10427 = vld [vmem:[%s5 + $0xf0] sm:$0xf]
  %v10428 = vld [vmem:[%s5 + $0xf4] sm:$0xf]
  %v10429 = vld [vmem:[%s5 + $0xf8] sm:$0xf]
  %v10430 = vld [vmem:[%s5 + $0xfc] sm:$0xf]
  %v10431 = vld [vmem:[%s5 + $0x100] sm:$0xf]
  %v10432 = vld [vmem:[%s5 + $0x104] sm:$0xf]
  %v10433 = vld [vmem:[%s5 + $0x108] sm:$0xf]
  %v10434 = vld [vmem:[%s5 + $0x10c] sm:$0xf]
  %v10435 = vld [vmem:[%s5 + $0x110] sm:$0xf]
  %v10436 = vld [vmem:[%s5 + $0x114] sm:$0xf]
  %v10437 = vld [vmem:[%s5 + $0x118] sm:$0xf]
  %v10438 = vld [vmem:[%s5 + $0x11c] sm:$0xf]
  %v10439 = vld [vmem:[%s5 + $0x120] sm:$0xf]
  %v10440 = vld [vmem:[%s5 + $0x124] sm:$0xf]
  %v10441 = vld [vmem:[%s5 + $0x128] sm:$0xf]
  %v10442 = vld [vmem:[%s5 + $0x12c] sm:$0xf]
  %v10443 = vld [vmem:[%s5 + $0x130] sm:$0xf]
  %v10444 = vld [vmem:[%s5 + $0x134] sm:$0xf]
  %v10445 = vld [vmem:[%s5 + $0x138] sm:$0xf]
  %v10446 = vld [vmem:[%s5 + $0x13c] sm:$0xf]
  %v10447 = vld [vmem:[%s5 + $0x140] sm:$0xf]
  %v10448 = vld [vmem:[%s5 + $0x144] sm:$0xf]
  %v10449 = vld [vmem:[%s5 + $0x148] sm:$0xf]
  %v10450 = vld [vmem:[%s5 + $0x14c] sm:$0xf]
  %v10451 = vld [vmem:[%s5 + $0x150] sm:$0xf]
  %v10452 = vld [vmem:[%s5 + $0x154] sm:$0xf]
  %v10453 = vld [vmem:[%s5 + $0x158] sm:$0xf]
  %v10454 = vld [vmem:[%s5 + $0x15c] sm:$0xf]
  %v10455 = vld [vmem:[%s5 + $0x160] sm:$0xf]
  %v10456 = vld [vmem:[%s5 + $0x164] sm:$0xf]
  %v10457 = vld [vmem:[%s5 + $0x168] sm:$0xf]
  %v10458 = vld [vmem:[%s5 + $0x16c] sm:$0xf]
  %v10459 = vld [vmem:[%s5 + $0x170] sm:$0xf]
  %v10460 = vld [vmem:[%s5 + $0x174] sm:$0xf]
  %v10461 = vld [vmem:[%s5 + $0x178] sm:$0xf]
  %v10462 = vld [vmem:[%s5 + $0x17c] sm:$0xf]
  %v10463 = vld [vmem:[%s6] sm:$0x1]
  %v10465 = vperm.slane %v10463, 0
  %v10563 = vunpack.c.l.b16 %v10367
  %v10564 = vunpack.c.l.b16 %v10368
  %v10565 = vunpack.c.l.b16 %v10369
  %v10566 = vunpack.c.l.b16 %v10370
  %v10567 = vunpack.c.l.b16 %v10371
  %v10568 = vunpack.c.l.b16 %v10372
  %v10569 = vunpack.c.l.b16 %v10373
  %v10570 = vunpack.c.l.b16 %v10374
  %v10571 = vunpack.c.l.b16 %v10375
  %v10572 = vunpack.c.l.b16 %v10376
  %v10573 = vunpack.c.l.b16 %v10377
  %v10574 = vunpack.c.l.b16 %v10378
  %v10575 = vunpack.c.l.b16 %v10379
  %v10576 = vunpack.c.l.b16 %v10380
  %v10577 = vunpack.c.l.b16 %v10381
  %v10578 = vunpack.c.l.b16 %v10382
  %v10579 = vunpack.c.l.b16 %v10383
  %v10580 = vunpack.c.l.b16 %v10384
  %v10581 = vunpack.c.l.b16 %v10385
  %v10582 = vunpack.c.l.b16 %v10386
  %v10583 = vunpack.c.l.b16 %v10387
  %v10584 = vunpack.c.l.b16 %v10388
  %v10585 = vunpack.c.l.b16 %v10389
  %v10586 = vunpack.c.l.b16 %v10390
  %v10587 = vunpack.c.l.b16 %v10391
  %v10588 = vunpack.c.l.b16 %v10392
  %v10589 = vunpack.c.l.b16 %v10393
  %v10590 = vunpack.c.l.b16 %v10394
  %v10591 = vunpack.c.l.b16 %v10395
  %v10592 = vunpack.c.l.b16 %v10396
  %v10593 = vunpack.c.l.b16 %v10397
  %v10594 = vunpack.c.l.b16 %v10398
  %v10595 = vunpack.c.l.b16 %v10399
  %v10596 = vunpack.c.l.b16 %v10400
  %v10597 = vunpack.c.l.b16 %v10401
  %v10598 = vunpack.c.l.b16 %v10402
  %v10599 = vunpack.c.l.b16 %v10403
  %v10600 = vunpack.c.l.b16 %v10404
  %v10601 = vunpack.c.l.b16 %v10405
  %v10602 = vunpack.c.l.b16 %v10406
  %v10603 = vunpack.c.l.b16 %v10407
  %v10604 = vunpack.c.l.b16 %v10408
  %v10605 = vunpack.c.l.b16 %v10409
  %v10606 = vunpack.c.l.b16 %v10410
  %v10607 = vunpack.c.l.b16 %v10411
  %v10608 = vunpack.c.l.b16 %v10412
  %v10609 = vunpack.c.l.b16 %v10413
  %v10610 = vunpack.c.l.b16 %v10414
  %v10611 = vunpack.c.l.b16 %v10415
  %v10612 = vunpack.c.l.b16 %v10416
  %v10613 = vunpack.c.l.b16 %v10417
  %v10614 = vunpack.c.l.b16 %v10418
  %v10615 = vunpack.c.l.b16 %v10419
  %v10616 = vunpack.c.l.b16 %v10420
  %v10617 = vunpack.c.l.b16 %v10421
  %v10618 = vunpack.c.l.b16 %v10422
  %v10619 = vunpack.c.l.b16 %v10423
  %v10620 = vunpack.c.l.b16 %v10424
  %v10621 = vunpack.c.l.b16 %v10425
  %v10622 = vunpack.c.l.b16 %v10426
  %v10623 = vunpack.c.l.b16 %v10427
  %v10624 = vunpack.c.l.b16 %v10428
  %v10625 = vunpack.c.l.b16 %v10429
  %v10626 = vunpack.c.l.b16 %v10430
  %v10627 = vunpack.c.l.b16 %v10431
  %v10628 = vunpack.c.l.b16 %v10432
  %v10629 = vunpack.c.l.b16 %v10433
  %v10630 = vunpack.c.l.b16 %v10434
  %v10631 = vunpack.c.l.b16 %v10435
  %v10632 = vunpack.c.l.b16 %v10436
  %v10633 = vunpack.c.l.b16 %v10437
  %v10634 = vunpack.c.l.b16 %v10438
  %v10635 = vunpack.c.l.b16 %v10439
  %v10636 = vunpack.c.l.b16 %v10440
  %v10637 = vunpack.c.l.b16 %v10441
  %v10638 = vunpack.c.l.b16 %v10442
  %v10639 = vunpack.c.l.b16 %v10443
  %v10640 = vunpack.c.l.b16 %v10444
  %v10641 = vunpack.c.l.b16 %v10445
  %v10642 = vunpack.c.l.b16 %v10446
  %v10643 = vunpack.c.l.b16 %v10447
  %v10644 = vunpack.c.l.b16 %v10448
  %v10645 = vunpack.c.l.b16 %v10449
  %v10646 = vunpack.c.l.b16 %v10450
  %v10647 = vunpack.c.l.b16 %v10451
  %v10648 = vunpack.c.l.b16 %v10452
  %v10649 = vunpack.c.l.b16 %v10453
  %v10650 = vunpack.c.l.b16 %v10454
  %v10651 = vunpack.c.l.b16 %v10455
  %v10652 = vunpack.c.l.b16 %v10456
  %v10653 = vunpack.c.l.b16 %v10457
  %v10654 = vunpack.c.l.b16 %v10458
  %v10655 = vunpack.c.l.b16 %v10459
  %v10656 = vunpack.c.l.b16 %v10460
  %v10657 = vunpack.c.l.b16 %v10461
  %v10658 = vunpack.c.l.b16 %v10462
  %v10659 = vpack.c.b16 %v10564, %v10563
  %v10660 = vpack.c.b16 %v10566, %v10565
  %v10661 = vpack.c.b16 %v10568, %v10567
  %v10662 = vpack.c.b16 %v10570, %v10569
  %v10663 = vpack.c.b16 %v10572, %v10571
  %v10664 = vpack.c.b16 %v10574, %v10573
  %v10665 = vpack.c.b16 %v10576, %v10575
  %v10666 = vpack.c.b16 %v10578, %v10577
  %v10667 = vpack.c.b16 %v10580, %v10579
  %v10668 = vpack.c.b16 %v10582, %v10581
  %v10669 = vpack.c.b16 %v10584, %v10583
  %v10670 = vpack.c.b16 %v10586, %v10585
  %v10671 = vpack.c.b16 %v10588, %v10587
  %v10672 = vpack.c.b16 %v10590, %v10589
  %v10673 = vpack.c.b16 %v10592, %v10591
  %v10674 = vpack.c.b16 %v10594, %v10593
  %v10675 = vpack.c.b16 %v10596, %v10595
  %v10676 = vpack.c.b16 %v10598, %v10597
  %v10677 = vpack.c.b16 %v10600, %v10599
  %v10678 = vpack.c.b16 %v10602, %v10601
  %v10679 = vpack.c.b16 %v10604, %v10603
  %v10680 = vpack.c.b16 %v10606, %v10605
  %v10681 = vpack.c.b16 %v10608, %v10607
  %v10682 = vpack.c.b16 %v10610, %v10609
  %v10683 = vpack.c.b16 %v10612, %v10611
  %v10684 = vpack.c.b16 %v10614, %v10613
  %v10685 = vpack.c.b16 %v10616, %v10615
  %v10686 = vpack.c.b16 %v10618, %v10617
  %v10687 = vpack.c.b16 %v10620, %v10619
  %v10688 = vpack.c.b16 %v10622, %v10621
  %v10689 = vpack.c.b16 %v10624, %v10623
  %v10690 = vpack.c.b16 %v10626, %v10625
  %v10691 = vpack.c.b16 %v10628, %v10627
  %v10692 = vpack.c.b16 %v10630, %v10629
  %v10693 = vpack.c.b16 %v10632, %v10631
  %v10694 = vpack.c.b16 %v10634, %v10633
  %v10695 = vpack.c.b16 %v10636, %v10635
  %v10696 = vpack.c.b16 %v10638, %v10637
  %v10697 = vpack.c.b16 %v10640, %v10639
  %v10698 = vpack.c.b16 %v10642, %v10641
  %v10699 = vpack.c.b16 %v10644, %v10643
  %v10700 = vpack.c.b16 %v10646, %v10645
  %v10701 = vpack.c.b16 %v10648, %v10647
  %v10702 = vpack.c.b16 %v10650, %v10649
  %v10703 = vpack.c.b16 %v10652, %v10651
  %v10704 = vpack.c.b16 %v10654, %v10653
  %v10705 = vpack.c.b16 %v10656, %v10655
  %v10706 = vpack.c.b16 %v10658, %v10657
  %10755 = vmatpush.bf16.msra.mxu0 %v10666
  %10756 = vmatpush.bf16.msra.mxu0 %v10665
  %10757 = vmatpush.bf16.msra.mxu0 %v10664
  %10758 = vmatpush.bf16.msra.mxu0 %v10663
  %10759 = vmatpush.bf16.msra.mxu0 %v10662
  %10760 = vmatpush.bf16.msra.mxu0 %v10661
  %10761 = vmatpush.bf16.msra.mxu0 %v10660
  %10762 = vmatpush.bf16.msra.mxu0 %v10659
  %10763 = vmatmul.bf16.gmra.mxu0 %v10361
  %v10764 = vpop.f32.mrf.mxu0
  %v10765 = vadd.f32 %v10465, %v10764
  %v10766 = vpop.f32.mrf.mxu0
  %v10767 = vadd.f32 %v10465, %v10766
  %10768 = vdwg.mxu0
  %10769 = vmatpush.bf16.msra.mxu0 %v10674
  %10770 = vmatpush.bf16.msra.mxu0 %v10673
  %10771 = vmatpush.bf16.msra.mxu0 %v10672
  %10772 = vmatpush.bf16.msra.mxu0 %v10671
  %10773 = vmatpush.bf16.msra.mxu0 %v10670
  %10774 = vmatpush.bf16.msra.mxu0 %v10669
  %10775 = vmatpush.bf16.msra.mxu0 %v10668
  %10776 = vmatpush.bf16.msra.mxu0 %v10667
  %10777 = vmatmul.bf16.gmra.mxu0 %v10362
  %v10778 = vpop.f32.mrf.mxu0
  %v10779 = vadd.f32 %v10765, %v10778
  %v10780 = vpop.f32.mrf.mxu0
  %v10781 = vadd.f32 %v10767, %v10780
  %10782 = vdwg.mxu0
  %10783 = vmatpush.bf16.msra.mxu0 %v10682
  %10784 = vmatpush.bf16.msra.mxu0 %v10681
  %10785 = vmatpush.bf16.msra.mxu0 %v10680
  %10786 = vmatpush.bf16.msra.mxu0 %v10679
  %10787 = vmatpush.bf16.msra.mxu0 %v10678
  %10788 = vmatpush.bf16.msra.mxu0 %v10677
  %10789 = vmatpush.bf16.msra.mxu0 %v10676
  %10790 = vmatpush.bf16.msra.mxu0 %v10675
  %10791 = vmatmul.bf16.gmra.mxu0 %v10363
  %v10792 = vpop.f32.mrf.mxu0
  %v10793 = vadd.f32 %v10779, %v10792
  %v10794 = vpop.f32.mrf.mxu0
  %v10795 = vadd.f32 %v10781, %v10794
  %10796 = vdwg.mxu0
  %10797 = vmatpush.bf16.msra.mxu0 %v10690
  %10798 = vmatpush.bf16.msra.mxu0 %v10689
  %10799 = vmatpush.bf16.msra.mxu0 %v10688
  %10800 = vmatpush.bf16.msra.mxu0 %v10687
  %10801 = vmatpush.bf16.msra.mxu0 %v10686
  %10802 = vmatpush.bf16.msra.mxu0 %v10685
  %10803 = vmatpush.bf16.msra.mxu0 %v10684
  %10804 = vmatpush.bf16.msra.mxu0 %v10683
  %10805 = vmatmul.bf16.gmra.mxu0 %v10364
  %v10806 = vpop.f32.mrf.mxu0
  %v10807 = vadd.f32 %v10793, %v10806
  %v10808 = vpop.f32.mrf.mxu0
  %v10809 = vadd.f32 %v10795, %v10808
  %10810 = vdwg.mxu0
  %10811 = vmatpush.bf16.msra.mxu0 %v10698
  %10812 = vmatpush.bf16.msra.mxu0 %v10697
  %10813 = vmatpush.bf16.msra.mxu0 %v10696
  %10814 = vmatpush.bf16.msra.mxu0 %v10695
  %10815 = vmatpush.bf16.msra.mxu0 %v10694
  %10816 = vmatpush.bf16.msra.mxu0 %v10693
  %10817 = vmatpush.bf16.msra.mxu0 %v10692
  %10818 = vmatpush.bf16.msra.mxu0 %v10691
  %10819 = vmatmul.bf16.gmra.mxu0 %v10365
  %v10820 = vpop.f32.mrf.mxu0
  %v10821 = vadd.f32 %v10807, %v10820
  %v10822 = vpop.f32.mrf.mxu0
  %v10823 = vadd.f32 %v10809, %v10822
  %10824 = vdwg.mxu0
  %10825 = vmatpush.bf16.msra.mxu0 %v10706
  %10826 = vmatpush.bf16.msra.mxu0 %v10705
  %10827 = vmatpush.bf16.msra.mxu0 %v10704
  %10828 = vmatpush.bf16.msra.mxu0 %v10703
  %10829 = vmatpush.bf16.msra.mxu0 %v10702
  %10830 = vmatpush.bf16.msra.mxu0 %v10701
  %10831 = vmatpush.bf16.msra.mxu0 %v10700
  %10832 = vmatpush.bf16.msra.mxu0 %v10699
  %10833 = vmatmul.bf16.gmra.mxu0 %v10366
  %v10834 = vpop.f32.mrf.mxu0
  %v10835 = vadd.f32 %v10821, %v10834
  %v10836 = vpop.f32.mrf.mxu0
  %v10837 = vadd.f32 %v10823, %v10836
  %10838 = vdwg.mxu0
  %10839 = vst [vmem:[%s7] sm:$0xff] %v10835
  %10840 = vst [vmem:[%s7 + $0x8] sm:$0xff] %v10837
  // Predicated region
  $region30: #{inception_aux_forward.1} parent=0 // pred_check
    _
  $region31: #{inception_aux_forward.1} parent=0 // pred_check_branch
    %10842 = sbr.rel (0) target = $region33
  $region32: #{inception_aux_forward.1} parent=0 // pred_region
    _
  $region33: #{inception_aux_forward.1} parent=0 // pred_fallthru
    _
  // Predicated region
  $region34: #{inception_aux_forward.1} parent=0 // pred_check
    _
  $region35: #{inception_aux_forward.1} parent=0 // pred_check_branch
    %10844 = sbr.rel (0) target = $region37
  $region36: #{inception_aux_forward.1} parent=0 // pred_region
    _
  $region37: #{inception_aux_forward.1} parent=0 // pred_fallthru
    _

</llo_original>
